<compile_context>
chip_gen: v7x
topology: tpu7x:2x2x1
jax: 0.10.0
libtpu: 0.0.40
codegen_flags: <defaults>
</compile_context>

<pallas_src>
import functools

import jax
import jax.numpy as jnp
from jax.experimental import pallas as pl
from jax.experimental.pallas import tpu as pltpu

EPS = 1e-5
# Above the 16/32 MiB scoped defaults (needed for the resident merge slab and
# 512-wide tiles at production sizes), below v7x's 64 MiB physical VMEM.
_VMEM_LIMIT = 48 * 1024 * 1024


def _pick_tile(total, target):
    """Largest multiple-of-8 divisor of `total` that is <= target (else total)."""
    if total <= target:
        return total
    best = total
    t = 8
    while t <= target:
        if total % t == 0:
            best = t
        t += 8
    # TODO(synk): pad odd spatial extents instead of falling back to the full
    # extent (the fallback re-creates the whole-slab VMEM problem at odd sizes).
    return best


def _pick_rows(h, w, target_rows):
    """Largest divisor tr of h with tr <= target_rows and (tr*w) % 8 == 0."""
    best = None
    for tr in range(1, max(1, min(h, target_rows)) + 1):
        if h % tr == 0 and (tr * w) % 8 == 0:
            best = tr
    return best if best is not None else h


# ----------------------------------------------------------------------------
# Kernel 1a: content projection — (x - mean) * rstd then 1x1 conv (bf16 MXU).
# Tiled over the spatial axis; stats arrive as (1, 1, C) blocks.
# ----------------------------------------------------------------------------
def content_proj_kernel(x_ref, mean_ref, rstd_ref, w_ref, b_ref, f_ref):
    x = x_ref[0]                                            # (tp, C) fp32
    nx = ((x - mean_ref[0]) * rstd_ref[0]).astype(jnp.bfloat16)
    f_ref[0] = (jnp.dot(nx, w_ref[...], preferred_element_type=jnp.float32)
                + b_ref[...]).astype(jnp.bfloat16)


# ----------------------------------------------------------------------------
# Kernel 1b: style projection — g (normalized) and h (raw) from one style read.
# ----------------------------------------------------------------------------
def style_proj_kernel(x_ref, mean_ref, rstd_ref, wg_ref, bg_ref, wh_ref, bh_ref,
                      g_ref, h_ref):
    x = x_ref[0]                                            # (tp, C) fp32
    nx = ((x - mean_ref[0]) * rstd_ref[0]).astype(jnp.bfloat16)
    g_ref[0] = (jnp.dot(nx, wg_ref[...], preferred_element_type=jnp.float32)
                + bg_ref[...]).astype(jnp.bfloat16)
    h_ref[0] = (jnp.dot(x.astype(jnp.bfloat16), wh_ref[...],
                        preferred_element_type=jnp.float32)
                + bh_ref[...]).astype(jnp.bfloat16)


# ----------------------------------------------------------------------------
# Kernel 2: flash-style SANet attention + out_conv + residual.
# Grid (N, HWc/tq, HWs/tk); online-softmax scratch (m, l, acc) in VMEM.
# ----------------------------------------------------------------------------
def sanet_attn_kernel(c_ref, f_ref, g_ref, h_ref, wo_ref, bo_ref, out_ref,
                      m_sc, l_sc, acc_sc, *, exp_dtype):
    ki = pl.program_id(2)

    @pl.when(ki == 0)
    def _():
        m_sc[...] = jnp.full_like(m_sc, -jnp.inf)
        l_sc[...] = jnp.zeros_like(l_sc)
        acc_sc[...] = jnp.zeros_like(acc_sc)

    f = f_ref[0]                                            # (tq, C) bf16
    g = g_ref[0]                                            # (tk, C) bf16
    # S block = F G^T: contract the C (minor) axis of both operands on the MXU
    # ("nt" matmul form) — no materialized transpose of G.
    s = jax.lax.dot_general(f, g, (((1,), (1,)), ((), ())),
                            preferred_element_type=jnp.float32)   # (tq, tk)

    m_prev = m_sc[...]
    m_new = jnp.maximum(m_prev, jnp.max(s, axis=-1, keepdims=True))
    alpha = jnp.exp(m_prev - m_new)
    # exp in bf16 on v6e/v7x keeps the EUP off the critical path; fp32 on v5e.
    p = jnp.exp((s - m_new).astype(exp_dtype))
    l_sc[...] = alpha * l_sc[...] + jnp.sum(p.astype(jnp.float32), axis=-1,
                                            keepdims=True)
    acc_sc[...] = alpha * acc_sc[...] + jnp.dot(
        p.astype(jnp.bfloat16), h_ref[0], preferred_element_type=jnp.float32)
    m_sc[...] = m_new

    @pl.when(ki == pl.num_programs(2) - 1)
    def _():
        # Deferred softmax normalization: one approx EUP reciprocal per q tile.
        o = acc_sc[...] * pl.reciprocal(l_sc[...], approx=True)
        o = jnp.dot(o.astype(jnp.bfloat16), wo_ref[...],
                    preferred_element_type=jnp.float32) + bo_ref[...]
        out_ref[0] = o + c_ref[0]                           # residual (fp32)


def sanet(content_flat, style_flat, p, *, tp=512, tq=512, tk=512):
    """content_flat: (N, HWc, C), style_flat: (N, HWs, C) -> (N, HWc, C) fp32.

    `p` holds pre-transposed bf16 weights (C_in, C_out) and fp32 (1, C) biases.
    """
    N, HWc, C = content_flat.shape
    _, HWs, _ = style_flat.shape
    tp_c = _pick_tile(HWc, tp)
    tp_s = _pick_tile(HWs, tp)
    tq = _pick_tile(HWc, tq)
    tk = _pick_tile(HWs, tk)

    # Per-(batch,channel) MVN stats — tiny XLA reduction, two-pass (centered)
    # variance, unbiased (ddof=1) to match torch .var(dim=2).
    def _stats(x):
        mean = jnp.mean(x, axis=1, keepdims=True)
        var = jnp.var(x, axis=1, ddof=1, keepdims=True)
        return mean, jax.lax.rsqrt(var + EPS)

    mean_c, rstd_c = _stats(content_flat)
    mean_s, rstd_s = _stats(style_flat)

    wspec = pl.BlockSpec((C, C), lambda n, i: (0, 0))
    bspec = pl.BlockSpec((1, C), lambda n, i: (0, 0))
    stat_spec = pl.BlockSpec((1, 1, C), lambda n, i: (n, 0, 0))
    row_c = pl.BlockSpec((1, tp_c, C), lambda n, i: (n, i, 0))
    row_s = pl.BlockSpec((1, tp_s, C), lambda n, i: (n, i, 0))
    cparams2 = pltpu.CompilerParams(
        dimension_semantics=("parallel", "parallel"),
        vmem_limit_bytes=_VMEM_LIMIT)

    f = pl.pallas_call(
        content_proj_kernel,
        out_shape=jax.ShapeDtypeStruct((N, HWc, C), jnp.bfloat16),
        grid=(N, HWc // tp_c),
        in_specs=[row_c, stat_spec, stat_spec, wspec, bspec],
        out_specs=row_c,
        compiler_params=cparams2,
    )(content_flat, mean_c, rstd_c, p["wf"], p["bf"])

    g, h = pl.pallas_call(
        style_proj_kernel,
        out_shape=(jax.ShapeDtypeStruct((N, HWs, C), jnp.bfloat16),
                   jax.ShapeDtypeStruct((N, HWs, C), jnp.bfloat16)),
        grid=(N, HWs // tp_s),
        in_specs=[row_s, stat_spec, stat_spec, wspec, bspec, wspec, bspec],
        out_specs=(row_s, row_s),
        compiler_params=cparams2,
    )(style_flat, mean_s, rstd_s, p["wg"], p["bg"], p["wh"], p["bh"])

    # bf16 exp only where the EUP has a bf16 path (v6e / v7x); fp32 otherwise.
    kind = jax.devices()[0].device_kind.lower()
    exp_dtype = jnp.bfloat16 if ("v6" in kind or "v7" in kind) else jnp.float32

    q_spec = pl.BlockSpec((1, tq, C), lambda n, qi, ki: (n, qi, 0))
    kv_spec = pl.BlockSpec((1, tk, C), lambda n, qi, ki: (n, ki, 0))
    # NOTE: bump kv_spec to pipeline_mode=pl.Buffered(3) only if a trace shows
    # exposed DMA at tk=512.
    return pl.pallas_call(
        functools.partial(sanet_attn_kernel, exp_dtype=exp_dtype),
        out_shape=jax.ShapeDtypeStruct((N, HWc, C), jnp.float32),
        grid=(N, HWc // tq, HWs // tk),
        in_specs=[q_spec,                                    # content residual
                  q_spec,                                    # F (bf16)
                  kv_spec,                                   # G (bf16)
                  kv_spec,                                   # H (bf16)
                  pl.BlockSpec((C, C), lambda n, qi, ki: (0, 0)),   # wo (bf16)
                  pl.BlockSpec((1, C), lambda n, qi, ki: (0, 0))],  # bo (fp32)
        out_specs=q_spec,
        scratch_shapes=[pltpu.VMEM((tq, 1), jnp.float32),    # m
                        pltpu.VMEM((tq, 1), jnp.float32),    # l
                        pltpu.VMEM((tq, C), jnp.float32)],   # acc
        compiler_params=pltpu.CompilerParams(
            dimension_semantics=("parallel", "parallel", "arbitrary"),
            vmem_limit_bytes=_VMEM_LIMIT),
    )(content_flat, f, g, h, p["wo"], p["bo"])


# ----------------------------------------------------------------------------
# Kernel 3: fused reflection-pad 3x3 merge conv.  Input is the dx-folded bf16
# slab (1, (H+2)*W, 3C) kept resident per batch; each output row tile
# accumulates the three dy taps as aligned (tr*W, 3C) @ (3C, C) matmuls.
# ----------------------------------------------------------------------------
def merge_conv_kernel(x_ref, w_ref, b_ref, out_ref, *, w_cols):
    i = pl.program_id(1)
    trw = out_ref.shape[1]                                  # tr * W
    acc = jnp.zeros(out_ref.shape[1:], jnp.float32)         # (trw, C)
    for dy in range(3):
        start = i * trw + dy * w_cols
        if w_cols % 8 == 0:
            start = pl.multiple_of(start, 8)
        x = x_ref[0, pl.ds(start, trw), :]                  # (trw, 3C) bf16
        acc = acc + jnp.dot(x, w_ref[dy], preferred_element_type=jnp.float32)
    out_ref[0] = acc + b_ref[...]


def merge_conv(merged, w_taps, b, *, target_rows=512):
    """merged: (N, H, W, C) fp32 NHWC; w_taps: (3, 3C, C) bf16; b: (1, C)."""
    N, H, W, C = merged.shape
    padded = jnp.pad(merged.astype(jnp.bfloat16),
                     ((0, 0), (1, 1), (1, 1), (0, 0)), mode="reflect")
    # Fold only the dx taps into channels (3x bf16 blow-up instead of the 9x
    # fp32 im2col); dy taps are handled inside the kernel via row slices.
    xfold = jnp.concatenate([padded[:, :, dx:dx + W, :] for dx in range(3)],
                            axis=-1)                         # (N, H+2, W, 3C)
    xflat = xfold.reshape(N, (H + 2) * W, 3 * C)
    tr = _pick_rows(H, W, max(1, target_rows // max(W, 1)))
    out = pl.pallas_call(
        functools.partial(merge_conv_kernel, w_cols=W),
        out_shape=jax.ShapeDtypeStruct((N, H * W, C), jnp.float32),
        grid=(N, H // tr),
        in_specs=[pl.BlockSpec((1, (H + 2) * W, 3 * C), lambda n, i: (n, 0, 0)),
                  pl.BlockSpec((3, 3 * C, C), lambda n, i: (0, 0, 0)),
                  pl.BlockSpec((1, C), lambda n, i: (0, 0))],
        out_specs=pl.BlockSpec((1, tr * W, C), lambda n, i: (n, i, 0)),
        compiler_params=pltpu.CompilerParams(
            dimension_semantics=("parallel", "parallel"),
            vmem_limit_bytes=_VMEM_LIMIT),
    )(xflat, w_taps, b)
    return out.reshape(N, H, W, C)


# ----------------------------------------------------------------------------
# Host-side weight prep + full Transform forward.  Remaining glue (NCHW<->NHWC,
# nearest x2 upsample, reflect pad + dx fold, MVN stats) is pure data movement
# left to XLA.
# ----------------------------------------------------------------------------
def _prep_sanet_params(p):
    # (C_out, C_in) -> (C_in, C_out), pre-cast to bf16 once on the host.
    t = lambda w: jnp.asarray(w).T.astype(jnp.bfloat16)
    return dict(wf=t(p["wf"]), bf=p["bf"], wg=t(p["wg"]), bg=p["bg"],
                wh=t(p["wh"]), bh=p["bh"], wo=t(p["wo"]), bo=p["bo"])


def _prep_merge_weights(w):
    """(9, C_out, C_in) tap-major (k=dy*3+dx) -> (3, 3*C_in, C_out) bf16,
    matching the dx-folded channel order of the merge-conv input slab."""
    taps = []
    for dy in range(3):
        rows = [w[dy * 3 + dx].T for dx in range(3)]         # (C_in, C_out)
        taps.append(jnp.concatenate(rows, axis=0))           # (3*C_in, C_out)
    return jnp.stack(taps, axis=0).astype(jnp.bfloat16)


def transform_forward(params, content4, style4, content5, style5,
                      content_val, style_val, *,
                      proj_tile=512, attn_tile=512, merge_rows_target=512):
    to_nhwc = lambda x: jnp.transpose(x, (0, 2, 3, 1)).astype(jnp.float32)
    c4 = to_nhwc(content4) * (content_val * 1.2)
    s4 = to_nhwc(style4) * (style_val * 0.5)
    c5 = to_nhwc(content5) * (content_val * 0.01)
    s5 = to_nhwc(style5) * (style_val * 0.5)

    N, H4, W4, C = c4.shape
    _, H4s, W4s, _ = s4.shape
    _, H5, W5, _ = c5.shape
    _, H5s, W5s, _ = s5.shape

    o4 = sanet(c4.reshape(N, H4 * W4, C), s4.reshape(N, H4s * W4s, C),
               _prep_sanet_params(params["sanet4"]),
               tp=proj_tile, tq=attn_tile, tk=attn_tile)
    o5 = sanet(c5.reshape(N, H5 * W5, C), s5.reshape(N, H5s * W5s, C),
               _prep_sanet_params(params["sanet5"]),
               tp=proj_tile, tq=attn_tile, tk=attn_tile)
    o4 = o4.reshape(N, H4, W4, C)
    o5 = o5.reshape(N, H5, W5, C)

    # nearest-neighbor x2 upsample + add (XLA glue)
    o5_up = jnp.repeat(jnp.repeat(o5, 2, axis=1), 2, axis=2)
    merged = o4 + o5_up

    w_taps = _prep_merge_weights(params["w_merge"])
    out = merge_conv(merged, w_taps, params["b_merge"],
                     target_rows=merge_rows_target)
    return jnp.transpose(out, (0, 3, 1, 2))                  # back to NCHW


# ----------------------------------------------------------------------------
# Pure-JAX reference (mirrors the PyTorch NCHW math) for verification.
# ----------------------------------------------------------------------------
def _ref_mvn(x):
    N, C = x.shape[:2]
    flat = x.reshape(N, C, -1)
    mean = flat.mean(axis=2)
    std = jnp.sqrt(flat.var(axis=2, ddof=1) + EPS)
    return (x - mean[:, :, None, None]) / std[:, :, None, None]


def _ref_conv1x1(x, w, b):
    return jnp.einsum("nchw,oc->nohw", x, w, precision="highest") + b[None, :, None, None]


def _ref_sanet(content, style, p):
    Fm = _ref_conv1x1(_ref_mvn(content), p["wf"], p["bf"][0])
    Gm = _ref_conv1x1(_ref_mvn(style), p["wg"], p["bg"][0])
    Hm = _ref_conv1x1(style, p["wh"], p["bh"][0])
    b, c, h, w = Fm.shape
    Ff = Fm.reshape(b, c, h * w).transpose(0, 2, 1)
    bs, cs, hs, ws = Gm.shape
    Gf = Gm.reshape(bs, cs, hs * ws)
    S = jnp.einsum("bpc,bcq->bpq", Ff, Gf, precision="highest")
    S = jax.nn.softmax(S, axis=-1)
    Hf = Hm.reshape(bs, cs, hs * ws)
    O = jnp.einsum("bcq,bpq->bcp", Hf, S, precision="highest").reshape(b, c, h, w)
    return _ref_conv1x1(O, p["wo"], p["bo"][0]) + content


def _ref_transform(params, c4, s4, c5, s5, cv, sv):
    a = _ref_sanet(cv * 1.2 * c4, sv * 0.5 * s4, params["sanet4"])
    b = _ref_sanet(cv * 0.01 * c5, sv * 0.5 * s5, params["sanet5"])
    b_up = jnp.repeat(jnp.repeat(b, 2, axis=2), 2, axis=3)
    merged = a + b_up
    padded = jnp.pad(merged, ((0, 0), (0, 0), (1, 1), (1, 1)), mode="reflect")
    C = a.shape[1]
    w = jnp.transpose(params["w_merge"].reshape(3, 3, C, C), (2, 3, 0, 1))  # OIHW
    out = jax.lax.conv_general_dilated(
        padded, w, window_strides=(1, 1), padding="VALID",
        dimension_numbers=("NCHW", "OIHW", "NCHW"),
        precision=jax.lax.Precision.HIGHEST)
    return out + params["b_merge"][0][None, :, None, None]


# ----------------------------------------------------------------------------
# Deterministic parameter init (synthetic weights, PyTorch shapes squeezed).
# ----------------------------------------------------------------------------
def init_sanet_params(key, C):
    ks = jax.random.split(key, 8)
    w = lambda k: 0.1 * jax.random.normal(k, (C, C), jnp.float32)
    b = lambda k: 0.1 * jax.random.normal(k, (1, C), jnp.float32)
    return dict(wf=w(ks[0]), bf=b(ks[1]), wg=w(ks[2]), bg=b(ks[3]),
                wh=w(ks[4]), bh=b(ks[5]), wo=w(ks[6]), bo=b(ks[7]))


def init_params(key, C):
    k1, k2, k3, k4 = jax.random.split(key, 4)
    return dict(
        sanet4=init_sanet_params(k1, C),
        sanet5=init_sanet_params(k2, C),
        w_merge=0.05 * jax.random.normal(k3, (9, C, C), jnp.float32),
        b_merge=0.05 * jax.random.normal(k4, (1, C), jnp.float32),
    )


if __name__ == "__main__":
    key = jax.random.PRNGKey(0)
    N, C = 2, 32
    H4 = W4 = 16
    H5 = W5 = 8
    content_val, style_val = 1.0, 1.0

    kp, k1, k2, k3, k4 = jax.random.split(key, 5)
    params = init_params(kp, C)
    content4 = jax.random.normal(k1, (N, C, H4, W4), jnp.float32)
    style4 = jax.random.normal(k2, (N, C, H4, W4), jnp.float32)
    content5 = jax.random.normal(k3, (N, C, H5, W5), jnp.float32)
    style5 = jax.random.normal(k4, (N, C, H5, W5), jnp.float32)

    # Small tiles at toy sizes so multi-step online-softmax, multi-tile
    # projection and multi-row merge paths are all exercised; production
    # defaults (512) are used when no overrides are passed.
    fwd = jax.jit(functools.partial(transform_forward,
                                    content_val=content_val,
                                    style_val=style_val,
                                    proj_tile=128, attn_tile=64,
                                    merge_rows_target=128))
    out = jax.block_until_ready(fwd(params, content4, style4, content5, style5))

    ref = jax.block_until_ready(
        _ref_transform(params, content4, style4, content5, style5,
                       content_val, style_val))

    assert out.shape == (N, C, H4, W4)
    assert bool(jnp.all(jnp.isfinite(out)))
    max_diff = float(jnp.max(jnp.abs(out - ref)))
    assert max_diff < 5e-2, f"mismatch vs reference: {max_diff}"

    print("KERNEL_OK")
</pallas_src>

<mosaic_0001>
module attributes {stable_mosaic.version = 11 : i64} {
  func.func @style_proj_kernel(%arg0: i32, %arg1: i32, %arg2: memref<1x128x32xf32, #tpu.memory_space<vmem>>, %arg3: memref<1x1x32xf32, #tpu.memory_space<vmem>>, %arg4: memref<1x1x32xf32, #tpu.memory_space<vmem>>, %arg5: memref<32x32xbf16, #tpu.memory_space<vmem>>, %arg6: memref<1x32xf32, #tpu.memory_space<vmem>>, %arg7: memref<32x32xbf16, #tpu.memory_space<vmem>>, %arg8: memref<1x32xf32, #tpu.memory_space<vmem>>, %arg9: memref<1x128x32xbf16, #tpu.memory_space<vmem>>, %arg10: memref<1x128x32xbf16, #tpu.memory_space<vmem>>) attributes {dimension_semantics = [#tpu.dimension_semantics<parallel>, #tpu.dimension_semantics<parallel>], iteration_bounds = array<i64: 2, 2>, scalar_prefetch = 0 : i64, scratch_operands = 0 : i64, tpu.core_type = #tpu.core_type<tc>, window_params = [{transform_indices = @transform_0, window_bounds = array<i64: 1, 128, 32>}, {transform_indices = @transform_1, window_bounds = array<i64: 1, 1, 32>}, {transform_indices = @transform_2, window_bounds = array<i64: 1, 1, 32>}, {pipeline_mode = #tpu.pipeline_mode<synchronous>, transform_indices = @transform_3, window_bounds = array<i64: 32, 32>}, {pipeline_mode = #tpu.pipeline_mode<synchronous>, transform_indices = @transform_4, window_bounds = array<i64: 1, 32>}, {pipeline_mode = #tpu.pipeline_mode<synchronous>, transform_indices = @transform_5, window_bounds = array<i64: 32, 32>}, {pipeline_mode = #tpu.pipeline_mode<synchronous>, transform_indices = @transform_6, window_bounds = array<i64: 1, 32>}, {transform_indices = @transform_7, window_bounds = array<i64: 1, 128, 32>}, {transform_indices = @transform_8, window_bounds = array<i64: 1, 128, 32>}]} {
    %c0 = arith.constant 0 : index
    %c0_0 = arith.constant 0 : index
    %c0_1 = arith.constant 0 : index
    %0 = vector.load %arg2[%c0, %c0_0, %c0_1] : memref<1x128x32xf32, #tpu.memory_space<vmem>>, vector<1x128x32xf32>
    %1 = vector.shape_cast %0 : vector<1x128x32xf32> to vector<128x32xf32>
    %c0_2 = arith.constant 0 : index
    %c0_3 = arith.constant 0 : index
    %c0_4 = arith.constant 0 : index
    %2 = vector.load %arg3[%c0_2, %c0_3, %c0_4] : memref<1x1x32xf32, #tpu.memory_space<vmem>>, vector<1x1x32xf32>
    %3 = vector.shape_cast %2 : vector<1x1x32xf32> to vector<1x32xf32>
    %4 = vector.broadcast %3 : vector<1x32xf32> to vector<128x32xf32>
    %5 = arith.subf %1, %4 : vector<128x32xf32>
    %c0_5 = arith.constant 0 : index
    %c0_6 = arith.constant 0 : index
    %c0_7 = arith.constant 0 : index
    %6 = vector.load %arg4[%c0_5, %c0_6, %c0_7] : memref<1x1x32xf32, #tpu.memory_space<vmem>>, vector<1x1x32xf32>
    %7 = vector.shape_cast %6 : vector<1x1x32xf32> to vector<1x32xf32>
    %8 = vector.broadcast %7 : vector<1x32xf32> to vector<128x32xf32>
    %9 = arith.mulf %5, %8 : vector<128x32xf32>
    %10 = arith.truncf %9 : vector<128x32xf32> to vector<128x32xbf16>
    %c0_8 = arith.constant 0 : index
    %c0_9 = arith.constant 0 : index
    %11 = vector.load %arg5[%c0_8, %c0_9] : memref<32x32xbf16, #tpu.memory_space<vmem>>, vector<32x32xbf16>
    %cst = arith.constant dense<0.000000e+00> : vector<128x32xf32>
    %12 = tpu.matmul %10, %11, %cst {dimension_numbers = #tpu.dot_dimension_numbers<[1], [0], [0], [1], [0, 0, 1, 1], [], []>} : vector<128x32xbf16>, vector<32x32xbf16>, vector<128x32xf32> -> vector<128x32xf32>
    %c0_10 = arith.constant 0 : index
    %c0_11 = arith.constant 0 : index
    %13 = vector.load %arg6[%c0_10, %c0_11] : memref<1x32xf32, #tpu.memory_space<vmem>>, vector<1x32xf32>
    %14 = vector.broadcast %13 : vector<1x32xf32> to vector<128x32xf32>
    %15 = arith.addf %12, %14 : vector<128x32xf32>
    %16 = arith.truncf %15 : vector<128x32xf32> to vector<128x32xbf16>
    %c0_12 = arith.constant 0 : index
    %c0_13 = arith.constant 0 : index
    %c0_14 = arith.constant 0 : index
    %17 = vector.load %arg9[%c0_12, %c0_13, %c0_14] : memref<1x128x32xbf16, #tpu.memory_space<vmem>>, vector<1x128x32xbf16>
    %18 = vector.shape_cast %17 : vector<1x128x32xbf16> to vector<128x32xbf16>
    %19 = vector.shape_cast %16 : vector<128x32xbf16> to vector<1x128x32xbf16>
    tpu.vector_store %arg9[%c0_12, %c0_13, %c0_14], %19 {strides = array<i32>} : memref<1x128x32xbf16, #tpu.memory_space<vmem>>, vector<1x128x32xbf16>,
    %20 = arith.truncf %1 : vector<128x32xf32> to vector<128x32xbf16>
    %c0_15 = arith.constant 0 : index
    %c0_16 = arith.constant 0 : index
    %21 = vector.load %arg7[%c0_15, %c0_16] : memref<32x32xbf16, #tpu.memory_space<vmem>>, vector<32x32xbf16>
    %cst_17 = arith.constant dense<0.000000e+00> : vector<128x32xf32>
    %22 = tpu.matmul %20, %21, %cst_17 {dimension_numbers = #tpu.dot_dimension_numbers<[1], [0], [0], [1], [0, 0, 1, 1], [], []>} : vector<128x32xbf16>, vector<32x32xbf16>, vector<128x32xf32> -> vector<128x32xf32>
    %c0_18 = arith.constant 0 : index
    %c0_19 = arith.constant 0 : index
    %23 = vector.load %arg8[%c0_18, %c0_19] : memref<1x32xf32, #tpu.memory_space<vmem>>, vector<1x32xf32>
    %24 = vector.broadcast %23 : vector<1x32xf32> to vector<128x32xf32>
    %25 = arith.addf %22, %24 : vector<128x32xf32>
    %26 = arith.truncf %25 : vector<128x32xf32> to vector<128x32xbf16>
    %c0_20 = arith.constant 0 : index
    %c0_21 = arith.constant 0 : index
    %c0_22 = arith.constant 0 : index
    %27 = vector.load %arg10[%c0_20, %c0_21, %c0_22] : memref<1x128x32xbf16, #tpu.memory_space<vmem>>, vector<1x128x32xbf16>
    %28 = vector.shape_cast %27 : vector<1x128x32xbf16> to vector<128x32xbf16>
    %29 = vector.shape_cast %26 : vector<128x32xbf16> to vector<1x128x32xbf16>
    tpu.vector_store %arg10[%c0_20, %c0_21, %c0_22], %29 {strides = array<i32>} : memref<1x128x32xbf16, #tpu.memory_space<vmem>>, vector<1x128x32xbf16>,
    return
  }
  func.func @transform_0(%arg0: i32, %arg1: i32) -> (i32, i32, i32) {
    %c0_i32 = arith.constant 0 : i32
    %c0_i32_0 = arith.constant 0 : i32
    return %arg0, %arg1, %c0_i32 : i32, i32, i32
  }
  func.func @transform_1(%arg0: i32, %arg1: i32) -> (i32, i32, i32) {
    %c0_i32 = arith.constant 0 : i32
    %c0_i32_0 = arith.constant 0 : i32
    %c0_i32_1 = arith.constant 0 : i32
    return %arg0, %c0_i32, %c0_i32_0 : i32, i32, i32
  }
  func.func @transform_2(%arg0: i32, %arg1: i32) -> (i32, i32, i32) {
    %c0_i32 = arith.constant 0 : i32
    %c0_i32_0 = arith.constant 0 : i32
    %c0_i32_1 = arith.constant 0 : i32
    return %arg0, %c0_i32, %c0_i32_0 : i32, i32, i32
  }
  func.func @transform_3(%arg0: i32, %arg1: i32) -> (i32, i32) {
    %c0_i32 = arith.constant 0 : i32
    %c0_i32_0 = arith.constant 0 : i32
    %c0_i32_1 = arith.constant 0 : i32
    return %c0_i32, %c0_i32_0 : i32, i32
  }
  func.func @transform_4(%arg0: i32, %arg1: i32) -> (i32, i32) {
    %c0_i32 = arith.constant 0 : i32
    %c0_i32_0 = arith.constant 0 : i32
    %c0_i32_1 = arith.constant 0 : i32
    return %c0_i32, %c0_i32_0 : i32, i32
  }
  func.func @transform_5(%arg0: i32, %arg1: i32) -> (i32, i32) {
    %c0_i32 = arith.constant 0 : i32
    %c0_i32_0 = arith.constant 0 : i32
    %c0_i32_1 = arith.constant 0 : i32
    return %c0_i32, %c0_i32_0 : i32, i32
  }
  func.func @transform_6(%arg0: i32, %arg1: i32) -> (i32, i32) {
    %c0_i32 = arith.constant 0 : i32
    %c0_i32_0 = arith.constant 0 : i32
    %c0_i32_1 = arith.constant 0 : i32
    return %c0_i32, %c0_i32_0 : i32, i32
  }
  func.func @transform_7(%arg0: i32, %arg1: i32) -> (i32, i32, i32) {
    %c0_i32 = arith.constant 0 : i32
    %c0_i32_0 = arith.constant 0 : i32
    return %arg0, %arg1, %c0_i32 : i32, i32, i32
  }
  func.func @transform_8(%arg0: i32, %arg1: i32) -> (i32, i32, i32) {
    %c0_i32 = arith.constant 0 : i32
    %c0_i32_0 = arith.constant 0 : i32
    return %arg0, %arg1, %c0_i32 : i32, i32, i32
  }
}

module attributes {stable_mosaic.version = 11 : i64} {
  func.func @content_proj_kernel(%arg0: i32, %arg1: i32, %arg2: memref<1x128x32xf32, #tpu.memory_space<vmem>>, %arg3: memref<1x1x32xf32, #tpu.memory_space<vmem>>, %arg4: memref<1x1x32xf32, #tpu.memory_space<vmem>>, %arg5: memref<32x32xbf16, #tpu.memory_space<vmem>>, %arg6: memref<1x32xf32, #tpu.memory_space<vmem>>, %arg7: memref<1x128x32xbf16, #tpu.memory_space<vmem>>) attributes {dimension_semantics = [#tpu.dimension_semantics<parallel>, #tpu.dimension_semantics<parallel>], iteration_bounds = array<i64: 2, 2>, scalar_prefetch = 0 : i64, scratch_operands = 0 : i64, tpu.core_type = #tpu.core_type<tc>, window_params = [{transform_indices = @transform_0, window_bounds = array<i64: 1, 128, 32>}, {transform_indices = @transform_1, window_bounds = array<i64: 1, 1, 32>}, {transform_indices = @transform_2, window_bounds = array<i64: 1, 1, 32>}, {pipeline_mode = #tpu.pipeline_mode<synchronous>, transform_indices = @transform_3, window_bounds = array<i64: 32, 32>}, {pipeline_mode = #tpu.pipeline_mode<synchronous>, transform_indices = @transform_4, window_bounds = array<i64: 1, 32>}, {transform_indices = @transform_5, window_bounds = array<i64: 1, 128, 32>}]} {
    %c0 = arith.constant 0 : index
    %c0_0 = arith.constant 0 : index
    %c0_1 = arith.constant 0 : index
    %0 = vector.load %arg2[%c0, %c0_0, %c0_1] : memref<1x128x32xf32, #tpu.memory_space<vmem>>, vector<1x128x32xf32>
    %1 = vector.shape_cast %0 : vector<1x128x32xf32> to vector<128x32xf32>
    %c0_2 = arith.constant 0 : index
    %c0_3 = arith.constant 0 : index
    %c0_4 = arith.constant 0 : index
    %2 = vector.load %arg3[%c0_2, %c0_3, %c0_4] : memref<1x1x32xf32, #tpu.memory_space<vmem>>, vector<1x1x32xf32>
    %3 = vector.shape_cast %2 : vector<1x1x32xf32> to vector<1x32xf32>
    %4 = vector.broadcast %3 : vector<1x32xf32> to vector<128x32xf32>
    %5 = arith.subf %1, %4 : vector<128x32xf32>
    %c0_5 = arith.constant 0 : index
    %c0_6 = arith.constant 0 : index
    %c0_7 = arith.constant 0 : index
    %6 = vector.load %arg4[%c0_5, %c0_6, %c0_7] : memref<1x1x32xf32, #tpu.memory_space<vmem>>, vector<1x1x32xf32>
    %7 = vector.shape_cast %6 : vector<1x1x32xf32> to vector<1x32xf32>
    %8 = vector.broadcast %7 : vector<1x32xf32> to vector<128x32xf32>
    %9 = arith.mulf %5, %8 : vector<128x32xf32>
    %10 = arith.truncf %9 : vector<128x32xf32> to vector<128x32xbf16>
    %c0_8 = arith.constant 0 : index
    %c0_9 = arith.constant 0 : index
    %11 = vector.load %arg5[%c0_8, %c0_9] : memref<32x32xbf16, #tpu.memory_space<vmem>>, vector<32x32xbf16>
    %cst = arith.constant dense<0.000000e+00> : vector<128x32xf32>
    %12 = tpu.matmul %10, %11, %cst {dimension_numbers = #tpu.dot_dimension_numbers<[1], [0], [0], [1], [0, 0, 1, 1], [], []>} : vector<128x32xbf16>, vector<32x32xbf16>, vector<128x32xf32> -> vector<128x32xf32>
    %c0_10 = arith.constant 0 : index
    %c0_11 = arith.constant 0 : index
    %13 = vector.load %arg6[%c0_10, %c0_11] : memref<1x32xf32, #tpu.memory_space<vmem>>, vector<1x32xf32>
    %14 = vector.broadcast %13 : vector<1x32xf32> to vector<128x32xf32>
    %15 = arith.addf %12, %14 : vector<128x32xf32>
    %16 = arith.truncf %15 : vector<128x32xf32> to vector<128x32xbf16>
    %c0_12 = arith.constant 0 : index
    %c0_13 = arith.constant 0 : index
    %c0_14 = arith.constant 0 : index
    %17 = vector.load %arg7[%c0_12, %c0_13, %c0_14] : memref<1x128x32xbf16, #tpu.memory_space<vmem>>, vector<1x128x32xbf16>
    %18 = vector.shape_cast %17 : vector<1x128x32xbf16> to vector<128x32xbf16>
    %19 = vector.shape_cast %16 : vector<128x32xbf16> to vector<1x128x32xbf16>
    tpu.vector_store %arg7[%c0_12, %c0_13, %c0_14], %19 {strides = array<i32>} : memref<1x128x32xbf16, #tpu.memory_space<vmem>>, vector<1x128x32xbf16>,
    return
  }
  func.func @transform_0(%arg0: i32, %arg1: i32) -> (i32, i32, i32) {
    %c0_i32 = arith.constant 0 : i32
    %c0_i32_0 = arith.constant 0 : i32
    return %arg0, %arg1, %c0_i32 : i32, i32, i32
  }
  func.func @transform_1(%arg0: i32, %arg1: i32) -> (i32, i32, i32) {
    %c0_i32 = arith.constant 0 : i32
    %c0_i32_0 = arith.constant 0 : i32
    %c0_i32_1 = arith.constant 0 : i32
    return %arg0, %c0_i32, %c0_i32_0 : i32, i32, i32
  }
  func.func @transform_2(%arg0: i32, %arg1: i32) -> (i32, i32, i32) {
    %c0_i32 = arith.constant 0 : i32
    %c0_i32_0 = arith.constant 0 : i32
    %c0_i32_1 = arith.constant 0 : i32
    return %arg0, %c0_i32, %c0_i32_0 : i32, i32, i32
  }
  func.func @transform_3(%arg0: i32, %arg1: i32) -> (i32, i32) {
    %c0_i32 = arith.constant 0 : i32
    %c0_i32_0 = arith.constant 0 : i32
    %c0_i32_1 = arith.constant 0 : i32
    return %c0_i32, %c0_i32_0 : i32, i32
  }
  func.func @transform_4(%arg0: i32, %arg1: i32) -> (i32, i32) {
    %c0_i32 = arith.constant 0 : i32
    %c0_i32_0 = arith.constant 0 : i32
    %c0_i32_1 = arith.constant 0 : i32
    return %c0_i32, %c0_i32_0 : i32, i32
  }
  func.func @transform_5(%arg0: i32, %arg1: i32) -> (i32, i32, i32) {
    %c0_i32 = arith.constant 0 : i32
    %c0_i32_0 = arith.constant 0 : i32
    return %arg0, %arg1, %c0_i32 : i32, i32, i32
  }
}

module attributes {stable_mosaic.version = 11 : i64} {
  func.func @sanet_attn_kernel(%arg0: i32, %arg1: i32, %arg2: i32, %arg3: memref<1x64x32xf32, #tpu.memory_space<vmem>>, %arg4: memref<1x64x32xbf16, #tpu.memory_space<vmem>>, %arg5: memref<1x64x32xbf16, #tpu.memory_space<vmem>>, %arg6: memref<1x64x32xbf16, #tpu.memory_space<vmem>>, %arg7: memref<32x32xbf16, #tpu.memory_space<vmem>>, %arg8: memref<1x32xf32, #tpu.memory_space<vmem>>, %arg9: memref<1x64x32xf32, #tpu.memory_space<vmem>>, %arg10: memref<64x1xf32, #tpu.memory_space<vmem>>, %arg11: memref<64x1xf32, #tpu.memory_space<vmem>>, %arg12: memref<64x32xf32, #tpu.memory_space<vmem>>) attributes {dimension_semantics = [#tpu.dimension_semantics<parallel>, #tpu.dimension_semantics<parallel>, #tpu.dimension_semantics<arbitrary>], iteration_bounds = array<i64: 2, 4, 4>, scalar_prefetch = 0 : i64, scratch_operands = 3 : i64, tpu.core_type = #tpu.core_type<tc>, window_params = [{transform_indices = @transform_0, window_bounds = array<i64: 1, 64, 32>}, {transform_indices = @transform_1, window_bounds = array<i64: 1, 64, 32>}, {transform_indices = @transform_2, window_bounds = array<i64: 1, 64, 32>}, {transform_indices = @transform_3, window_bounds = array<i64: 1, 64, 32>}, {pipeline_mode = #tpu.pipeline_mode<synchronous>, transform_indices = @transform_4, window_bounds = array<i64: 32, 32>}, {pipeline_mode = #tpu.pipeline_mode<synchronous>, transform_indices = @transform_5, window_bounds = array<i64: 1, 32>}, {transform_indices = @transform_6, window_bounds = array<i64: 1, 64, 32>}]} {
    %c0_i32 = arith.constant 0 : i32
    %0 = arith.cmpi eq, %arg2, %c0_i32 : i32
    %1 = arith.extui %0 : i1 to i32
    %c0_i32_0 = arith.constant 0 : i32
    %2 = arith.cmpi ne, %1, %c0_i32_0 : i32
    scf.if %2 {
      %cst_25 = arith.constant 0xFF800000 : f32
      %36 = vector.broadcast %cst_25 : f32 to vector<64x1xf32>
      %c0_26 = arith.constant 0 : index
      %c0_27 = arith.constant 0 : index
      %37 = vector.load %arg10[%c0_26, %c0_27] : memref<64x1xf32, #tpu.memory_space<vmem>>, vector<64x1xf32>
      tpu.vector_store %arg10[%c0_26, %c0_27], %36 {strides = array<i32>} : memref<64x1xf32, #tpu.memory_space<vmem>>, vector<64x1xf32>,
      %cst_28 = arith.constant 0.000000e+00 : f32
      %38 = vector.broadcast %cst_28 : f32 to vector<64x1xf32>
      %c0_29 = arith.constant 0 : index
      %c0_30 = arith.constant 0 : index
      %39 = vector.load %arg11[%c0_29, %c0_30] : memref<64x1xf32, #tpu.memory_space<vmem>>, vector<64x1xf32>
      tpu.vector_store %arg11[%c0_29, %c0_30], %38 {strides = array<i32>} : memref<64x1xf32, #tpu.memory_space<vmem>>, vector<64x1xf32>,
      %cst_31 = arith.constant 0.000000e+00 : f32
      %40 = vector.broadcast %cst_31 : f32 to vector<64x32xf32>
      %c0_32 = arith.constant 0 : index
      %c0_33 = arith.constant 0 : index
      %41 = vector.load %arg12[%c0_32, %c0_33] : memref<64x32xf32, #tpu.memory_space<vmem>>, vector<64x32xf32>
      tpu.vector_store %arg12[%c0_32, %c0_33], %40 {strides = array<i32>} : memref<64x32xf32, #tpu.memory_space<vmem>>, vector<64x32xf32>,
    } else {
    }
    %c0 = arith.constant 0 : index
    %c0_1 = arith.constant 0 : index
    %c0_2 = arith.constant 0 : index
    %3 = vector.load %arg4[%c0, %c0_1, %c0_2] : memref<1x64x32xbf16, #tpu.memory_space<vmem>>, vector<1x64x32xbf16>
    %4 = vector.shape_cast %3 : vector<1x64x32xbf16> to vector<64x32xbf16>
    %c0_3 = arith.constant 0 : index
    %c0_4 = arith.constant 0 : index
    %c0_5 = arith.constant 0 : index
    %5 = vector.load %arg5[%c0_3, %c0_4, %c0_5] : memref<1x64x32xbf16, #tpu.memory_space<vmem>>, vector<1x64x32xbf16>
    %6 = vector.shape_cast %5 : vector<1x64x32xbf16> to vector<64x32xbf16>
    %cst = arith.constant dense<0.000000e+00> : vector<64x64xf32>
    %7 = tpu.matmul %4, %6, %cst {dimension_numbers = #tpu.dot_dimension_numbers<[1], [1], [0], [0], [0, 0, 1, 0], [], []>} : vector<64x32xbf16>, vector<64x32xbf16>, vector<64x64xf32> -> vector<64x64xf32>
    %c0_6 = arith.constant 0 : index
    %c0_7 = arith.constant 0 : index
    %8 = vector.load %arg10[%c0_6, %c0_7] : memref<64x1xf32, #tpu.memory_space<vmem>>, vector<64x1xf32>
    %cst_8 = arith.constant dense<0xFF800000> : vector<64xf32>
    %9 = vector.multi_reduction <maximumf>, %7, %cst_8 [1] : vector<64x64xf32> to vector<64xf32>
    %10 = vector.shape_cast %9 : vector<64xf32> to vector<64x1xf32>
    %11 = arith.maximumf %8, %10 : vector<64x1xf32>
    %12 = arith.subf %8, %11 : vector<64x1xf32>
    %13 = math.exp %12 : vector<64x1xf32>
    %14 = vector.broadcast %11 : vector<64x1xf32> to vector<64x64xf32>
    %15 = arith.subf %7, %14 : vector<64x64xf32>
    %16 = math.exp %15 : vector<64x64xf32>
    %c0_9 = arith.constant 0 : index
    %c0_10 = arith.constant 0 : index
    %17 = vector.load %arg11[%c0_9, %c0_10] : memref<64x1xf32, #tpu.memory_space<vmem>>, vector<64x1xf32>
    %18 = arith.mulf %13, %17 : vector<64x1xf32>
    %cst_11 = arith.constant dense<0.000000e+00> : vector<64xf32>
    %19 = vector.multi_reduction <add>, %16, %cst_11 [1] : vector<64x64xf32> to vector<64xf32>
    %20 = vector.shape_cast %19 : vector<64xf32> to vector<64x1xf32>
    %21 = arith.addf %18, %20 : vector<64x1xf32>
    %c0_12 = arith.constant 0 : index
    %c0_13 = arith.constant 0 : index
    %22 = vector.load %arg11[%c0_12, %c0_13] : memref<64x1xf32, #tpu.memory_space<vmem>>, vector<64x1xf32>
    tpu.vector_store %arg11[%c0_12, %c0_13], %21 {strides = array<i32>} : memref<64x1xf32, #tpu.memory_space<vmem>>, vector<64x1xf32>,
    %c0_14 = arith.constant 0 : index
    %c0_15 = arith.constant 0 : index
    %23 = vector.load %arg12[%c0_14, %c0_15] : memref<64x32xf32, #tpu.memory_space<vmem>>, vector<64x32xf32>
    %24 = vector.broadcast %13 : vector<64x1xf32> to vector<64x32xf32>
    %25 = arith.mulf %24, %23 : vector<64x32xf32>
    %26 = arith.truncf %16 : vector<64x64xf32> to vector<64x64xbf16>
    %c0_16 = arith.constant 0 : index
    %c0_17 = arith.constant 0 : index
    %c0_18 = arith.constant 0 : index
    %27 = vector.load %arg6[%c0_16, %c0_17, %c0_18] : memref<1x64x32xbf16, #tpu.memory_space<vmem>>, vector<1x64x32xbf16>
    %28 = vector.shape_cast %27 : vector<1x64x32xbf16> to vector<64x32xbf16>
    %cst_19 = arith.constant dense<0.000000e+00> : vector<64x32xf32>
    %29 = tpu.matmul %26, %28, %cst_19 {dimension_numbers = #tpu.dot_dimension_numbers<[1], [0], [0], [1], [0, 0, 1, 1], [], []>} : vector<64x64xbf16>, vector<64x32xbf16>, vector<64x32xf32> -> vector<64x32xf32>
    %30 = arith.addf %25, %29 : vector<64x32xf32>
    %c0_20 = arith.constant 0 : index
    %c0_21 = arith.constant 0 : index
    %31 = vector.load %arg12[%c0_20, %c0_21] : memref<64x32xf32, #tpu.memory_space<vmem>>, vector<64x32xf32>
    tpu.vector_store %arg12[%c0_20, %c0_21], %30 {strides = array<i32>} : memref<64x32xf32, #tpu.memory_space<vmem>>, vector<64x32xf32>,
    %c0_22 = arith.constant 0 : index
    %c0_23 = arith.constant 0 : index
    %32 = vector.load %arg10[%c0_22, %c0_23] : memref<64x1xf32, #tpu.memory_space<vmem>>, vector<64x1xf32>
    tpu.vector_store %arg10[%c0_22, %c0_23], %11 {strides = array<i32>} : memref<64x1xf32, #tpu.memory_space<vmem>>, vector<64x1xf32>,
    %c3_i32 = arith.constant 3 : i32
    %33 = arith.cmpi eq, %arg2, %c3_i32 : i32
    %34 = arith.extui %33 : i1 to i32
    %c0_i32_24 = arith.constant 0 : i32
    %35 = arith.cmpi ne, %34, %c0_i32_24 : i32
    scf.if %35 {
      %c0_25 = arith.constant 0 : index
      %c0_26 = arith.constant 0 : index
      %36 = vector.load %arg12[%c0_25, %c0_26] : memref<64x32xf32, #tpu.memory_space<vmem>>, vector<64x32xf32>
      %c0_27 = arith.constant 0 : index
      %c0_28 = arith.constant 0 : index
      %37 = vector.load %arg11[%c0_27, %c0_28] : memref<64x1xf32, #tpu.memory_space<vmem>>, vector<64x1xf32>
      %38 = tpu.reciprocal %37 {approx = true} : vector<64x1xf32> -> vector<64x1xf32>
      %39 = vector.broadcast %38 : vector<64x1xf32> to vector<64x32xf32>
      %40 = arith.mulf %36, %39 : vector<64x32xf32>
      %41 = arith.truncf %40 : vector<64x32xf32> to vector<64x32xbf16>
      %c0_29 = arith.constant 0 : index
      %c0_30 = arith.constant 0 : index
      %42 = vector.load %arg7[%c0_29, %c0_30] : memref<32x32xbf16, #tpu.memory_space<vmem>>, vector<32x32xbf16>
      %cst_31 = arith.constant dense<0.000000e+00> : vector<64x32xf32>
      %43 = tpu.matmul %41, %42, %cst_31 {dimension_numbers = #tpu.dot_dimension_numbers<[1], [0], [0], [1], [0, 0, 1, 1], [], []>} : vector<64x32xbf16>, vector<32x32xbf16>, vector<64x32xf32> -> vector<64x32xf32>
      %c0_32 = arith.constant 0 : index
      %c0_33 = arith.constant 0 : index
      %44 = vector.load %arg8[%c0_32, %c0_33] : memref<1x32xf32, #tpu.memory_space<vmem>>, vector<1x32xf32>
      %45 = vector.broadcast %44 : vector<1x32xf32> to vector<64x32xf32>
      %46 = arith.addf %43, %45 : vector<64x32xf32>
      %c0_34 = arith.constant 0 : index
      %c0_35 = arith.constant 0 : index
      %c0_36 = arith.constant 0 : index
      %47 = vector.load %arg3[%c0_34, %c0_35, %c0_36] : memref<1x64x32xf32, #tpu.memory_space<vmem>>, vector<1x64x32xf32>
      %48 = vector.shape_cast %47 : vector<1x64x32xf32> to vector<64x32xf32>
      %49 = arith.addf %46, %48 : vector<64x32xf32>
      %c0_37 = arith.constant 0 : index
      %c0_38 = arith.constant 0 : index
      %c0_39 = arith.constant 0 : index
      %50 = vector.load %arg9[%c0_37, %c0_38, %c0_39] : memref<1x64x32xf32, #tpu.memory_space<vmem>>, vector<1x64x32xf32>
      %51 = vector.shape_cast %50 : vector<1x64x32xf32> to vector<64x32xf32>
      %52 = vector.shape_cast %49 : vector<64x32xf32> to vector<1x64x32xf32>
      tpu.vector_store %arg9[%c0_37, %c0_38, %c0_39], %52 {strides = array<i32>} : memref<1x64x32xf32, #tpu.memory_space<vmem>>, vector<1x64x32xf32>,
    } else {
    }
    return
  }
  func.func @transform_0(%arg0: i32, %arg1: i32, %arg2: i32) -> (i32, i32, i32) {
    %c0_i32 = arith.constant 0 : i32
    %c0_i32_0 = arith.constant 0 : i32
    return %arg0, %arg1, %c0_i32 : i32, i32, i32
  }
  func.func @transform_1(%arg0: i32, %arg1: i32, %arg2: i32) -> (i32, i32, i32) {
    %c0_i32 = arith.constant 0 : i32
    %c0_i32_0 = arith.constant 0 : i32
    return %arg0, %arg1, %c0_i32 : i32, i32, i32
  }
  func.func @transform_2(%arg0: i32, %arg1: i32, %arg2: i32) -> (i32, i32, i32) {
    %c0_i32 = arith.constant 0 : i32
    %c0_i32_0 = arith.constant 0 : i32
    return %arg0, %arg2, %c0_i32 : i32, i32, i32
  }
  func.func @transform_3(%arg0: i32, %arg1: i32, %arg2: i32) -> (i32, i32, i32) {
    %c0_i32 = arith.constant 0 : i32
    %c0_i32_0 = arith.constant 0 : i32
    return %arg0, %arg2, %c0_i32 : i32, i32, i32
  }
  func.func @transform_4(%arg0: i32, %arg1: i32, %arg2: i32) -> (i32, i32) {
    %c0_i32 = arith.constant 0 : i32
    %c0_i32_0 = arith.constant 0 : i32
    %c0_i32_1 = arith.constant 0 : i32
    return %c0_i32, %c0_i32_0 : i32, i32
  }
  func.func @transform_5(%arg0: i32, %arg1: i32, %arg2: i32) -> (i32, i32) {
    %c0_i32 = arith.constant 0 : i32
    %c0_i32_0 = arith.constant 0 : i32
    %c0_i32_1 = arith.constant 0 : i32
    return %c0_i32, %c0_i32_0 : i32, i32
  }
  func.func @transform_6(%arg0: i32, %arg1: i32, %arg2: i32) -> (i32, i32, i32) {
    %c0_i32 = arith.constant 0 : i32
    %c0_i32_0 = arith.constant 0 : i32
    return %arg0, %arg1, %c0_i32 : i32, i32, i32
  }
}

module attributes {stable_mosaic.version = 11 : i64} {
  func.func @style_proj_kernel(%arg0: i32, %arg1: i32, %arg2: memref<1x64x32xf32, #tpu.memory_space<vmem>>, %arg3: memref<1x1x32xf32, #tpu.memory_space<vmem>>, %arg4: memref<1x1x32xf32, #tpu.memory_space<vmem>>, %arg5: memref<32x32xbf16, #tpu.memory_space<vmem>>, %arg6: memref<1x32xf32, #tpu.memory_space<vmem>>, %arg7: memref<32x32xbf16, #tpu.memory_space<vmem>>, %arg8: memref<1x32xf32, #tpu.memory_space<vmem>>, %arg9: memref<1x64x32xbf16, #tpu.memory_space<vmem>>, %arg10: memref<1x64x32xbf16, #tpu.memory_space<vmem>>) attributes {dimension_semantics = [#tpu.dimension_semantics<parallel>, #tpu.dimension_semantics<parallel>], iteration_bounds = array<i64: 2, 1>, scalar_prefetch = 0 : i64, scratch_operands = 0 : i64, tpu.core_type = #tpu.core_type<tc>, window_params = [{transform_indices = @transform_0, window_bounds = array<i64: 1, 64, 32>}, {transform_indices = @transform_1, window_bounds = array<i64: 1, 1, 32>}, {transform_indices = @transform_2, window_bounds = array<i64: 1, 1, 32>}, {pipeline_mode = #tpu.pipeline_mode<synchronous>, transform_indices = @transform_3, window_bounds = array<i64: 32, 32>}, {pipeline_mode = #tpu.pipeline_mode<synchronous>, transform_indices = @transform_4, window_bounds = array<i64: 1, 32>}, {pipeline_mode = #tpu.pipeline_mode<synchronous>, transform_indices = @transform_5, window_bounds = array<i64: 32, 32>}, {pipeline_mode = #tpu.pipeline_mode<synchronous>, transform_indices = @transform_6, window_bounds = array<i64: 1, 32>}, {transform_indices = @transform_7, window_bounds = array<i64: 1, 64, 32>}, {transform_indices = @transform_8, window_bounds = array<i64: 1, 64, 32>}]} {
    %c0 = arith.constant 0 : index
    %c0_0 = arith.constant 0 : index
    %c0_1 = arith.constant 0 : index
    %0 = vector.load %arg2[%c0, %c0_0, %c0_1] : memref<1x64x32xf32, #tpu.memory_space<vmem>>, vector<1x64x32xf32>
    %1 = vector.shape_cast %0 : vector<1x64x32xf32> to vector<64x32xf32>
    %c0_2 = arith.constant 0 : index
    %c0_3 = arith.constant 0 : index
    %c0_4 = arith.constant 0 : index
    %2 = vector.load %arg3[%c0_2, %c0_3, %c0_4] : memref<1x1x32xf32, #tpu.memory_space<vmem>>, vector<1x1x32xf32>
    %3 = vector.shape_cast %2 : vector<1x1x32xf32> to vector<1x32xf32>
    %4 = vector.broadcast %3 : vector<1x32xf32> to vector<64x32xf32>
    %5 = arith.subf %1, %4 : vector<64x32xf32>
    %c0_5 = arith.constant 0 : index
    %c0_6 = arith.constant 0 : index
    %c0_7 = arith.constant 0 : index
    %6 = vector.load %arg4[%c0_5, %c0_6, %c0_7] : memref<1x1x32xf32, #tpu.memory_space<vmem>>, vector<1x1x32xf32>
    %7 = vector.shape_cast %6 : vector<1x1x32xf32> to vector<1x32xf32>
    %8 = vector.broadcast %7 : vector<1x32xf32> to vector<64x32xf32>
    %9 = arith.mulf %5, %8 : vector<64x32xf32>
    %10 = arith.truncf %9 : vector<64x32xf32> to vector<64x32xbf16>
    %c0_8 = arith.constant 0 : index
    %c0_9 = arith.constant 0 : index
    %11 = vector.load %arg5[%c0_8, %c0_9] : memref<32x32xbf16, #tpu.memory_space<vmem>>, vector<32x32xbf16>
    %cst = arith.constant dense<0.000000e+00> : vector<64x32xf32>
    %12 = tpu.matmul %10, %11, %cst {dimension_numbers = #tpu.dot_dimension_numbers<[1], [0], [0], [1], [0, 0, 1, 1], [], []>} : vector<64x32xbf16>, vector<32x32xbf16>, vector<64x32xf32> -> vector<64x32xf32>
    %c0_10 = arith.constant 0 : index
    %c0_11 = arith.constant 0 : index
    %13 = vector.load %arg6[%c0_10, %c0_11] : memref<1x32xf32, #tpu.memory_space<vmem>>, vector<1x32xf32>
    %14 = vector.broadcast %13 : vector<1x32xf32> to vector<64x32xf32>
    %15 = arith.addf %12, %14 : vector<64x32xf32>
    %16 = arith.truncf %15 : vector<64x32xf32> to vector<64x32xbf16>
    %c0_12 = arith.constant 0 : index
    %c0_13 = arith.constant 0 : index
    %c0_14 = arith.constant 0 : index
    %17 = vector.load %arg9[%c0_12, %c0_13, %c0_14] : memref<1x64x32xbf16, #tpu.memory_space<vmem>>, vector<1x64x32xbf16>
    %18 = vector.shape_cast %17 : vector<1x64x32xbf16> to vector<64x32xbf16>
    %19 = vector.shape_cast %16 : vector<64x32xbf16> to vector<1x64x32xbf16>
    tpu.vector_store %arg9[%c0_12, %c0_13, %c0_14], %19 {strides = array<i32>} : memref<1x64x32xbf16, #tpu.memory_space<vmem>>, vector<1x64x32xbf16>,
    %20 = arith.truncf %1 : vector<64x32xf32> to vector<64x32xbf16>
    %c0_15 = arith.constant 0 : index
    %c0_16 = arith.constant 0 : index
    %21 = vector.load %arg7[%c0_15, %c0_16] : memref<32x32xbf16, #tpu.memory_space<vmem>>, vector<32x32xbf16>
    %cst_17 = arith.constant dense<0.000000e+00> : vector<64x32xf32>
    %22 = tpu.matmul %20, %21, %cst_17 {dimension_numbers = #tpu.dot_dimension_numbers<[1], [0], [0], [1], [0, 0, 1, 1], [], []>} : vector<64x32xbf16>, vector<32x32xbf16>, vector<64x32xf32> -> vector<64x32xf32>
    %c0_18 = arith.constant 0 : index
    %c0_19 = arith.constant 0 : index
    %23 = vector.load %arg8[%c0_18, %c0_19] : memref<1x32xf32, #tpu.memory_space<vmem>>, vector<1x32xf32>
    %24 = vector.broadcast %23 : vector<1x32xf32> to vector<64x32xf32>
    %25 = arith.addf %22, %24 : vector<64x32xf32>
    %26 = arith.truncf %25 : vector<64x32xf32> to vector<64x32xbf16>
    %c0_20 = arith.constant 0 : index
    %c0_21 = arith.constant 0 : index
    %c0_22 = arith.constant 0 : index
    %27 = vector.load %arg10[%c0_20, %c0_21, %c0_22] : memref<1x64x32xbf16, #tpu.memory_space<vmem>>, vector<1x64x32xbf16>
    %28 = vector.shape_cast %27 : vector<1x64x32xbf16> to vector<64x32xbf16>
    %29 = vector.shape_cast %26 : vector<64x32xbf16> to vector<1x64x32xbf16>
    tpu.vector_store %arg10[%c0_20, %c0_21, %c0_22], %29 {strides = array<i32>} : memref<1x64x32xbf16, #tpu.memory_space<vmem>>, vector<1x64x32xbf16>,
    return
  }
  func.func @transform_0(%arg0: i32, %arg1: i32) -> (i32, i32, i32) {
    %c0_i32 = arith.constant 0 : i32
    %c0_i32_0 = arith.constant 0 : i32
    return %arg0, %arg1, %c0_i32 : i32, i32, i32
  }
  func.func @transform_1(%arg0: i32, %arg1: i32) -> (i32, i32, i32) {
    %c0_i32 = arith.constant 0 : i32
    %c0_i32_0 = arith.constant 0 : i32
    %c0_i32_1 = arith.constant 0 : i32
    return %arg0, %c0_i32, %c0_i32_0 : i32, i32, i32
  }
  func.func @transform_2(%arg0: i32, %arg1: i32) -> (i32, i32, i32) {
    %c0_i32 = arith.constant 0 : i32
    %c0_i32_0 = arith.constant 0 : i32
    %c0_i32_1 = arith.constant 0 : i32
    return %arg0, %c0_i32, %c0_i32_0 : i32, i32, i32
  }
  func.func @transform_3(%arg0: i32, %arg1: i32) -> (i32, i32) {
    %c0_i32 = arith.constant 0 : i32
    %c0_i32_0 = arith.constant 0 : i32
    %c0_i32_1 = arith.constant 0 : i32
    return %c0_i32, %c0_i32_0 : i32, i32
  }
  func.func @transform_4(%arg0: i32, %arg1: i32) -> (i32, i32) {
    %c0_i32 = arith.constant 0 : i32
    %c0_i32_0 = arith.constant 0 : i32
    %c0_i32_1 = arith.constant 0 : i32
    return %c0_i32, %c0_i32_0 : i32, i32
  }
  func.func @transform_5(%arg0: i32, %arg1: i32) -> (i32, i32) {
    %c0_i32 = arith.constant 0 : i32
    %c0_i32_0 = arith.constant 0 : i32
    %c0_i32_1 = arith.constant 0 : i32
    return %c0_i32, %c0_i32_0 : i32, i32
  }
  func.func @transform_6(%arg0: i32, %arg1: i32) -> (i32, i32) {
    %c0_i32 = arith.constant 0 : i32
    %c0_i32_0 = arith.constant 0 : i32
    %c0_i32_1 = arith.constant 0 : i32
    return %c0_i32, %c0_i32_0 : i32, i32
  }
  func.func @transform_7(%arg0: i32, %arg1: i32) -> (i32, i32, i32) {
    %c0_i32 = arith.constant 0 : i32
    %c0_i32_0 = arith.constant 0 : i32
    return %arg0, %arg1, %c0_i32 : i32, i32, i32
  }
  func.func @transform_8(%arg0: i32, %arg1: i32) -> (i32, i32, i32) {
    %c0_i32 = arith.constant 0 : i32
    %c0_i32_0 = arith.constant 0 : i32
    return %arg0, %arg1, %c0_i32 : i32, i32, i32
  }
}

module attributes {stable_mosaic.version = 11 : i64} {
  func.func @sanet_attn_kernel(%arg0: i32, %arg1: i32, %arg2: i32, %arg3: memref<1x64x32xf32, #tpu.memory_space<vmem>>, %arg4: memref<1x64x32xbf16, #tpu.memory_space<vmem>>, %arg5: memref<1x64x32xbf16, #tpu.memory_space<vmem>>, %arg6: memref<1x64x32xbf16, #tpu.memory_space<vmem>>, %arg7: memref<32x32xbf16, #tpu.memory_space<vmem>>, %arg8: memref<1x32xf32, #tpu.memory_space<vmem>>, %arg9: memref<1x64x32xf32, #tpu.memory_space<vmem>>, %arg10: memref<64x1xf32, #tpu.memory_space<vmem>>, %arg11: memref<64x1xf32, #tpu.memory_space<vmem>>, %arg12: memref<64x32xf32, #tpu.memory_space<vmem>>) attributes {dimension_semantics = [#tpu.dimension_semantics<parallel>, #tpu.dimension_semantics<parallel>, #tpu.dimension_semantics<arbitrary>], iteration_bounds = array<i64: 2, 1, 1>, scalar_prefetch = 0 : i64, scratch_operands = 3 : i64, tpu.core_type = #tpu.core_type<tc>, window_params = [{transform_indices = @transform_0, window_bounds = array<i64: 1, 64, 32>}, {transform_indices = @transform_1, window_bounds = array<i64: 1, 64, 32>}, {transform_indices = @transform_2, window_bounds = array<i64: 1, 64, 32>}, {transform_indices = @transform_3, window_bounds = array<i64: 1, 64, 32>}, {pipeline_mode = #tpu.pipeline_mode<synchronous>, transform_indices = @transform_4, window_bounds = array<i64: 32, 32>}, {pipeline_mode = #tpu.pipeline_mode<synchronous>, transform_indices = @transform_5, window_bounds = array<i64: 1, 32>}, {transform_indices = @transform_6, window_bounds = array<i64: 1, 64, 32>}]} {
    %c0_i32 = arith.constant 0 : i32
    %0 = arith.cmpi eq, %arg2, %c0_i32 : i32
    %1 = arith.extui %0 : i1 to i32
    %c0_i32_0 = arith.constant 0 : i32
    %2 = arith.cmpi ne, %1, %c0_i32_0 : i32
    scf.if %2 {
      %cst_26 = arith.constant 0xFF800000 : f32
      %36 = vector.broadcast %cst_26 : f32 to vector<64x1xf32>
      %c0_27 = arith.constant 0 : index
      %c0_28 = arith.constant 0 : index
      %37 = vector.load %arg10[%c0_27, %c0_28] : memref<64x1xf32, #tpu.memory_space<vmem>>, vector<64x1xf32>
      tpu.vector_store %arg10[%c0_27, %c0_28], %36 {strides = array<i32>} : memref<64x1xf32, #tpu.memory_space<vmem>>, vector<64x1xf32>,
      %cst_29 = arith.constant 0.000000e+00 : f32
      %38 = vector.broadcast %cst_29 : f32 to vector<64x1xf32>
      %c0_30 = arith.constant 0 : index
      %c0_31 = arith.constant 0 : index
      %39 = vector.load %arg11[%c0_30, %c0_31] : memref<64x1xf32, #tpu.memory_space<vmem>>, vector<64x1xf32>
      tpu.vector_store %arg11[%c0_30, %c0_31], %38 {strides = array<i32>} : memref<64x1xf32, #tpu.memory_space<vmem>>, vector<64x1xf32>,
      %cst_32 = arith.constant 0.000000e+00 : f32
      %40 = vector.broadcast %cst_32 : f32 to vector<64x32xf32>
      %c0_33 = arith.constant 0 : index
      %c0_34 = arith.constant 0 : index
      %41 = vector.load %arg12[%c0_33, %c0_34] : memref<64x32xf32, #tpu.memory_space<vmem>>, vector<64x32xf32>
      tpu.vector_store %arg12[%c0_33, %c0_34], %40 {strides = array<i32>} : memref<64x32xf32, #tpu.memory_space<vmem>>, vector<64x32xf32>,
    } else {
    }
    %c0 = arith.constant 0 : index
    %c0_1 = arith.constant 0 : index
    %c0_2 = arith.constant 0 : index
    %3 = vector.load %arg4[%c0, %c0_1, %c0_2] : memref<1x64x32xbf16, #tpu.memory_space<vmem>>, vector<1x64x32xbf16>
    %4 = vector.shape_cast %3 : vector<1x64x32xbf16> to vector<64x32xbf16>
    %c0_3 = arith.constant 0 : index
    %c0_4 = arith.constant 0 : index
    %c0_5 = arith.constant 0 : index
    %5 = vector.load %arg5[%c0_3, %c0_4, %c0_5] : memref<1x64x32xbf16, #tpu.memory_space<vmem>>, vector<1x64x32xbf16>
    %6 = vector.shape_cast %5 : vector<1x64x32xbf16> to vector<64x32xbf16>
    %cst = arith.constant dense<0.000000e+00> : vector<64x64xf32>
    %7 = tpu.matmul %4, %6, %cst {dimension_numbers = #tpu.dot_dimension_numbers<[1], [1], [0], [0], [0, 0, 1, 0], [], []>} : vector<64x32xbf16>, vector<64x32xbf16>, vector<64x64xf32> -> vector<64x64xf32>
    %c0_6 = arith.constant 0 : index
    %c0_7 = arith.constant 0 : index
    %8 = vector.load %arg10[%c0_6, %c0_7] : memref<64x1xf32, #tpu.memory_space<vmem>>, vector<64x1xf32>
    %cst_8 = arith.constant dense<0xFF800000> : vector<64xf32>
    %9 = vector.multi_reduction <maximumf>, %7, %cst_8 [1] : vector<64x64xf32> to vector<64xf32>
    %10 = vector.shape_cast %9 : vector<64xf32> to vector<64x1xf32>
    %11 = arith.maximumf %8, %10 : vector<64x1xf32>
    %12 = arith.subf %8, %11 : vector<64x1xf32>
    %13 = math.exp %12 : vector<64x1xf32>
    %14 = vector.broadcast %11 : vector<64x1xf32> to vector<64x64xf32>
    %15 = arith.subf %7, %14 : vector<64x64xf32>
    %16 = math.exp %15 : vector<64x64xf32>
    %c0_9 = arith.constant 0 : index
    %c0_10 = arith.constant 0 : index
    %17 = vector.load %arg11[%c0_9, %c0_10] : memref<64x1xf32, #tpu.memory_space<vmem>>, vector<64x1xf32>
    %18 = arith.mulf %13, %17 : vector<64x1xf32>
    %cst_11 = arith.constant dense<0.000000e+00> : vector<64xf32>
    %19 = vector.multi_reduction <add>, %16, %cst_11 [1] : vector<64x64xf32> to vector<64xf32>
    %20 = vector.shape_cast %19 : vector<64xf32> to vector<64x1xf32>
    %21 = arith.addf %18, %20 : vector<64x1xf32>
    %c0_12 = arith.constant 0 : index
    %c0_13 = arith.constant 0 : index
    %22 = vector.load %arg11[%c0_12, %c0_13] : memref<64x1xf32, #tpu.memory_space<vmem>>, vector<64x1xf32>
    tpu.vector_store %arg11[%c0_12, %c0_13], %21 {strides = array<i32>} : memref<64x1xf32, #tpu.memory_space<vmem>>, vector<64x1xf32>,
    %c0_14 = arith.constant 0 : index
    %c0_15 = arith.constant 0 : index
    %23 = vector.load %arg12[%c0_14, %c0_15] : memref<64x32xf32, #tpu.memory_space<vmem>>, vector<64x32xf32>
    %24 = vector.broadcast %13 : vector<64x1xf32> to vector<64x32xf32>
    %25 = arith.mulf %24, %23 : vector<64x32xf32>
    %26 = arith.truncf %16 : vector<64x64xf32> to vector<64x64xbf16>
    %c0_16 = arith.constant 0 : index
    %c0_17 = arith.constant 0 : index
    %c0_18 = arith.constant 0 : index
    %27 = vector.load %arg6[%c0_16, %c0_17, %c0_18] : memref<1x64x32xbf16, #tpu.memory_space<vmem>>, vector<1x64x32xbf16>
    %28 = vector.shape_cast %27 : vector<1x64x32xbf16> to vector<64x32xbf16>
    %cst_19 = arith.constant dense<0.000000e+00> : vector<64x32xf32>
    %29 = tpu.matmul %26, %28, %cst_19 {dimension_numbers = #tpu.dot_dimension_numbers<[1], [0], [0], [1], [0, 0, 1, 1], [], []>} : vector<64x64xbf16>, vector<64x32xbf16>, vector<64x32xf32> -> vector<64x32xf32>
    %30 = arith.addf %25, %29 : vector<64x32xf32>
    %c0_20 = arith.constant 0 : index
    %c0_21 = arith.constant 0 : index
    %31 = vector.load %arg12[%c0_20, %c0_21] : memref<64x32xf32, #tpu.memory_space<vmem>>, vector<64x32xf32>
    tpu.vector_store %arg12[%c0_20, %c0_21], %30 {strides = array<i32>} : memref<64x32xf32, #tpu.memory_space<vmem>>, vector<64x32xf32>,
    %c0_22 = arith.constant 0 : index
    %c0_23 = arith.constant 0 : index
    %32 = vector.load %arg10[%c0_22, %c0_23] : memref<64x1xf32, #tpu.memory_space<vmem>>, vector<64x1xf32>
    tpu.vector_store %arg10[%c0_22, %c0_23], %11 {strides = array<i32>} : memref<64x1xf32, #tpu.memory_space<vmem>>, vector<64x1xf32>,
    %c0_i32_24 = arith.constant 0 : i32
    %33 = arith.cmpi eq, %arg2, %c0_i32_24 : i32
    %34 = arith.extui %33 : i1 to i32
    %c0_i32_25 = arith.constant 0 : i32
    %35 = arith.cmpi ne, %34, %c0_i32_25 : i32
    scf.if %35 {
      %c0_26 = arith.constant 0 : index
      %c0_27 = arith.constant 0 : index
      %36 = vector.load %arg12[%c0_26, %c0_27] : memref<64x32xf32, #tpu.memory_space<vmem>>, vector<64x32xf32>
      %c0_28 = arith.constant 0 : index
      %c0_29 = arith.constant 0 : index
      %37 = vector.load %arg11[%c0_28, %c0_29] : memref<64x1xf32, #tpu.memory_space<vmem>>, vector<64x1xf32>
      %38 = tpu.reciprocal %37 {approx = true} : vector<64x1xf32> -> vector<64x1xf32>
      %39 = vector.broadcast %38 : vector<64x1xf32> to vector<64x32xf32>
      %40 = arith.mulf %36, %39 : vector<64x32xf32>
      %41 = arith.truncf %40 : vector<64x32xf32> to vector<64x32xbf16>
      %c0_30 = arith.constant 0 : index
      %c0_31 = arith.constant 0 : index
      %42 = vector.load %arg7[%c0_30, %c0_31] : memref<32x32xbf16, #tpu.memory_space<vmem>>, vector<32x32xbf16>
      %cst_32 = arith.constant dense<0.000000e+00> : vector<64x32xf32>
      %43 = tpu.matmul %41, %42, %cst_32 {dimension_numbers = #tpu.dot_dimension_numbers<[1], [0], [0], [1], [0, 0, 1, 1], [], []>} : vector<64x32xbf16>, vector<32x32xbf16>, vector<64x32xf32> -> vector<64x32xf32>
      %c0_33 = arith.constant 0 : index
      %c0_34 = arith.constant 0 : index
      %44 = vector.load %arg8[%c0_33, %c0_34] : memref<1x32xf32, #tpu.memory_space<vmem>>, vector<1x32xf32>
      %45 = vector.broadcast %44 : vector<1x32xf32> to vector<64x32xf32>
      %46 = arith.addf %43, %45 : vector<64x32xf32>
      %c0_35 = arith.constant 0 : index
      %c0_36 = arith.constant 0 : index
      %c0_37 = arith.constant 0 : index
      %47 = vector.load %arg3[%c0_35, %c0_36, %c0_37] : memref<1x64x32xf32, #tpu.memory_space<vmem>>, vector<1x64x32xf32>
      %48 = vector.shape_cast %47 : vector<1x64x32xf32> to vector<64x32xf32>
      %49 = arith.addf %46, %48 : vector<64x32xf32>
      %c0_38 = arith.constant 0 : index
      %c0_39 = arith.constant 0 : index
      %c0_40 = arith.constant 0 : index
      %50 = vector.load %arg9[%c0_38, %c0_39, %c0_40] : memref<1x64x32xf32, #tpu.memory_space<vmem>>, vector<1x64x32xf32>
      %51 = vector.shape_cast %50 : vector<1x64x32xf32> to vector<64x32xf32>
      %52 = vector.shape_cast %49 : vector<64x32xf32> to vector<1x64x32xf32>
      tpu.vector_store %arg9[%c0_38, %c0_39, %c0_40], %52 {strides = array<i32>} : memref<1x64x32xf32, #tpu.memory_space<vmem>>, vector<1x64x32xf32>,
    } else {
    }
    return
  }
  func.func @transform_0(%arg0: i32, %arg1: i32, %arg2: i32) -> (i32, i32, i32) {
    %c0_i32 = arith.constant 0 : i32
    %c0_i32_0 = arith.constant 0 : i32
    return %arg0, %arg1, %c0_i32 : i32, i32, i32
  }
  func.func @transform_1(%arg0: i32, %arg1: i32, %arg2: i32) -> (i32, i32, i32) {
    %c0_i32 = arith.constant 0 : i32
    %c0_i32_0 = arith.constant 0 : i32
    return %arg0, %arg1, %c0_i32 : i32, i32, i32
  }
  func.func @transform_2(%arg0: i32, %arg1: i32, %arg2: i32) -> (i32, i32, i32) {
    %c0_i32 = arith.constant 0 : i32
    %c0_i32_0 = arith.constant 0 : i32
    return %arg0, %arg2, %c0_i32 : i32, i32, i32
  }
  func.func @transform_3(%arg0: i32, %arg1: i32, %arg2: i32) -> (i32, i32, i32) {
    %c0_i32 = arith.constant 0 : i32
    %c0_i32_0 = arith.constant 0 : i32
    return %arg0, %arg2, %c0_i32 : i32, i32, i32
  }
  func.func @transform_4(%arg0: i32, %arg1: i32, %arg2: i32) -> (i32, i32) {
    %c0_i32 = arith.constant 0 : i32
    %c0_i32_0 = arith.constant 0 : i32
    %c0_i32_1 = arith.constant 0 : i32
    return %c0_i32, %c0_i32_0 : i32, i32
  }
  func.func @transform_5(%arg0: i32, %arg1: i32, %arg2: i32) -> (i32, i32) {
    %c0_i32 = arith.constant 0 : i32
    %c0_i32_0 = arith.constant 0 : i32
    %c0_i32_1 = arith.constant 0 : i32
    return %c0_i32, %c0_i32_0 : i32, i32
  }
  func.func @transform_6(%arg0: i32, %arg1: i32, %arg2: i32) -> (i32, i32, i32) {
    %c0_i32 = arith.constant 0 : i32
    %c0_i32_0 = arith.constant 0 : i32
    return %arg0, %arg1, %c0_i32 : i32, i32, i32
  }
}

module attributes {stable_mosaic.version = 11 : i64} {
  func.func @content_proj_kernel(%arg0: i32, %arg1: i32, %arg2: memref<1x64x32xf32, #tpu.memory_space<vmem>>, %arg3: memref<1x1x32xf32, #tpu.memory_space<vmem>>, %arg4: memref<1x1x32xf32, #tpu.memory_space<vmem>>, %arg5: memref<32x32xbf16, #tpu.memory_space<vmem>>, %arg6: memref<1x32xf32, #tpu.memory_space<vmem>>, %arg7: memref<1x64x32xbf16, #tpu.memory_space<vmem>>) attributes {dimension_semantics = [#tpu.dimension_semantics<parallel>, #tpu.dimension_semantics<parallel>], iteration_bounds = array<i64: 2, 1>, scalar_prefetch = 0 : i64, scratch_operands = 0 : i64, tpu.core_type = #tpu.core_type<tc>, window_params = [{transform_indices = @transform_0, window_bounds = array<i64: 1, 64, 32>}, {transform_indices = @transform_1, window_bounds = array<i64: 1, 1, 32>}, {transform_indices = @transform_2, window_bounds = array<i64: 1, 1, 32>}, {pipeline_mode = #tpu.pipeline_mode<synchronous>, transform_indices = @transform_3, window_bounds = array<i64: 32, 32>}, {pipeline_mode = #tpu.pipeline_mode<synchronous>, transform_indices = @transform_4, window_bounds = array<i64: 1, 32>}, {transform_indices = @transform_5, window_bounds = array<i64: 1, 64, 32>}]} {
    %c0 = arith.constant 0 : index
    %c0_0 = arith.constant 0 : index
    %c0_1 = arith.constant 0 : index
    %0 = vector.load %arg2[%c0, %c0_0, %c0_1] : memref<1x64x32xf32, #tpu.memory_space<vmem>>, vector<1x64x32xf32>
    %1 = vector.shape_cast %0 : vector<1x64x32xf32> to vector<64x32xf32>
    %c0_2 = arith.constant 0 : index
    %c0_3 = arith.constant 0 : index
    %c0_4 = arith.constant 0 : index
    %2 = vector.load %arg3[%c0_2, %c0_3, %c0_4] : memref<1x1x32xf32, #tpu.memory_space<vmem>>, vector<1x1x32xf32>
    %3 = vector.shape_cast %2 : vector<1x1x32xf32> to vector<1x32xf32>
    %4 = vector.broadcast %3 : vector<1x32xf32> to vector<64x32xf32>
    %5 = arith.subf %1, %4 : vector<64x32xf32>
    %c0_5 = arith.constant 0 : index
    %c0_6 = arith.constant 0 : index
    %c0_7 = arith.constant 0 : index
    %6 = vector.load %arg4[%c0_5, %c0_6, %c0_7] : memref<1x1x32xf32, #tpu.memory_space<vmem>>, vector<1x1x32xf32>
    %7 = vector.shape_cast %6 : vector<1x1x32xf32> to vector<1x32xf32>
    %8 = vector.broadcast %7 : vector<1x32xf32> to vector<64x32xf32>
    %9 = arith.mulf %5, %8 : vector<64x32xf32>
    %10 = arith.truncf %9 : vector<64x32xf32> to vector<64x32xbf16>
    %c0_8 = arith.constant 0 : index
    %c0_9 = arith.constant 0 : index
    %11 = vector.load %arg5[%c0_8, %c0_9] : memref<32x32xbf16, #tpu.memory_space<vmem>>, vector<32x32xbf16>
    %cst = arith.constant dense<0.000000e+00> : vector<64x32xf32>
    %12 = tpu.matmul %10, %11, %cst {dimension_numbers = #tpu.dot_dimension_numbers<[1], [0], [0], [1], [0, 0, 1, 1], [], []>} : vector<64x32xbf16>, vector<32x32xbf16>, vector<64x32xf32> -> vector<64x32xf32>
    %c0_10 = arith.constant 0 : index
    %c0_11 = arith.constant 0 : index
    %13 = vector.load %arg6[%c0_10, %c0_11] : memref<1x32xf32, #tpu.memory_space<vmem>>, vector<1x32xf32>
    %14 = vector.broadcast %13 : vector<1x32xf32> to vector<64x32xf32>
    %15 = arith.addf %12, %14 : vector<64x32xf32>
    %16 = arith.truncf %15 : vector<64x32xf32> to vector<64x32xbf16>
    %c0_12 = arith.constant 0 : index
    %c0_13 = arith.constant 0 : index
    %c0_14 = arith.constant 0 : index
    %17 = vector.load %arg7[%c0_12, %c0_13, %c0_14] : memref<1x64x32xbf16, #tpu.memory_space<vmem>>, vector<1x64x32xbf16>
    %18 = vector.shape_cast %17 : vector<1x64x32xbf16> to vector<64x32xbf16>
    %19 = vector.shape_cast %16 : vector<64x32xbf16> to vector<1x64x32xbf16>
    tpu.vector_store %arg7[%c0_12, %c0_13, %c0_14], %19 {strides = array<i32>} : memref<1x64x32xbf16, #tpu.memory_space<vmem>>, vector<1x64x32xbf16>,
    return
  }
  func.func @transform_0(%arg0: i32, %arg1: i32) -> (i32, i32, i32) {
    %c0_i32 = arith.constant 0 : i32
    %c0_i32_0 = arith.constant 0 : i32
    return %arg0, %arg1, %c0_i32 : i32, i32, i32
  }
  func.func @transform_1(%arg0: i32, %arg1: i32) -> (i32, i32, i32) {
    %c0_i32 = arith.constant 0 : i32
    %c0_i32_0 = arith.constant 0 : i32
    %c0_i32_1 = arith.constant 0 : i32
    return %arg0, %c0_i32, %c0_i32_0 : i32, i32, i32
  }
  func.func @transform_2(%arg0: i32, %arg1: i32) -> (i32, i32, i32) {
    %c0_i32 = arith.constant 0 : i32
    %c0_i32_0 = arith.constant 0 : i32
    %c0_i32_1 = arith.constant 0 : i32
    return %arg0, %c0_i32, %c0_i32_0 : i32, i32, i32
  }
  func.func @transform_3(%arg0: i32, %arg1: i32) -> (i32, i32) {
    %c0_i32 = arith.constant 0 : i32
    %c0_i32_0 = arith.constant 0 : i32
    %c0_i32_1 = arith.constant 0 : i32
    return %c0_i32, %c0_i32_0 : i32, i32
  }
  func.func @transform_4(%arg0: i32, %arg1: i32) -> (i32, i32) {
    %c0_i32 = arith.constant 0 : i32
    %c0_i32_0 = arith.constant 0 : i32
    %c0_i32_1 = arith.constant 0 : i32
    return %c0_i32, %c0_i32_0 : i32, i32
  }
  func.func @transform_5(%arg0: i32, %arg1: i32) -> (i32, i32, i32) {
    %c0_i32 = arith.constant 0 : i32
    %c0_i32_0 = arith.constant 0 : i32
    return %arg0, %arg1, %c0_i32 : i32, i32, i32
  }
}

module attributes {stable_mosaic.version = 11 : i64} {
  func.func @merge_conv_kernel(%arg0: i32, %arg1: i32, %arg2: memref<1x288x96xbf16, #tpu.memory_space<vmem>>, %arg3: memref<3x96x32xbf16, #tpu.memory_space<vmem>>, %arg4: memref<1x32xf32, #tpu.memory_space<vmem>>, %arg5: memref<1x128x32xf32, #tpu.memory_space<vmem>>) attributes {dimension_semantics = [#tpu.dimension_semantics<parallel>, #tpu.dimension_semantics<parallel>], iteration_bounds = array<i64: 2, 2>, scalar_prefetch = 0 : i64, scratch_operands = 0 : i64, tpu.core_type = #tpu.core_type<tc>, window_params = [{transform_indices = @transform_0, window_bounds = array<i64: 1, 288, 96>}, {pipeline_mode = #tpu.pipeline_mode<synchronous>, transform_indices = @transform_1, window_bounds = array<i64: 3, 96, 32>}, {pipeline_mode = #tpu.pipeline_mode<synchronous>, transform_indices = @transform_2, window_bounds = array<i64: 1, 32>}, {transform_indices = @transform_3, window_bounds = array<i64: 1, 128, 32>}]} {
    %cst = arith.constant 0.000000e+00 : f32
    %0 = vector.broadcast %cst : f32 to vector<128x32xf32>
    %c128_i32 = arith.constant 128 : i32
    %1 = arith.muli %arg1, %c128_i32 : i32
    %c0_i32 = arith.constant 0 : i32
    %2 = arith.addi %1, %c0_i32 : i32
    %3 = tpu.assume_multiple %2, 8 : i32
    %c0 = arith.constant 0 : index
    %4 = arith.index_cast %3 : i32 to index
    %c0_0 = arith.constant 0 : index
    %5 = vector.load %arg2[%c0, %4, %c0_0] : memref<1x288x96xbf16, #tpu.memory_space<vmem>>, vector<1x128x96xbf16>
    %6 = vector.shape_cast %5 : vector<1x128x96xbf16> to vector<128x96xbf16>
    %c0_1 = arith.constant 0 : index
    %c0_2 = arith.constant 0 : index
    %c0_3 = arith.constant 0 : index
    %7 = vector.load %arg3[%c0_1, %c0_2, %c0_3] : memref<3x96x32xbf16, #tpu.memory_space<vmem>>, vector<1x96x32xbf16>
    %8 = vector.shape_cast %7 : vector<1x96x32xbf16> to vector<96x32xbf16>
    %cst_4 = arith.constant dense<0.000000e+00> : vector<128x32xf32>
    %9 = tpu.matmul %6, %8, %cst_4 {dimension_numbers = #tpu.dot_dimension_numbers<[1], [0], [0], [1], [0, 0, 1, 1], [], []>} : vector<128x96xbf16>, vector<96x32xbf16>, vector<128x32xf32> -> vector<128x32xf32>
    %10 = arith.addf %0, %9 : vector<128x32xf32>
    %c128_i32_5 = arith.constant 128 : i32
    %11 = arith.muli %arg1, %c128_i32_5 : i32
    %c16_i32 = arith.constant 16 : i32
    %12 = arith.addi %11, %c16_i32 : i32
    %13 = tpu.assume_multiple %12, 8 : i32
    %c0_6 = arith.constant 0 : index
    %14 = arith.index_cast %13 : i32 to index
    %c0_7 = arith.constant 0 : index
    %15 = vector.load %arg2[%c0_6, %14, %c0_7] : memref<1x288x96xbf16, #tpu.memory_space<vmem>>, vector<1x128x96xbf16>
    %16 = vector.shape_cast %15 : vector<1x128x96xbf16> to vector<128x96xbf16>
    %c1 = arith.constant 1 : index
    %c0_8 = arith.constant 0 : index
    %c0_9 = arith.constant 0 : index
    %17 = vector.load %arg3[%c1, %c0_8, %c0_9] : memref<3x96x32xbf16, #tpu.memory_space<vmem>>, vector<1x96x32xbf16>
    %18 = vector.shape_cast %17 : vector<1x96x32xbf16> to vector<96x32xbf16>
    %cst_10 = arith.constant dense<0.000000e+00> : vector<128x32xf32>
    %19 = tpu.matmul %16, %18, %cst_10 {dimension_numbers = #tpu.dot_dimension_numbers<[1], [0], [0], [1], [0, 0, 1, 1], [], []>} : vector<128x96xbf16>, vector<96x32xbf16>, vector<128x32xf32> -> vector<128x32xf32>
    %20 = arith.addf %10, %19 : vector<128x32xf32>
    %c128_i32_11 = arith.constant 128 : i32
    %21 = arith.muli %arg1, %c128_i32_11 : i32
    %c32_i32 = arith.constant 32 : i32
    %22 = arith.addi %21, %c32_i32 : i32
    %23 = tpu.assume_multiple %22, 8 : i32
    %c0_12 = arith.constant 0 : index
    %24 = arith.index_cast %23 : i32 to index
    %c0_13 = arith.constant 0 : index
    %25 = vector.load %arg2[%c0_12, %24, %c0_13] : memref<1x288x96xbf16, #tpu.memory_space<vmem>>, vector<1x128x96xbf16>
    %26 = vector.shape_cast %25 : vector<1x128x96xbf16> to vector<128x96xbf16>
    %c2 = arith.constant 2 : index
    %c0_14 = arith.constant 0 : index
    %c0_15 = arith.constant 0 : index
    %27 = vector.load %arg3[%c2, %c0_14, %c0_15] : memref<3x96x32xbf16, #tpu.memory_space<vmem>>, vector<1x96x32xbf16>
    %28 = vector.shape_cast %27 : vector<1x96x32xbf16> to vector<96x32xbf16>
    %cst_16 = arith.constant dense<0.000000e+00> : vector<128x32xf32>
    %29 = tpu.matmul %26, %28, %cst_16 {dimension_numbers = #tpu.dot_dimension_numbers<[1], [0], [0], [1], [0, 0, 1, 1], [], []>} : vector<128x96xbf16>, vector<96x32xbf16>, vector<128x32xf32> -> vector<128x32xf32>
    %30 = arith.addf %20, %29 : vector<128x32xf32>
    %c0_17 = arith.constant 0 : index
    %c0_18 = arith.constant 0 : index
    %31 = vector.load %arg4[%c0_17, %c0_18] : memref<1x32xf32, #tpu.memory_space<vmem>>, vector<1x32xf32>
    %32 = vector.broadcast %31 : vector<1x32xf32> to vector<128x32xf32>
    %33 = arith.addf %30, %32 : vector<128x32xf32>
    %c0_19 = arith.constant 0 : index
    %c0_20 = arith.constant 0 : index
    %c0_21 = arith.constant 0 : index
    %34 = vector.load %arg5[%c0_19, %c0_20, %c0_21] : memref<1x128x32xf32, #tpu.memory_space<vmem>>, vector<1x128x32xf32>
    %35 = vector.shape_cast %34 : vector<1x128x32xf32> to vector<128x32xf32>
    %36 = vector.shape_cast %33 : vector<128x32xf32> to vector<1x128x32xf32>
    tpu.vector_store %arg5[%c0_19, %c0_20, %c0_21], %36 {strides = array<i32>} : memref<1x128x32xf32, #tpu.memory_space<vmem>>, vector<1x128x32xf32>,
    return
  }
  func.func @transform_0(%arg0: i32, %arg1: i32) -> (i32, i32, i32) {
    %c0_i32 = arith.constant 0 : i32
    %c0_i32_0 = arith.constant 0 : i32
    %c0_i32_1 = arith.constant 0 : i32
    return %arg0, %c0_i32, %c0_i32_0 : i32, i32, i32
  }
  func.func @transform_1(%arg0: i32, %arg1: i32) -> (i32, i32, i32) {
    %c0_i32 = arith.constant 0 : i32
    %c0_i32_0 = arith.constant 0 : i32
    %c0_i32_1 = arith.constant 0 : i32
    %c0_i32_2 = arith.constant 0 : i32
    return %c0_i32, %c0_i32_0, %c0_i32_1 : i32, i32, i32
  }
  func.func @transform_2(%arg0: i32, %arg1: i32) -> (i32, i32) {
    %c0_i32 = arith.constant 0 : i32
    %c0_i32_0 = arith.constant 0 : i32
    %c0_i32_1 = arith.constant 0 : i32
    return %c0_i32, %c0_i32_0 : i32, i32
  }
  func.func @transform_3(%arg0: i32, %arg1: i32) -> (i32, i32, i32) {
    %c0_i32 = arith.constant 0 : i32
    %c0_i32_0 = arith.constant 0 : i32
    return %arg0, %arg1, %c0_i32 : i32, i32, i32
  }
}

</mosaic_0001>

<llo_original>
// kernel: transform_forward.11
$region0: #{transform_forward.11}
  #allocation0 [shape = 'u32[]', space=smem, size = 0x4, offset = 0x4, fixed_abs, tag = 'smem constant byte address 0x4 - core index']
  #allocation1 [shape = 'u32[144,128]{1,0:T(1,128)}', space=vmem, size = 0x12000, scoped, tag = 'internal scratch']
  %s0 = inlined_call_operand.vmem [shape: f32[2,64,32], index: 0, kind: input, shape index: {}]
  %s1 = inlined_call_operand.vmem [shape: f32[2,1,32], index: 1, kind: input, shape index: {}]
  %s2 = inlined_call_operand.vmem [shape: f32[2,1,32], index: 2, kind: input, shape index: {}]
  %s3 = inlined_call_operand.vmem [shape: bf16[32,32], index: 3, kind: input, shape index: {}]
  %s4 = inlined_call_operand.vmem [shape: f32[1,32], index: 4, kind: input, shape index: {}]
  %s5 = inlined_call_operand.vmem [shape: bf16[32,32], index: 5, kind: input, shape index: {}]
  %s6 = inlined_call_operand.vmem [shape: f32[1,32], index: 6, kind: input, shape index: {}]
  %s7 = inlined_call_operand.vmem [shape: bf16[2,64,32], index: 7, kind: output, shape index: {0}]
  %s8 = inlined_call_operand.vmem [shape: bf16[2,64,32], index: 8, kind: output, shape index: {1}]
  %9 = xla_tuple %s7, %s8
  %s10 = sld [smem:[#allocation0]]
  $region69: #{transform_forward.11} parent=0
    _
  %s12 = ssub.s32 1, %s10
  %s13 = scalar_select 0, %s12, %s10
  loop: start=0, step=1, limit=4
  $region2: #{transform_forward.11} parent=0 // loop_pre_header
    _
  $region3: #{transform_forward.11} parent=0 // loop_header
    %s15 = sphi 0, %s19
    %p16 = scmp.ge.s32.totalorder %s15, 4
    %s22 = sphi 0, %s34
    %s23 = sphi 0, %s30
    %s24 = sphi 0, %s22
    %s25 = sphi 0, %s23
    %s26 = sphi 0, %s24
    %s27 = sphi 0, %s25
    %s39 = sphi 0, %s41
    %s42 = sphi 0, %s39
    %s43 = sphi 0, %s42
    %s59 = sphi 0, %s43
    %s65 = sphi 0, %s67
    %s68 = sphi 0, %s65
    %s69 = sphi 0, %s68
    %s85 = sphi 0, %s69
    %s91 = sphi 0, %s93
    %s94 = sphi 0, %s91
    %s95 = sphi 0, %s94
    %s111 = sphi 0, %s95
    %s115 = sphi 0, %s115
    %s117 = sphi 0, %s115
    %s118 = sphi 0, %s117
    %s132 = sphi 0, %s118
    %s136 = sphi 0, %s136
    %s138 = sphi 0, %s136
    %s139 = sphi 0, %s138
    %s153 = sphi 0, %s139
    %s157 = sphi 0, %s157
    %s159 = sphi 0, %s157
    %s160 = sphi 0, %s159
    %s174 = sphi 0, %s160
    %s178 = sphi 0, %s178
    %s180 = sphi 0, %s178
    %s181 = sphi 0, %s180
    %s195 = sphi 0, %s181
    %s203 = sphi 0, %s205
    %s206 = sphi 0, %s203
    %s207 = sphi 0, %s206
    %s223 = sphi 0, %s207
    %s231 = sphi 0, %s233
    %s234 = sphi 0, %s231
    %s235 = sphi 0, %s234
    %s251 = sphi 0, %s235
  $region4: #{transform_forward.11} parent=0 // loop_header_branch
    %18 = sbr.rel (%p16) target = $region8
  $region5: #{transform_forward.11} parent=0 // loop_body
    %s20 = ssub.s32 %s15, 1
    %s21 = ssub.s32 %s15, 2
    %s28 = sadd.s32 1, %s23
    %p29 = scmp.ge.s32.totalorder %s28, 1
    %s30 = scalar_select %p29, 0, %s28
    %s31 = sadd.s32 1, %s22
    %s32 = scalar_select %p29, %s31, %s22
    %p33 = scmp.ge.s32.totalorder %s32, 2
    %s34 = scalar_select %p33, 0, %s32
    %s35 = ssub.s32 %s22, %s34
    %s36 = ssub.s32 %s23, %s30
    %s37 = sor.u32 %s35, %s36
    %p38 = scmp.eq.s32.totalorder %s37, 0
    %s40 = sadd.s32 %s39, 1
    %s41 = scalar_select %p38, %s39, %s40
    %p44 = pneg %p38
    %p45 = scmp.eq.s32.totalorder %s15, 1
    %p46 = por %p44, %p45
    %p47 = scmp.ne.s32.totalorder %s39, %s42
    %p48 = scmp.eq.s32.totalorder %s15, 0
    %p49 = por %p47, %p48
    %p50 = scmp.ne.s32.totalorder %s39, %s42
    %p51 = scmp.eq.s32.totalorder %s20, 1
    %p52 = por %p50, %p51
    %p53 = scmp.ne.s32.totalorder %s42, %s43
    %p54 = scmp.eq.s32.totalorder %s20, 0
    %p55 = por %p53, %p54
    %p56 = scmp.ne.s32.totalorder %s42, %s43
    %p57 = scmp.eq.s32.totalorder %s21, 1
    %p58 = por %p56, %p57
    %p60 = scmp.ne.s32.totalorder %s43, %s59
    %p61 = scmp.eq.s32.totalorder %s21, 0
    %p62 = por %p60, %p61
    %s63 = ssub.s32 %s22, %s34
    %p64 = scmp.eq.s32.totalorder %s63, 0
    %s66 = sadd.s32 %s65, 1
    %s67 = scalar_select %p64, %s65, %s66
    %p70 = pneg %p64
    %p71 = scmp.eq.s32.totalorder %s15, 1
    %p72 = por %p70, %p71
    %p73 = scmp.ne.s32.totalorder %s65, %s68
    %p74 = scmp.eq.s32.totalorder %s15, 0
    %p75 = por %p73, %p74
    %p76 = scmp.ne.s32.totalorder %s65, %s68
    %p77 = scmp.eq.s32.totalorder %s20, 1
    %p78 = por %p76, %p77
    %p79 = scmp.ne.s32.totalorder %s68, %s69
    %p80 = scmp.eq.s32.totalorder %s20, 0
    %p81 = por %p79, %p80
    %p82 = scmp.ne.s32.totalorder %s68, %s69
    %p83 = scmp.eq.s32.totalorder %s21, 1
    %p84 = por %p82, %p83
    %p86 = scmp.ne.s32.totalorder %s69, %s85
    %p87 = scmp.eq.s32.totalorder %s21, 0
    %p88 = por %p86, %p87
    %s89 = ssub.s32 %s22, %s34
    %p90 = scmp.eq.s32.totalorder %s89, 0
    %s92 = sadd.s32 %s91, 1
    %s93 = scalar_select %p90, %s91, %s92
    %p96 = pneg %p90
    %p97 = scmp.eq.s32.totalorder %s15, 1
    %p98 = por %p96, %p97
    %p99 = scmp.ne.s32.totalorder %s91, %s94
    %p100 = scmp.eq.s32.totalorder %s15, 0
    %p101 = por %p99, %p100
    %p102 = scmp.ne.s32.totalorder %s91, %s94
    %p103 = scmp.eq.s32.totalorder %s20, 1
    %p104 = por %p102, %p103
    %p105 = scmp.ne.s32.totalorder %s94, %s95
    %p106 = scmp.eq.s32.totalorder %s20, 0
    %p107 = por %p105, %p106
    %p108 = scmp.ne.s32.totalorder %s94, %s95
    %p109 = scmp.eq.s32.totalorder %s21, 1
    %p110 = por %p108, %p109
    %p112 = scmp.ne.s32.totalorder %s95, %s111
    %p113 = scmp.eq.s32.totalorder %s21, 0
    %p114 = por %p112, %p113
    %s116 = sadd.s32 %s115, 1
    %p119 = scmp.eq.s32.totalorder %s15, 1
    %p120 = scmp.ne.s32.totalorder %s115, %s117
    %p121 = scmp.eq.s32.totalorder %s15, 0
    %p122 = por %p120, %p121
    %p123 = scmp.ne.s32.totalorder %s115, %s117
    %p124 = scmp.eq.s32.totalorder %s20, 1
    %p125 = por %p123, %p124
    %p126 = scmp.ne.s32.totalorder %s117, %s118
    %p127 = scmp.eq.s32.totalorder %s20, 0
    %p128 = por %p126, %p127
    %p129 = scmp.ne.s32.totalorder %s117, %s118
    %p130 = scmp.eq.s32.totalorder %s21, 1
    %p131 = por %p129, %p130
    %p133 = scmp.ne.s32.totalorder %s118, %s132
    %p134 = scmp.eq.s32.totalorder %s21, 0
    %p135 = por %p133, %p134
    %s137 = sadd.s32 %s136, 1
    %p140 = scmp.eq.s32.totalorder %s15, 1
    %p141 = scmp.ne.s32.totalorder %s136, %s138
    %p142 = scmp.eq.s32.totalorder %s15, 0
    %p143 = por %p141, %p142
    %p144 = scmp.ne.s32.totalorder %s136, %s138
    %p145 = scmp.eq.s32.totalorder %s20, 1
    %p146 = por %p144, %p145
    %p147 = scmp.ne.s32.totalorder %s138, %s139
    %p148 = scmp.eq.s32.totalorder %s20, 0
    %p149 = por %p147, %p148
    %p150 = scmp.ne.s32.totalorder %s138, %s139
    %p151 = scmp.eq.s32.totalorder %s21, 1
    %p152 = por %p150, %p151
    %p154 = scmp.ne.s32.totalorder %s139, %s153
    %p155 = scmp.eq.s32.totalorder %s21, 0
    %p156 = por %p154, %p155
    %s158 = sadd.s32 %s157, 1
    %p161 = scmp.eq.s32.totalorder %s15, 1
    %p162 = scmp.ne.s32.totalorder %s157, %s159
    %p163 = scmp.eq.s32.totalorder %s15, 0
    %p164 = por %p162, %p163
    %p165 = scmp.ne.s32.totalorder %s157, %s159
    %p166 = scmp.eq.s32.totalorder %s20, 1
    %p167 = por %p165, %p166
    %p168 = scmp.ne.s32.totalorder %s159, %s160
    %p169 = scmp.eq.s32.totalorder %s20, 0
    %p170 = por %p168, %p169
    %p171 = scmp.ne.s32.totalorder %s159, %s160
    %p172 = scmp.eq.s32.totalorder %s21, 1
    %p173 = por %p171, %p172
    %p175 = scmp.ne.s32.totalorder %s160, %s174
    %p176 = scmp.eq.s32.totalorder %s21, 0
    %p177 = por %p175, %p176
    %s179 = sadd.s32 %s178, 1
    %p182 = scmp.eq.s32.totalorder %s15, 1
    %p183 = scmp.ne.s32.totalorder %s178, %s180
    %p184 = scmp.eq.s32.totalorder %s15, 0
    %p185 = por %p183, %p184
    %p186 = scmp.ne.s32.totalorder %s178, %s180
    %p187 = scmp.eq.s32.totalorder %s20, 1
    %p188 = por %p186, %p187
    %p189 = scmp.ne.s32.totalorder %s180, %s181
    %p190 = scmp.eq.s32.totalorder %s20, 0
    %p191 = por %p189, %p190
    %p192 = scmp.ne.s32.totalorder %s180, %s181
    %p193 = scmp.eq.s32.totalorder %s21, 1
    %p194 = por %p192, %p193
    %p196 = scmp.ne.s32.totalorder %s181, %s195
    %p197 = scmp.eq.s32.totalorder %s21, 0
    %p198 = por %p196, %p197
    %s199 = ssub.s32 %s22, %s34
    %s200 = ssub.s32 %s23, %s30
    %s201 = sor.u32 %s199, %s200
    %p202 = scmp.eq.s32.totalorder %s201, 0
    %s204 = sadd.s32 %s203, 1
    %s205 = scalar_select %p202, %s203, %s204
    %p208 = pneg %p202
    %p209 = scmp.eq.s32.totalorder %s15, 1
    %p210 = por %p208, %p209
    %p211 = scmp.ne.s32.totalorder %s203, %s206
    %p212 = scmp.eq.s32.totalorder %s15, 0
    %p213 = por %p211, %p212
    %p214 = scmp.ne.s32.totalorder %s203, %s206
    %p215 = scmp.eq.s32.totalorder %s20, 1
    %p216 = por %p214, %p215
    %p217 = scmp.ne.s32.totalorder %s206, %s207
    %p218 = scmp.eq.s32.totalorder %s20, 0
    %p219 = por %p217, %p218
    %p220 = scmp.ne.s32.totalorder %s206, %s207
    %p221 = scmp.eq.s32.totalorder %s21, 1
    %p222 = por %p220, %p221
    %p224 = scmp.ne.s32.totalorder %s207, %s223
    %p225 = scmp.eq.s32.totalorder %s21, 0
    %p226 = por %p224, %p225
    %s227 = ssub.s32 %s22, %s34
    %s228 = ssub.s32 %s23, %s30
    %s229 = sor.u32 %s227, %s228
    %p230 = scmp.eq.s32.totalorder %s229, 0
    %s232 = sadd.s32 %s231, 1
    %s233 = scalar_select %p230, %s231, %s232
    %p236 = pneg %p230
    %p237 = scmp.eq.s32.totalorder %s15, 1
    %p238 = por %p236, %p237
    %p239 = scmp.ne.s32.totalorder %s231, %s234
    %p240 = scmp.eq.s32.totalorder %s15, 0
    %p241 = por %p239, %p240
    %p242 = scmp.ne.s32.totalorder %s231, %s234
    %p243 = scmp.eq.s32.totalorder %s20, 1
    %p244 = por %p242, %p243
    %p245 = scmp.ne.s32.totalorder %s234, %s235
    %p246 = scmp.eq.s32.totalorder %s20, 0
    %p247 = por %p245, %p246
    %p248 = scmp.ne.s32.totalorder %s234, %s235
    %p249 = scmp.eq.s32.totalorder %s21, 1
    %p250 = por %p248, %p249
    %p252 = scmp.ne.s32.totalorder %s235, %s251
    %p253 = scmp.eq.s32.totalorder %s21, 0
    %p254 = por %p252, %p253
    %p255 = scmp.le.s32.totalorder 1, %s15
    %p256 = scmp.lt.s32.totalorder %s15, 3
    %p257 = pnand %p255, %p256
    %p258 = pneg %p257
    // Predicated region
    $region9: #{transform_forward.11} parent=5 // pred_check
      _
    $region10: #{transform_forward.11} parent=5 // pred_check_branch
      %260 = sbr.rel (%p257) target = $region12
    $region11: #{transform_forward.11} parent=5 // pred_region
      %s261 = ssub.s32 %s15, 1
      // Predicated region
      $region13: #{transform_forward.11} parent=11 // pred_check
        %p262 = pneg %p128
      $region14: #{transform_forward.11} parent=11 // pred_check_branch
        %264 = sbr.rel (%p262) target = $region16
      $region15: #{transform_forward.11} parent=11 // pred_region
        _
      $region16: #{transform_forward.11} parent=11 // pred_fallthru
        _
      // Predicated region
      $region17: #{transform_forward.11} parent=11 // pred_check
        %p265 = pneg %p149
      $region18: #{transform_forward.11} parent=11 // pred_check_branch
        %267 = sbr.rel (%p265) target = $region20
      $region19: #{transform_forward.11} parent=11 // pred_region
        _
      $region20: #{transform_forward.11} parent=11 // pred_fallthru
        _
      // Predicated region
      $region21: #{transform_forward.11} parent=11 // pred_check
        %p268 = pneg %p170
      $region22: #{transform_forward.11} parent=11 // pred_check_branch
        %270 = sbr.rel (%p268) target = $region24
      $region23: #{transform_forward.11} parent=11 // pred_region
        _
      $region24: #{transform_forward.11} parent=11 // pred_fallthru
        _
      // Predicated region
      $region25: #{transform_forward.11} parent=11 // pred_check
        %p271 = pneg %p191
      $region26: #{transform_forward.11} parent=11 // pred_check_branch
        %273 = sbr.rel (%p271) target = $region28
      $region27: #{transform_forward.11} parent=11 // pred_region
        _
      $region28: #{transform_forward.11} parent=11 // pred_fallthru
        _
    $region12: #{transform_forward.11} parent=5 // pred_fallthru
      _
    %p274 = scmp.lt.s32.totalorder %s15, 2
    // Predicated region
    $region29: #{transform_forward.11} parent=5 // pred_check
      %p275 = pneg %p274
    $region30: #{transform_forward.11} parent=5 // pred_check_branch
      %277 = sbr.rel (%p275) target = $region32
    $region31: #{transform_forward.11} parent=5 // pred_region
      // Predicated region
      $region33: #{transform_forward.11} parent=31 // pred_check
        %p278 = pneg %p49
      $region34: #{transform_forward.11} parent=31 // pred_check_branch
        %280 = sbr.rel (%p278) target = $region36
      $region35: #{transform_forward.11} parent=31 // pred_region
        %s281 = smul.u32 8, %s23
        %p282 = scmp.lt.s32.totalorder %s22, 1
        %s283 = scalar_select %p282, %s22, 1
        %p284 = scmp.lt.s32.totalorder %s281, 7
        %s285 = scalar_select %p284, %s281, 7
        %s286 = smul.addr %s283, 8
        %s287 = sadd.s32 %s285, %s286
        %s288 = smul.addr %s287, 8
        %s289 = scalar_lea.vmem %s0, %s288
        %s290 = smul.u32 8, %s23
      $region36: #{transform_forward.11} parent=31 // pred_fallthru
        _
      // Predicated region
      $region37: #{transform_forward.11} parent=31 // pred_check
        %p291 = pneg %p75
      $region38: #{transform_forward.11} parent=31 // pred_check_branch
        %293 = sbr.rel (%p291) target = $region40
      $region39: #{transform_forward.11} parent=31 // pred_region
        %p294 = scmp.lt.s32.totalorder %s22, 1
        %s295 = scalar_select %p294, %s22, 1
        %s296 = scalar_lea.vmem %s1, %s295
      $region40: #{transform_forward.11} parent=31 // pred_fallthru
        _
      // Predicated region
      $region41: #{transform_forward.11} parent=31 // pred_check
        %p297 = pneg %p101
      $region42: #{transform_forward.11} parent=31 // pred_check_branch
        %299 = sbr.rel (%p297) target = $region44
      $region43: #{transform_forward.11} parent=31 // pred_region
        %p300 = scmp.lt.s32.totalorder %s22, 1
        %s301 = scalar_select %p300, %s22, 1
        %s302 = scalar_lea.vmem %s2, %s301
      $region44: #{transform_forward.11} parent=31 // pred_fallthru
        _
    $region32: #{transform_forward.11} parent=5 // pred_fallthru
      _
    %p303 = scmp.le.s32.totalorder 1, %s15
    %p304 = scmp.lt.s32.totalorder %s15, 3
    %p305 = pnand %p303, %p304
    %p306 = pneg %p305
    // Predicated region
    $region45: #{transform_forward.11} parent=5 // pred_check
      _
    $region46: #{transform_forward.11} parent=5 // pred_check_branch
      %308 = sbr.rel (%p305) target = $region48
    $region47: #{transform_forward.11} parent=5 // pred_region
      %s309 = ssub.s32 %s15, 1
      %s310 = smul.u32 8, %s25
      %p311 = scmp.lt.s32.totalorder %s24, 1
      %s312 = scalar_select %p311, %s24, 1
      %p313 = scmp.lt.s32.totalorder %s310, 7
      %s314 = scalar_select %p313, %s310, 7
      %s315 = smul.addr %s312, 8
      %s316 = sadd.s32 %s314, %s315
      %s317 = smul.addr %s316, 8
      %s318 = scalar_lea.vmem %s0, %s317
      %p319 = pneg %p55
      %p320 = pneg %p52
      %p321 = scmp.lt.s32.totalorder %s24, 1
      %s322 = scalar_select %p321, %s24, 1
      %s323 = scalar_lea.vmem %s1, %s322
      %p324 = pneg %p81
      %p325 = pneg %p78
      %p326 = scmp.lt.s32.totalorder %s24, 1
      %s327 = scalar_select %p326, %s24, 1
      %s328 = scalar_lea.vmem %s2, %s327
      %p329 = pneg %p107
      %p330 = pneg %p104
      %p331 = pneg %p128
      %p332 = pneg %p125
      %p333 = pneg %p149
      %p334 = pneg %p146
      %p335 = pneg %p170
      %p336 = pneg %p167
      %p337 = pneg %p191
      %p338 = pneg %p188
      %p339 = pneg %p219
      %p340 = pneg %p216
      %s341 = smul.u32 8, %s25
      %p342 = scmp.lt.s32.totalorder %s24, 1
      %s343 = scalar_select %p342, %s24, 1
      %p344 = scmp.lt.s32.totalorder %s341, 7
      %s345 = scalar_select %p344, %s341, 7
      %s346 = smul.addr %s343, 8
      %s347 = sadd.s32 %s345, %s346
      %s348 = smul.addr %s347, 4
      %s349 = scalar_lea.vmem %s7, %s348
      %p350 = pneg %p247
      %p351 = pneg %p244
      %s352 = smul.u32 8, %s25
      %p353 = scmp.lt.s32.totalorder %s24, 1
      %s354 = scalar_select %p353, %s24, 1
      %p355 = scmp.lt.s32.totalorder %s352, 7
      %s356 = scalar_select %p355, %s352, 7
      %s357 = smul.addr %s354, 8
      %s358 = sadd.s32 %s356, %s357
      %s359 = smul.addr %s358, 4
      %s360 = scalar_lea.vmem %s8, %s359
      %s361 = smul.u32 8, %s25
      %p362 = scmp.lt.s32.totalorder %s24, 1
      %s363 = scalar_select %p362, %s24, 1
      %p364 = scmp.lt.s32.totalorder %s361, 7
      %s365 = scalar_select %p364, %s361, 7
      %s366 = smul.addr %s363, 8
      %s367 = sadd.s32 %s365, %s366
      %s368 = smul.addr %s367, 8
      %s369 = scalar_lea.vmem %s0, %s368
      %s370 = smul.u32 8, %s25
      %p371 = scmp.lt.s32.totalorder %s24, 1
      %s372 = scalar_select %p371, %s24, 1
      %s373 = scalar_lea.vmem %s1, %s372
      %p374 = scmp.lt.s32.totalorder %s24, 1
      %s375 = scalar_select %p374, %s24, 1
      %s376 = scalar_lea.vmem %s2, %s375
      %s377 = smul.u32 8, %s25
      %p378 = scmp.lt.s32.totalorder %s24, 1
      %s379 = scalar_select %p378, %s24, 1
      %p380 = scmp.lt.s32.totalorder %s377, 7
      %s381 = scalar_select %p380, %s377, 7
      %s382 = smul.addr %s379, 8
      %s383 = sadd.s32 %s381, %s382
      %s384 = smul.addr %s383, 4
      %s385 = scalar_lea.vmem %s7, %s384
      %s386 = smul.u32 8, %s25
      %s387 = smul.u32 8, %s25
      %p388 = scmp.lt.s32.totalorder %s24, 1
      %s389 = scalar_select %p388, %s24, 1
      %p390 = scmp.lt.s32.totalorder %s387, 7
      %s391 = scalar_select %p390, %s387, 7
      %s392 = smul.addr %s389, 8
      %s393 = sadd.s32 %s391, %s392
      %s394 = smul.addr %s393, 4
      %s395 = scalar_lea.vmem %s8, %s394
      %s396 = smul.u32 8, %s25
      %v398 = vld [vmem:[%s369] sm:$0xff]
      %v399 = vld [vmem:[%s369 + $0x8] sm:$0xff]
      %v400 = vld [vmem:[%s369 + $0x10] sm:$0xff]
      %v401 = vld [vmem:[%s369 + $0x18] sm:$0xff]
      %v402 = vld [vmem:[%s369 + $0x20] sm:$0xff]
      %v403 = vld [vmem:[%s369 + $0x28] sm:$0xff]
      %v404 = vld [vmem:[%s369 + $0x30] sm:$0xff]
      %v405 = vld [vmem:[%s369 + $0x38] sm:$0xff]
      %v406 = vld [vmem:[%s373] sm:$0x1]
      %v408 = vlaneseq
      %v409 = vshrl.u32 %v408, 7
      %v410 = vsub.s32 0, %v409
      %v411 = vrot.slane %v406, %v410
      %v413 = vsub.f32 %v398, %v411
      %v414 = vsub.f32 %v399, %v411
      %v415 = vsub.f32 %v400, %v411
      %v416 = vsub.f32 %v401, %v411
      %v417 = vsub.f32 %v402, %v411
      %v418 = vsub.f32 %v403, %v411
      %v419 = vsub.f32 %v404, %v411
      %v420 = vsub.f32 %v405, %v411
      %v421 = vld [vmem:[%s376] sm:$0x1]
      %v423 = vlaneseq
      %v424 = vshrl.u32 %v423, 7
      %v425 = vsub.s32 0, %v424
      %v426 = vrot.slane %v421, %v425
      %v428 = vmul.f32 %v413, %v426
      %v429 = vmul.f32 %v414, %v426
      %v430 = vmul.f32 %v415, %v426
      %v431 = vmul.f32 %v416, %v426
      %v432 = vmul.f32 %v417, %v426
      %v433 = vmul.f32 %v418, %v426
      %v434 = vmul.f32 %v419, %v426
      %v435 = vmul.f32 %v420, %v426
      %v436 = vpack.c.bf16 %v429, %v428
      %v437 = vpack.c.bf16 %v431, %v430
      %v438 = vpack.c.bf16 %v433, %v432
      %v439 = vpack.c.bf16 %v435, %v434
      %v440 = vld [vmem:[%s3] sm:$0xf]
      %v441 = vld [vmem:[%s3 + $0x4] sm:$0xf]
      %v442 = vld [vmem:[%s3 + $0x8] sm:$0xf]
      %v443 = vld [vmem:[%s3 + $0xc] sm:$0xf]
      %v444 = vld [vmem:[%s4] sm:$0x1]
      %v446 = vlaneseq
      %v447 = vshrl.u32 %v446, 7
      %v448 = vsub.s32 0, %v447
      %v449 = vrot.slane %v444, %v448
      %v455 = vunpack.c.l.b16 %v440
      %v456 = vunpack.c.l.b16 %v441
      %v457 = vunpack.c.l.b16 %v442
      %v458 = vunpack.c.l.b16 %v443
      %v459 = vpack.c.b16 %v456, %v455
      %v460 = vpack.c.b16 %v458, %v457
      %vm463 = vcmask 261120
      %v465 = vsel %vm463, %v436, 0
      %v468 = vsel %vm463, %v437, 0
      %v471 = vsel %vm463, %v438, 0
      %v474 = vsel %vm463, %v439, 0
      %476 = vmatprep.subr.bf16.mxu0 0
      %477 = vmatpush1.bf16.msra.mxu0 %v459
      %478 = vmatprep.subr.bf16.mxu0 0
      %479 = vmatpush1.bf16.msra.mxu0 %v460
      %480 = vmatprep.subr.bf16.mxu0 0
      %481 = vmatpush1.bf16.msra.mxu0 0
      %482 = vmatprep.subr.bf16.mxu0 0
      %483 = vmatpush1.bf16.msra.mxu0 0
      %484 = vmatprep.subr.bf16.mxu0 0
      %485 = vmatpush1.bf16.msra.mxu0 0
      %486 = vmatprep.subr.bf16.mxu0 0
      %487 = vmatpush1.bf16.msra.mxu0 0
      %488 = vmatprep.subr.bf16.mxu0 0
      %489 = vmatpush1.bf16.msra.mxu0 0
      %490 = vmatprep.subr.bf16.mxu0 0
      %491 = vmatpush1.bf16.msra.mxu0 0
      %492 = vmatprep.subr.bf16.mxu0 0
      %493 = vmatpush1.bf16.msra.mxu0 0
      %494 = vmatprep.subr.bf16.mxu0 0
      %495 = vmatpush1.bf16.msra.mxu0 0
      %496 = vmatprep.subr.bf16.mxu0 0
      %497 = vmatpush1.bf16.msra.mxu0 0
      %498 = vmatprep.subr.bf16.mxu0 0
      %499 = vmatpush1.bf16.msra.mxu0 0
      %500 = vmatprep.subr.bf16.mxu0 0
      %501 = vmatpush1.bf16.msra.mxu0 0
      %502 = vmatprep.subr.bf16.mxu0 0
      %503 = vmatpush1.bf16.msra.mxu0 0
      %504 = vmatprep.subr.bf16.mxu0 0
      %505 = vmatpush1.bf16.msra.mxu0 0
      %506 = vmatprep.subr.bf16.mxu0 0
      %507 = vmatpush1.bf16.msra.mxu0 0
      %508 = vmatprep.mubr.bf16.mxu0 0
      %509 = vmatmul.mubr.bf16.gmra.mrb[0].mxu0 %v465
      %v510 = vpop.f32.mrb[0].mxu0
      %v511 = vadd.f32 %v449, %v510
      %v512 = vpop.f32.mrb[0].mxu0
      %v513 = vpop.f32.mrb[0].mxu0
      %v514 = vadd.f32 %v449, %v513
      %v515 = vpop.f32.mrb[0].mxu0
      %516 = vmatprep.mubr.bf16.mxu0 0
      %517 = vmatmul.mubr.bf16.gmra.mrb[0].mxu0 %v468
      %v518 = vpop.f32.mrb[0].mxu0
      %v519 = vadd.f32 %v449, %v518
      %v520 = vpop.f32.mrb[0].mxu0
      %v521 = vpop.f32.mrb[0].mxu0
      %v522 = vadd.f32 %v449, %v521
      %v523 = vpop.f32.mrb[0].mxu0
      %524 = vmatprep.mubr.bf16.mxu0 0
      %525 = vmatmul.mubr.bf16.gmra.mrb[0].mxu0 %v471
      %v526 = vpop.f32.mrb[0].mxu0
      %v527 = vadd.f32 %v449, %v526
      %v528 = vpop.f32.mrb[0].mxu0
      %v529 = vpop.f32.mrb[0].mxu0
      %v530 = vadd.f32 %v449, %v529
      %v531 = vpop.f32.mrb[0].mxu0
      %532 = vmatprep.mubr.bf16.mxu0 0
      %533 = vmatmul.mubr.bf16.gmra.mrb[0].mxu0 %v474
      %v534 = vpop.f32.mrb[0].mxu0
      %v535 = vadd.f32 %v449, %v534
      %v536 = vpop.f32.mrb[0].mxu0
      %v537 = vpop.f32.mrb[0].mxu0
      %v538 = vadd.f32 %v449, %v537
      %v539 = vpop.f32.mrb[0].mxu0
      %540 = vdwg.mxu0
      %v541 = vpack.c.bf16 %v514, %v511
      %v542 = vpack.c.bf16 %v522, %v519
      %v543 = vpack.c.bf16 %v530, %v527
      %v544 = vpack.c.bf16 %v538, %v535
      %v549 = vunpack.c.l.b16 %v541
      %v550 = vunpack.c.h.b16 %v541
      %v551 = vunpack.c.l.b16 %v542
      %v552 = vunpack.c.h.b16 %v542
      %v553 = vunpack.c.l.b16 %v543
      %v554 = vunpack.c.h.b16 %v543
      %v555 = vunpack.c.l.b16 %v544
      %v556 = vunpack.c.h.b16 %v544
      %v557 = vpack.c.b16 %v549, %v549
      %v558 = vpack.c.b16 %v550, %v550
      %v559 = vpack.c.b16 %v551, %v551
      %v560 = vpack.c.b16 %v552, %v552
      %v561 = vpack.c.b16 %v553, %v553
      %v562 = vpack.c.b16 %v554, %v554
      %v563 = vpack.c.b16 %v555, %v555
      %v564 = vpack.c.b16 %v556, %v556
      %vm573 = vcmask 257024
      %574 = vst.msk [vmem:[%s385] sm:$0xf] %vm573, %v557
      %575 = vst.msk [vmem:[%s385 + $0x4] sm:$0xf] %vm573, %v558
      %576 = vst.msk [vmem:[%s385 + $0x8] sm:$0xf] %vm573, %v559
      %577 = vst.msk [vmem:[%s385 + $0xc] sm:$0xf] %vm573, %v560
      %578 = vst.msk [vmem:[%s385 + $0x10] sm:$0xf] %vm573, %v561
      %579 = vst.msk [vmem:[%s385 + $0x14] sm:$0xf] %vm573, %v562
      %580 = vst.msk [vmem:[%s385 + $0x18] sm:$0xf] %vm573, %v563
      %581 = vst.msk [vmem:[%s385 + $0x1c] sm:$0xf] %vm573, %v564
      %v582 = vpack.c.bf16 %v399, %v398
      %v583 = vpack.c.bf16 %v401, %v400
      %v584 = vpack.c.bf16 %v403, %v402
      %v585 = vpack.c.bf16 %v405, %v404
      %v586 = vld [vmem:[%s5] sm:$0xf]
      %v587 = vld [vmem:[%s5 + $0x4] sm:$0xf]
      %v588 = vld [vmem:[%s5 + $0x8] sm:$0xf]
      %v589 = vld [vmem:[%s5 + $0xc] sm:$0xf]
      %v590 = vld [vmem:[%s6] sm:$0x1]
      %v592 = vlaneseq
      %v593 = vshrl.u32 %v592, 7
      %v594 = vsub.s32 0, %v593
      %v595 = vrot.slane %v590, %v594
      %v601 = vunpack.c.l.b16 %v586
      %v602 = vunpack.c.l.b16 %v587
      %v603 = vunpack.c.l.b16 %v588
      %v604 = vunpack.c.l.b16 %v589
      %v605 = vpack.c.b16 %v602, %v601
      %v606 = vpack.c.b16 %v604, %v603
      %v610 = vsel %vm463, %v582, 0
      %v613 = vsel %vm463, %v583, 0
      %v616 = vsel %vm463, %v584, 0
      %v619 = vsel %vm463, %v585, 0
      %621 = vmatprep.subr.bf16.mxu0 0
      %622 = vmatpush1.bf16.msra.mxu0 %v605
      %623 = vmatprep.subr.bf16.mxu0 0
      %624 = vmatpush1.bf16.msra.mxu0 %v606
      %625 = vmatprep.subr.bf16.mxu0 0
      %626 = vmatpush1.bf16.msra.mxu0 0
      %627 = vmatprep.subr.bf16.mxu0 0
      %628 = vmatpush1.bf16.msra.mxu0 0
      %629 = vmatprep.subr.bf16.mxu0 0
      %630 = vmatpush1.bf16.msra.mxu0 0
      %631 = vmatprep.subr.bf16.mxu0 0
      %632 = vmatpush1.bf16.msra.mxu0 0
      %633 = vmatprep.subr.bf16.mxu0 0
      %634 = vmatpush1.bf16.msra.mxu0 0
      %635 = vmatprep.subr.bf16.mxu0 0
      %636 = vmatpush1.bf16.msra.mxu0 0
      %637 = vmatprep.subr.bf16.mxu0 0
      %638 = vmatpush1.bf16.msra.mxu0 0
      %639 = vmatprep.subr.bf16.mxu0 0
      %640 = vmatpush1.bf16.msra.mxu0 0
      %641 = vmatprep.subr.bf16.mxu0 0
      %642 = vmatpush1.bf16.msra.mxu0 0
      %643 = vmatprep.subr.bf16.mxu0 0
      %644 = vmatpush1.bf16.msra.mxu0 0
      %645 = vmatprep.subr.bf16.mxu0 0
      %646 = vmatpush1.bf16.msra.mxu0 0
      %647 = vmatprep.subr.bf16.mxu0 0
      %648 = vmatpush1.bf16.msra.mxu0 0
      %649 = vmatprep.subr.bf16.mxu0 0
      %650 = vmatpush1.bf16.msra.mxu0 0
      %651 = vmatprep.subr.bf16.mxu0 0
      %652 = vmatpush1.bf16.msra.mxu0 0
      %653 = vmatprep.mubr.bf16.mxu0 0
      %654 = vmatmul.mubr.bf16.gmra.mrb[0].mxu0 %v610
      %v655 = vpop.f32.mrb[0].mxu0
      %v656 = vadd.f32 %v595, %v655
      %v657 = vpop.f32.mrb[0].mxu0
      %v658 = vpop.f32.mrb[0].mxu0
      %v659 = vadd.f32 %v595, %v658
      %v660 = vpop.f32.mrb[0].mxu0
      %661 = vmatprep.mubr.bf16.mxu0 0
      %662 = vmatmul.mubr.bf16.gmra.mrb[0].mxu0 %v613
      %v663 = vpop.f32.mrb[0].mxu0
      %v664 = vadd.f32 %v595, %v663
      %v665 = vpop.f32.mrb[0].mxu0
      %v666 = vpop.f32.mrb[0].mxu0
      %v667 = vadd.f32 %v595, %v666
      %v668 = vpop.f32.mrb[0].mxu0
      %669 = vmatprep.mubr.bf16.mxu0 0
      %670 = vmatmul.mubr.bf16.gmra.mrb[0].mxu0 %v616
      %v671 = vpop.f32.mrb[0].mxu0
      %v672 = vadd.f32 %v595, %v671
      %v673 = vpop.f32.mrb[0].mxu0
      %v674 = vpop.f32.mrb[0].mxu0
      %v675 = vadd.f32 %v595, %v674
      %v676 = vpop.f32.mrb[0].mxu0
      %677 = vmatprep.mubr.bf16.mxu0 0
      %678 = vmatmul.mubr.bf16.gmra.mrb[0].mxu0 %v619
      %v679 = vpop.f32.mrb[0].mxu0
      %v680 = vadd.f32 %v595, %v679
      %v681 = vpop.f32.mrb[0].mxu0
      %v682 = vpop.f32.mrb[0].mxu0
      %v683 = vadd.f32 %v595, %v682
      %v684 = vpop.f32.mrb[0].mxu0
      %685 = vdwg.mxu0
      %v686 = vpack.c.bf16 %v659, %v656
      %v687 = vpack.c.bf16 %v667, %v664
      %v688 = vpack.c.bf16 %v675, %v672
      %v689 = vpack.c.bf16 %v683, %v680
      %v694 = vunpack.c.l.b16 %v686
      %v695 = vunpack.c.h.b16 %v686
      %v696 = vunpack.c.l.b16 %v687
      %v697 = vunpack.c.h.b16 %v687
      %v698 = vunpack.c.l.b16 %v688
      %v699 = vunpack.c.h.b16 %v688
      %v700 = vunpack.c.l.b16 %v689
      %v701 = vunpack.c.h.b16 %v689
      %v702 = vpack.c.b16 %v694, %v694
      %v703 = vpack.c.b16 %v695, %v695
      %v704 = vpack.c.b16 %v696, %v696
      %v705 = vpack.c.b16 %v697, %v697
      %v706 = vpack.c.b16 %v698, %v698
      %v707 = vpack.c.b16 %v699, %v699
      %v708 = vpack.c.b16 %v700, %v700
      %v709 = vpack.c.b16 %v701, %v701
      %718 = vst.msk [vmem:[%s395] sm:$0xf] %vm573, %v702
      %719 = vst.msk [vmem:[%s395 + $0x4] sm:$0xf] %vm573, %v703
      %720 = vst.msk [vmem:[%s395 + $0x8] sm:$0xf] %vm573, %v704
      %721 = vst.msk [vmem:[%s395 + $0xc] sm:$0xf] %vm573, %v705
      %722 = vst.msk [vmem:[%s395 + $0x10] sm:$0xf] %vm573, %v706
      %723 = vst.msk [vmem:[%s395 + $0x14] sm:$0xf] %vm573, %v707
      %724 = vst.msk [vmem:[%s395 + $0x18] sm:$0xf] %vm573, %v708
      %725 = vst.msk [vmem:[%s395 + $0x1c] sm:$0xf] %vm573, %v709
      %s726 = smul.u32 8, %s25
      %p727 = scmp.lt.s32.totalorder %s24, 1
      %s728 = scalar_select %p727, %s24, 1
      %p729 = scmp.lt.s32.totalorder %s726, 7
      %s730 = scalar_select %p729, %s726, 7
      %s731 = smul.addr %s728, 8
      %s732 = sadd.s32 %s730, %s731
      %s733 = smul.addr %s732, 4
      %s734 = scalar_lea.vmem %s7, %s733
      %s735 = smul.u32 8, %s25
      %p736 = scmp.lt.s32.totalorder %s24, 1
      %s737 = scalar_select %p736, %s24, 1
      %p738 = scmp.lt.s32.totalorder %s735, 7
      %s739 = scalar_select %p738, %s735, 7
      %s740 = smul.addr %s737, 8
      %s741 = sadd.s32 %s739, %s740
      %s742 = smul.addr %s741, 4
      %s743 = scalar_lea.vmem %s8, %s742
      // Predicated region
      $region49: #{transform_forward.11} parent=47 // pred_check
        %p744 = pneg %p216
      $region50: #{transform_forward.11} parent=47 // pred_check_branch
        %746 = sbr.rel (%p744) target = $region52
      $region51: #{transform_forward.11} parent=47 // pred_region
        %s747 = smul.u32 8, %s25
      $region52: #{transform_forward.11} parent=47 // pred_fallthru
        _
      // Predicated region
      $region53: #{transform_forward.11} parent=47 // pred_check
        %p748 = pneg %p244
      $region54: #{transform_forward.11} parent=47 // pred_check_branch
        %750 = sbr.rel (%p748) target = $region56
      $region55: #{transform_forward.11} parent=47 // pred_region
        %s751 = smul.u32 8, %s25
      $region56: #{transform_forward.11} parent=47 // pred_fallthru
        _
    $region48: #{transform_forward.11} parent=5 // pred_fallthru
      _
    %p752 = scmp.le.s32.totalorder 2, %s15
    // Predicated region
    $region57: #{transform_forward.11} parent=5 // pred_check
      %p753 = pneg %p752
    $region58: #{transform_forward.11} parent=5 // pred_check_branch
      %755 = sbr.rel (%p753) target = $region60
    $region59: #{transform_forward.11} parent=5 // pred_region
      %s756 = ssub.s32 %s15, 2
      // Predicated region
      $region61: #{transform_forward.11} parent=59 // pred_check
        %p757 = pneg %p222
      $region62: #{transform_forward.11} parent=59 // pred_check_branch
        %759 = sbr.rel (%p757) target = $region64
      $region63: #{transform_forward.11} parent=59 // pred_region
        %s760 = smul.u32 8, %s27
        %p761 = scmp.lt.s32.totalorder %s26, 1
        %s762 = scalar_select %p761, %s26, 1
        %p763 = scmp.lt.s32.totalorder %s760, 7
        %s764 = scalar_select %p763, %s760, 7
        %s765 = smul.addr %s762, 8
        %s766 = sadd.s32 %s764, %s765
        %s767 = smul.addr %s766, 4
        %s768 = scalar_lea.vmem %s7, %s767
      $region64: #{transform_forward.11} parent=59 // pred_fallthru
        _
      // Predicated region
      $region65: #{transform_forward.11} parent=59 // pred_check
        %p769 = pneg %p250
      $region66: #{transform_forward.11} parent=59 // pred_check_branch
        %771 = sbr.rel (%p769) target = $region68
      $region67: #{transform_forward.11} parent=59 // pred_region
        %s772 = smul.u32 8, %s27
        %p773 = scmp.lt.s32.totalorder %s26, 1
        %s774 = scalar_select %p773, %s26, 1
        %p775 = scmp.lt.s32.totalorder %s772, 7
        %s776 = scalar_select %p775, %s772, 7
        %s777 = smul.addr %s774, 8
        %s778 = sadd.s32 %s776, %s777
        %s779 = smul.addr %s778, 4
        %s780 = scalar_lea.vmem %s8, %s779
      $region68: #{transform_forward.11} parent=59 // pred_fallthru
        _
    $region60: #{transform_forward.11} parent=5 // pred_fallthru
      _
  $region6: #{transform_forward.11} parent=0 // loop_footer
    %s19 = sadd.s32 1, %s15
  $region7: #{transform_forward.11} parent=0 // loop_footer_branch
    %14 = sbr.rel target = $region3
  $region8: #{transform_forward.11} parent=0 // loop_exit
    _

// kernel: transform_forward.7
$region0: #{transform_forward.7}
  #allocation0 [shape = 'u32[]', space=smem, size = 0x4, offset = 0x4, fixed_abs, tag = 'smem constant byte address 0x4 - core index']
  #allocation1 [shape = 'u32[144,128]{1,0:T(1,128)}', space=vmem, size = 0x12000, scoped, tag = 'internal scratch']
  %s0 = inlined_call_operand.vmem [shape: f32[2,256,32], index: 0, kind: input, shape index: {}]
  %s1 = inlined_call_operand.vmem [shape: f32[2,1,32], index: 1, kind: input, shape index: {}]
  %s2 = inlined_call_operand.vmem [shape: f32[2,1,32], index: 2, kind: input, shape index: {}]
  %s3 = inlined_call_operand.vmem [shape: bf16[32,32], index: 3, kind: input, shape index: {}]
  %s4 = inlined_call_operand.vmem [shape: f32[1,32], index: 4, kind: input, shape index: {}]
  %s5 = inlined_call_operand.vmem [shape: bf16[2,256,32], index: 5, kind: output, shape index: {}]
  %s6 = sld [smem:[#allocation0]]
  $region53: #{transform_forward.7} parent=0
    _
  %s8 = ssub.s32 1, %s6
  %s9 = scalar_select 0, %s8, %s6
  loop: start=0, step=1, limit=6
  $region2: #{transform_forward.7} parent=0 // loop_pre_header
    _
  $region3: #{transform_forward.7} parent=0 // loop_header
    %s11 = sphi 0, %s15
    %p12 = scmp.ge.s32.totalorder %s11, 6
    %s18 = sphi 0, %s30
    %s19 = sphi 0, %s26
    %s20 = sphi 0, %s18
    %s21 = sphi 0, %s19
    %s22 = sphi 0, %s20
    %s23 = sphi 0, %s21
    %s35 = sphi 0, %s37
    %s38 = sphi 0, %s35
    %s39 = sphi 0, %s38
    %s55 = sphi 0, %s39
    %s61 = sphi 0, %s63
    %s64 = sphi 0, %s61
    %s65 = sphi 0, %s64
    %s81 = sphi 0, %s65
    %s87 = sphi 0, %s89
    %s90 = sphi 0, %s87
    %s91 = sphi 0, %s90
    %s107 = sphi 0, %s91
    %s111 = sphi 0, %s111
    %s113 = sphi 0, %s111
    %s114 = sphi 0, %s113
    %s128 = sphi 0, %s114
    %s132 = sphi 0, %s132
    %s134 = sphi 0, %s132
    %s135 = sphi 0, %s134
    %s149 = sphi 0, %s135
    %s157 = sphi 0, %s159
    %s160 = sphi 0, %s157
    %s161 = sphi 0, %s160
    %s177 = sphi 0, %s161
  $region4: #{transform_forward.7} parent=0 // loop_header_branch
    %14 = sbr.rel (%p12) target = $region8
  $region5: #{transform_forward.7} parent=0 // loop_body
    %s16 = ssub.s32 %s11, 1
    %s17 = ssub.s32 %s11, 2
    %s24 = sadd.s32 1, %s19
    %p25 = scmp.ge.s32.totalorder %s24, 2
    %s26 = scalar_select %p25, 0, %s24
    %s27 = sadd.s32 1, %s18
    %s28 = scalar_select %p25, %s27, %s18
    %p29 = scmp.ge.s32.totalorder %s28, 2
    %s30 = scalar_select %p29, 0, %s28
    %s31 = ssub.s32 %s18, %s30
    %s32 = ssub.s32 %s19, %s26
    %s33 = sor.u32 %s31, %s32
    %p34 = scmp.eq.s32.totalorder %s33, 0
    %s36 = sadd.s32 %s35, 1
    %s37 = scalar_select %p34, %s35, %s36
    %p40 = pneg %p34
    %p41 = scmp.eq.s32.totalorder %s11, 3
    %p42 = por %p40, %p41
    %p43 = scmp.ne.s32.totalorder %s35, %s38
    %p44 = scmp.eq.s32.totalorder %s11, 0
    %p45 = por %p43, %p44
    %p46 = scmp.ne.s32.totalorder %s35, %s38
    %p47 = scmp.eq.s32.totalorder %s16, 3
    %p48 = por %p46, %p47
    %p49 = scmp.ne.s32.totalorder %s38, %s39
    %p50 = scmp.eq.s32.totalorder %s16, 0
    %p51 = por %p49, %p50
    %p52 = scmp.ne.s32.totalorder %s38, %s39
    %p53 = scmp.eq.s32.totalorder %s17, 3
    %p54 = por %p52, %p53
    %p56 = scmp.ne.s32.totalorder %s39, %s55
    %p57 = scmp.eq.s32.totalorder %s17, 0
    %p58 = por %p56, %p57
    %s59 = ssub.s32 %s18, %s30
    %p60 = scmp.eq.s32.totalorder %s59, 0
    %s62 = sadd.s32 %s61, 1
    %s63 = scalar_select %p60, %s61, %s62
    %p66 = pneg %p60
    %p67 = scmp.eq.s32.totalorder %s11, 3
    %p68 = por %p66, %p67
    %p69 = scmp.ne.s32.totalorder %s61, %s64
    %p70 = scmp.eq.s32.totalorder %s11, 0
    %p71 = por %p69, %p70
    %p72 = scmp.ne.s32.totalorder %s61, %s64
    %p73 = scmp.eq.s32.totalorder %s16, 3
    %p74 = por %p72, %p73
    %p75 = scmp.ne.s32.totalorder %s64, %s65
    %p76 = scmp.eq.s32.totalorder %s16, 0
    %p77 = por %p75, %p76
    %p78 = scmp.ne.s32.totalorder %s64, %s65
    %p79 = scmp.eq.s32.totalorder %s17, 3
    %p80 = por %p78, %p79
    %p82 = scmp.ne.s32.totalorder %s65, %s81
    %p83 = scmp.eq.s32.totalorder %s17, 0
    %p84 = por %p82, %p83
    %s85 = ssub.s32 %s18, %s30
    %p86 = scmp.eq.s32.totalorder %s85, 0
    %s88 = sadd.s32 %s87, 1
    %s89 = scalar_select %p86, %s87, %s88
    %p92 = pneg %p86
    %p93 = scmp.eq.s32.totalorder %s11, 3
    %p94 = por %p92, %p93
    %p95 = scmp.ne.s32.totalorder %s87, %s90
    %p96 = scmp.eq.s32.totalorder %s11, 0
    %p97 = por %p95, %p96
    %p98 = scmp.ne.s32.totalorder %s87, %s90
    %p99 = scmp.eq.s32.totalorder %s16, 3
    %p100 = por %p98, %p99
    %p101 = scmp.ne.s32.totalorder %s90, %s91
    %p102 = scmp.eq.s32.totalorder %s16, 0
    %p103 = por %p101, %p102
    %p104 = scmp.ne.s32.totalorder %s90, %s91
    %p105 = scmp.eq.s32.totalorder %s17, 3
    %p106 = por %p104, %p105
    %p108 = scmp.ne.s32.totalorder %s91, %s107
    %p109 = scmp.eq.s32.totalorder %s17, 0
    %p110 = por %p108, %p109
    %s112 = sadd.s32 %s111, 1
    %p115 = scmp.eq.s32.totalorder %s11, 3
    %p116 = scmp.ne.s32.totalorder %s111, %s113
    %p117 = scmp.eq.s32.totalorder %s11, 0
    %p118 = por %p116, %p117
    %p119 = scmp.ne.s32.totalorder %s111, %s113
    %p120 = scmp.eq.s32.totalorder %s16, 3
    %p121 = por %p119, %p120
    %p122 = scmp.ne.s32.totalorder %s113, %s114
    %p123 = scmp.eq.s32.totalorder %s16, 0
    %p124 = por %p122, %p123
    %p125 = scmp.ne.s32.totalorder %s113, %s114
    %p126 = scmp.eq.s32.totalorder %s17, 3
    %p127 = por %p125, %p126
    %p129 = scmp.ne.s32.totalorder %s114, %s128
    %p130 = scmp.eq.s32.totalorder %s17, 0
    %p131 = por %p129, %p130
    %s133 = sadd.s32 %s132, 1
    %p136 = scmp.eq.s32.totalorder %s11, 3
    %p137 = scmp.ne.s32.totalorder %s132, %s134
    %p138 = scmp.eq.s32.totalorder %s11, 0
    %p139 = por %p137, %p138
    %p140 = scmp.ne.s32.totalorder %s132, %s134
    %p141 = scmp.eq.s32.totalorder %s16, 3
    %p142 = por %p140, %p141
    %p143 = scmp.ne.s32.totalorder %s134, %s135
    %p144 = scmp.eq.s32.totalorder %s16, 0
    %p145 = por %p143, %p144
    %p146 = scmp.ne.s32.totalorder %s134, %s135
    %p147 = scmp.eq.s32.totalorder %s17, 3
    %p148 = por %p146, %p147
    %p150 = scmp.ne.s32.totalorder %s135, %s149
    %p151 = scmp.eq.s32.totalorder %s17, 0
    %p152 = por %p150, %p151
    %s153 = ssub.s32 %s18, %s30
    %s154 = ssub.s32 %s19, %s26
    %s155 = sor.u32 %s153, %s154
    %p156 = scmp.eq.s32.totalorder %s155, 0
    %s158 = sadd.s32 %s157, 1
    %s159 = scalar_select %p156, %s157, %s158
    %p162 = pneg %p156
    %p163 = scmp.eq.s32.totalorder %s11, 3
    %p164 = por %p162, %p163
    %p165 = scmp.ne.s32.totalorder %s157, %s160
    %p166 = scmp.eq.s32.totalorder %s11, 0
    %p167 = por %p165, %p166
    %p168 = scmp.ne.s32.totalorder %s157, %s160
    %p169 = scmp.eq.s32.totalorder %s16, 3
    %p170 = por %p168, %p169
    %p171 = scmp.ne.s32.totalorder %s160, %s161
    %p172 = scmp.eq.s32.totalorder %s16, 0
    %p173 = por %p171, %p172
    %p174 = scmp.ne.s32.totalorder %s160, %s161
    %p175 = scmp.eq.s32.totalorder %s17, 3
    %p176 = por %p174, %p175
    %p178 = scmp.ne.s32.totalorder %s161, %s177
    %p179 = scmp.eq.s32.totalorder %s17, 0
    %p180 = por %p178, %p179
    %p181 = scmp.le.s32.totalorder 1, %s11
    %p182 = scmp.lt.s32.totalorder %s11, 5
    %p183 = pnand %p181, %p182
    %p184 = pneg %p183
    // Predicated region
    $region9: #{transform_forward.7} parent=5 // pred_check
      _
    $region10: #{transform_forward.7} parent=5 // pred_check_branch
      %186 = sbr.rel (%p183) target = $region12
    $region11: #{transform_forward.7} parent=5 // pred_region
      %s187 = ssub.s32 %s11, 1
      // Predicated region
      $region13: #{transform_forward.7} parent=11 // pred_check
        %p188 = pneg %p124
      $region14: #{transform_forward.7} parent=11 // pred_check_branch
        %190 = sbr.rel (%p188) target = $region16
      $region15: #{transform_forward.7} parent=11 // pred_region
        _
      $region16: #{transform_forward.7} parent=11 // pred_fallthru
        _
      // Predicated region
      $region17: #{transform_forward.7} parent=11 // pred_check
        %p191 = pneg %p145
      $region18: #{transform_forward.7} parent=11 // pred_check_branch
        %193 = sbr.rel (%p191) target = $region20
      $region19: #{transform_forward.7} parent=11 // pred_region
        _
      $region20: #{transform_forward.7} parent=11 // pred_fallthru
        _
    $region12: #{transform_forward.7} parent=5 // pred_fallthru
      _
    %p194 = scmp.lt.s32.totalorder %s11, 4
    // Predicated region
    $region21: #{transform_forward.7} parent=5 // pred_check
      %p195 = pneg %p194
    $region22: #{transform_forward.7} parent=5 // pred_check_branch
      %197 = sbr.rel (%p195) target = $region24
    $region23: #{transform_forward.7} parent=5 // pred_region
      // Predicated region
      $region25: #{transform_forward.7} parent=23 // pred_check
        %p198 = pneg %p45
      $region26: #{transform_forward.7} parent=23 // pred_check_branch
        %200 = sbr.rel (%p198) target = $region28
      $region27: #{transform_forward.7} parent=23 // pred_region
        %s201 = smul.u32 16, %s19
        %p202 = scmp.lt.s32.totalorder %s18, 1
        %s203 = scalar_select %p202, %s18, 1
        %p204 = scmp.lt.s32.totalorder %s201, 31
        %s205 = scalar_select %p204, %s201, 31
        %s206 = smul.addr %s203, 32
        %s207 = sadd.s32 %s205, %s206
        %s208 = smul.addr %s207, 8
        %s209 = scalar_lea.vmem %s0, %s208
        %s210 = smul.u32 16, %s19
      $region28: #{transform_forward.7} parent=23 // pred_fallthru
        _
      // Predicated region
      $region29: #{transform_forward.7} parent=23 // pred_check
        %p211 = pneg %p71
      $region30: #{transform_forward.7} parent=23 // pred_check_branch
        %213 = sbr.rel (%p211) target = $region32
      $region31: #{transform_forward.7} parent=23 // pred_region
        %p214 = scmp.lt.s32.totalorder %s18, 1
        %s215 = scalar_select %p214, %s18, 1
        %s216 = scalar_lea.vmem %s1, %s215
      $region32: #{transform_forward.7} parent=23 // pred_fallthru
        _
      // Predicated region
      $region33: #{transform_forward.7} parent=23 // pred_check
        %p217 = pneg %p97
      $region34: #{transform_forward.7} parent=23 // pred_check_branch
        %219 = sbr.rel (%p217) target = $region36
      $region35: #{transform_forward.7} parent=23 // pred_region
        %p220 = scmp.lt.s32.totalorder %s18, 1
        %s221 = scalar_select %p220, %s18, 1
        %s222 = scalar_lea.vmem %s2, %s221
      $region36: #{transform_forward.7} parent=23 // pred_fallthru
        _
    $region24: #{transform_forward.7} parent=5 // pred_fallthru
      _
    %p223 = scmp.le.s32.totalorder 1, %s11
    %p224 = scmp.lt.s32.totalorder %s11, 5
    %p225 = pnand %p223, %p224
    %p226 = pneg %p225
    // Predicated region
    $region37: #{transform_forward.7} parent=5 // pred_check
      _
    $region38: #{transform_forward.7} parent=5 // pred_check_branch
      %228 = sbr.rel (%p225) target = $region40
    $region39: #{transform_forward.7} parent=5 // pred_region
      %s229 = ssub.s32 %s11, 1
      %s230 = smul.u32 16, %s21
      %p231 = scmp.lt.s32.totalorder %s20, 1
      %s232 = scalar_select %p231, %s20, 1
      %p233 = scmp.lt.s32.totalorder %s230, 31
      %s234 = scalar_select %p233, %s230, 31
      %s235 = smul.addr %s232, 32
      %s236 = sadd.s32 %s234, %s235
      %s237 = smul.addr %s236, 8
      %s238 = scalar_lea.vmem %s0, %s237
      %p239 = pneg %p51
      %p240 = pneg %p48
      %p241 = scmp.lt.s32.totalorder %s20, 1
      %s242 = scalar_select %p241, %s20, 1
      %s243 = scalar_lea.vmem %s1, %s242
      %p244 = pneg %p77
      %p245 = pneg %p74
      %p246 = scmp.lt.s32.totalorder %s20, 1
      %s247 = scalar_select %p246, %s20, 1
      %s248 = scalar_lea.vmem %s2, %s247
      %p249 = pneg %p103
      %p250 = pneg %p100
      %p251 = pneg %p124
      %p252 = pneg %p121
      %p253 = pneg %p145
      %p254 = pneg %p142
      %p255 = pneg %p173
      %p256 = pneg %p170
      %s257 = smul.u32 16, %s21
      %p258 = scmp.lt.s32.totalorder %s20, 1
      %s259 = scalar_select %p258, %s20, 1
      %p260 = scmp.lt.s32.totalorder %s257, 31
      %s261 = scalar_select %p260, %s257, 31
      %s262 = smul.addr %s259, 32
      %s263 = sadd.s32 %s261, %s262
      %s264 = smul.addr %s263, 4
      %s265 = scalar_lea.vmem %s5, %s264
      %s266 = smul.u32 16, %s21
      %p267 = scmp.lt.s32.totalorder %s20, 1
      %s268 = scalar_select %p267, %s20, 1
      %p269 = scmp.lt.s32.totalorder %s266, 31
      %s270 = scalar_select %p269, %s266, 31
      %s271 = smul.addr %s268, 32
      %s272 = sadd.s32 %s270, %s271
      %s273 = smul.addr %s272, 8
      %s274 = scalar_lea.vmem %s0, %s273
      %s275 = smul.u32 16, %s21
      %p276 = scmp.lt.s32.totalorder %s20, 1
      %s277 = scalar_select %p276, %s20, 1
      %s278 = scalar_lea.vmem %s1, %s277
      %p279 = scmp.lt.s32.totalorder %s20, 1
      %s280 = scalar_select %p279, %s20, 1
      %s281 = scalar_lea.vmem %s2, %s280
      %s282 = smul.u32 16, %s21
      %p283 = scmp.lt.s32.totalorder %s20, 1
      %s284 = scalar_select %p283, %s20, 1
      %p285 = scmp.lt.s32.totalorder %s282, 31
      %s286 = scalar_select %p285, %s282, 31
      %s287 = smul.addr %s284, 32
      %s288 = sadd.s32 %s286, %s287
      %s289 = smul.addr %s288, 4
      %s290 = scalar_lea.vmem %s5, %s289
      %s291 = smul.u32 16, %s21
      %v293 = vld [vmem:[%s274] sm:$0xff]
      %v294 = vld [vmem:[%s274 + $0x8] sm:$0xff]
      %v295 = vld [vmem:[%s274 + $0x10] sm:$0xff]
      %v296 = vld [vmem:[%s274 + $0x18] sm:$0xff]
      %v297 = vld [vmem:[%s274 + $0x20] sm:$0xff]
      %v298 = vld [vmem:[%s274 + $0x28] sm:$0xff]
      %v299 = vld [vmem:[%s274 + $0x30] sm:$0xff]
      %v300 = vld [vmem:[%s274 + $0x38] sm:$0xff]
      %v301 = vld [vmem:[%s274 + $0x40] sm:$0xff]
      %v302 = vld [vmem:[%s274 + $0x48] sm:$0xff]
      %v303 = vld [vmem:[%s274 + $0x50] sm:$0xff]
      %v304 = vld [vmem:[%s274 + $0x58] sm:$0xff]
      %v305 = vld [vmem:[%s274 + $0x60] sm:$0xff]
      %v306 = vld [vmem:[%s274 + $0x68] sm:$0xff]
      %v307 = vld [vmem:[%s274 + $0x70] sm:$0xff]
      %v308 = vld [vmem:[%s274 + $0x78] sm:$0xff]
      %v309 = vld [vmem:[%s278] sm:$0x1]
      %v311 = vlaneseq
      %v312 = vshrl.u32 %v311, 7
      %v313 = vsub.s32 0, %v312
      %v314 = vrot.slane %v309, %v313
      %v316 = vsub.f32 %v293, %v314
      %v317 = vsub.f32 %v294, %v314
      %v318 = vsub.f32 %v295, %v314
      %v319 = vsub.f32 %v296, %v314
      %v320 = vsub.f32 %v297, %v314
      %v321 = vsub.f32 %v298, %v314
      %v322 = vsub.f32 %v299, %v314
      %v323 = vsub.f32 %v300, %v314
      %v324 = vsub.f32 %v301, %v314
      %v325 = vsub.f32 %v302, %v314
      %v326 = vsub.f32 %v303, %v314
      %v327 = vsub.f32 %v304, %v314
      %v328 = vsub.f32 %v305, %v314
      %v329 = vsub.f32 %v306, %v314
      %v330 = vsub.f32 %v307, %v314
      %v331 = vsub.f32 %v308, %v314
      %v332 = vld [vmem:[%s281] sm:$0x1]
      %v334 = vlaneseq
      %v335 = vshrl.u32 %v334, 7
      %v336 = vsub.s32 0, %v335
      %v337 = vrot.slane %v332, %v336
      %v339 = vmul.f32 %v316, %v337
      %v340 = vmul.f32 %v317, %v337
      %v341 = vmul.f32 %v318, %v337
      %v342 = vmul.f32 %v319, %v337
      %v343 = vmul.f32 %v320, %v337
      %v344 = vmul.f32 %v321, %v337
      %v345 = vmul.f32 %v322, %v337
      %v346 = vmul.f32 %v323, %v337
      %v347 = vmul.f32 %v324, %v337
      %v348 = vmul.f32 %v325, %v337
      %v349 = vmul.f32 %v326, %v337
      %v350 = vmul.f32 %v327, %v337
      %v351 = vmul.f32 %v328, %v337
      %v352 = vmul.f32 %v329, %v337
      %v353 = vmul.f32 %v330, %v337
      %v354 = vmul.f32 %v331, %v337
      %v355 = vpack.c.bf16 %v340, %v339
      %v356 = vpack.c.bf16 %v342, %v341
      %v357 = vpack.c.bf16 %v344, %v343
      %v358 = vpack.c.bf16 %v346, %v345
      %v359 = vpack.c.bf16 %v348, %v347
      %v360 = vpack.c.bf16 %v350, %v349
      %v361 = vpack.c.bf16 %v352, %v351
      %v362 = vpack.c.bf16 %v354, %v353
      %v363 = vld [vmem:[%s3] sm:$0xf]
      %v364 = vld [vmem:[%s3 + $0x4] sm:$0xf]
      %v365 = vld [vmem:[%s3 + $0x8] sm:$0xf]
      %v366 = vld [vmem:[%s3 + $0xc] sm:$0xf]
      %v367 = vld [vmem:[%s4] sm:$0x1]
      %v369 = vlaneseq
      %v370 = vshrl.u32 %v369, 7
      %v371 = vsub.s32 0, %v370
      %v372 = vrot.slane %v367, %v371
      %v378 = vunpack.c.l.b16 %v363
      %v379 = vunpack.c.l.b16 %v364
      %v380 = vunpack.c.l.b16 %v365
      %v381 = vunpack.c.l.b16 %v366
      %v382 = vpack.c.b16 %v379, %v378
      %v383 = vpack.c.b16 %v381, %v380
      %vm386 = vcmask 261120
      %v388 = vsel %vm386, %v355, 0
      %v391 = vsel %vm386, %v356, 0
      %v394 = vsel %vm386, %v357, 0
      %v397 = vsel %vm386, %v358, 0
      %v400 = vsel %vm386, %v359, 0
      %v403 = vsel %vm386, %v360, 0
      %v406 = vsel %vm386, %v361, 0
      %v409 = vsel %vm386, %v362, 0
      %411 = vmatprep.subr.bf16.mxu0 0
      %412 = vmatpush1.bf16.msra.mxu0 %v382
      %413 = vmatprep.subr.bf16.mxu0 0
      %414 = vmatpush1.bf16.msra.mxu0 %v383
      %415 = vmatprep.subr.bf16.mxu0 0
      %416 = vmatpush1.bf16.msra.mxu0 0
      %417 = vmatprep.subr.bf16.mxu0 0
      %418 = vmatpush1.bf16.msra.mxu0 0
      %419 = vmatprep.subr.bf16.mxu0 0
      %420 = vmatpush1.bf16.msra.mxu0 0
      %421 = vmatprep.subr.bf16.mxu0 0
      %422 = vmatpush1.bf16.msra.mxu0 0
      %423 = vmatprep.subr.bf16.mxu0 0
      %424 = vmatpush1.bf16.msra.mxu0 0
      %425 = vmatprep.subr.bf16.mxu0 0
      %426 = vmatpush1.bf16.msra.mxu0 0
      %427 = vmatprep.subr.bf16.mxu0 0
      %428 = vmatpush1.bf16.msra.mxu0 0
      %429 = vmatprep.subr.bf16.mxu0 0
      %430 = vmatpush1.bf16.msra.mxu0 0
      %431 = vmatprep.subr.bf16.mxu0 0
      %432 = vmatpush1.bf16.msra.mxu0 0
      %433 = vmatprep.subr.bf16.mxu0 0
      %434 = vmatpush1.bf16.msra.mxu0 0
      %435 = vmatprep.subr.bf16.mxu0 0
      %436 = vmatpush1.bf16.msra.mxu0 0
      %437 = vmatprep.subr.bf16.mxu0 0
      %438 = vmatpush1.bf16.msra.mxu0 0
      %439 = vmatprep.subr.bf16.mxu0 0
      %440 = vmatpush1.bf16.msra.mxu0 0
      %441 = vmatprep.subr.bf16.mxu0 0
      %442 = vmatpush1.bf16.msra.mxu0 0
      %443 = vmatprep.mubr.bf16.mxu0 0
      %444 = vmatmul.mubr.bf16.gmra.mrb[0].mxu0 %v388
      %v445 = vpop.f32.mrb[0].mxu0
      %v446 = vadd.f32 %v372, %v445
      %v447 = vpop.f32.mrb[0].mxu0
      %v448 = vpop.f32.mrb[0].mxu0
      %v449 = vadd.f32 %v372, %v448
      %v450 = vpop.f32.mrb[0].mxu0
      %451 = vmatprep.mubr.bf16.mxu0 0
      %452 = vmatmul.mubr.bf16.gmra.mrb[0].mxu0 %v391
      %v453 = vpop.f32.mrb[0].mxu0
      %v454 = vadd.f32 %v372, %v453
      %v455 = vpop.f32.mrb[0].mxu0
      %v456 = vpop.f32.mrb[0].mxu0
      %v457 = vadd.f32 %v372, %v456
      %v458 = vpop.f32.mrb[0].mxu0
      %459 = vmatprep.mubr.bf16.mxu0 0
      %460 = vmatmul.mubr.bf16.gmra.mrb[0].mxu0 %v394
      %v461 = vpop.f32.mrb[0].mxu0
      %v462 = vadd.f32 %v372, %v461
      %v463 = vpop.f32.mrb[0].mxu0
      %v464 = vpop.f32.mrb[0].mxu0
      %v465 = vadd.f32 %v372, %v464
      %v466 = vpop.f32.mrb[0].mxu0
      %467 = vmatprep.mubr.bf16.mxu0 0
      %468 = vmatmul.mubr.bf16.gmra.mrb[0].mxu0 %v397
      %v469 = vpop.f32.mrb[0].mxu0
      %v470 = vadd.f32 %v372, %v469
      %v471 = vpop.f32.mrb[0].mxu0
      %v472 = vpop.f32.mrb[0].mxu0
      %v473 = vadd.f32 %v372, %v472
      %v474 = vpop.f32.mrb[0].mxu0
      %475 = vmatprep.mubr.bf16.mxu0 0
      %476 = vmatmul.mubr.bf16.gmra.mrb[0].mxu0 %v400
      %v477 = vpop.f32.mrb[0].mxu0
      %v478 = vadd.f32 %v372, %v477
      %v479 = vpop.f32.mrb[0].mxu0
      %v480 = vpop.f32.mrb[0].mxu0
      %v481 = vadd.f32 %v372, %v480
      %v482 = vpop.f32.mrb[0].mxu0
      %483 = vmatprep.mubr.bf16.mxu0 0
      %484 = vmatmul.mubr.bf16.gmra.mrb[0].mxu0 %v403
      %v485 = vpop.f32.mrb[0].mxu0
      %v486 = vadd.f32 %v372, %v485
      %v487 = vpop.f32.mrb[0].mxu0
      %v488 = vpop.f32.mrb[0].mxu0
      %v489 = vadd.f32 %v372, %v488
      %v490 = vpop.f32.mrb[0].mxu0
      %491 = vmatprep.mubr.bf16.mxu0 0
      %492 = vmatmul.mubr.bf16.gmra.mrb[0].mxu0 %v406
      %v493 = vpop.f32.mrb[0].mxu0
      %v494 = vadd.f32 %v372, %v493
      %v495 = vpop.f32.mrb[0].mxu0
      %v496 = vpop.f32.mrb[0].mxu0
      %v497 = vadd.f32 %v372, %v496
      %v498 = vpop.f32.mrb[0].mxu0
      %499 = vmatprep.mubr.bf16.mxu0 0
      %500 = vmatmul.mubr.bf16.gmra.mrb[0].mxu0 %v409
      %v501 = vpop.f32.mrb[0].mxu0
      %v502 = vadd.f32 %v372, %v501
      %v503 = vpop.f32.mrb[0].mxu0
      %v504 = vpop.f32.mrb[0].mxu0
      %v505 = vadd.f32 %v372, %v504
      %v506 = vpop.f32.mrb[0].mxu0
      %507 = vdwg.mxu0
      %v508 = vpack.c.bf16 %v449, %v446
      %v509 = vpack.c.bf16 %v457, %v454
      %v510 = vpack.c.bf16 %v465, %v462
      %v511 = vpack.c.bf16 %v473, %v470
      %v512 = vpack.c.bf16 %v481, %v478
      %v513 = vpack.c.bf16 %v489, %v486
      %v514 = vpack.c.bf16 %v497, %v494
      %v515 = vpack.c.bf16 %v505, %v502
      %v524 = vunpack.c.l.b16 %v508
      %v525 = vunpack.c.h.b16 %v508
      %v526 = vunpack.c.l.b16 %v509
      %v527 = vunpack.c.h.b16 %v509
      %v528 = vunpack.c.l.b16 %v510
      %v529 = vunpack.c.h.b16 %v510
      %v530 = vunpack.c.l.b16 %v511
      %v531 = vunpack.c.h.b16 %v511
      %v532 = vunpack.c.l.b16 %v512
      %v533 = vunpack.c.h.b16 %v512
      %v534 = vunpack.c.l.b16 %v513
      %v535 = vunpack.c.h.b16 %v513
      %v536 = vunpack.c.l.b16 %v514
      %v537 = vunpack.c.h.b16 %v514
      %v538 = vunpack.c.l.b16 %v515
      %v539 = vunpack.c.h.b16 %v515
      %v540 = vpack.c.b16 %v524, %v524
      %v541 = vpack.c.b16 %v525, %v525
      %v542 = vpack.c.b16 %v526, %v526
      %v543 = vpack.c.b16 %v527, %v527
      %v544 = vpack.c.b16 %v528, %v528
      %v545 = vpack.c.b16 %v529, %v529
      %v546 = vpack.c.b16 %v530, %v530
      %v547 = vpack.c.b16 %v531, %v531
      %v548 = vpack.c.b16 %v532, %v532
      %v549 = vpack.c.b16 %v533, %v533
      %v550 = vpack.c.b16 %v534, %v534
      %v551 = vpack.c.b16 %v535, %v535
      %v552 = vpack.c.b16 %v536, %v536
      %v553 = vpack.c.b16 %v537, %v537
      %v554 = vpack.c.b16 %v538, %v538
      %v555 = vpack.c.b16 %v539, %v539
      %vm572 = vcmask 257024
      %573 = vst.msk [vmem:[%s290] sm:$0xf] %vm572, %v540
      %574 = vst.msk [vmem:[%s290 + $0x4] sm:$0xf] %vm572, %v541
      %575 = vst.msk [vmem:[%s290 + $0x8] sm:$0xf] %vm572, %v542
      %576 = vst.msk [vmem:[%s290 + $0xc] sm:$0xf] %vm572, %v543
      %577 = vst.msk [vmem:[%s290 + $0x10] sm:$0xf] %vm572, %v544
      %578 = vst.msk [vmem:[%s290 + $0x14] sm:$0xf] %vm572, %v545
      %579 = vst.msk [vmem:[%s290 + $0x18] sm:$0xf] %vm572, %v546
      %580 = vst.msk [vmem:[%s290 + $0x1c] sm:$0xf] %vm572, %v547
      %581 = vst.msk [vmem:[%s290 + $0x20] sm:$0xf] %vm572, %v548
      %582 = vst.msk [vmem:[%s290 + $0x24] sm:$0xf] %vm572, %v549
      %583 = vst.msk [vmem:[%s290 + $0x28] sm:$0xf] %vm572, %v550
      %584 = vst.msk [vmem:[%s290 + $0x2c] sm:$0xf] %vm572, %v551
      %585 = vst.msk [vmem:[%s290 + $0x30] sm:$0xf] %vm572, %v552
      %586 = vst.msk [vmem:[%s290 + $0x34] sm:$0xf] %vm572, %v553
      %587 = vst.msk [vmem:[%s290 + $0x38] sm:$0xf] %vm572, %v554
      %588 = vst.msk [vmem:[%s290 + $0x3c] sm:$0xf] %vm572, %v555
      %s589 = smul.u32 16, %s21
      %p590 = scmp.lt.s32.totalorder %s20, 1
      %s591 = scalar_select %p590, %s20, 1
      %p592 = scmp.lt.s32.totalorder %s589, 31
      %s593 = scalar_select %p592, %s589, 31
      %s594 = smul.addr %s591, 32
      %s595 = sadd.s32 %s593, %s594
      %s596 = smul.addr %s595, 4
      %s597 = scalar_lea.vmem %s5, %s596
      // Predicated region
      $region41: #{transform_forward.7} parent=39 // pred_check
        %p598 = pneg %p170
      $region42: #{transform_forward.7} parent=39 // pred_check_branch
        %600 = sbr.rel (%p598) target = $region44
      $region43: #{transform_forward.7} parent=39 // pred_region
        %s601 = smul.u32 16, %s21
      $region44: #{transform_forward.7} parent=39 // pred_fallthru
        _
    $region40: #{transform_forward.7} parent=5 // pred_fallthru
      _
    %p602 = scmp.le.s32.totalorder 2, %s11
    // Predicated region
    $region45: #{transform_forward.7} parent=5 // pred_check
      %p603 = pneg %p602
    $region46: #{transform_forward.7} parent=5 // pred_check_branch
      %605 = sbr.rel (%p603) target = $region48
    $region47: #{transform_forward.7} parent=5 // pred_region
      %s606 = ssub.s32 %s11, 2
      // Predicated region
      $region49: #{transform_forward.7} parent=47 // pred_check
        %p607 = pneg %p176
      $region50: #{transform_forward.7} parent=47 // pred_check_branch
        %609 = sbr.rel (%p607) target = $region52
      $region51: #{transform_forward.7} parent=47 // pred_region
        %s610 = smul.u32 16, %s23
        %p611 = scmp.lt.s32.totalorder %s22, 1
        %s612 = scalar_select %p611, %s22, 1
        %p613 = scmp.lt.s32.totalorder %s610, 31
        %s614 = scalar_select %p613, %s610, 31
        %s615 = smul.addr %s612, 32
        %s616 = sadd.s32 %s614, %s615
        %s617 = smul.addr %s616, 4
        %s618 = scalar_lea.vmem %s5, %s617
      $region52: #{transform_forward.7} parent=47 // pred_fallthru
        _
    $region48: #{transform_forward.7} parent=5 // pred_fallthru
      _
  $region6: #{transform_forward.7} parent=0 // loop_footer
    %s15 = sadd.s32 1, %s11
  $region7: #{transform_forward.7} parent=0 // loop_footer_branch
    %10 = sbr.rel target = $region3
  $region8: #{transform_forward.7} parent=0 // loop_exit
    _

// kernel: transform_forward.8
$region0: #{transform_forward.8}
  #allocation0 [shape = 'u32[]', space=smem, size = 0x4, offset = 0x4, fixed_abs, tag = 'smem constant byte address 0x4 - core index']
  #allocation1 [shape = 'u32[144,128]{1,0:T(1,128)}', space=vmem, size = 0x12000, scoped, tag = 'internal scratch']
  %s0 = inlined_call_operand.vmem [shape: f32[2,256,32], index: 0, kind: input, shape index: {}]
  %s1 = inlined_call_operand.vmem [shape: f32[2,1,32], index: 1, kind: input, shape index: {}]
  %s2 = inlined_call_operand.vmem [shape: f32[2,1,32], index: 2, kind: input, shape index: {}]
  %s3 = inlined_call_operand.vmem [shape: bf16[32,32], index: 3, kind: input, shape index: {}]
  %s4 = inlined_call_operand.vmem [shape: f32[1,32], index: 4, kind: input, shape index: {}]
  %s5 = inlined_call_operand.vmem [shape: bf16[32,32], index: 5, kind: input, shape index: {}]
  %s6 = inlined_call_operand.vmem [shape: f32[1,32], index: 6, kind: input, shape index: {}]
  %s7 = inlined_call_operand.vmem [shape: bf16[2,256,32], index: 7, kind: output, shape index: {0}]
  %s8 = inlined_call_operand.vmem [shape: bf16[2,256,32], index: 8, kind: output, shape index: {1}]
  %9 = xla_tuple %s7, %s8
  %s10 = sld [smem:[#allocation0]]
  $region69: #{transform_forward.8} parent=0
    _
  %s12 = ssub.s32 1, %s10
  %s13 = scalar_select 0, %s12, %s10
  loop: start=0, step=1, limit=6
  $region2: #{transform_forward.8} parent=0 // loop_pre_header
    _
  $region3: #{transform_forward.8} parent=0 // loop_header
    %s15 = sphi 0, %s19
    %p16 = scmp.ge.s32.totalorder %s15, 6
    %s22 = sphi 0, %s34
    %s23 = sphi 0, %s30
    %s24 = sphi 0, %s22
    %s25 = sphi 0, %s23
    %s26 = sphi 0, %s24
    %s27 = sphi 0, %s25
    %s39 = sphi 0, %s41
    %s42 = sphi 0, %s39
    %s43 = sphi 0, %s42
    %s59 = sphi 0, %s43
    %s65 = sphi 0, %s67
    %s68 = sphi 0, %s65
    %s69 = sphi 0, %s68
    %s85 = sphi 0, %s69
    %s91 = sphi 0, %s93
    %s94 = sphi 0, %s91
    %s95 = sphi 0, %s94
    %s111 = sphi 0, %s95
    %s115 = sphi 0, %s115
    %s117 = sphi 0, %s115
    %s118 = sphi 0, %s117
    %s132 = sphi 0, %s118
    %s136 = sphi 0, %s136
    %s138 = sphi 0, %s136
    %s139 = sphi 0, %s138
    %s153 = sphi 0, %s139
    %s157 = sphi 0, %s157
    %s159 = sphi 0, %s157
    %s160 = sphi 0, %s159
    %s174 = sphi 0, %s160
    %s178 = sphi 0, %s178
    %s180 = sphi 0, %s178
    %s181 = sphi 0, %s180
    %s195 = sphi 0, %s181
    %s203 = sphi 0, %s205
    %s206 = sphi 0, %s203
    %s207 = sphi 0, %s206
    %s223 = sphi 0, %s207
    %s231 = sphi 0, %s233
    %s234 = sphi 0, %s231
    %s235 = sphi 0, %s234
    %s251 = sphi 0, %s235
  $region4: #{transform_forward.8} parent=0 // loop_header_branch
    %18 = sbr.rel (%p16) target = $region8
  $region5: #{transform_forward.8} parent=0 // loop_body
    %s20 = ssub.s32 %s15, 1
    %s21 = ssub.s32 %s15, 2
    %s28 = sadd.s32 1, %s23
    %p29 = scmp.ge.s32.totalorder %s28, 2
    %s30 = scalar_select %p29, 0, %s28
    %s31 = sadd.s32 1, %s22
    %s32 = scalar_select %p29, %s31, %s22
    %p33 = scmp.ge.s32.totalorder %s32, 2
    %s34 = scalar_select %p33, 0, %s32
    %s35 = ssub.s32 %s22, %s34
    %s36 = ssub.s32 %s23, %s30
    %s37 = sor.u32 %s35, %s36
    %p38 = scmp.eq.s32.totalorder %s37, 0
    %s40 = sadd.s32 %s39, 1
    %s41 = scalar_select %p38, %s39, %s40
    %p44 = pneg %p38
    %p45 = scmp.eq.s32.totalorder %s15, 3
    %p46 = por %p44, %p45
    %p47 = scmp.ne.s32.totalorder %s39, %s42
    %p48 = scmp.eq.s32.totalorder %s15, 0
    %p49 = por %p47, %p48
    %p50 = scmp.ne.s32.totalorder %s39, %s42
    %p51 = scmp.eq.s32.totalorder %s20, 3
    %p52 = por %p50, %p51
    %p53 = scmp.ne.s32.totalorder %s42, %s43
    %p54 = scmp.eq.s32.totalorder %s20, 0
    %p55 = por %p53, %p54
    %p56 = scmp.ne.s32.totalorder %s42, %s43
    %p57 = scmp.eq.s32.totalorder %s21, 3
    %p58 = por %p56, %p57
    %p60 = scmp.ne.s32.totalorder %s43, %s59
    %p61 = scmp.eq.s32.totalorder %s21, 0
    %p62 = por %p60, %p61
    %s63 = ssub.s32 %s22, %s34
    %p64 = scmp.eq.s32.totalorder %s63, 0
    %s66 = sadd.s32 %s65, 1
    %s67 = scalar_select %p64, %s65, %s66
    %p70 = pneg %p64
    %p71 = scmp.eq.s32.totalorder %s15, 3
    %p72 = por %p70, %p71
    %p73 = scmp.ne.s32.totalorder %s65, %s68
    %p74 = scmp.eq.s32.totalorder %s15, 0
    %p75 = por %p73, %p74
    %p76 = scmp.ne.s32.totalorder %s65, %s68
    %p77 = scmp.eq.s32.totalorder %s20, 3
    %p78 = por %p76, %p77
    %p79 = scmp.ne.s32.totalorder %s68, %s69
    %p80 = scmp.eq.s32.totalorder %s20, 0
    %p81 = por %p79, %p80
    %p82 = scmp.ne.s32.totalorder %s68, %s69
    %p83 = scmp.eq.s32.totalorder %s21, 3
    %p84 = por %p82, %p83
    %p86 = scmp.ne.s32.totalorder %s69, %s85
    %p87 = scmp.eq.s32.totalorder %s21, 0
    %p88 = por %p86, %p87
    %s89 = ssub.s32 %s22, %s34
    %p90 = scmp.eq.s32.totalorder %s89, 0
    %s92 = sadd.s32 %s91, 1
    %s93 = scalar_select %p90, %s91, %s92
    %p96 = pneg %p90
    %p97 = scmp.eq.s32.totalorder %s15, 3
    %p98 = por %p96, %p97
    %p99 = scmp.ne.s32.totalorder %s91, %s94
    %p100 = scmp.eq.s32.totalorder %s15, 0
    %p101 = por %p99, %p100
    %p102 = scmp.ne.s32.totalorder %s91, %s94
    %p103 = scmp.eq.s32.totalorder %s20, 3
    %p104 = por %p102, %p103
    %p105 = scmp.ne.s32.totalorder %s94, %s95
    %p106 = scmp.eq.s32.totalorder %s20, 0
    %p107 = por %p105, %p106
    %p108 = scmp.ne.s32.totalorder %s94, %s95
    %p109 = scmp.eq.s32.totalorder %s21, 3
    %p110 = por %p108, %p109
    %p112 = scmp.ne.s32.totalorder %s95, %s111
    %p113 = scmp.eq.s32.totalorder %s21, 0
    %p114 = por %p112, %p113
    %s116 = sadd.s32 %s115, 1
    %p119 = scmp.eq.s32.totalorder %s15, 3
    %p120 = scmp.ne.s32.totalorder %s115, %s117
    %p121 = scmp.eq.s32.totalorder %s15, 0
    %p122 = por %p120, %p121
    %p123 = scmp.ne.s32.totalorder %s115, %s117
    %p124 = scmp.eq.s32.totalorder %s20, 3
    %p125 = por %p123, %p124
    %p126 = scmp.ne.s32.totalorder %s117, %s118
    %p127 = scmp.eq.s32.totalorder %s20, 0
    %p128 = por %p126, %p127
    %p129 = scmp.ne.s32.totalorder %s117, %s118
    %p130 = scmp.eq.s32.totalorder %s21, 3
    %p131 = por %p129, %p130
    %p133 = scmp.ne.s32.totalorder %s118, %s132
    %p134 = scmp.eq.s32.totalorder %s21, 0
    %p135 = por %p133, %p134
    %s137 = sadd.s32 %s136, 1
    %p140 = scmp.eq.s32.totalorder %s15, 3
    %p141 = scmp.ne.s32.totalorder %s136, %s138
    %p142 = scmp.eq.s32.totalorder %s15, 0
    %p143 = por %p141, %p142
    %p144 = scmp.ne.s32.totalorder %s136, %s138
    %p145 = scmp.eq.s32.totalorder %s20, 3
    %p146 = por %p144, %p145
    %p147 = scmp.ne.s32.totalorder %s138, %s139
    %p148 = scmp.eq.s32.totalorder %s20, 0
    %p149 = por %p147, %p148
    %p150 = scmp.ne.s32.totalorder %s138, %s139
    %p151 = scmp.eq.s32.totalorder %s21, 3
    %p152 = por %p150, %p151
    %p154 = scmp.ne.s32.totalorder %s139, %s153
    %p155 = scmp.eq.s32.totalorder %s21, 0
    %p156 = por %p154, %p155
    %s158 = sadd.s32 %s157, 1
    %p161 = scmp.eq.s32.totalorder %s15, 3
    %p162 = scmp.ne.s32.totalorder %s157, %s159
    %p163 = scmp.eq.s32.totalorder %s15, 0
    %p164 = por %p162, %p163
    %p165 = scmp.ne.s32.totalorder %s157, %s159
    %p166 = scmp.eq.s32.totalorder %s20, 3
    %p167 = por %p165, %p166
    %p168 = scmp.ne.s32.totalorder %s159, %s160
    %p169 = scmp.eq.s32.totalorder %s20, 0
    %p170 = por %p168, %p169
    %p171 = scmp.ne.s32.totalorder %s159, %s160
    %p172 = scmp.eq.s32.totalorder %s21, 3
    %p173 = por %p171, %p172
    %p175 = scmp.ne.s32.totalorder %s160, %s174
    %p176 = scmp.eq.s32.totalorder %s21, 0
    %p177 = por %p175, %p176
    %s179 = sadd.s32 %s178, 1
    %p182 = scmp.eq.s32.totalorder %s15, 3
    %p183 = scmp.ne.s32.totalorder %s178, %s180
    %p184 = scmp.eq.s32.totalorder %s15, 0
    %p185 = por %p183, %p184
    %p186 = scmp.ne.s32.totalorder %s178, %s180
    %p187 = scmp.eq.s32.totalorder %s20, 3
    %p188 = por %p186, %p187
    %p189 = scmp.ne.s32.totalorder %s180, %s181
    %p190 = scmp.eq.s32.totalorder %s20, 0
    %p191 = por %p189, %p190
    %p192 = scmp.ne.s32.totalorder %s180, %s181
    %p193 = scmp.eq.s32.totalorder %s21, 3
    %p194 = por %p192, %p193
    %p196 = scmp.ne.s32.totalorder %s181, %s195
    %p197 = scmp.eq.s32.totalorder %s21, 0
    %p198 = por %p196, %p197
    %s199 = ssub.s32 %s22, %s34
    %s200 = ssub.s32 %s23, %s30
    %s201 = sor.u32 %s199, %s200
    %p202 = scmp.eq.s32.totalorder %s201, 0
    %s204 = sadd.s32 %s203, 1
    %s205 = scalar_select %p202, %s203, %s204
    %p208 = pneg %p202
    %p209 = scmp.eq.s32.totalorder %s15, 3
    %p210 = por %p208, %p209
    %p211 = scmp.ne.s32.totalorder %s203, %s206
    %p212 = scmp.eq.s32.totalorder %s15, 0
    %p213 = por %p211, %p212
    %p214 = scmp.ne.s32.totalorder %s203, %s206
    %p215 = scmp.eq.s32.totalorder %s20, 3
    %p216 = por %p214, %p215
    %p217 = scmp.ne.s32.totalorder %s206, %s207
    %p218 = scmp.eq.s32.totalorder %s20, 0
    %p219 = por %p217, %p218
    %p220 = scmp.ne.s32.totalorder %s206, %s207
    %p221 = scmp.eq.s32.totalorder %s21, 3
    %p222 = por %p220, %p221
    %p224 = scmp.ne.s32.totalorder %s207, %s223
    %p225 = scmp.eq.s32.totalorder %s21, 0
    %p226 = por %p224, %p225
    %s227 = ssub.s32 %s22, %s34
    %s228 = ssub.s32 %s23, %s30
    %s229 = sor.u32 %s227, %s228
    %p230 = scmp.eq.s32.totalorder %s229, 0
    %s232 = sadd.s32 %s231, 1
    %s233 = scalar_select %p230, %s231, %s232
    %p236 = pneg %p230
    %p237 = scmp.eq.s32.totalorder %s15, 3
    %p238 = por %p236, %p237
    %p239 = scmp.ne.s32.totalorder %s231, %s234
    %p240 = scmp.eq.s32.totalorder %s15, 0
    %p241 = por %p239, %p240
    %p242 = scmp.ne.s32.totalorder %s231, %s234
    %p243 = scmp.eq.s32.totalorder %s20, 3
    %p244 = por %p242, %p243
    %p245 = scmp.ne.s32.totalorder %s234, %s235
    %p246 = scmp.eq.s32.totalorder %s20, 0
    %p247 = por %p245, %p246
    %p248 = scmp.ne.s32.totalorder %s234, %s235
    %p249 = scmp.eq.s32.totalorder %s21, 3
    %p250 = por %p248, %p249
    %p252 = scmp.ne.s32.totalorder %s235, %s251
    %p253 = scmp.eq.s32.totalorder %s21, 0
    %p254 = por %p252, %p253
    %p255 = scmp.le.s32.totalorder 1, %s15
    %p256 = scmp.lt.s32.totalorder %s15, 5
    %p257 = pnand %p255, %p256
    %p258 = pneg %p257
    // Predicated region
    $region9: #{transform_forward.8} parent=5 // pred_check
      _
    $region10: #{transform_forward.8} parent=5 // pred_check_branch
      %260 = sbr.rel (%p257) target = $region12
    $region11: #{transform_forward.8} parent=5 // pred_region
      %s261 = ssub.s32 %s15, 1
      // Predicated region
      $region13: #{transform_forward.8} parent=11 // pred_check
        %p262 = pneg %p128
      $region14: #{transform_forward.8} parent=11 // pred_check_branch
        %264 = sbr.rel (%p262) target = $region16
      $region15: #{transform_forward.8} parent=11 // pred_region
        _
      $region16: #{transform_forward.8} parent=11 // pred_fallthru
        _
      // Predicated region
      $region17: #{transform_forward.8} parent=11 // pred_check
        %p265 = pneg %p149
      $region18: #{transform_forward.8} parent=11 // pred_check_branch
        %267 = sbr.rel (%p265) target = $region20
      $region19: #{transform_forward.8} parent=11 // pred_region
        _
      $region20: #{transform_forward.8} parent=11 // pred_fallthru
        _
      // Predicated region
      $region21: #{transform_forward.8} parent=11 // pred_check
        %p268 = pneg %p170
      $region22: #{transform_forward.8} parent=11 // pred_check_branch
        %270 = sbr.rel (%p268) target = $region24
      $region23: #{transform_forward.8} parent=11 // pred_region
        _
      $region24: #{transform_forward.8} parent=11 // pred_fallthru
        _
      // Predicated region
      $region25: #{transform_forward.8} parent=11 // pred_check
        %p271 = pneg %p191
      $region26: #{transform_forward.8} parent=11 // pred_check_branch
        %273 = sbr.rel (%p271) target = $region28
      $region27: #{transform_forward.8} parent=11 // pred_region
        _
      $region28: #{transform_forward.8} parent=11 // pred_fallthru
        _
    $region12: #{transform_forward.8} parent=5 // pred_fallthru
      _
    %p274 = scmp.lt.s32.totalorder %s15, 4
    // Predicated region
    $region29: #{transform_forward.8} parent=5 // pred_check
      %p275 = pneg %p274
    $region30: #{transform_forward.8} parent=5 // pred_check_branch
      %277 = sbr.rel (%p275) target = $region32
    $region31: #{transform_forward.8} parent=5 // pred_region
      // Predicated region
      $region33: #{transform_forward.8} parent=31 // pred_check
        %p278 = pneg %p49
      $region34: #{transform_forward.8} parent=31 // pred_check_branch
        %280 = sbr.rel (%p278) target = $region36
      $region35: #{transform_forward.8} parent=31 // pred_region
        %s281 = smul.u32 16, %s23
        %p282 = scmp.lt.s32.totalorder %s22, 1
        %s283 = scalar_select %p282, %s22, 1
        %p284 = scmp.lt.s32.totalorder %s281, 31
        %s285 = scalar_select %p284, %s281, 31
        %s286 = smul.addr %s283, 32
        %s287 = sadd.s32 %s285, %s286
        %s288 = smul.addr %s287, 8
        %s289 = scalar_lea.vmem %s0, %s288
        %s290 = smul.u32 16, %s23
      $region36: #{transform_forward.8} parent=31 // pred_fallthru
        _
      // Predicated region
      $region37: #{transform_forward.8} parent=31 // pred_check
        %p291 = pneg %p75
      $region38: #{transform_forward.8} parent=31 // pred_check_branch
        %293 = sbr.rel (%p291) target = $region40
      $region39: #{transform_forward.8} parent=31 // pred_region
        %p294 = scmp.lt.s32.totalorder %s22, 1
        %s295 = scalar_select %p294, %s22, 1
        %s296 = scalar_lea.vmem %s1, %s295
      $region40: #{transform_forward.8} parent=31 // pred_fallthru
        _
      // Predicated region
      $region41: #{transform_forward.8} parent=31 // pred_check
        %p297 = pneg %p101
      $region42: #{transform_forward.8} parent=31 // pred_check_branch
        %299 = sbr.rel (%p297) target = $region44
      $region43: #{transform_forward.8} parent=31 // pred_region
        %p300 = scmp.lt.s32.totalorder %s22, 1
        %s301 = scalar_select %p300, %s22, 1
        %s302 = scalar_lea.vmem %s2, %s301
      $region44: #{transform_forward.8} parent=31 // pred_fallthru
        _
    $region32: #{transform_forward.8} parent=5 // pred_fallthru
      _
    %p303 = scmp.le.s32.totalorder 1, %s15
    %p304 = scmp.lt.s32.totalorder %s15, 5
    %p305 = pnand %p303, %p304
    %p306 = pneg %p305
    // Predicated region
    $region45: #{transform_forward.8} parent=5 // pred_check
      _
    $region46: #{transform_forward.8} parent=5 // pred_check_branch
      %308 = sbr.rel (%p305) target = $region48
    $region47: #{transform_forward.8} parent=5 // pred_region
      %s309 = ssub.s32 %s15, 1
      %s310 = smul.u32 16, %s25
      %p311 = scmp.lt.s32.totalorder %s24, 1
      %s312 = scalar_select %p311, %s24, 1
      %p313 = scmp.lt.s32.totalorder %s310, 31
      %s314 = scalar_select %p313, %s310, 31
      %s315 = smul.addr %s312, 32
      %s316 = sadd.s32 %s314, %s315
      %s317 = smul.addr %s316, 8
      %s318 = scalar_lea.vmem %s0, %s317
      %p319 = pneg %p55
      %p320 = pneg %p52
      %p321 = scmp.lt.s32.totalorder %s24, 1
      %s322 = scalar_select %p321, %s24, 1
      %s323 = scalar_lea.vmem %s1, %s322
      %p324 = pneg %p81
      %p325 = pneg %p78
      %p326 = scmp.lt.s32.totalorder %s24, 1
      %s327 = scalar_select %p326, %s24, 1
      %s328 = scalar_lea.vmem %s2, %s327
      %p329 = pneg %p107
      %p330 = pneg %p104
      %p331 = pneg %p128
      %p332 = pneg %p125
      %p333 = pneg %p149
      %p334 = pneg %p146
      %p335 = pneg %p170
      %p336 = pneg %p167
      %p337 = pneg %p191
      %p338 = pneg %p188
      %p339 = pneg %p219
      %p340 = pneg %p216
      %s341 = smul.u32 16, %s25
      %p342 = scmp.lt.s32.totalorder %s24, 1
      %s343 = scalar_select %p342, %s24, 1
      %p344 = scmp.lt.s32.totalorder %s341, 31
      %s345 = scalar_select %p344, %s341, 31
      %s346 = smul.addr %s343, 32
      %s347 = sadd.s32 %s345, %s346
      %s348 = smul.addr %s347, 4
      %s349 = scalar_lea.vmem %s7, %s348
      %p350 = pneg %p247
      %p351 = pneg %p244
      %s352 = smul.u32 16, %s25
      %p353 = scmp.lt.s32.totalorder %s24, 1
      %s354 = scalar_select %p353, %s24, 1
      %p355 = scmp.lt.s32.totalorder %s352, 31
      %s356 = scalar_select %p355, %s352, 31
      %s357 = smul.addr %s354, 32
      %s358 = sadd.s32 %s356, %s357
      %s359 = smul.addr %s358, 4
      %s360 = scalar_lea.vmem %s8, %s359
      %s361 = smul.u32 16, %s25
      %p362 = scmp.lt.s32.totalorder %s24, 1
      %s363 = scalar_select %p362, %s24, 1
      %p364 = scmp.lt.s32.totalorder %s361, 31
      %s365 = scalar_select %p364, %s361, 31
      %s366 = smul.addr %s363, 32
      %s367 = sadd.s32 %s365, %s366
      %s368 = smul.addr %s367, 8
      %s369 = scalar_lea.vmem %s0, %s368
      %s370 = smul.u32 16, %s25
      %p371 = scmp.lt.s32.totalorder %s24, 1
      %s372 = scalar_select %p371, %s24, 1
      %s373 = scalar_lea.vmem %s1, %s372
      %p374 = scmp.lt.s32.totalorder %s24, 1
      %s375 = scalar_select %p374, %s24, 1
      %s376 = scalar_lea.vmem %s2, %s375
      %s377 = smul.u32 16, %s25
      %p378 = scmp.lt.s32.totalorder %s24, 1
      %s379 = scalar_select %p378, %s24, 1
      %p380 = scmp.lt.s32.totalorder %s377, 31
      %s381 = scalar_select %p380, %s377, 31
      %s382 = smul.addr %s379, 32
      %s383 = sadd.s32 %s381, %s382
      %s384 = smul.addr %s383, 4
      %s385 = scalar_lea.vmem %s7, %s384
      %s386 = smul.u32 16, %s25
      %s387 = smul.u32 16, %s25
      %p388 = scmp.lt.s32.totalorder %s24, 1
      %s389 = scalar_select %p388, %s24, 1
      %p390 = scmp.lt.s32.totalorder %s387, 31
      %s391 = scalar_select %p390, %s387, 31
      %s392 = smul.addr %s389, 32
      %s393 = sadd.s32 %s391, %s392
      %s394 = smul.addr %s393, 4
      %s395 = scalar_lea.vmem %s8, %s394
      %s396 = smul.u32 16, %s25
      %v398 = vld [vmem:[%s369] sm:$0xff]
      %v399 = vld [vmem:[%s369 + $0x8] sm:$0xff]
      %v400 = vld [vmem:[%s369 + $0x10] sm:$0xff]
      %v401 = vld [vmem:[%s369 + $0x18] sm:$0xff]
      %v402 = vld [vmem:[%s369 + $0x20] sm:$0xff]
      %v403 = vld [vmem:[%s369 + $0x28] sm:$0xff]
      %v404 = vld [vmem:[%s369 + $0x30] sm:$0xff]
      %v405 = vld [vmem:[%s369 + $0x38] sm:$0xff]
      %v406 = vld [vmem:[%s369 + $0x40] sm:$0xff]
      %v407 = vld [vmem:[%s369 + $0x48] sm:$0xff]
      %v408 = vld [vmem:[%s369 + $0x50] sm:$0xff]
      %v409 = vld [vmem:[%s369 + $0x58] sm:$0xff]
      %v410 = vld [vmem:[%s369 + $0x60] sm:$0xff]
      %v411 = vld [vmem:[%s369 + $0x68] sm:$0xff]
      %v412 = vld [vmem:[%s369 + $0x70] sm:$0xff]
      %v413 = vld [vmem:[%s369 + $0x78] sm:$0xff]
      %v414 = vld [vmem:[%s373] sm:$0x1]
      %v416 = vlaneseq
      %v417 = vshrl.u32 %v416, 7
      %v418 = vsub.s32 0, %v417
      %v419 = vrot.slane %v414, %v418
      %v421 = vsub.f32 %v398, %v419
      %v422 = vsub.f32 %v399, %v419
      %v423 = vsub.f32 %v400, %v419
      %v424 = vsub.f32 %v401, %v419
      %v425 = vsub.f32 %v402, %v419
      %v426 = vsub.f32 %v403, %v419
      %v427 = vsub.f32 %v404, %v419
      %v428 = vsub.f32 %v405, %v419
      %v429 = vsub.f32 %v406, %v419
      %v430 = vsub.f32 %v407, %v419
      %v431 = vsub.f32 %v408, %v419
      %v432 = vsub.f32 %v409, %v419
      %v433 = vsub.f32 %v410, %v419
      %v434 = vsub.f32 %v411, %v419
      %v435 = vsub.f32 %v412, %v419
      %v436 = vsub.f32 %v413, %v419
      %v437 = vld [vmem:[%s376] sm:$0x1]
      %v439 = vlaneseq
      %v440 = vshrl.u32 %v439, 7
      %v441 = vsub.s32 0, %v440
      %v442 = vrot.slane %v437, %v441
      %v444 = vmul.f32 %v421, %v442
      %v445 = vmul.f32 %v422, %v442
      %v446 = vmul.f32 %v423, %v442
      %v447 = vmul.f32 %v424, %v442
      %v448 = vmul.f32 %v425, %v442
      %v449 = vmul.f32 %v426, %v442
      %v450 = vmul.f32 %v427, %v442
      %v451 = vmul.f32 %v428, %v442
      %v452 = vmul.f32 %v429, %v442
      %v453 = vmul.f32 %v430, %v442
      %v454 = vmul.f32 %v431, %v442
      %v455 = vmul.f32 %v432, %v442
      %v456 = vmul.f32 %v433, %v442
      %v457 = vmul.f32 %v434, %v442
      %v458 = vmul.f32 %v435, %v442
      %v459 = vmul.f32 %v436, %v442
      %v460 = vpack.c.bf16 %v445, %v444
      %v461 = vpack.c.bf16 %v447, %v446
      %v462 = vpack.c.bf16 %v449, %v448
      %v463 = vpack.c.bf16 %v451, %v450
      %v464 = vpack.c.bf16 %v453, %v452
      %v465 = vpack.c.bf16 %v455, %v454
      %v466 = vpack.c.bf16 %v457, %v456
      %v467 = vpack.c.bf16 %v459, %v458
      %v468 = vld [vmem:[%s3] sm:$0xf]
      %v469 = vld [vmem:[%s3 + $0x4] sm:$0xf]
      %v470 = vld [vmem:[%s3 + $0x8] sm:$0xf]
      %v471 = vld [vmem:[%s3 + $0xc] sm:$0xf]
      %v472 = vld [vmem:[%s4] sm:$0x1]
      %v474 = vlaneseq
      %v475 = vshrl.u32 %v474, 7
      %v476 = vsub.s32 0, %v475
      %v477 = vrot.slane %v472, %v476
      %v483 = vunpack.c.l.b16 %v468
      %v484 = vunpack.c.l.b16 %v469
      %v485 = vunpack.c.l.b16 %v470
      %v486 = vunpack.c.l.b16 %v471
      %v487 = vpack.c.b16 %v484, %v483
      %v488 = vpack.c.b16 %v486, %v485
      %vm491 = vcmask 261120
      %v493 = vsel %vm491, %v460, 0
      %v496 = vsel %vm491, %v461, 0
      %v499 = vsel %vm491, %v462, 0
      %v502 = vsel %vm491, %v463, 0
      %v505 = vsel %vm491, %v464, 0
      %v508 = vsel %vm491, %v465, 0
      %v511 = vsel %vm491, %v466, 0
      %v514 = vsel %vm491, %v467, 0
      %516 = vmatprep.subr.bf16.mxu0 0
      %517 = vmatpush1.bf16.msra.mxu0 %v487
      %518 = vmatprep.subr.bf16.mxu0 0
      %519 = vmatpush1.bf16.msra.mxu0 %v488
      %520 = vmatprep.subr.bf16.mxu0 0
      %521 = vmatpush1.bf16.msra.mxu0 0
      %522 = vmatprep.subr.bf16.mxu0 0
      %523 = vmatpush1.bf16.msra.mxu0 0
      %524 = vmatprep.subr.bf16.mxu0 0
      %525 = vmatpush1.bf16.msra.mxu0 0
      %526 = vmatprep.subr.bf16.mxu0 0
      %527 = vmatpush1.bf16.msra.mxu0 0
      %528 = vmatprep.subr.bf16.mxu0 0
      %529 = vmatpush1.bf16.msra.mxu0 0
      %530 = vmatprep.subr.bf16.mxu0 0
      %531 = vmatpush1.bf16.msra.mxu0 0
      %532 = vmatprep.subr.bf16.mxu0 0
      %533 = vmatpush1.bf16.msra.mxu0 0
      %534 = vmatprep.subr.bf16.mxu0 0
      %535 = vmatpush1.bf16.msra.mxu0 0
      %536 = vmatprep.subr.bf16.mxu0 0
      %537 = vmatpush1.bf16.msra.mxu0 0
      %538 = vmatprep.subr.bf16.mxu0 0
      %539 = vmatpush1.bf16.msra.mxu0 0
      %540 = vmatprep.subr.bf16.mxu0 0
      %541 = vmatpush1.bf16.msra.mxu0 0
      %542 = vmatprep.subr.bf16.mxu0 0
      %543 = vmatpush1.bf16.msra.mxu0 0
      %544 = vmatprep.subr.bf16.mxu0 0
      %545 = vmatpush1.bf16.msra.mxu0 0
      %546 = vmatprep.subr.bf16.mxu0 0
      %547 = vmatpush1.bf16.msra.mxu0 0
      %548 = vmatprep.mubr.bf16.mxu0 0
      %549 = vmatmul.mubr.bf16.gmra.mrb[0].mxu0 %v493
      %v550 = vpop.f32.mrb[0].mxu0
      %v551 = vadd.f32 %v477, %v550
      %v552 = vpop.f32.mrb[0].mxu0
      %v553 = vpop.f32.mrb[0].mxu0
      %v554 = vadd.f32 %v477, %v553
      %v555 = vpop.f32.mrb[0].mxu0
      %556 = vmatprep.mubr.bf16.mxu0 0
      %557 = vmatmul.mubr.bf16.gmra.mrb[0].mxu0 %v496
      %v558 = vpop.f32.mrb[0].mxu0
      %v559 = vadd.f32 %v477, %v558
      %v560 = vpop.f32.mrb[0].mxu0
      %v561 = vpop.f32.mrb[0].mxu0
      %v562 = vadd.f32 %v477, %v561
      %v563 = vpop.f32.mrb[0].mxu0
      %564 = vmatprep.mubr.bf16.mxu0 0
      %565 = vmatmul.mubr.bf16.gmra.mrb[0].mxu0 %v499
      %v566 = vpop.f32.mrb[0].mxu0
      %v567 = vadd.f32 %v477, %v566
      %v568 = vpop.f32.mrb[0].mxu0
      %v569 = vpop.f32.mrb[0].mxu0
      %v570 = vadd.f32 %v477, %v569
      %v571 = vpop.f32.mrb[0].mxu0
      %572 = vmatprep.mubr.bf16.mxu0 0
      %573 = vmatmul.mubr.bf16.gmra.mrb[0].mxu0 %v502
      %v574 = vpop.f32.mrb[0].mxu0
      %v575 = vadd.f32 %v477, %v574
      %v576 = vpop.f32.mrb[0].mxu0
      %v577 = vpop.f32.mrb[0].mxu0
      %v578 = vadd.f32 %v477, %v577
      %v579 = vpop.f32.mrb[0].mxu0
      %580 = vmatprep.mubr.bf16.mxu0 0
      %581 = vmatmul.mubr.bf16.gmra.mrb[0].mxu0 %v505
      %v582 = vpop.f32.mrb[0].mxu0
      %v583 = vadd.f32 %v477, %v582
      %v584 = vpop.f32.mrb[0].mxu0
      %v585 = vpop.f32.mrb[0].mxu0
      %v586 = vadd.f32 %v477, %v585
      %v587 = vpop.f32.mrb[0].mxu0
      %588 = vmatprep.mubr.bf16.mxu0 0
      %589 = vmatmul.mubr.bf16.gmra.mrb[0].mxu0 %v508
      %v590 = vpop.f32.mrb[0].mxu0
      %v591 = vadd.f32 %v477, %v590
      %v592 = vpop.f32.mrb[0].mxu0
      %v593 = vpop.f32.mrb[0].mxu0
      %v594 = vadd.f32 %v477, %v593
      %v595 = vpop.f32.mrb[0].mxu0
      %596 = vmatprep.mubr.bf16.mxu0 0
      %597 = vmatmul.mubr.bf16.gmra.mrb[0].mxu0 %v511
      %v598 = vpop.f32.mrb[0].mxu0
      %v599 = vadd.f32 %v477, %v598
      %v600 = vpop.f32.mrb[0].mxu0
      %v601 = vpop.f32.mrb[0].mxu0
      %v602 = vadd.f32 %v477, %v601
      %v603 = vpop.f32.mrb[0].mxu0
      %604 = vmatprep.mubr.bf16.mxu0 0
      %605 = vmatmul.mubr.bf16.gmra.mrb[0].mxu0 %v514
      %v606 = vpop.f32.mrb[0].mxu0
      %v607 = vadd.f32 %v477, %v606
      %v608 = vpop.f32.mrb[0].mxu0
      %v609 = vpop.f32.mrb[0].mxu0
      %v610 = vadd.f32 %v477, %v609
      %v611 = vpop.f32.mrb[0].mxu0
      %612 = vdwg.mxu0
      %v613 = vpack.c.bf16 %v554, %v551
      %v614 = vpack.c.bf16 %v562, %v559
      %v615 = vpack.c.bf16 %v570, %v567
      %v616 = vpack.c.bf16 %v578, %v575
      %v617 = vpack.c.bf16 %v586, %v583
      %v618 = vpack.c.bf16 %v594, %v591
      %v619 = vpack.c.bf16 %v602, %v599
      %v620 = vpack.c.bf16 %v610, %v607
      %v629 = vunpack.c.l.b16 %v613
      %v630 = vunpack.c.h.b16 %v613
      %v631 = vunpack.c.l.b16 %v614
      %v632 = vunpack.c.h.b16 %v614
      %v633 = vunpack.c.l.b16 %v615
      %v634 = vunpack.c.h.b16 %v615
      %v635 = vunpack.c.l.b16 %v616
      %v636 = vunpack.c.h.b16 %v616
      %v637 = vunpack.c.l.b16 %v617
      %v638 = vunpack.c.h.b16 %v617
      %v639 = vunpack.c.l.b16 %v618
      %v640 = vunpack.c.h.b16 %v618
      %v641 = vunpack.c.l.b16 %v619
      %v642 = vunpack.c.h.b16 %v619
      %v643 = vunpack.c.l.b16 %v620
      %v644 = vunpack.c.h.b16 %v620
      %v645 = vpack.c.b16 %v629, %v629
      %v646 = vpack.c.b16 %v630, %v630
      %v647 = vpack.c.b16 %v631, %v631
      %v648 = vpack.c.b16 %v632, %v632
      %v649 = vpack.c.b16 %v633, %v633
      %v650 = vpack.c.b16 %v634, %v634
      %v651 = vpack.c.b16 %v635, %v635
      %v652 = vpack.c.b16 %v636, %v636
      %v653 = vpack.c.b16 %v637, %v637
      %v654 = vpack.c.b16 %v638, %v638
      %v655 = vpack.c.b16 %v639, %v639
      %v656 = vpack.c.b16 %v640, %v640
      %v657 = vpack.c.b16 %v641, %v641
      %v658 = vpack.c.b16 %v642, %v642
      %v659 = vpack.c.b16 %v643, %v643
      %v660 = vpack.c.b16 %v644, %v644
      %vm677 = vcmask 257024
      %678 = vst.msk [vmem:[%s385] sm:$0xf] %vm677, %v645
      %679 = vst.msk [vmem:[%s385 + $0x4] sm:$0xf] %vm677, %v646
      %680 = vst.msk [vmem:[%s385 + $0x8] sm:$0xf] %vm677, %v647
      %681 = vst.msk [vmem:[%s385 + $0xc] sm:$0xf] %vm677, %v648
      %682 = vst.msk [vmem:[%s385 + $0x10] sm:$0xf] %vm677, %v649
      %683 = vst.msk [vmem:[%s385 + $0x14] sm:$0xf] %vm677, %v650
      %684 = vst.msk [vmem:[%s385 + $0x18] sm:$0xf] %vm677, %v651
      %685 = vst.msk [vmem:[%s385 + $0x1c] sm:$0xf] %vm677, %v652
      %686 = vst.msk [vmem:[%s385 + $0x20] sm:$0xf] %vm677, %v653
      %687 = vst.msk [vmem:[%s385 + $0x24] sm:$0xf] %vm677, %v654
      %688 = vst.msk [vmem:[%s385 + $0x28] sm:$0xf] %vm677, %v655
      %689 = vst.msk [vmem:[%s385 + $0x2c] sm:$0xf] %vm677, %v656
      %690 = vst.msk [vmem:[%s385 + $0x30] sm:$0xf] %vm677, %v657
      %691 = vst.msk [vmem:[%s385 + $0x34] sm:$0xf] %vm677, %v658
      %692 = vst.msk [vmem:[%s385 + $0x38] sm:$0xf] %vm677, %v659
      %693 = vst.msk [vmem:[%s385 + $0x3c] sm:$0xf] %vm677, %v660
      %v694 = vpack.c.bf16 %v399, %v398
      %v695 = vpack.c.bf16 %v401, %v400
      %v696 = vpack.c.bf16 %v403, %v402
      %v697 = vpack.c.bf16 %v405, %v404
      %v698 = vpack.c.bf16 %v407, %v406
      %v699 = vpack.c.bf16 %v409, %v408
      %v700 = vpack.c.bf16 %v411, %v410
      %v701 = vpack.c.bf16 %v413, %v412
      %v702 = vld [vmem:[%s5] sm:$0xf]
      %v703 = vld [vmem:[%s5 + $0x4] sm:$0xf]
      %v704 = vld [vmem:[%s5 + $0x8] sm:$0xf]
      %v705 = vld [vmem:[%s5 + $0xc] sm:$0xf]
      %v706 = vld [vmem:[%s6] sm:$0x1]
      %v708 = vlaneseq
      %v709 = vshrl.u32 %v708, 7
      %v710 = vsub.s32 0, %v709
      %v711 = vrot.slane %v706, %v710
      %v717 = vunpack.c.l.b16 %v702
      %v718 = vunpack.c.l.b16 %v703
      %v719 = vunpack.c.l.b16 %v704
      %v720 = vunpack.c.l.b16 %v705
      %v721 = vpack.c.b16 %v718, %v717
      %v722 = vpack.c.b16 %v720, %v719
      %v726 = vsel %vm491, %v694, 0
      %v729 = vsel %vm491, %v695, 0
      %v732 = vsel %vm491, %v696, 0
      %v735 = vsel %vm491, %v697, 0
      %v738 = vsel %vm491, %v698, 0
      %v741 = vsel %vm491, %v699, 0
      %v744 = vsel %vm491, %v700, 0
      %v747 = vsel %vm491, %v701, 0
      %749 = vmatprep.subr.bf16.mxu0 0
      %750 = vmatpush1.bf16.msra.mxu0 %v721
      %751 = vmatprep.subr.bf16.mxu0 0
      %752 = vmatpush1.bf16.msra.mxu0 %v722
      %753 = vmatprep.subr.bf16.mxu0 0
      %754 = vmatpush1.bf16.msra.mxu0 0
      %755 = vmatprep.subr.bf16.mxu0 0
      %756 = vmatpush1.bf16.msra.mxu0 0
      %757 = vmatprep.subr.bf16.mxu0 0
      %758 = vmatpush1.bf16.msra.mxu0 0
      %759 = vmatprep.subr.bf16.mxu0 0
      %760 = vmatpush1.bf16.msra.mxu0 0
      %761 = vmatprep.subr.bf16.mxu0 0
      %762 = vmatpush1.bf16.msra.mxu0 0
      %763 = vmatprep.subr.bf16.mxu0 0
      %764 = vmatpush1.bf16.msra.mxu0 0
      %765 = vmatprep.subr.bf16.mxu0 0
      %766 = vmatpush1.bf16.msra.mxu0 0
      %767 = vmatprep.subr.bf16.mxu0 0
      %768 = vmatpush1.bf16.msra.mxu0 0
      %769 = vmatprep.subr.bf16.mxu0 0
      %770 = vmatpush1.bf16.msra.mxu0 0
      %771 = vmatprep.subr.bf16.mxu0 0
      %772 = vmatpush1.bf16.msra.mxu0 0
      %773 = vmatprep.subr.bf16.mxu0 0
      %774 = vmatpush1.bf16.msra.mxu0 0
      %775 = vmatprep.subr.bf16.mxu0 0
      %776 = vmatpush1.bf16.msra.mxu0 0
      %777 = vmatprep.subr.bf16.mxu0 0
      %778 = vmatpush1.bf16.msra.mxu0 0
      %779 = vmatprep.subr.bf16.mxu0 0
      %780 = vmatpush1.bf16.msra.mxu0 0
      %781 = vmatprep.mubr.bf16.mxu0 0
      %782 = vmatmul.mubr.bf16.gmra.mrb[0].mxu0 %v726
      %v783 = vpop.f32.mrb[0].mxu0
      %v784 = vadd.f32 %v711, %v783
      %v785 = vpop.f32.mrb[0].mxu0
      %v786 = vpop.f32.mrb[0].mxu0
      %v787 = vadd.f32 %v711, %v786
      %v788 = vpop.f32.mrb[0].mxu0
      %789 = vmatprep.mubr.bf16.mxu0 0
      %790 = vmatmul.mubr.bf16.gmra.mrb[0].mxu0 %v729
      %v791 = vpop.f32.mrb[0].mxu0
      %v792 = vadd.f32 %v711, %v791
      %v793 = vpop.f32.mrb[0].mxu0
      %v794 = vpop.f32.mrb[0].mxu0
      %v795 = vadd.f32 %v711, %v794
      %v796 = vpop.f32.mrb[0].mxu0
      %797 = vmatprep.mubr.bf16.mxu0 0
      %798 = vmatmul.mubr.bf16.gmra.mrb[0].mxu0 %v732
      %v799 = vpop.f32.mrb[0].mxu0
      %v800 = vadd.f32 %v711, %v799
      %v801 = vpop.f32.mrb[0].mxu0
      %v802 = vpop.f32.mrb[0].mxu0
      %v803 = vadd.f32 %v711, %v802
      %v804 = vpop.f32.mrb[0].mxu0
      %805 = vmatprep.mubr.bf16.mxu0 0
      %806 = vmatmul.mubr.bf16.gmra.mrb[0].mxu0 %v735
      %v807 = vpop.f32.mrb[0].mxu0
      %v808 = vadd.f32 %v711, %v807
      %v809 = vpop.f32.mrb[0].mxu0
      %v810 = vpop.f32.mrb[0].mxu0
      %v811 = vadd.f32 %v711, %v810
      %v812 = vpop.f32.mrb[0].mxu0
      %813 = vmatprep.mubr.bf16.mxu0 0
      %814 = vmatmul.mubr.bf16.gmra.mrb[0].mxu0 %v738
      %v815 = vpop.f32.mrb[0].mxu0
      %v816 = vadd.f32 %v711, %v815
      %v817 = vpop.f32.mrb[0].mxu0
      %v818 = vpop.f32.mrb[0].mxu0
      %v819 = vadd.f32 %v711, %v818
      %v820 = vpop.f32.mrb[0].mxu0
      %821 = vmatprep.mubr.bf16.mxu0 0
      %822 = vmatmul.mubr.bf16.gmra.mrb[0].mxu0 %v741
      %v823 = vpop.f32.mrb[0].mxu0
      %v824 = vadd.f32 %v711, %v823
      %v825 = vpop.f32.mrb[0].mxu0
      %v826 = vpop.f32.mrb[0].mxu0
      %v827 = vadd.f32 %v711, %v826
      %v828 = vpop.f32.mrb[0].mxu0
      %829 = vmatprep.mubr.bf16.mxu0 0
      %830 = vmatmul.mubr.bf16.gmra.mrb[0].mxu0 %v744
      %v831 = vpop.f32.mrb[0].mxu0
      %v832 = vadd.f32 %v711, %v831
      %v833 = vpop.f32.mrb[0].mxu0
      %v834 = vpop.f32.mrb[0].mxu0
      %v835 = vadd.f32 %v711, %v834
      %v836 = vpop.f32.mrb[0].mxu0
      %837 = vmatprep.mubr.bf16.mxu0 0
      %838 = vmatmul.mubr.bf16.gmra.mrb[0].mxu0 %v747
      %v839 = vpop.f32.mrb[0].mxu0
      %v840 = vadd.f32 %v711, %v839
      %v841 = vpop.f32.mrb[0].mxu0
      %v842 = vpop.f32.mrb[0].mxu0
      %v843 = vadd.f32 %v711, %v842
      %v844 = vpop.f32.mrb[0].mxu0
      %845 = vdwg.mxu0
      %v846 = vpack.c.bf16 %v787, %v784
      %v847 = vpack.c.bf16 %v795, %v792
      %v848 = vpack.c.bf16 %v803, %v800
      %v849 = vpack.c.bf16 %v811, %v808
      %v850 = vpack.c.bf16 %v819, %v816
      %v851 = vpack.c.bf16 %v827, %v824
      %v852 = vpack.c.bf16 %v835, %v832
      %v853 = vpack.c.bf16 %v843, %v840
      %v862 = vunpack.c.l.b16 %v846
      %v863 = vunpack.c.h.b16 %v846
      %v864 = vunpack.c.l.b16 %v847
      %v865 = vunpack.c.h.b16 %v847
      %v866 = vunpack.c.l.b16 %v848
      %v867 = vunpack.c.h.b16 %v848
      %v868 = vunpack.c.l.b16 %v849
      %v869 = vunpack.c.h.b16 %v849
      %v870 = vunpack.c.l.b16 %v850
      %v871 = vunpack.c.h.b16 %v850
      %v872 = vunpack.c.l.b16 %v851
      %v873 = vunpack.c.h.b16 %v851
      %v874 = vunpack.c.l.b16 %v852
      %v875 = vunpack.c.h.b16 %v852
      %v876 = vunpack.c.l.b16 %v853
      %v877 = vunpack.c.h.b16 %v853
      %v878 = vpack.c.b16 %v862, %v862
      %v879 = vpack.c.b16 %v863, %v863
      %v880 = vpack.c.b16 %v864, %v864
      %v881 = vpack.c.b16 %v865, %v865
      %v882 = vpack.c.b16 %v866, %v866
      %v883 = vpack.c.b16 %v867, %v867
      %v884 = vpack.c.b16 %v868, %v868
      %v885 = vpack.c.b16 %v869, %v869
      %v886 = vpack.c.b16 %v870, %v870
      %v887 = vpack.c.b16 %v871, %v871
      %v888 = vpack.c.b16 %v872, %v872
      %v889 = vpack.c.b16 %v873, %v873
      %v890 = vpack.c.b16 %v874, %v874
      %v891 = vpack.c.b16 %v875, %v875
      %v892 = vpack.c.b16 %v876, %v876
      %v893 = vpack.c.b16 %v877, %v877
      %910 = vst.msk [vmem:[%s395] sm:$0xf] %vm677, %v878
      %911 = vst.msk [vmem:[%s395 + $0x4] sm:$0xf] %vm677, %v879
      %912 = vst.msk [vmem:[%s395 + $0x8] sm:$0xf] %vm677, %v880
      %913 = vst.msk [vmem:[%s395 + $0xc] sm:$0xf] %vm677, %v881
      %914 = vst.msk [vmem:[%s395 + $0x10] sm:$0xf] %vm677, %v882
      %915 = vst.msk [vmem:[%s395 + $0x14] sm:$0xf] %vm677, %v883
      %916 = vst.msk [vmem:[%s395 + $0x18] sm:$0xf] %vm677, %v884
      %917 = vst.msk [vmem:[%s395 + $0x1c] sm:$0xf] %vm677, %v885
      %918 = vst.msk [vmem:[%s395 + $0x20] sm:$0xf] %vm677, %v886
      %919 = vst.msk [vmem:[%s395 + $0x24] sm:$0xf] %vm677, %v887
      %920 = vst.msk [vmem:[%s395 + $0x28] sm:$0xf] %vm677, %v888
      %921 = vst.msk [vmem:[%s395 + $0x2c] sm:$0xf] %vm677, %v889
      %922 = vst.msk [vmem:[%s395 + $0x30] sm:$0xf] %vm677, %v890
      %923 = vst.msk [vmem:[%s395 + $0x34] sm:$0xf] %vm677, %v891
      %924 = vst.msk [vmem:[%s395 + $0x38] sm:$0xf] %vm677, %v892
      %925 = vst.msk [vmem:[%s395 + $0x3c] sm:$0xf] %vm677, %v893
      %s926 = smul.u32 16, %s25
      %p927 = scmp.lt.s32.totalorder %s24, 1
      %s928 = scalar_select %p927, %s24, 1
      %p929 = scmp.lt.s32.totalorder %s926, 31
      %s930 = scalar_select %p929, %s926, 31
      %s931 = smul.addr %s928, 32
      %s932 = sadd.s32 %s930, %s931
      %s933 = smul.addr %s932, 4
      %s934 = scalar_lea.vmem %s7, %s933
      %s935 = smul.u32 16, %s25
      %p936 = scmp.lt.s32.totalorder %s24, 1
      %s937 = scalar_select %p936, %s24, 1
      %p938 = scmp.lt.s32.totalorder %s935, 31
      %s939 = scalar_select %p938, %s935, 31
      %s940 = smul.addr %s937, 32
      %s941 = sadd.s32 %s939, %s940
      %s942 = smul.addr %s941, 4
      %s943 = scalar_lea.vmem %s8, %s942
      // Predicated region
      $region49: #{transform_forward.8} parent=47 // pred_check
        %p944 = pneg %p216
      $region50: #{transform_forward.8} parent=47 // pred_check_branch
        %946 = sbr.rel (%p944) target = $region52
      $region51: #{transform_forward.8} parent=47 // pred_region
        %s947 = smul.u32 16, %s25
      $region52: #{transform_forward.8} parent=47 // pred_fallthru
        _
      // Predicated region
      $region53: #{transform_forward.8} parent=47 // pred_check
        %p948 = pneg %p244
      $region54: #{transform_forward.8} parent=47 // pred_check_branch
        %950 = sbr.rel (%p948) target = $region56
      $region55: #{transform_forward.8} parent=47 // pred_region
        %s951 = smul.u32 16, %s25
      $region56: #{transform_forward.8} parent=47 // pred_fallthru
        _
    $region48: #{transform_forward.8} parent=5 // pred_fallthru
      _
    %p952 = scmp.le.s32.totalorder 2, %s15
    // Predicated region
    $region57: #{transform_forward.8} parent=5 // pred_check
      %p953 = pneg %p952
    $region58: #{transform_forward.8} parent=5 // pred_check_branch
      %955 = sbr.rel (%p953) target = $region60
    $region59: #{transform_forward.8} parent=5 // pred_region
      %s956 = ssub.s32 %s15, 2
      // Predicated region
      $region61: #{transform_forward.8} parent=59 // pred_check
        %p957 = pneg %p222
      $region62: #{transform_forward.8} parent=59 // pred_check_branch
        %959 = sbr.rel (%p957) target = $region64
      $region63: #{transform_forward.8} parent=59 // pred_region
        %s960 = smul.u32 16, %s27
        %p961 = scmp.lt.s32.totalorder %s26, 1
        %s962 = scalar_select %p961, %s26, 1
        %p963 = scmp.lt.s32.totalorder %s960, 31
        %s964 = scalar_select %p963, %s960, 31
        %s965 = smul.addr %s962, 32
        %s966 = sadd.s32 %s964, %s965
        %s967 = smul.addr %s966, 4
        %s968 = scalar_lea.vmem %s7, %s967
      $region64: #{transform_forward.8} parent=59 // pred_fallthru
        _
      // Predicated region
      $region65: #{transform_forward.8} parent=59 // pred_check
        %p969 = pneg %p250
      $region66: #{transform_forward.8} parent=59 // pred_check_branch
        %971 = sbr.rel (%p969) target = $region68
      $region67: #{transform_forward.8} parent=59 // pred_region
        %s972 = smul.u32 16, %s27
        %p973 = scmp.lt.s32.totalorder %s26, 1
        %s974 = scalar_select %p973, %s26, 1
        %p975 = scmp.lt.s32.totalorder %s972, 31
        %s976 = scalar_select %p975, %s972, 31
        %s977 = smul.addr %s974, 32
        %s978 = sadd.s32 %s976, %s977
        %s979 = smul.addr %s978, 4
        %s980 = scalar_lea.vmem %s8, %s979
      $region68: #{transform_forward.8} parent=59 // pred_fallthru
        _
    $region60: #{transform_forward.8} parent=5 // pred_fallthru
      _
  $region6: #{transform_forward.8} parent=0 // loop_footer
    %s19 = sadd.s32 1, %s15
  $region7: #{transform_forward.8} parent=0 // loop_footer_branch
    %14 = sbr.rel target = $region3
  $region8: #{transform_forward.8} parent=0 // loop_exit
    _

// kernel: transform_forward.9
$region0: #{transform_forward.9}
  #allocation0 [shape = 'u32[]', space=smem, size = 0x4, offset = 0x4, fixed_abs, tag = 'smem constant byte address 0x4 - core index']
  #allocation1 [shape = 'u32[144,128]{1,0:T(1,128)}', space=vmem, size = 0x12000, scoped, tag = 'internal scratch']
  #allocation2 [shape = 'f32[64,1]{1,0:T(8,128)}', space=vmem, size = 0x8000, scoped, tag = 'scratch operand']
  #allocation3 [shape = 'f32[64,1]{1,0:T(8,128)}', space=vmem, size = 0x8000, scoped, tag = 'scratch operand']
  #allocation4 [shape = 'f32[64,32]{1,0:T(8,128)}', space=vmem, size = 0x8000, scoped, tag = 'scratch operand']
  %s0 = inlined_call_operand.vmem [shape: f32[2,256,32], index: 0, kind: input, shape index: {}]
  %s1 = inlined_call_operand.vmem [shape: bf16[2,256,32], index: 1, kind: input, shape index: {}]
  %s2 = inlined_call_operand.vmem [shape: bf16[2,256,32], index: 2, kind: input, shape index: {}]
  %s3 = inlined_call_operand.vmem [shape: bf16[2,256,32], index: 3, kind: input, shape index: {}]
  %s4 = inlined_call_operand.vmem [shape: bf16[32,32], index: 4, kind: input, shape index: {}]
  %s5 = inlined_call_operand.vmem [shape: f32[1,32], index: 5, kind: input, shape index: {}]
  %s6 = inlined_call_operand.vmem [shape: f32[2,256,32], index: 6, kind: output, shape index: {}]
  %s7 = sld [smem:[#allocation0]]
  $region65: #{transform_forward.9} parent=0
    _
  %s9 = ssub.s32 1, %s7
  %s10 = scalar_select 0, %s9, %s7
  loop: start=0, step=1, limit=34
  $region2: #{transform_forward.9} parent=0 // loop_pre_header
    _
  $region3: #{transform_forward.9} parent=0 // loop_header
    %s12 = sphi 0, %s16
    %p13 = scmp.ge.s32.totalorder %s12, 34
    %s19 = sphi 0, %s38
    %s20 = sphi 0, %s34
    %s21 = sphi 0, %s30
    %s22 = sphi 0, %s19
    %s23 = sphi 0, %s20
    %s24 = sphi 0, %s21
    %s25 = sphi 0, %s22
    %s26 = sphi 0, %s23
    %s27 = sphi 0, %s24
    %s43 = sphi 0, %s45
    %s46 = sphi 0, %s43
    %s47 = sphi 0, %s46
    %s63 = sphi 0, %s47
    %s71 = sphi 0, %s73
    %s74 = sphi 0, %s71
    %s75 = sphi 0, %s74
    %s91 = sphi 0, %s75
    %s99 = sphi 0, %s101
    %s102 = sphi 0, %s99
    %s103 = sphi 0, %s102
    %s119 = sphi 0, %s103
    %s127 = sphi 0, %s129
    %s130 = sphi 0, %s127
    %s131 = sphi 0, %s130
    %s147 = sphi 0, %s131
    %s151 = sphi 0, %s151
    %s153 = sphi 0, %s151
    %s154 = sphi 0, %s153
    %s168 = sphi 0, %s154
    %s172 = sphi 0, %s172
    %s174 = sphi 0, %s172
    %s175 = sphi 0, %s174
    %s189 = sphi 0, %s175
    %s197 = sphi 0, %s199
    %s200 = sphi 0, %s197
    %s201 = sphi 0, %s200
    %s217 = sphi 0, %s201
  $region4: #{transform_forward.9} parent=0 // loop_header_branch
    %15 = sbr.rel (%p13) target = $region8
  $region5: #{transform_forward.9} parent=0 // loop_body
    %s17 = ssub.s32 %s12, 1
    %s18 = ssub.s32 %s12, 2
    %s28 = sadd.s32 1, %s21
    %p29 = scmp.ge.s32.totalorder %s28, 4
    %s30 = scalar_select %p29, 0, %s28
    %s31 = sadd.s32 1, %s20
    %s32 = scalar_select %p29, %s31, %s20
    %p33 = scmp.ge.s32.totalorder %s32, 4
    %s34 = scalar_select %p33, 0, %s32
    %s35 = sadd.s32 1, %s19
    %s36 = scalar_select %p33, %s35, %s19
    %p37 = scmp.ge.s32.totalorder %s36, 2
    %s38 = scalar_select %p37, 0, %s36
    %s39 = ssub.s32 %s19, %s38
    %s40 = ssub.s32 %s20, %s34
    %s41 = sor.u32 %s39, %s40
    %p42 = scmp.eq.s32.totalorder %s41, 0
    %s44 = sadd.s32 %s43, 1
    %s45 = scalar_select %p42, %s43, %s44
    %p48 = pneg %p42
    %p49 = scmp.eq.s32.totalorder %s12, 31
    %p50 = por %p48, %p49
    %p51 = scmp.ne.s32.totalorder %s43, %s46
    %p52 = scmp.eq.s32.totalorder %s12, 0
    %p53 = por %p51, %p52
    %p54 = scmp.ne.s32.totalorder %s43, %s46
    %p55 = scmp.eq.s32.totalorder %s17, 31
    %p56 = por %p54, %p55
    %p57 = scmp.ne.s32.totalorder %s46, %s47
    %p58 = scmp.eq.s32.totalorder %s17, 0
    %p59 = por %p57, %p58
    %p60 = scmp.ne.s32.totalorder %s46, %s47
    %p61 = scmp.eq.s32.totalorder %s18, 31
    %p62 = por %p60, %p61
    %p64 = scmp.ne.s32.totalorder %s47, %s63
    %p65 = scmp.eq.s32.totalorder %s18, 0
    %p66 = por %p64, %p65
    %s67 = ssub.s32 %s19, %s38
    %s68 = ssub.s32 %s20, %s34
    %s69 = sor.u32 %s67, %s68
    %p70 = scmp.eq.s32.totalorder %s69, 0
    %s72 = sadd.s32 %s71, 1
    %s73 = scalar_select %p70, %s71, %s72
    %p76 = pneg %p70
    %p77 = scmp.eq.s32.totalorder %s12, 31
    %p78 = por %p76, %p77
    %p79 = scmp.ne.s32.totalorder %s71, %s74
    %p80 = scmp.eq.s32.totalorder %s12, 0
    %p81 = por %p79, %p80
    %p82 = scmp.ne.s32.totalorder %s71, %s74
    %p83 = scmp.eq.s32.totalorder %s17, 31
    %p84 = por %p82, %p83
    %p85 = scmp.ne.s32.totalorder %s74, %s75
    %p86 = scmp.eq.s32.totalorder %s17, 0
    %p87 = por %p85, %p86
    %p88 = scmp.ne.s32.totalorder %s74, %s75
    %p89 = scmp.eq.s32.totalorder %s18, 31
    %p90 = por %p88, %p89
    %p92 = scmp.ne.s32.totalorder %s75, %s91
    %p93 = scmp.eq.s32.totalorder %s18, 0
    %p94 = por %p92, %p93
    %s95 = ssub.s32 %s19, %s38
    %s96 = ssub.s32 %s21, %s30
    %s97 = sor.u32 %s95, %s96
    %p98 = scmp.eq.s32.totalorder %s97, 0
    %s100 = sadd.s32 %s99, 1
    %s101 = scalar_select %p98, %s99, %s100
    %p104 = pneg %p98
    %p105 = scmp.eq.s32.totalorder %s12, 31
    %p106 = por %p104, %p105
    %p107 = scmp.ne.s32.totalorder %s99, %s102
    %p108 = scmp.eq.s32.totalorder %s12, 0
    %p109 = por %p107, %p108
    %p110 = scmp.ne.s32.totalorder %s99, %s102
    %p111 = scmp.eq.s32.totalorder %s17, 31
    %p112 = por %p110, %p111
    %p113 = scmp.ne.s32.totalorder %s102, %s103
    %p114 = scmp.eq.s32.totalorder %s17, 0
    %p115 = por %p113, %p114
    %p116 = scmp.ne.s32.totalorder %s102, %s103
    %p117 = scmp.eq.s32.totalorder %s18, 31
    %p118 = por %p116, %p117
    %p120 = scmp.ne.s32.totalorder %s103, %s119
    %p121 = scmp.eq.s32.totalorder %s18, 0
    %p122 = por %p120, %p121
    %s123 = ssub.s32 %s19, %s38
    %s124 = ssub.s32 %s21, %s30
    %s125 = sor.u32 %s123, %s124
    %p126 = scmp.eq.s32.totalorder %s125, 0
    %s128 = sadd.s32 %s127, 1
    %s129 = scalar_select %p126, %s127, %s128
    %p132 = pneg %p126
    %p133 = scmp.eq.s32.totalorder %s12, 31
    %p134 = por %p132, %p133
    %p135 = scmp.ne.s32.totalorder %s127, %s130
    %p136 = scmp.eq.s32.totalorder %s12, 0
    %p137 = por %p135, %p136
    %p138 = scmp.ne.s32.totalorder %s127, %s130
    %p139 = scmp.eq.s32.totalorder %s17, 31
    %p140 = por %p138, %p139
    %p141 = scmp.ne.s32.totalorder %s130, %s131
    %p142 = scmp.eq.s32.totalorder %s17, 0
    %p143 = por %p141, %p142
    %p144 = scmp.ne.s32.totalorder %s130, %s131
    %p145 = scmp.eq.s32.totalorder %s18, 31
    %p146 = por %p144, %p145
    %p148 = scmp.ne.s32.totalorder %s131, %s147
    %p149 = scmp.eq.s32.totalorder %s18, 0
    %p150 = por %p148, %p149
    %s152 = sadd.s32 %s151, 1
    %p155 = scmp.eq.s32.totalorder %s12, 31
    %p156 = scmp.ne.s32.totalorder %s151, %s153
    %p157 = scmp.eq.s32.totalorder %s12, 0
    %p158 = por %p156, %p157
    %p159 = scmp.ne.s32.totalorder %s151, %s153
    %p160 = scmp.eq.s32.totalorder %s17, 31
    %p161 = por %p159, %p160
    %p162 = scmp.ne.s32.totalorder %s153, %s154
    %p163 = scmp.eq.s32.totalorder %s17, 0
    %p164 = por %p162, %p163
    %p165 = scmp.ne.s32.totalorder %s153, %s154
    %p166 = scmp.eq.s32.totalorder %s18, 31
    %p167 = por %p165, %p166
    %p169 = scmp.ne.s32.totalorder %s154, %s168
    %p170 = scmp.eq.s32.totalorder %s18, 0
    %p171 = por %p169, %p170
    %s173 = sadd.s32 %s172, 1
    %p176 = scmp.eq.s32.totalorder %s12, 31
    %p177 = scmp.ne.s32.totalorder %s172, %s174
    %p178 = scmp.eq.s32.totalorder %s12, 0
    %p179 = por %p177, %p178
    %p180 = scmp.ne.s32.totalorder %s172, %s174
    %p181 = scmp.eq.s32.totalorder %s17, 31
    %p182 = por %p180, %p181
    %p183 = scmp.ne.s32.totalorder %s174, %s175
    %p184 = scmp.eq.s32.totalorder %s17, 0
    %p185 = por %p183, %p184
    %p186 = scmp.ne.s32.totalorder %s174, %s175
    %p187 = scmp.eq.s32.totalorder %s18, 31
    %p188 = por %p186, %p187
    %p190 = scmp.ne.s32.totalorder %s175, %s189
    %p191 = scmp.eq.s32.totalorder %s18, 0
    %p192 = por %p190, %p191
    %s193 = ssub.s32 %s19, %s38
    %s194 = ssub.s32 %s20, %s34
    %s195 = sor.u32 %s193, %s194
    %p196 = scmp.eq.s32.totalorder %s195, 0
    %s198 = sadd.s32 %s197, 1
    %s199 = scalar_select %p196, %s197, %s198
    %p202 = pneg %p196
    %p203 = scmp.eq.s32.totalorder %s12, 31
    %p204 = por %p202, %p203
    %p205 = scmp.ne.s32.totalorder %s197, %s200
    %p206 = scmp.eq.s32.totalorder %s12, 0
    %p207 = por %p205, %p206
    %p208 = scmp.ne.s32.totalorder %s197, %s200
    %p209 = scmp.eq.s32.totalorder %s17, 31
    %p210 = por %p208, %p209
    %p211 = scmp.ne.s32.totalorder %s200, %s201
    %p212 = scmp.eq.s32.totalorder %s17, 0
    %p213 = por %p211, %p212
    %p214 = scmp.ne.s32.totalorder %s200, %s201
    %p215 = scmp.eq.s32.totalorder %s18, 31
    %p216 = por %p214, %p215
    %p218 = scmp.ne.s32.totalorder %s201, %s217
    %p219 = scmp.eq.s32.totalorder %s18, 0
    %p220 = por %p218, %p219
    %p221 = scmp.le.s32.totalorder 1, %s12
    %p222 = scmp.lt.s32.totalorder %s12, 33
    %p223 = pnand %p221, %p222
    %p224 = pneg %p223
    // Predicated region
    $region9: #{transform_forward.9} parent=5 // pred_check
      _
    $region10: #{transform_forward.9} parent=5 // pred_check_branch
      %226 = sbr.rel (%p223) target = $region12
    $region11: #{transform_forward.9} parent=5 // pred_region
      %s227 = ssub.s32 %s12, 1
      // Predicated region
      $region13: #{transform_forward.9} parent=11 // pred_check
        %p228 = pneg %p164
      $region14: #{transform_forward.9} parent=11 // pred_check_branch
        %230 = sbr.rel (%p228) target = $region16
      $region15: #{transform_forward.9} parent=11 // pred_region
        _
      $region16: #{transform_forward.9} parent=11 // pred_fallthru
        _
      // Predicated region
      $region17: #{transform_forward.9} parent=11 // pred_check
        %p231 = pneg %p185
      $region18: #{transform_forward.9} parent=11 // pred_check_branch
        %233 = sbr.rel (%p231) target = $region20
      $region19: #{transform_forward.9} parent=11 // pred_region
        _
      $region20: #{transform_forward.9} parent=11 // pred_fallthru
        _
    $region12: #{transform_forward.9} parent=5 // pred_fallthru
      _
    %p234 = scmp.lt.s32.totalorder %s12, 32
    // Predicated region
    $region21: #{transform_forward.9} parent=5 // pred_check
      %p235 = pneg %p234
    $region22: #{transform_forward.9} parent=5 // pred_check_branch
      %237 = sbr.rel (%p235) target = $region24
    $region23: #{transform_forward.9} parent=5 // pred_region
      // Predicated region
      $region25: #{transform_forward.9} parent=23 // pred_check
        %p238 = pneg %p53
      $region26: #{transform_forward.9} parent=23 // pred_check_branch
        %240 = sbr.rel (%p238) target = $region28
      $region27: #{transform_forward.9} parent=23 // pred_region
        %s241 = smul.u32 8, %s20
        %p242 = scmp.lt.s32.totalorder %s19, 1
        %s243 = scalar_select %p242, %s19, 1
        %p244 = scmp.lt.s32.totalorder %s241, 31
        %s245 = scalar_select %p244, %s241, 31
        %s246 = smul.addr %s243, 32
        %s247 = sadd.s32 %s245, %s246
        %s248 = smul.addr %s247, 8
        %s249 = scalar_lea.vmem %s0, %s248
        %s250 = smul.u32 8, %s20
      $region28: #{transform_forward.9} parent=23 // pred_fallthru
        _
      // Predicated region
      $region29: #{transform_forward.9} parent=23 // pred_check
        %p251 = pneg %p81
      $region30: #{transform_forward.9} parent=23 // pred_check_branch
        %253 = sbr.rel (%p251) target = $region32
      $region31: #{transform_forward.9} parent=23 // pred_region
        %s254 = smul.u32 8, %s20
        %p255 = scmp.lt.s32.totalorder %s19, 1
        %s256 = scalar_select %p255, %s19, 1
        %p257 = scmp.lt.s32.totalorder %s254, 31
        %s258 = scalar_select %p257, %s254, 31
        %s259 = smul.addr %s256, 32
        %s260 = sadd.s32 %s258, %s259
        %s261 = smul.addr %s260, 4
        %s262 = scalar_lea.vmem %s1, %s261
        %s263 = smul.u32 8, %s20
      $region32: #{transform_forward.9} parent=23 // pred_fallthru
        _
      // Predicated region
      $region33: #{transform_forward.9} parent=23 // pred_check
        %p264 = pneg %p109
      $region34: #{transform_forward.9} parent=23 // pred_check_branch
        %266 = sbr.rel (%p264) target = $region36
      $region35: #{transform_forward.9} parent=23 // pred_region
        %s267 = smul.u32 8, %s21
        %p268 = scmp.lt.s32.totalorder %s19, 1
        %s269 = scalar_select %p268, %s19, 1
        %p270 = scmp.lt.s32.totalorder %s267, 31
        %s271 = scalar_select %p270, %s267, 31
        %s272 = smul.addr %s269, 32
        %s273 = sadd.s32 %s271, %s272
        %s274 = smul.addr %s273, 4
        %s275 = scalar_lea.vmem %s2, %s274
        %s276 = smul.u32 8, %s21
      $region36: #{transform_forward.9} parent=23 // pred_fallthru
        _
      // Predicated region
      $region37: #{transform_forward.9} parent=23 // pred_check
        %p277 = pneg %p137
      $region38: #{transform_forward.9} parent=23 // pred_check_branch
        %279 = sbr.rel (%p277) target = $region40
      $region39: #{transform_forward.9} parent=23 // pred_region
        %s280 = smul.u32 8, %s21
        %p281 = scmp.lt.s32.totalorder %s19, 1
        %s282 = scalar_select %p281, %s19, 1
        %p283 = scmp.lt.s32.totalorder %s280, 31
        %s284 = scalar_select %p283, %s280, 31
        %s285 = smul.addr %s282, 32
        %s286 = sadd.s32 %s284, %s285
        %s287 = smul.addr %s286, 4
        %s288 = scalar_lea.vmem %s3, %s287
        %s289 = smul.u32 8, %s21
      $region40: #{transform_forward.9} parent=23 // pred_fallthru
        _
    $region24: #{transform_forward.9} parent=5 // pred_fallthru
      _
    %p290 = scmp.le.s32.totalorder 1, %s12
    %p291 = scmp.lt.s32.totalorder %s12, 33
    %p292 = pnand %p290, %p291
    %p293 = pneg %p292
    // Predicated region
    $region41: #{transform_forward.9} parent=5 // pred_check
      _
    $region42: #{transform_forward.9} parent=5 // pred_check_branch
      %295 = sbr.rel (%p292) target = $region44
    $region43: #{transform_forward.9} parent=5 // pred_region
      %s296 = ssub.s32 %s12, 1
      %s297 = smul.u32 8, %s23
      %p298 = scmp.lt.s32.totalorder %s22, 1
      %s299 = scalar_select %p298, %s22, 1
      %p300 = scmp.lt.s32.totalorder %s297, 31
      %s301 = scalar_select %p300, %s297, 31
      %s302 = smul.addr %s299, 32
      %s303 = sadd.s32 %s301, %s302
      %s304 = smul.addr %s303, 8
      %s305 = scalar_lea.vmem %s0, %s304
      %p306 = pneg %p59
      %p307 = pneg %p56
      %s308 = smul.u32 8, %s23
      %p309 = scmp.lt.s32.totalorder %s22, 1
      %s310 = scalar_select %p309, %s22, 1
      %p311 = scmp.lt.s32.totalorder %s308, 31
      %s312 = scalar_select %p311, %s308, 31
      %s313 = smul.addr %s310, 32
      %s314 = sadd.s32 %s312, %s313
      %s315 = smul.addr %s314, 4
      %s316 = scalar_lea.vmem %s1, %s315
      %p317 = pneg %p87
      %p318 = pneg %p84
      %s319 = smul.u32 8, %s24
      %p320 = scmp.lt.s32.totalorder %s22, 1
      %s321 = scalar_select %p320, %s22, 1
      %p322 = scmp.lt.s32.totalorder %s319, 31
      %s323 = scalar_select %p322, %s319, 31
      %s324 = smul.addr %s321, 32
      %s325 = sadd.s32 %s323, %s324
      %s326 = smul.addr %s325, 4
      %s327 = scalar_lea.vmem %s2, %s326
      %p328 = pneg %p115
      %p329 = pneg %p112
      %s330 = smul.u32 8, %s24
      %p331 = scmp.lt.s32.totalorder %s22, 1
      %s332 = scalar_select %p331, %s22, 1
      %p333 = scmp.lt.s32.totalorder %s330, 31
      %s334 = scalar_select %p333, %s330, 31
      %s335 = smul.addr %s332, 32
      %s336 = sadd.s32 %s334, %s335
      %s337 = smul.addr %s336, 4
      %s338 = scalar_lea.vmem %s3, %s337
      %p339 = pneg %p143
      %p340 = pneg %p140
      %p341 = pneg %p164
      %p342 = pneg %p161
      %p343 = pneg %p185
      %p344 = pneg %p182
      %p345 = pneg %p213
      %p346 = pneg %p210
      %s347 = smul.u32 8, %s23
      %p348 = scmp.lt.s32.totalorder %s22, 1
      %s349 = scalar_select %p348, %s22, 1
      %p350 = scmp.lt.s32.totalorder %s347, 31
      %s351 = scalar_select %p350, %s347, 31
      %s352 = smul.addr %s349, 32
      %s353 = sadd.s32 %s351, %s352
      %s354 = smul.addr %s353, 8
      %s355 = scalar_lea.vmem %s6, %s354
      %s356 = smul.u32 8, %s23
      %p357 = scmp.lt.s32.totalorder %s22, 1
      %s358 = scalar_select %p357, %s22, 1
      %p359 = scmp.lt.s32.totalorder %s356, 31
      %s360 = scalar_select %p359, %s356, 31
      %s361 = smul.addr %s358, 32
      %s362 = sadd.s32 %s360, %s361
      %s363 = smul.addr %s362, 8
      %s364 = scalar_lea.vmem %s0, %s363
      %s365 = smul.u32 8, %s23
      %s366 = smul.u32 8, %s23
      %p367 = scmp.lt.s32.totalorder %s22, 1
      %s368 = scalar_select %p367, %s22, 1
      %p369 = scmp.lt.s32.totalorder %s366, 31
      %s370 = scalar_select %p369, %s366, 31
      %s371 = smul.addr %s368, 32
      %s372 = sadd.s32 %s370, %s371
      %s373 = smul.addr %s372, 4
      %s374 = scalar_lea.vmem %s1, %s373
      %s375 = smul.u32 8, %s23
      %s376 = smul.u32 8, %s24
      %p377 = scmp.lt.s32.totalorder %s22, 1
      %s378 = scalar_select %p377, %s22, 1
      %p379 = scmp.lt.s32.totalorder %s376, 31
      %s380 = scalar_select %p379, %s376, 31
      %s381 = smul.addr %s378, 32
      %s382 = sadd.s32 %s380, %s381
      %s383 = smul.addr %s382, 4
      %s384 = scalar_lea.vmem %s2, %s383
      %s385 = smul.u32 8, %s24
      %s386 = smul.u32 8, %s24
      %p387 = scmp.lt.s32.totalorder %s22, 1
      %s388 = scalar_select %p387, %s22, 1
      %p389 = scmp.lt.s32.totalorder %s386, 31
      %s390 = scalar_select %p389, %s386, 31
      %s391 = smul.addr %s388, 32
      %s392 = sadd.s32 %s390, %s391
      %s393 = smul.addr %s392, 4
      %s394 = scalar_lea.vmem %s3, %s393
      %s395 = smul.u32 8, %s24
      %s396 = smul.u32 8, %s23
      %p397 = scmp.lt.s32.totalorder %s22, 1
      %s398 = scalar_select %p397, %s22, 1
      %p399 = scmp.lt.s32.totalorder %s396, 31
      %s400 = scalar_select %p399, %s396, 31
      %s401 = smul.addr %s398, 32
      %s402 = sadd.s32 %s400, %s401
      %s403 = smul.addr %s402, 8
      %s404 = scalar_lea.vmem %s6, %s403
      %s405 = smul.u32 8, %s23
      %p407 = scmp.eq.s32.totalorder %s24, 0
      // Predicated region
      $region45: #{transform_forward.9} parent=43 // pred_check
        %p408 = pneg %p407
      $region46: #{transform_forward.9} parent=43 // pred_check_branch
        %410 = sbr.rel (%p408) target = $region48
      $region47: #{transform_forward.9} parent=43 // pred_region
        %vm411 = vcmask 7168
        %412 = vst.msk [vmem:[#allocation2] sm:$0xff] %vm411, -inf
        %413 = vst.msk [vmem:[#allocation2 + $0x8] sm:$0xff] %vm411, -inf
        %414 = vst.msk [vmem:[#allocation2 + $0x10] sm:$0xff] %vm411, -inf
        %415 = vst.msk [vmem:[#allocation2 + $0x18] sm:$0xff] %vm411, -inf
        %416 = vst.msk [vmem:[#allocation2 + $0x20] sm:$0xff] %vm411, -inf
        %417 = vst.msk [vmem:[#allocation2 + $0x28] sm:$0xff] %vm411, -inf
        %418 = vst.msk [vmem:[#allocation2 + $0x30] sm:$0xff] %vm411, -inf
        %419 = vst.msk [vmem:[#allocation2 + $0x38] sm:$0xff] %vm411, -inf
        %420 = vst.msk [vmem:[#allocation3] sm:$0xff] %vm411, 0.0
        %421 = vst.msk [vmem:[#allocation3 + $0x8] sm:$0xff] %vm411, 0.0
        %422 = vst.msk [vmem:[#allocation3 + $0x10] sm:$0xff] %vm411, 0.0
        %423 = vst.msk [vmem:[#allocation3 + $0x18] sm:$0xff] %vm411, 0.0
        %424 = vst.msk [vmem:[#allocation3 + $0x20] sm:$0xff] %vm411, 0.0
        %425 = vst.msk [vmem:[#allocation3 + $0x28] sm:$0xff] %vm411, 0.0
        %426 = vst.msk [vmem:[#allocation3 + $0x30] sm:$0xff] %vm411, 0.0
        %427 = vst.msk [vmem:[#allocation3 + $0x38] sm:$0xff] %vm411, 0.0
        %vm428 = vcmask 261120
        %429 = vst.msk [vmem:[#allocation4] sm:$0xff] %vm428, 0.0
        %430 = vst.msk [vmem:[#allocation4 + $0x8] sm:$0xff] %vm428, 0.0
        %431 = vst.msk [vmem:[#allocation4 + $0x10] sm:$0xff] %vm428, 0.0
        %432 = vst.msk [vmem:[#allocation4 + $0x18] sm:$0xff] %vm428, 0.0
        %433 = vst.msk [vmem:[#allocation4 + $0x20] sm:$0xff] %vm428, 0.0
        %434 = vst.msk [vmem:[#allocation4 + $0x28] sm:$0xff] %vm428, 0.0
        %435 = vst.msk [vmem:[#allocation4 + $0x30] sm:$0xff] %vm428, 0.0
        %436 = vst.msk [vmem:[#allocation4 + $0x38] sm:$0xff] %vm428, 0.0
      $region48: #{transform_forward.9} parent=43 // pred_fallthru
        _
      %v437 = vld [vmem:[%s374] sm:$0xf]
      %v438 = vld [vmem:[%s374 + $0x4] sm:$0xf]
      %v439 = vld [vmem:[%s374 + $0x8] sm:$0xf]
      %v440 = vld [vmem:[%s374 + $0xc] sm:$0xf]
      %v441 = vld [vmem:[%s374 + $0x10] sm:$0xf]
      %v442 = vld [vmem:[%s374 + $0x14] sm:$0xf]
      %v443 = vld [vmem:[%s374 + $0x18] sm:$0xf]
      %v444 = vld [vmem:[%s374 + $0x1c] sm:$0xf]
      %v445 = vld [vmem:[%s384] sm:$0xf]
      %v446 = vld [vmem:[%s384 + $0x4] sm:$0xf]
      %v447 = vld [vmem:[%s384 + $0x8] sm:$0xf]
      %v448 = vld [vmem:[%s384 + $0xc] sm:$0xf]
      %v449 = vld [vmem:[%s384 + $0x10] sm:$0xf]
      %v450 = vld [vmem:[%s384 + $0x14] sm:$0xf]
      %v451 = vld [vmem:[%s384 + $0x18] sm:$0xf]
      %v452 = vld [vmem:[%s384 + $0x1c] sm:$0xf]
      %v461 = vunpack.c.l.b16 %v437
      %v462 = vunpack.c.l.b16 %v438
      %v463 = vunpack.c.l.b16 %v439
      %v464 = vunpack.c.l.b16 %v440
      %v465 = vunpack.c.l.b16 %v441
      %v466 = vunpack.c.l.b16 %v442
      %v467 = vunpack.c.l.b16 %v443
      %v468 = vunpack.c.l.b16 %v444
      %v469 = vpack.c.b16 %v462, %v461
      %v470 = vpack.c.b16 %v464, %v463
      %v471 = vpack.c.b16 %v466, %v465
      %v472 = vpack.c.b16 %v468, %v467
      %v481 = vunpack.c.l.b16 %v445
      %v482 = vunpack.c.l.b16 %v446
      %v483 = vunpack.c.l.b16 %v447
      %v484 = vunpack.c.l.b16 %v448
      %v485 = vunpack.c.l.b16 %v449
      %v486 = vunpack.c.l.b16 %v450
      %v487 = vunpack.c.l.b16 %v451
      %v488 = vunpack.c.l.b16 %v452
      %v489 = vpack.c.b16 %v482, %v481
      %v490 = vpack.c.b16 %v484, %v483
      %v491 = vpack.c.b16 %v486, %v485
      %v492 = vpack.c.b16 %v488, %v487
      %vm493 = vcmask 261120
      %v495 = vsel %vm493, %v469, 0
      %v498 = vsel %vm493, %v470, 0
      %v501 = vsel %vm493, %v471, 0
      %v504 = vsel %vm493, %v472, 0
      %v507 = vsel %vm493, %v489, 0
      %v510 = vsel %vm493, %v490, 0
      %v513 = vsel %vm493, %v491, 0
      %v516 = vsel %vm493, %v492, 0
      %518 = vmatprep.subr.bf16.mxu0 0
      %519 = vmatpush1.bf16.xpose.msra.mxu0 %v507
      %520 = vmatprep.subr.bf16.mxu0 0
      %521 = vmatpush1.bf16.xpose.msra.mxu0 %v510
      %522 = vmatprep.subr.bf16.mxu0 0
      %523 = vmatpush1.bf16.xpose.msra.mxu0 %v513
      %524 = vmatprep.subr.bf16.mxu0 0
      %525 = vmatpush1.bf16.xpose.msra.mxu0 %v516
      %526 = vmatprep.subr.bf16.mxu0 0
      %527 = vmatpush1.bf16.xpose.msra.mxu0 0
      %528 = vmatprep.subr.bf16.mxu0 0
      %529 = vmatpush1.bf16.xpose.msra.mxu0 0
      %530 = vmatprep.subr.bf16.mxu0 0
      %531 = vmatpush1.bf16.xpose.msra.mxu0 0
      %532 = vmatprep.subr.bf16.mxu0 0
      %533 = vmatpush1.bf16.xpose.msra.mxu0 0
      %534 = vmatprep.subr.bf16.mxu0 0
      %535 = vmatpush1.bf16.xpose.msra.mxu0 0
      %536 = vmatprep.subr.bf16.mxu0 0
      %537 = vmatpush1.bf16.xpose.msra.mxu0 0
      %538 = vmatprep.subr.bf16.mxu0 0
      %539 = vmatpush1.bf16.xpose.msra.mxu0 0
      %540 = vmatprep.subr.bf16.mxu0 0
      %541 = vmatpush1.bf16.xpose.msra.mxu0 0
      %542 = vmatprep.subr.bf16.mxu0 0
      %543 = vmatpush1.bf16.xpose.msra.mxu0 0
      %544 = vmatprep.subr.bf16.mxu0 0
      %545 = vmatpush1.bf16.xpose.msra.mxu0 0
      %546 = vmatprep.subr.bf16.mxu0 0
      %547 = vmatpush1.bf16.xpose.msra.mxu0 0
      %548 = vmatprep.subr.bf16.mxu0 0
      %549 = vmatpush1.bf16.xpose.msra.mxu0 0
      %550 = vmatprep.mubr.bf16.mxu0 0
      %551 = vmatmul.mubr.bf16.gmra.mrb[0].mxu0 %v495
      %v552 = vpop.f32.mrb[0].mxu0
      %v553 = vadd.f32 0.0, %v552
      %v554 = vpop.f32.mrb[0].mxu0
      %v555 = vpop.f32.mrb[0].mxu0
      %v556 = vadd.f32 0.0, %v555
      %v557 = vpop.f32.mrb[0].mxu0
      %558 = vmatprep.mubr.bf16.mxu0 0
      %559 = vmatmul.mubr.bf16.gmra.mrb[0].mxu0 %v498
      %v560 = vpop.f32.mrb[0].mxu0
      %v561 = vadd.f32 0.0, %v560
      %v562 = vpop.f32.mrb[0].mxu0
      %v563 = vpop.f32.mrb[0].mxu0
      %v564 = vadd.f32 0.0, %v563
      %v565 = vpop.f32.mrb[0].mxu0
      %566 = vmatprep.mubr.bf16.mxu0 0
      %567 = vmatmul.mubr.bf16.gmra.mrb[0].mxu0 %v501
      %v568 = vpop.f32.mrb[0].mxu0
      %v569 = vadd.f32 0.0, %v568
      %v570 = vpop.f32.mrb[0].mxu0
      %v571 = vpop.f32.mrb[0].mxu0
      %v572 = vadd.f32 0.0, %v571
      %v573 = vpop.f32.mrb[0].mxu0
      %574 = vmatprep.mubr.bf16.mxu0 0
      %575 = vmatmul.mubr.bf16.gmra.mrb[0].mxu0 %v504
      %v576 = vpop.f32.mrb[0].mxu0
      %v577 = vadd.f32 0.0, %v576
      %v578 = vpop.f32.mrb[0].mxu0
      %v579 = vpop.f32.mrb[0].mxu0
      %v580 = vadd.f32 0.0, %v579
      %v581 = vpop.f32.mrb[0].mxu0
      %582 = vdwg.mxu0
      %v583 = vld [vmem:[#allocation2] sm:$0xff]
      %v584 = vld [vmem:[#allocation2 + $0x8] sm:$0xff]
      %v585 = vld [vmem:[#allocation2 + $0x10] sm:$0xff]
      %v586 = vld [vmem:[#allocation2 + $0x18] sm:$0xff]
      %v587 = vld [vmem:[#allocation2 + $0x20] sm:$0xff]
      %v588 = vld [vmem:[#allocation2 + $0x28] sm:$0xff]
      %v589 = vld [vmem:[#allocation2 + $0x30] sm:$0xff]
      %v590 = vld [vmem:[#allocation2 + $0x38] sm:$0xff]
      %vm591 = vcmask 523264
      %v592 = vsel %vm591, %v553, -inf
      %593 = vmax.xlane.f32.xlu0 %v592
      %v594 = vpop.xlane.xlu0 %593
      %v595 = vsel %vm591, %v556, -inf
      %596 = vmax.xlane.f32.xlu0 %v595
      %v597 = vpop.xlane.xlu0 %596
      %v598 = vsel %vm591, %v561, -inf
      %599 = vmax.xlane.f32.xlu0 %v598
      %v600 = vpop.xlane.xlu0 %599
      %v601 = vsel %vm591, %v564, -inf
      %602 = vmax.xlane.f32.xlu0 %v601
      %v603 = vpop.xlane.xlu0 %602
      %v604 = vsel %vm591, %v569, -inf
      %605 = vmax.xlane.f32.xlu0 %v604
      %v606 = vpop.xlane.xlu0 %605
      %v607 = vsel %vm591, %v572, -inf
      %608 = vmax.xlane.f32.xlu0 %v607
      %v609 = vpop.xlane.xlu0 %608
      %v610 = vsel %vm591, %v577, -inf
      %611 = vmax.xlane.f32.xlu0 %v610
      %v612 = vpop.xlane.xlu0 %611
      %v613 = vsel %vm591, %v580, -inf
      %614 = vmax.xlane.f32.xlu0 %v613
      %v615 = vpop.xlane.xlu0 %614
      %v616 = vmax.f32 %v583, %v594
      %v617 = vmax.f32 %v584, %v597
      %v618 = vmax.f32 %v585, %v600
      %v619 = vmax.f32 %v586, %v603
      %v620 = vmax.f32 %v587, %v606
      %v621 = vmax.f32 %v588, %v609
      %v622 = vmax.f32 %v589, %v612
      %v623 = vmax.f32 %v590, %v615
      %v624 = vsub.f32 %v583, %v616
      %v625 = vsub.f32 %v584, %v617
      %v626 = vsub.f32 %v585, %v618
      %v627 = vsub.f32 %v586, %v619
      %v628 = vsub.f32 %v587, %v620
      %v629 = vsub.f32 %v588, %v621
      %v630 = vsub.f32 %v589, %v622
      %v631 = vsub.f32 %v590, %v623
      %v632 = vmul.f32 %v624, 1.442695
      %v633 = vpow.pop %v632
      %v634 = vmul.f32 %v625, 1.442695
      %v635 = vpow.pop %v634
      %v636 = vmul.f32 %v626, 1.442695
      %v637 = vpow.pop %v636
      %v638 = vmul.f32 %v627, 1.442695
      %v639 = vpow.pop %v638
      %v640 = vmul.f32 %v628, 1.442695
      %v641 = vpow.pop %v640
      %v642 = vmul.f32 %v629, 1.442695
      %v643 = vpow.pop %v642
      %v644 = vmul.f32 %v630, 1.442695
      %v645 = vpow.pop %v644
      %v646 = vmul.f32 %v631, 1.442695
      %v647 = vpow.pop %v646
      %649 = vset.pattern.permute.xlu0 0
      %650 = vperm.xlu0 %649, %v616
      %v651 = vpop.permute.xlu0 %650
      %654 = vset.pattern.permute.xlu0 0
      %655 = vperm.xlu0 %654, %v617
      %v656 = vpop.permute.xlu0 %655
      %659 = vset.pattern.permute.xlu0 0
      %660 = vperm.xlu0 %659, %v618
      %v661 = vpop.permute.xlu0 %660
      %664 = vset.pattern.permute.xlu0 0
      %665 = vperm.xlu0 %664, %v619
      %v666 = vpop.permute.xlu0 %665
      %669 = vset.pattern.permute.xlu0 0
      %670 = vperm.xlu0 %669, %v620
      %v671 = vpop.permute.xlu0 %670
      %674 = vset.pattern.permute.xlu0 0
      %675 = vperm.xlu0 %674, %v621
      %v676 = vpop.permute.xlu0 %675
      %679 = vset.pattern.permute.xlu0 0
      %680 = vperm.xlu0 %679, %v622
      %v681 = vpop.permute.xlu0 %680
      %684 = vset.pattern.permute.xlu0 0
      %685 = vperm.xlu0 %684, %v623
      %v686 = vpop.permute.xlu0 %685
      %v688 = vsub.f32 %v553, %v651
      %v689 = vsub.f32 %v556, %v656
      %v690 = vsub.f32 %v561, %v661
      %v691 = vsub.f32 %v564, %v666
      %v692 = vsub.f32 %v569, %v671
      %v693 = vsub.f32 %v572, %v676
      %v694 = vsub.f32 %v577, %v681
      %v695 = vsub.f32 %v580, %v686
      %v696 = vmul.f32 %v688, 1.442695
      %v697 = vpow.pop %v696
      %v698 = vmul.f32 %v689, 1.442695
      %v699 = vpow.pop %v698
      %v700 = vmul.f32 %v690, 1.442695
      %v701 = vpow.pop %v700
      %v702 = vmul.f32 %v691, 1.442695
      %v703 = vpow.pop %v702
      %v704 = vmul.f32 %v692, 1.442695
      %v705 = vpow.pop %v704
      %v706 = vmul.f32 %v693, 1.442695
      %v707 = vpow.pop %v706
      %v708 = vmul.f32 %v694, 1.442695
      %v709 = vpow.pop %v708
      %v710 = vmul.f32 %v695, 1.442695
      %v711 = vpow.pop %v710
      %v712 = vld [vmem:[#allocation3] sm:$0xff]
      %v713 = vld [vmem:[#allocation3 + $0x8] sm:$0xff]
      %v714 = vld [vmem:[#allocation3 + $0x10] sm:$0xff]
      %v715 = vld [vmem:[#allocation3 + $0x18] sm:$0xff]
      %v716 = vld [vmem:[#allocation3 + $0x20] sm:$0xff]
      %v717 = vld [vmem:[#allocation3 + $0x28] sm:$0xff]
      %v718 = vld [vmem:[#allocation3 + $0x30] sm:$0xff]
      %v719 = vld [vmem:[#allocation3 + $0x38] sm:$0xff]
      %v720 = vmul.f32 %v633, %v712
      %v721 = vmul.f32 %v635, %v713
      %v722 = vmul.f32 %v637, %v714
      %v723 = vmul.f32 %v639, %v715
      %v724 = vmul.f32 %v641, %v716
      %v725 = vmul.f32 %v643, %v717
      %v726 = vmul.f32 %v645, %v718
      %v727 = vmul.f32 %v647, %v719
      %v728 = vsel %vm591, %v697, 0.0
      %729 = vadd.xlane.f32.xlu0 %v728
      %v730 = vpop.xlane.xlu0 %729
      %v731 = vsel %vm591, %v699, 0.0
      %732 = vadd.xlane.f32.xlu0 %v731
      %v733 = vpop.xlane.xlu0 %732
      %v734 = vsel %vm591, %v701, 0.0
      %735 = vadd.xlane.f32.xlu0 %v734
      %v736 = vpop.xlane.xlu0 %735
      %v737 = vsel %vm591, %v703, 0.0
      %738 = vadd.xlane.f32.xlu0 %v737
      %v739 = vpop.xlane.xlu0 %738
      %v740 = vsel %vm591, %v705, 0.0
      %741 = vadd.xlane.f32.xlu0 %v740
      %v742 = vpop.xlane.xlu0 %741
      %v743 = vsel %vm591, %v707, 0.0
      %744 = vadd.xlane.f32.xlu0 %v743
      %v745 = vpop.xlane.xlu0 %744
      %v746 = vsel %vm591, %v709, 0.0
      %747 = vadd.xlane.f32.xlu0 %v746
      %v748 = vpop.xlane.xlu0 %747
      %v749 = vsel %vm591, %v711, 0.0
      %750 = vadd.xlane.f32.xlu0 %v749
      %v751 = vpop.xlane.xlu0 %750
      %v752 = vadd.f32 %v720, %v730
      %v753 = vadd.f32 %v721, %v733
      %v754 = vadd.f32 %v722, %v736
      %v755 = vadd.f32 %v723, %v739
      %v756 = vadd.f32 %v724, %v742
      %v757 = vadd.f32 %v725, %v745
      %v758 = vadd.f32 %v726, %v748
      %v759 = vadd.f32 %v727, %v751
      %vm760 = vcmask 7168
      %761 = vst.msk [vmem:[#allocation3] sm:$0xff] %vm760, %v752
      %762 = vst.msk [vmem:[#allocation3 + $0x8] sm:$0xff] %vm760, %v753
      %763 = vst.msk [vmem:[#allocation3 + $0x10] sm:$0xff] %vm760, %v754
      %764 = vst.msk [vmem:[#allocation3 + $0x18] sm:$0xff] %vm760, %v755
      %765 = vst.msk [vmem:[#allocation3 + $0x20] sm:$0xff] %vm760, %v756
      %766 = vst.msk [vmem:[#allocation3 + $0x28] sm:$0xff] %vm760, %v757
      %767 = vst.msk [vmem:[#allocation3 + $0x30] sm:$0xff] %vm760, %v758
      %768 = vst.msk [vmem:[#allocation3 + $0x38] sm:$0xff] %vm760, %v759
      %v769 = vld [vmem:[#allocation4] sm:$0xff]
      %v770 = vld [vmem:[#allocation4 + $0x8] sm:$0xff]
      %v771 = vld [vmem:[#allocation4 + $0x10] sm:$0xff]
      %v772 = vld [vmem:[#allocation4 + $0x18] sm:$0xff]
      %v773 = vld [vmem:[#allocation4 + $0x20] sm:$0xff]
      %v774 = vld [vmem:[#allocation4 + $0x28] sm:$0xff]
      %v775 = vld [vmem:[#allocation4 + $0x30] sm:$0xff]
      %v776 = vld [vmem:[#allocation4 + $0x38] sm:$0xff]
      %778 = vset.pattern.permute.xlu0 0
      %779 = vperm.xlu0 %778, %v633
      %v780 = vpop.permute.xlu0 %779
      %783 = vset.pattern.permute.xlu0 0
      %784 = vperm.xlu0 %783, %v635
      %v785 = vpop.permute.xlu0 %784
      %788 = vset.pattern.permute.xlu0 0
      %789 = vperm.xlu0 %788, %v637
      %v790 = vpop.permute.xlu0 %789
      %793 = vset.pattern.permute.xlu0 0
      %794 = vperm.xlu0 %793, %v639
      %v795 = vpop.permute.xlu0 %794
      %798 = vset.pattern.permute.xlu0 0
      %799 = vperm.xlu0 %798, %v641
      %v800 = vpop.permute.xlu0 %799
      %803 = vset.pattern.permute.xlu0 0
      %804 = vperm.xlu0 %803, %v643
      %v805 = vpop.permute.xlu0 %804
      %808 = vset.pattern.permute.xlu0 0
      %809 = vperm.xlu0 %808, %v645
      %v810 = vpop.permute.xlu0 %809
      %813 = vset.pattern.permute.xlu0 0
      %814 = vperm.xlu0 %813, %v647
      %v815 = vpop.permute.xlu0 %814
      %v817 = vmul.f32 %v780, %v769
      %v818 = vmul.f32 %v785, %v770
      %v819 = vmul.f32 %v790, %v771
      %v820 = vmul.f32 %v795, %v772
      %v821 = vmul.f32 %v800, %v773
      %v822 = vmul.f32 %v805, %v774
      %v823 = vmul.f32 %v810, %v775
      %v824 = vmul.f32 %v815, %v776
      %v825 = vpack.c.bf16 %v699, %v697
      %v826 = vpack.c.bf16 %v703, %v701
      %v827 = vpack.c.bf16 %v707, %v705
      %v828 = vpack.c.bf16 %v711, %v709
      %v829 = vld [vmem:[%s394] sm:$0xf]
      %v830 = vld [vmem:[%s394 + $0x4] sm:$0xf]
      %v831 = vld [vmem:[%s394 + $0x8] sm:$0xf]
      %v832 = vld [vmem:[%s394 + $0xc] sm:$0xf]
      %v833 = vld [vmem:[%s394 + $0x10] sm:$0xf]
      %v834 = vld [vmem:[%s394 + $0x14] sm:$0xf]
      %v835 = vld [vmem:[%s394 + $0x18] sm:$0xf]
      %v836 = vld [vmem:[%s394 + $0x1c] sm:$0xf]
      %v845 = vunpack.c.l.b16 %v829
      %v846 = vunpack.c.l.b16 %v830
      %v847 = vunpack.c.l.b16 %v831
      %v848 = vunpack.c.l.b16 %v832
      %v849 = vunpack.c.l.b16 %v833
      %v850 = vunpack.c.l.b16 %v834
      %v851 = vunpack.c.l.b16 %v835
      %v852 = vunpack.c.l.b16 %v836
      %v853 = vpack.c.b16 %v846, %v845
      %v854 = vpack.c.b16 %v848, %v847
      %v855 = vpack.c.b16 %v850, %v849
      %v856 = vpack.c.b16 %v852, %v851
      %v862 = vsel %vm591, %v825, 0
      %v865 = vsel %vm591, %v826, 0
      %v868 = vsel %vm591, %v827, 0
      %v871 = vsel %vm591, %v828, 0
      %873 = vmatprep.subr.bf16.mxu0 0
      %874 = vmatpush1.bf16.msra.mxu0 %v853
      %875 = vmatprep.subr.bf16.mxu0 0
      %876 = vmatpush1.bf16.msra.mxu0 %v854
      %877 = vmatprep.subr.bf16.mxu0 0
      %878 = vmatpush1.bf16.msra.mxu0 %v855
      %879 = vmatprep.subr.bf16.mxu0 0
      %880 = vmatpush1.bf16.msra.mxu0 %v856
      %881 = vmatprep.subr.bf16.mxu0 0
      %882 = vmatpush1.bf16.msra.mxu0 0
      %883 = vmatprep.subr.bf16.mxu0 0
      %884 = vmatpush1.bf16.msra.mxu0 0
      %885 = vmatprep.subr.bf16.mxu0 0
      %886 = vmatpush1.bf16.msra.mxu0 0
      %887 = vmatprep.subr.bf16.mxu0 0
      %888 = vmatpush1.bf16.msra.mxu0 0
      %889 = vmatprep.subr.bf16.mxu0 0
      %890 = vmatpush1.bf16.msra.mxu0 0
      %891 = vmatprep.subr.bf16.mxu0 0
      %892 = vmatpush1.bf16.msra.mxu0 0
      %893 = vmatprep.subr.bf16.mxu0 0
      %894 = vmatpush1.bf16.msra.mxu0 0
      %895 = vmatprep.subr.bf16.mxu0 0
      %896 = vmatpush1.bf16.msra.mxu0 0
      %897 = vmatprep.subr.bf16.mxu0 0
      %898 = vmatpush1.bf16.msra.mxu0 0
      %899 = vmatprep.subr.bf16.mxu0 0
      %900 = vmatpush1.bf16.msra.mxu0 0
      %901 = vmatprep.subr.bf16.mxu0 0
      %902 = vmatpush1.bf16.msra.mxu0 0
      %903 = vmatprep.subr.bf16.mxu0 0
      %904 = vmatpush1.bf16.msra.mxu0 0
      %905 = vmatprep.mubr.bf16.mxu0 0
      %906 = vmatmul.mubr.bf16.gmra.mrb[0].mxu0 %v862
      %v907 = vpop.f32.mrb[0].mxu0
      %v908 = vadd.f32 0.0, %v907
      %v909 = vpop.f32.mrb[0].mxu0
      %v910 = vpop.f32.mrb[0].mxu0
      %v911 = vadd.f32 0.0, %v910
      %v912 = vpop.f32.mrb[0].mxu0
      %913 = vmatprep.mubr.bf16.mxu0 0
      %914 = vmatmul.mubr.bf16.gmra.mrb[0].mxu0 %v865
      %v915 = vpop.f32.mrb[0].mxu0
      %v916 = vadd.f32 0.0, %v915
      %v917 = vpop.f32.mrb[0].mxu0
      %v918 = vpop.f32.mrb[0].mxu0
      %v919 = vadd.f32 0.0, %v918
      %v920 = vpop.f32.mrb[0].mxu0
      %921 = vmatprep.mubr.bf16.mxu0 0
      %922 = vmatmul.mubr.bf16.gmra.mrb[0].mxu0 %v868
      %v923 = vpop.f32.mrb[0].mxu0
      %v924 = vadd.f32 0.0, %v923
      %v925 = vpop.f32.mrb[0].mxu0
      %v926 = vpop.f32.mrb[0].mxu0
      %v927 = vadd.f32 0.0, %v926
      %v928 = vpop.f32.mrb[0].mxu0
      %929 = vmatprep.mubr.bf16.mxu0 0
      %930 = vmatmul.mubr.bf16.gmra.mrb[0].mxu0 %v871
      %v931 = vpop.f32.mrb[0].mxu0
      %v932 = vadd.f32 0.0, %v931
      %v933 = vpop.f32.mrb[0].mxu0
      %v934 = vpop.f32.mrb[0].mxu0
      %v935 = vadd.f32 0.0, %v934
      %v936 = vpop.f32.mrb[0].mxu0
      %937 = vdwg.mxu0
      %v938 = vadd.f32 %v817, %v908
      %v939 = vadd.f32 %v818, %v911
      %v940 = vadd.f32 %v819, %v916
      %v941 = vadd.f32 %v820, %v919
      %v942 = vadd.f32 %v821, %v924
      %v943 = vadd.f32 %v822, %v927
      %v944 = vadd.f32 %v823, %v932
      %v945 = vadd.f32 %v824, %v935
      %946 = vst.msk [vmem:[#allocation4] sm:$0xff] %vm493, %v938
      %947 = vst.msk [vmem:[#allocation4 + $0x8] sm:$0xff] %vm493, %v939
      %948 = vst.msk [vmem:[#allocation4 + $0x10] sm:$0xff] %vm493, %v940
      %949 = vst.msk [vmem:[#allocation4 + $0x18] sm:$0xff] %vm493, %v941
      %950 = vst.msk [vmem:[#allocation4 + $0x20] sm:$0xff] %vm493, %v942
      %951 = vst.msk [vmem:[#allocation4 + $0x28] sm:$0xff] %vm493, %v943
      %952 = vst.msk [vmem:[#allocation4 + $0x30] sm:$0xff] %vm493, %v944
      %953 = vst.msk [vmem:[#allocation4 + $0x38] sm:$0xff] %vm493, %v945
      %954 = vst.msk [vmem:[#allocation2] sm:$0xff] %vm760, %v616
      %955 = vst.msk [vmem:[#allocation2 + $0x8] sm:$0xff] %vm760, %v617
      %956 = vst.msk [vmem:[#allocation2 + $0x10] sm:$0xff] %vm760, %v618
      %957 = vst.msk [vmem:[#allocation2 + $0x18] sm:$0xff] %vm760, %v619
      %958 = vst.msk [vmem:[#allocation2 + $0x20] sm:$0xff] %vm760, %v620
      %959 = vst.msk [vmem:[#allocation2 + $0x28] sm:$0xff] %vm760, %v621
      %960 = vst.msk [vmem:[#allocation2 + $0x30] sm:$0xff] %vm760, %v622
      %961 = vst.msk [vmem:[#allocation2 + $0x38] sm:$0xff] %vm760, %v623
      %p962 = scmp.eq.s32.totalorder %s24, 3
      // Predicated region
      $region49: #{transform_forward.9} parent=43 // pred_check
        %p963 = pneg %p962
      $region50: #{transform_forward.9} parent=43 // pred_check_branch
        %965 = sbr.rel (%p963) target = $region52
      $region51: #{transform_forward.9} parent=43 // pred_region
        %v966 = vld [vmem:[#allocation4] sm:$0xff]
        %v967 = vld [vmem:[#allocation4 + $0x8] sm:$0xff]
        %v968 = vld [vmem:[#allocation4 + $0x10] sm:$0xff]
        %v969 = vld [vmem:[#allocation4 + $0x18] sm:$0xff]
        %v970 = vld [vmem:[#allocation4 + $0x20] sm:$0xff]
        %v971 = vld [vmem:[#allocation4 + $0x28] sm:$0xff]
        %v972 = vld [vmem:[#allocation4 + $0x30] sm:$0xff]
        %v973 = vld [vmem:[#allocation4 + $0x38] sm:$0xff]
        %v974 = vld [vmem:[#allocation3] sm:$0xff]
        %v975 = vld [vmem:[#allocation3 + $0x8] sm:$0xff]
        %v976 = vld [vmem:[#allocation3 + $0x10] sm:$0xff]
        %v977 = vld [vmem:[#allocation3 + $0x18] sm:$0xff]
        %v978 = vld [vmem:[#allocation3 + $0x20] sm:$0xff]
        %v979 = vld [vmem:[#allocation3 + $0x28] sm:$0xff]
        %v980 = vld [vmem:[#allocation3 + $0x30] sm:$0xff]
        %v981 = vld [vmem:[#allocation3 + $0x38] sm:$0xff]
        %v982 = vrcp.pop %v974
        %v983 = vrcp.pop %v975
        %v984 = vrcp.pop %v976
        %v985 = vrcp.pop %v977
        %v986 = vrcp.pop %v978
        %v987 = vrcp.pop %v979
        %v988 = vrcp.pop %v980
        %v989 = vrcp.pop %v981
        %991 = vset.pattern.permute.xlu0 0
        %992 = vperm.xlu0 %991, %v982
        %v993 = vpop.permute.xlu0 %992
        %996 = vset.pattern.permute.xlu0 0
        %997 = vperm.xlu0 %996, %v983
        %v998 = vpop.permute.xlu0 %997
        %1001 = vset.pattern.permute.xlu0 0
        %1002 = vperm.xlu0 %1001, %v984
        %v1003 = vpop.permute.xlu0 %1002
        %1006 = vset.pattern.permute.xlu0 0
        %1007 = vperm.xlu0 %1006, %v985
        %v1008 = vpop.permute.xlu0 %1007
        %1011 = vset.pattern.permute.xlu0 0
        %1012 = vperm.xlu0 %1011, %v986
        %v1013 = vpop.permute.xlu0 %1012
        %1016 = vset.pattern.permute.xlu0 0
        %1017 = vperm.xlu0 %1016, %v987
        %v1018 = vpop.permute.xlu0 %1017
        %1021 = vset.pattern.permute.xlu0 0
        %1022 = vperm.xlu0 %1021, %v988
        %v1023 = vpop.permute.xlu0 %1022
        %1026 = vset.pattern.permute.xlu0 0
        %1027 = vperm.xlu0 %1026, %v989
        %v1028 = vpop.permute.xlu0 %1027
        %v1030 = vmul.f32 %v966, %v993
        %v1031 = vmul.f32 %v967, %v998
        %v1032 = vmul.f32 %v968, %v1003
        %v1033 = vmul.f32 %v969, %v1008
        %v1034 = vmul.f32 %v970, %v1013
        %v1035 = vmul.f32 %v971, %v1018
        %v1036 = vmul.f32 %v972, %v1023
        %v1037 = vmul.f32 %v973, %v1028
        %v1038 = vpack.c.bf16 %v1031, %v1030
        %v1039 = vpack.c.bf16 %v1033, %v1032
        %v1040 = vpack.c.bf16 %v1035, %v1034
        %v1041 = vpack.c.bf16 %v1037, %v1036
        %v1042 = vld [vmem:[%s4] sm:$0xf]
        %v1043 = vld [vmem:[%s4 + $0x4] sm:$0xf]
        %v1044 = vld [vmem:[%s4 + $0x8] sm:$0xf]
        %v1045 = vld [vmem:[%s4 + $0xc] sm:$0xf]
        %v1046 = vld [vmem:[%s5] sm:$0x1]
        %v1048 = vlaneseq
        %v1049 = vshrl.u32 %v1048, 7
        %v1050 = vsub.s32 0, %v1049
        %v1051 = vrot.slane %v1046, %v1050
        %v1057 = vunpack.c.l.b16 %v1042
        %v1058 = vunpack.c.l.b16 %v1043
        %v1059 = vunpack.c.l.b16 %v1044
        %v1060 = vunpack.c.l.b16 %v1045
        %v1061 = vpack.c.b16 %v1058, %v1057
        %v1062 = vpack.c.b16 %v1060, %v1059
        %v1066 = vsel %vm493, %v1038, 0
        %v1069 = vsel %vm493, %v1039, 0
        %v1072 = vsel %vm493, %v1040, 0
        %v1075 = vsel %vm493, %v1041, 0
        %1077 = vmatprep.subr.bf16.mxu0 0
        %1078 = vmatpush1.bf16.msra.mxu0 %v1061
        %1079 = vmatprep.subr.bf16.mxu0 0
        %1080 = vmatpush1.bf16.msra.mxu0 %v1062
        %1081 = vmatprep.subr.bf16.mxu0 0
        %1082 = vmatpush1.bf16.msra.mxu0 0
        %1083 = vmatprep.subr.bf16.mxu0 0
        %1084 = vmatpush1.bf16.msra.mxu0 0
        %1085 = vmatprep.subr.bf16.mxu0 0
        %1086 = vmatpush1.bf16.msra.mxu0 0
        %1087 = vmatprep.subr.bf16.mxu0 0
        %1088 = vmatpush1.bf16.msra.mxu0 0
        %1089 = vmatprep.subr.bf16.mxu0 0
        %1090 = vmatpush1.bf16.msra.mxu0 0
        %1091 = vmatprep.subr.bf16.mxu0 0
        %1092 = vmatpush1.bf16.msra.mxu0 0
        %1093 = vmatprep.subr.bf16.mxu0 0
        %1094 = vmatpush1.bf16.msra.mxu0 0
        %1095 = vmatprep.subr.bf16.mxu0 0
        %1096 = vmatpush1.bf16.msra.mxu0 0
        %1097 = vmatprep.subr.bf16.mxu0 0
        %1098 = vmatpush1.bf16.msra.mxu0 0
        %1099 = vmatprep.subr.bf16.mxu0 0
        %1100 = vmatpush1.bf16.msra.mxu0 0
        %1101 = vmatprep.subr.bf16.mxu0 0
        %1102 = vmatpush1.bf16.msra.mxu0 0
        %1103 = vmatprep.subr.bf16.mxu0 0
        %1104 = vmatpush1.bf16.msra.mxu0 0
        %1105 = vmatprep.subr.bf16.mxu0 0
        %1106 = vmatpush1.bf16.msra.mxu0 0
        %1107 = vmatprep.subr.bf16.mxu0 0
        %1108 = vmatpush1.bf16.msra.mxu0 0
        %1109 = vmatprep.mubr.bf16.mxu0 0
        %1110 = vmatmul.mubr.bf16.gmra.mrb[0].mxu0 %v1066
        %v1111 = vpop.f32.mrb[0].mxu0
        %v1112 = vadd.f32 %v1051, %v1111
        %v1113 = vpop.f32.mrb[0].mxu0
        %v1114 = vpop.f32.mrb[0].mxu0
        %v1115 = vadd.f32 %v1051, %v1114
        %v1116 = vpop.f32.mrb[0].mxu0
        %1117 = vmatprep.mubr.bf16.mxu0 0
        %1118 = vmatmul.mubr.bf16.gmra.mrb[0].mxu0 %v1069
        %v1119 = vpop.f32.mrb[0].mxu0
        %v1120 = vadd.f32 %v1051, %v1119
        %v1121 = vpop.f32.mrb[0].mxu0
        %v1122 = vpop.f32.mrb[0].mxu0
        %v1123 = vadd.f32 %v1051, %v1122
        %v1124 = vpop.f32.mrb[0].mxu0
        %1125 = vmatprep.mubr.bf16.mxu0 0
        %1126 = vmatmul.mubr.bf16.gmra.mrb[0].mxu0 %v1072
        %v1127 = vpop.f32.mrb[0].mxu0
        %v1128 = vadd.f32 %v1051, %v1127
        %v1129 = vpop.f32.mrb[0].mxu0
        %v1130 = vpop.f32.mrb[0].mxu0
        %v1131 = vadd.f32 %v1051, %v1130
        %v1132 = vpop.f32.mrb[0].mxu0
        %1133 = vmatprep.mubr.bf16.mxu0 0
        %1134 = vmatmul.mubr.bf16.gmra.mrb[0].mxu0 %v1075
        %v1135 = vpop.f32.mrb[0].mxu0
        %v1136 = vadd.f32 %v1051, %v1135
        %v1137 = vpop.f32.mrb[0].mxu0
        %v1138 = vpop.f32.mrb[0].mxu0
        %v1139 = vadd.f32 %v1051, %v1138
        %v1140 = vpop.f32.mrb[0].mxu0
        %1141 = vdwg.mxu0
        %v1142 = vld [vmem:[%s364] sm:$0xff]
        %v1143 = vld [vmem:[%s364 + $0x8] sm:$0xff]
        %v1144 = vld [vmem:[%s364 + $0x10] sm:$0xff]
        %v1145 = vld [vmem:[%s364 + $0x18] sm:$0xff]
        %v1146 = vld [vmem:[%s364 + $0x20] sm:$0xff]
        %v1147 = vld [vmem:[%s364 + $0x28] sm:$0xff]
        %v1148 = vld [vmem:[%s364 + $0x30] sm:$0xff]
        %v1149 = vld [vmem:[%s364 + $0x38] sm:$0xff]
        %v1150 = vadd.f32 %v1112, %v1142
        %v1151 = vadd.f32 %v1115, %v1143
        %v1152 = vadd.f32 %v1120, %v1144
        %v1153 = vadd.f32 %v1123, %v1145
        %v1154 = vadd.f32 %v1128, %v1146
        %v1155 = vadd.f32 %v1131, %v1147
        %v1156 = vadd.f32 %v1136, %v1148
        %v1157 = vadd.f32 %v1139, %v1149
        %1158 = vst.msk [vmem:[%s404] sm:$0xff] %vm493, %v1150
        %1159 = vst.msk [vmem:[%s404 + $0x8] sm:$0xff] %vm493, %v1151
        %1160 = vst.msk [vmem:[%s404 + $0x10] sm:$0xff] %vm493, %v1152
        %1161 = vst.msk [vmem:[%s404 + $0x18] sm:$0xff] %vm493, %v1153
        %1162 = vst.msk [vmem:[%s404 + $0x20] sm:$0xff] %vm493, %v1154
        %1163 = vst.msk [vmem:[%s404 + $0x28] sm:$0xff] %vm493, %v1155
        %1164 = vst.msk [vmem:[%s404 + $0x30] sm:$0xff] %vm493, %v1156
        %1165 = vst.msk [vmem:[%s404 + $0x38] sm:$0xff] %vm493, %v1157
      $region52: #{transform_forward.9} parent=43 // pred_fallthru
        _
      %s1166 = smul.u32 8, %s23
      %p1167 = scmp.lt.s32.totalorder %s22, 1
      %s1168 = scalar_select %p1167, %s22, 1
      %p1169 = scmp.lt.s32.totalorder %s1166, 31
      %s1170 = scalar_select %p1169, %s1166, 31
      %s1171 = smul.addr %s1168, 32
      %s1172 = sadd.s32 %s1170, %s1171
      %s1173 = smul.addr %s1172, 8
      %s1174 = scalar_lea.vmem %s6, %s1173
      // Predicated region
      $region53: #{transform_forward.9} parent=43 // pred_check
        %p1175 = pneg %p210
      $region54: #{transform_forward.9} parent=43 // pred_check_branch
        %1177 = sbr.rel (%p1175) target = $region56
      $region55: #{transform_forward.9} parent=43 // pred_region
        %s1178 = smul.u32 8, %s23
      $region56: #{transform_forward.9} parent=43 // pred_fallthru
        _
    $region44: #{transform_forward.9} parent=5 // pred_fallthru
      _
    %p1179 = scmp.le.s32.totalorder 2, %s12
    // Predicated region
    $region57: #{transform_forward.9} parent=5 // pred_check
      %p1180 = pneg %p1179
    $region58: #{transform_forward.9} parent=5 // pred_check_branch
      %1182 = sbr.rel (%p1180) target = $region60
    $region59: #{transform_forward.9} parent=5 // pred_region
      %s1183 = ssub.s32 %s12, 2
      // Predicated region
      $region61: #{transform_forward.9} parent=59 // pred_check
        %p1184 = pneg %p216
      $region62: #{transform_forward.9} parent=59 // pred_check_branch
        %1186 = sbr.rel (%p1184) target = $region64
      $region63: #{transform_forward.9} parent=59 // pred_region
        %s1187 = smul.u32 8, %s26
        %p1188 = scmp.lt.s32.totalorder %s25, 1
        %s1189 = scalar_select %p1188, %s25, 1
        %p1190 = scmp.lt.s32.totalorder %s1187, 31
        %s1191 = scalar_select %p1190, %s1187, 31
        %s1192 = smul.addr %s1189, 32
        %s1193 = sadd.s32 %s1191, %s1192
        %s1194 = smul.addr %s1193, 8
        %s1195 = scalar_lea.vmem %s6, %s1194
      $region64: #{transform_forward.9} parent=59 // pred_fallthru
        _
    $region60: #{transform_forward.9} parent=5 // pred_fallthru
      _
  $region6: #{transform_forward.9} parent=0 // loop_footer
    %s16 = sadd.s32 1, %s12
  $region7: #{transform_forward.9} parent=0 // loop_footer_branch
    %11 = sbr.rel target = $region3
  $region8: #{transform_forward.9} parent=0 // loop_exit
    _

// kernel: transform_forward.10
$region0: #{transform_forward.10}
  #allocation0 [shape = 'u32[]', space=smem, size = 0x4, offset = 0x4, fixed_abs, tag = 'smem constant byte address 0x4 - core index']
  #allocation1 [shape = 'u32[144,128]{1,0:T(1,128)}', space=vmem, size = 0x12000, scoped, tag = 'internal scratch']
  %s0 = inlined_call_operand.vmem [shape: f32[2,64,32], index: 0, kind: input, shape index: {}]
  %s1 = inlined_call_operand.vmem [shape: f32[2,1,32], index: 1, kind: input, shape index: {}]
  %s2 = inlined_call_operand.vmem [shape: f32[2,1,32], index: 2, kind: input, shape index: {}]
  %s3 = inlined_call_operand.vmem [shape: bf16[32,32], index: 3, kind: input, shape index: {}]
  %s4 = inlined_call_operand.vmem [shape: f32[1,32], index: 4, kind: input, shape index: {}]
  %s5 = inlined_call_operand.vmem [shape: bf16[2,64,32], index: 5, kind: output, shape index: {}]
  %s6 = sld [smem:[#allocation0]]
  $region53: #{transform_forward.10} parent=0
    _
  %s8 = ssub.s32 1, %s6
  %s9 = scalar_select 0, %s8, %s6
  loop: start=0, step=1, limit=4
  $region2: #{transform_forward.10} parent=0 // loop_pre_header
    _
  $region3: #{transform_forward.10} parent=0 // loop_header
    %s11 = sphi 0, %s15
    %p12 = scmp.ge.s32.totalorder %s11, 4
    %s18 = sphi 0, %s30
    %s19 = sphi 0, %s26
    %s20 = sphi 0, %s18
    %s21 = sphi 0, %s19
    %s22 = sphi 0, %s20
    %s23 = sphi 0, %s21
    %s35 = sphi 0, %s37
    %s38 = sphi 0, %s35
    %s39 = sphi 0, %s38
    %s55 = sphi 0, %s39
    %s61 = sphi 0, %s63
    %s64 = sphi 0, %s61
    %s65 = sphi 0, %s64
    %s81 = sphi 0, %s65
    %s87 = sphi 0, %s89
    %s90 = sphi 0, %s87
    %s91 = sphi 0, %s90
    %s107 = sphi 0, %s91
    %s111 = sphi 0, %s111
    %s113 = sphi 0, %s111
    %s114 = sphi 0, %s113
    %s128 = sphi 0, %s114
    %s132 = sphi 0, %s132
    %s134 = sphi 0, %s132
    %s135 = sphi 0, %s134
    %s149 = sphi 0, %s135
    %s157 = sphi 0, %s159
    %s160 = sphi 0, %s157
    %s161 = sphi 0, %s160
    %s177 = sphi 0, %s161
  $region4: #{transform_forward.10} parent=0 // loop_header_branch
    %14 = sbr.rel (%p12) target = $region8
  $region5: #{transform_forward.10} parent=0 // loop_body
    %s16 = ssub.s32 %s11, 1
    %s17 = ssub.s32 %s11, 2
    %s24 = sadd.s32 1, %s19
    %p25 = scmp.ge.s32.totalorder %s24, 1
    %s26 = scalar_select %p25, 0, %s24
    %s27 = sadd.s32 1, %s18
    %s28 = scalar_select %p25, %s27, %s18
    %p29 = scmp.ge.s32.totalorder %s28, 2
    %s30 = scalar_select %p29, 0, %s28
    %s31 = ssub.s32 %s18, %s30
    %s32 = ssub.s32 %s19, %s26
    %s33 = sor.u32 %s31, %s32
    %p34 = scmp.eq.s32.totalorder %s33, 0
    %s36 = sadd.s32 %s35, 1
    %s37 = scalar_select %p34, %s35, %s36
    %p40 = pneg %p34
    %p41 = scmp.eq.s32.totalorder %s11, 1
    %p42 = por %p40, %p41
    %p43 = scmp.ne.s32.totalorder %s35, %s38
    %p44 = scmp.eq.s32.totalorder %s11, 0
    %p45 = por %p43, %p44
    %p46 = scmp.ne.s32.totalorder %s35, %s38
    %p47 = scmp.eq.s32.totalorder %s16, 1
    %p48 = por %p46, %p47
    %p49 = scmp.ne.s32.totalorder %s38, %s39
    %p50 = scmp.eq.s32.totalorder %s16, 0
    %p51 = por %p49, %p50
    %p52 = scmp.ne.s32.totalorder %s38, %s39
    %p53 = scmp.eq.s32.totalorder %s17, 1
    %p54 = por %p52, %p53
    %p56 = scmp.ne.s32.totalorder %s39, %s55
    %p57 = scmp.eq.s32.totalorder %s17, 0
    %p58 = por %p56, %p57
    %s59 = ssub.s32 %s18, %s30
    %p60 = scmp.eq.s32.totalorder %s59, 0
    %s62 = sadd.s32 %s61, 1
    %s63 = scalar_select %p60, %s61, %s62
    %p66 = pneg %p60
    %p67 = scmp.eq.s32.totalorder %s11, 1
    %p68 = por %p66, %p67
    %p69 = scmp.ne.s32.totalorder %s61, %s64
    %p70 = scmp.eq.s32.totalorder %s11, 0
    %p71 = por %p69, %p70
    %p72 = scmp.ne.s32.totalorder %s61, %s64
    %p73 = scmp.eq.s32.totalorder %s16, 1
    %p74 = por %p72, %p73
    %p75 = scmp.ne.s32.totalorder %s64, %s65
    %p76 = scmp.eq.s32.totalorder %s16, 0
    %p77 = por %p75, %p76
    %p78 = scmp.ne.s32.totalorder %s64, %s65
    %p79 = scmp.eq.s32.totalorder %s17, 1
    %p80 = por %p78, %p79
    %p82 = scmp.ne.s32.totalorder %s65, %s81
    %p83 = scmp.eq.s32.totalorder %s17, 0
    %p84 = por %p82, %p83
    %s85 = ssub.s32 %s18, %s30
    %p86 = scmp.eq.s32.totalorder %s85, 0
    %s88 = sadd.s32 %s87, 1
    %s89 = scalar_select %p86, %s87, %s88
    %p92 = pneg %p86
    %p93 = scmp.eq.s32.totalorder %s11, 1
    %p94 = por %p92, %p93
    %p95 = scmp.ne.s32.totalorder %s87, %s90
    %p96 = scmp.eq.s32.totalorder %s11, 0
    %p97 = por %p95, %p96
    %p98 = scmp.ne.s32.totalorder %s87, %s90
    %p99 = scmp.eq.s32.totalorder %s16, 1
    %p100 = por %p98, %p99
    %p101 = scmp.ne.s32.totalorder %s90, %s91
    %p102 = scmp.eq.s32.totalorder %s16, 0
    %p103 = por %p101, %p102
    %p104 = scmp.ne.s32.totalorder %s90, %s91
    %p105 = scmp.eq.s32.totalorder %s17, 1
    %p106 = por %p104, %p105
    %p108 = scmp.ne.s32.totalorder %s91, %s107
    %p109 = scmp.eq.s32.totalorder %s17, 0
    %p110 = por %p108, %p109
    %s112 = sadd.s32 %s111, 1
    %p115 = scmp.eq.s32.totalorder %s11, 1
    %p116 = scmp.ne.s32.totalorder %s111, %s113
    %p117 = scmp.eq.s32.totalorder %s11, 0
    %p118 = por %p116, %p117
    %p119 = scmp.ne.s32.totalorder %s111, %s113
    %p120 = scmp.eq.s32.totalorder %s16, 1
    %p121 = por %p119, %p120
    %p122 = scmp.ne.s32.totalorder %s113, %s114
    %p123 = scmp.eq.s32.totalorder %s16, 0
    %p124 = por %p122, %p123
    %p125 = scmp.ne.s32.totalorder %s113, %s114
    %p126 = scmp.eq.s32.totalorder %s17, 1
    %p127 = por %p125, %p126
    %p129 = scmp.ne.s32.totalorder %s114, %s128
    %p130 = scmp.eq.s32.totalorder %s17, 0
    %p131 = por %p129, %p130
    %s133 = sadd.s32 %s132, 1
    %p136 = scmp.eq.s32.totalorder %s11, 1
    %p137 = scmp.ne.s32.totalorder %s132, %s134
    %p138 = scmp.eq.s32.totalorder %s11, 0
    %p139 = por %p137, %p138
    %p140 = scmp.ne.s32.totalorder %s132, %s134
    %p141 = scmp.eq.s32.totalorder %s16, 1
    %p142 = por %p140, %p141
    %p143 = scmp.ne.s32.totalorder %s134, %s135
    %p144 = scmp.eq.s32.totalorder %s16, 0
    %p145 = por %p143, %p144
    %p146 = scmp.ne.s32.totalorder %s134, %s135
    %p147 = scmp.eq.s32.totalorder %s17, 1
    %p148 = por %p146, %p147
    %p150 = scmp.ne.s32.totalorder %s135, %s149
    %p151 = scmp.eq.s32.totalorder %s17, 0
    %p152 = por %p150, %p151
    %s153 = ssub.s32 %s18, %s30
    %s154 = ssub.s32 %s19, %s26
    %s155 = sor.u32 %s153, %s154
    %p156 = scmp.eq.s32.totalorder %s155, 0
    %s158 = sadd.s32 %s157, 1
    %s159 = scalar_select %p156, %s157, %s158
    %p162 = pneg %p156
    %p163 = scmp.eq.s32.totalorder %s11, 1
    %p164 = por %p162, %p163
    %p165 = scmp.ne.s32.totalorder %s157, %s160
    %p166 = scmp.eq.s32.totalorder %s11, 0
    %p167 = por %p165, %p166
    %p168 = scmp.ne.s32.totalorder %s157, %s160
    %p169 = scmp.eq.s32.totalorder %s16, 1
    %p170 = por %p168, %p169
    %p171 = scmp.ne.s32.totalorder %s160, %s161
    %p172 = scmp.eq.s32.totalorder %s16, 0
    %p173 = por %p171, %p172
    %p174 = scmp.ne.s32.totalorder %s160, %s161
    %p175 = scmp.eq.s32.totalorder %s17, 1
    %p176 = por %p174, %p175
    %p178 = scmp.ne.s32.totalorder %s161, %s177
    %p179 = scmp.eq.s32.totalorder %s17, 0
    %p180 = por %p178, %p179
    %p181 = scmp.le.s32.totalorder 1, %s11
    %p182 = scmp.lt.s32.totalorder %s11, 3
    %p183 = pnand %p181, %p182
    %p184 = pneg %p183
    // Predicated region
    $region9: #{transform_forward.10} parent=5 // pred_check
      _
    $region10: #{transform_forward.10} parent=5 // pred_check_branch
      %186 = sbr.rel (%p183) target = $region12
    $region11: #{transform_forward.10} parent=5 // pred_region
      %s187 = ssub.s32 %s11, 1
      // Predicated region
      $region13: #{transform_forward.10} parent=11 // pred_check
        %p188 = pneg %p124
      $region14: #{transform_forward.10} parent=11 // pred_check_branch
        %190 = sbr.rel (%p188) target = $region16
      $region15: #{transform_forward.10} parent=11 // pred_region
        _
      $region16: #{transform_forward.10} parent=11 // pred_fallthru
        _
      // Predicated region
      $region17: #{transform_forward.10} parent=11 // pred_check
        %p191 = pneg %p145
      $region18: #{transform_forward.10} parent=11 // pred_check_branch
        %193 = sbr.rel (%p191) target = $region20
      $region19: #{transform_forward.10} parent=11 // pred_region
        _
      $region20: #{transform_forward.10} parent=11 // pred_fallthru
        _
    $region12: #{transform_forward.10} parent=5 // pred_fallthru
      _
    %p194 = scmp.lt.s32.totalorder %s11, 2
    // Predicated region
    $region21: #{transform_forward.10} parent=5 // pred_check
      %p195 = pneg %p194
    $region22: #{transform_forward.10} parent=5 // pred_check_branch
      %197 = sbr.rel (%p195) target = $region24
    $region23: #{transform_forward.10} parent=5 // pred_region
      // Predicated region
      $region25: #{transform_forward.10} parent=23 // pred_check
        %p198 = pneg %p45
      $region26: #{transform_forward.10} parent=23 // pred_check_branch
        %200 = sbr.rel (%p198) target = $region28
      $region27: #{transform_forward.10} parent=23 // pred_region
        %s201 = smul.u32 8, %s19
        %p202 = scmp.lt.s32.totalorder %s18, 1
        %s203 = scalar_select %p202, %s18, 1
        %p204 = scmp.lt.s32.totalorder %s201, 7
        %s205 = scalar_select %p204, %s201, 7
        %s206 = smul.addr %s203, 8
        %s207 = sadd.s32 %s205, %s206
        %s208 = smul.addr %s207, 8
        %s209 = scalar_lea.vmem %s0, %s208
        %s210 = smul.u32 8, %s19
      $region28: #{transform_forward.10} parent=23 // pred_fallthru
        _
      // Predicated region
      $region29: #{transform_forward.10} parent=23 // pred_check
        %p211 = pneg %p71
      $region30: #{transform_forward.10} parent=23 // pred_check_branch
        %213 = sbr.rel (%p211) target = $region32
      $region31: #{transform_forward.10} parent=23 // pred_region
        %p214 = scmp.lt.s32.totalorder %s18, 1
        %s215 = scalar_select %p214, %s18, 1
        %s216 = scalar_lea.vmem %s1, %s215
      $region32: #{transform_forward.10} parent=23 // pred_fallthru
        _
      // Predicated region
      $region33: #{transform_forward.10} parent=23 // pred_check
        %p217 = pneg %p97
      $region34: #{transform_forward.10} parent=23 // pred_check_branch
        %219 = sbr.rel (%p217) target = $region36
      $region35: #{transform_forward.10} parent=23 // pred_region
        %p220 = scmp.lt.s32.totalorder %s18, 1
        %s221 = scalar_select %p220, %s18, 1
        %s222 = scalar_lea.vmem %s2, %s221
      $region36: #{transform_forward.10} parent=23 // pred_fallthru
        _
    $region24: #{transform_forward.10} parent=5 // pred_fallthru
      _
    %p223 = scmp.le.s32.totalorder 1, %s11
    %p224 = scmp.lt.s32.totalorder %s11, 3
    %p225 = pnand %p223, %p224
    %p226 = pneg %p225
    // Predicated region
    $region37: #{transform_forward.10} parent=5 // pred_check
      _
    $region38: #{transform_forward.10} parent=5 // pred_check_branch
      %228 = sbr.rel (%p225) target = $region40
    $region39: #{transform_forward.10} parent=5 // pred_region
      %s229 = ssub.s32 %s11, 1
      %s230 = smul.u32 8, %s21
      %p231 = scmp.lt.s32.totalorder %s20, 1
      %s232 = scalar_select %p231, %s20, 1
      %p233 = scmp.lt.s32.totalorder %s230, 7
      %s234 = scalar_select %p233, %s230, 7
      %s235 = smul.addr %s232, 8
      %s236 = sadd.s32 %s234, %s235
      %s237 = smul.addr %s236, 8
      %s238 = scalar_lea.vmem %s0, %s237
      %p239 = pneg %p51
      %p240 = pneg %p48
      %p241 = scmp.lt.s32.totalorder %s20, 1
      %s242 = scalar_select %p241, %s20, 1
      %s243 = scalar_lea.vmem %s1, %s242
      %p244 = pneg %p77
      %p245 = pneg %p74
      %p246 = scmp.lt.s32.totalorder %s20, 1
      %s247 = scalar_select %p246, %s20, 1
      %s248 = scalar_lea.vmem %s2, %s247
      %p249 = pneg %p103
      %p250 = pneg %p100
      %p251 = pneg %p124
      %p252 = pneg %p121
      %p253 = pneg %p145
      %p254 = pneg %p142
      %p255 = pneg %p173
      %p256 = pneg %p170
      %s257 = smul.u32 8, %s21
      %p258 = scmp.lt.s32.totalorder %s20, 1
      %s259 = scalar_select %p258, %s20, 1
      %p260 = scmp.lt.s32.totalorder %s257, 7
      %s261 = scalar_select %p260, %s257, 7
      %s262 = smul.addr %s259, 8
      %s263 = sadd.s32 %s261, %s262
      %s264 = smul.addr %s263, 4
      %s265 = scalar_lea.vmem %s5, %s264
      %s266 = smul.u32 8, %s21
      %p267 = scmp.lt.s32.totalorder %s20, 1
      %s268 = scalar_select %p267, %s20, 1
      %p269 = scmp.lt.s32.totalorder %s266, 7
      %s270 = scalar_select %p269, %s266, 7
      %s271 = smul.addr %s268, 8
      %s272 = sadd.s32 %s270, %s271
      %s273 = smul.addr %s272, 8
      %s274 = scalar_lea.vmem %s0, %s273
      %s275 = smul.u32 8, %s21
      %p276 = scmp.lt.s32.totalorder %s20, 1
      %s277 = scalar_select %p276, %s20, 1
      %s278 = scalar_lea.vmem %s1, %s277
      %p279 = scmp.lt.s32.totalorder %s20, 1
      %s280 = scalar_select %p279, %s20, 1
      %s281 = scalar_lea.vmem %s2, %s280
      %s282 = smul.u32 8, %s21
      %p283 = scmp.lt.s32.totalorder %s20, 1
      %s284 = scalar_select %p283, %s20, 1
      %p285 = scmp.lt.s32.totalorder %s282, 7
      %s286 = scalar_select %p285, %s282, 7
      %s287 = smul.addr %s284, 8
      %s288 = sadd.s32 %s286, %s287
      %s289 = smul.addr %s288, 4
      %s290 = scalar_lea.vmem %s5, %s289
      %s291 = smul.u32 8, %s21
      %v293 = vld [vmem:[%s274] sm:$0xff]
      %v294 = vld [vmem:[%s274 + $0x8] sm:$0xff]
      %v295 = vld [vmem:[%s274 + $0x10] sm:$0xff]
      %v296 = vld [vmem:[%s274 + $0x18] sm:$0xff]
      %v297 = vld [vmem:[%s274 + $0x20] sm:$0xff]
      %v298 = vld [vmem:[%s274 + $0x28] sm:$0xff]
      %v299 = vld [vmem:[%s274 + $0x30] sm:$0xff]
      %v300 = vld [vmem:[%s274 + $0x38] sm:$0xff]
      %v301 = vld [vmem:[%s278] sm:$0x1]
      %v303 = vlaneseq
      %v304 = vshrl.u32 %v303, 7
      %v305 = vsub.s32 0, %v304
      %v306 = vrot.slane %v301, %v305
      %v308 = vsub.f32 %v293, %v306
      %v309 = vsub.f32 %v294, %v306
      %v310 = vsub.f32 %v295, %v306
      %v311 = vsub.f32 %v296, %v306
      %v312 = vsub.f32 %v297, %v306
      %v313 = vsub.f32 %v298, %v306
      %v314 = vsub.f32 %v299, %v306
      %v315 = vsub.f32 %v300, %v306
      %v316 = vld [vmem:[%s281] sm:$0x1]
      %v318 = vlaneseq
      %v319 = vshrl.u32 %v318, 7
      %v320 = vsub.s32 0, %v319
      %v321 = vrot.slane %v316, %v320
      %v323 = vmul.f32 %v308, %v321
      %v324 = vmul.f32 %v309, %v321
      %v325 = vmul.f32 %v310, %v321
      %v326 = vmul.f32 %v311, %v321
      %v327 = vmul.f32 %v312, %v321
      %v328 = vmul.f32 %v313, %v321
      %v329 = vmul.f32 %v314, %v321
      %v330 = vmul.f32 %v315, %v321
      %v331 = vpack.c.bf16 %v324, %v323
      %v332 = vpack.c.bf16 %v326, %v325
      %v333 = vpack.c.bf16 %v328, %v327
      %v334 = vpack.c.bf16 %v330, %v329
      %v335 = vld [vmem:[%s3] sm:$0xf]
      %v336 = vld [vmem:[%s3 + $0x4] sm:$0xf]
      %v337 = vld [vmem:[%s3 + $0x8] sm:$0xf]
      %v338 = vld [vmem:[%s3 + $0xc] sm:$0xf]
      %v339 = vld [vmem:[%s4] sm:$0x1]
      %v341 = vlaneseq
      %v342 = vshrl.u32 %v341, 7
      %v343 = vsub.s32 0, %v342
      %v344 = vrot.slane %v339, %v343
      %v350 = vunpack.c.l.b16 %v335
      %v351 = vunpack.c.l.b16 %v336
      %v352 = vunpack.c.l.b16 %v337
      %v353 = vunpack.c.l.b16 %v338
      %v354 = vpack.c.b16 %v351, %v350
      %v355 = vpack.c.b16 %v353, %v352
      %vm358 = vcmask 261120
      %v360 = vsel %vm358, %v331, 0
      %v363 = vsel %vm358, %v332, 0
      %v366 = vsel %vm358, %v333, 0
      %v369 = vsel %vm358, %v334, 0
      %371 = vmatprep.subr.bf16.mxu0 0
      %372 = vmatpush1.bf16.msra.mxu0 %v354
      %373 = vmatprep.subr.bf16.mxu0 0
      %374 = vmatpush1.bf16.msra.mxu0 %v355
      %375 = vmatprep.subr.bf16.mxu0 0
      %376 = vmatpush1.bf16.msra.mxu0 0
      %377 = vmatprep.subr.bf16.mxu0 0
      %378 = vmatpush1.bf16.msra.mxu0 0
      %379 = vmatprep.subr.bf16.mxu0 0
      %380 = vmatpush1.bf16.msra.mxu0 0
      %381 = vmatprep.subr.bf16.mxu0 0
      %382 = vmatpush1.bf16.msra.mxu0 0
      %383 = vmatprep.subr.bf16.mxu0 0
      %384 = vmatpush1.bf16.msra.mxu0 0
      %385 = vmatprep.subr.bf16.mxu0 0
      %386 = vmatpush1.bf16.msra.mxu0 0
      %387 = vmatprep.subr.bf16.mxu0 0
      %388 = vmatpush1.bf16.msra.mxu0 0
      %389 = vmatprep.subr.bf16.mxu0 0
      %390 = vmatpush1.bf16.msra.mxu0 0
      %391 = vmatprep.subr.bf16.mxu0 0
      %392 = vmatpush1.bf16.msra.mxu0 0
      %393 = vmatprep.subr.bf16.mxu0 0
      %394 = vmatpush1.bf16.msra.mxu0 0
      %395 = vmatprep.subr.bf16.mxu0 0
      %396 = vmatpush1.bf16.msra.mxu0 0
      %397 = vmatprep.subr.bf16.mxu0 0
      %398 = vmatpush1.bf16.msra.mxu0 0
      %399 = vmatprep.subr.bf16.mxu0 0
      %400 = vmatpush1.bf16.msra.mxu0 0
      %401 = vmatprep.subr.bf16.mxu0 0
      %402 = vmatpush1.bf16.msra.mxu0 0
      %403 = vmatprep.mubr.bf16.mxu0 0
      %404 = vmatmul.mubr.bf16.gmra.mrb[0].mxu0 %v360
      %v405 = vpop.f32.mrb[0].mxu0
      %v406 = vadd.f32 %v344, %v405
      %v407 = vpop.f32.mrb[0].mxu0
      %v408 = vpop.f32.mrb[0].mxu0
      %v409 = vadd.f32 %v344, %v408
      %v410 = vpop.f32.mrb[0].mxu0
      %411 = vmatprep.mubr.bf16.mxu0 0
      %412 = vmatmul.mubr.bf16.gmra.mrb[0].mxu0 %v363
      %v413 = vpop.f32.mrb[0].mxu0
      %v414 = vadd.f32 %v344, %v413
      %v415 = vpop.f32.mrb[0].mxu0
      %v416 = vpop.f32.mrb[0].mxu0
      %v417 = vadd.f32 %v344, %v416
      %v418 = vpop.f32.mrb[0].mxu0
      %419 = vmatprep.mubr.bf16.mxu0 0
      %420 = vmatmul.mubr.bf16.gmra.mrb[0].mxu0 %v366
      %v421 = vpop.f32.mrb[0].mxu0
      %v422 = vadd.f32 %v344, %v421
      %v423 = vpop.f32.mrb[0].mxu0
      %v424 = vpop.f32.mrb[0].mxu0
      %v425 = vadd.f32 %v344, %v424
      %v426 = vpop.f32.mrb[0].mxu0
      %427 = vmatprep.mubr.bf16.mxu0 0
      %428 = vmatmul.mubr.bf16.gmra.mrb[0].mxu0 %v369
      %v429 = vpop.f32.mrb[0].mxu0
      %v430 = vadd.f32 %v344, %v429
      %v431 = vpop.f32.mrb[0].mxu0
      %v432 = vpop.f32.mrb[0].mxu0
      %v433 = vadd.f32 %v344, %v432
      %v434 = vpop.f32.mrb[0].mxu0
      %435 = vdwg.mxu0
      %v436 = vpack.c.bf16 %v409, %v406
      %v437 = vpack.c.bf16 %v417, %v414
      %v438 = vpack.c.bf16 %v425, %v422
      %v439 = vpack.c.bf16 %v433, %v430
      %v444 = vunpack.c.l.b16 %v436
      %v445 = vunpack.c.h.b16 %v436
      %v446 = vunpack.c.l.b16 %v437
      %v447 = vunpack.c.h.b16 %v437
      %v448 = vunpack.c.l.b16 %v438
      %v449 = vunpack.c.h.b16 %v438
      %v450 = vunpack.c.l.b16 %v439
      %v451 = vunpack.c.h.b16 %v439
      %v452 = vpack.c.b16 %v444, %v444
      %v453 = vpack.c.b16 %v445, %v445
      %v454 = vpack.c.b16 %v446, %v446
      %v455 = vpack.c.b16 %v447, %v447
      %v456 = vpack.c.b16 %v448, %v448
      %v457 = vpack.c.b16 %v449, %v449
      %v458 = vpack.c.b16 %v450, %v450
      %v459 = vpack.c.b16 %v451, %v451
      %vm468 = vcmask 257024
      %469 = vst.msk [vmem:[%s290] sm:$0xf] %vm468, %v452
      %470 = vst.msk [vmem:[%s290 + $0x4] sm:$0xf] %vm468, %v453
      %471 = vst.msk [vmem:[%s290 + $0x8] sm:$0xf] %vm468, %v454
      %472 = vst.msk [vmem:[%s290 + $0xc] sm:$0xf] %vm468, %v455
      %473 = vst.msk [vmem:[%s290 + $0x10] sm:$0xf] %vm468, %v456
      %474 = vst.msk [vmem:[%s290 + $0x14] sm:$0xf] %vm468, %v457
      %475 = vst.msk [vmem:[%s290 + $0x18] sm:$0xf] %vm468, %v458
      %476 = vst.msk [vmem:[%s290 + $0x1c] sm:$0xf] %vm468, %v459
      %s477 = smul.u32 8, %s21
      %p478 = scmp.lt.s32.totalorder %s20, 1
      %s479 = scalar_select %p478, %s20, 1
      %p480 = scmp.lt.s32.totalorder %s477, 7
      %s481 = scalar_select %p480, %s477, 7
      %s482 = smul.addr %s479, 8
      %s483 = sadd.s32 %s481, %s482
      %s484 = smul.addr %s483, 4
      %s485 = scalar_lea.vmem %s5, %s484
      // Predicated region
      $region41: #{transform_forward.10} parent=39 // pred_check
        %p486 = pneg %p170
      $region42: #{transform_forward.10} parent=39 // pred_check_branch
        %488 = sbr.rel (%p486) target = $region44
      $region43: #{transform_forward.10} parent=39 // pred_region
        %s489 = smul.u32 8, %s21
      $region44: #{transform_forward.10} parent=39 // pred_fallthru
        _
    $region40: #{transform_forward.10} parent=5 // pred_fallthru
      _
    %p490 = scmp.le.s32.totalorder 2, %s11
    // Predicated region
    $region45: #{transform_forward.10} parent=5 // pred_check
      %p491 = pneg %p490
    $region46: #{transform_forward.10} parent=5 // pred_check_branch
      %493 = sbr.rel (%p491) target = $region48
    $region47: #{transform_forward.10} parent=5 // pred_region
      %s494 = ssub.s32 %s11, 2
      // Predicated region
      $region49: #{transform_forward.10} parent=47 // pred_check
        %p495 = pneg %p176
      $region50: #{transform_forward.10} parent=47 // pred_check_branch
        %497 = sbr.rel (%p495) target = $region52
      $region51: #{transform_forward.10} parent=47 // pred_region
        %s498 = smul.u32 8, %s23
        %p499 = scmp.lt.s32.totalorder %s22, 1
        %s500 = scalar_select %p499, %s22, 1
        %p501 = scmp.lt.s32.totalorder %s498, 7
        %s502 = scalar_select %p501, %s498, 7
        %s503 = smul.addr %s500, 8
        %s504 = sadd.s32 %s502, %s503
        %s505 = smul.addr %s504, 4
        %s506 = scalar_lea.vmem %s5, %s505
      $region52: #{transform_forward.10} parent=47 // pred_fallthru
        _
    $region48: #{transform_forward.10} parent=5 // pred_fallthru
      _
  $region6: #{transform_forward.10} parent=0 // loop_footer
    %s15 = sadd.s32 1, %s11
  $region7: #{transform_forward.10} parent=0 // loop_footer_branch
    %10 = sbr.rel target = $region3
  $region8: #{transform_forward.10} parent=0 // loop_exit
    _

// kernel: transform_forward.12
$region0: #{transform_forward.12}
  #allocation0 [shape = 'u32[]', space=smem, size = 0x4, offset = 0x4, fixed_abs, tag = 'smem constant byte address 0x4 - core index']
  #allocation1 [shape = 'u32[144,128]{1,0:T(1,128)}', space=vmem, size = 0x12000, scoped, tag = 'internal scratch']
  #allocation2 [shape = 'f32[64,1]{1,0:T(8,128)}', space=vmem, size = 0x8000, scoped, tag = 'scratch operand']
  #allocation3 [shape = 'f32[64,1]{1,0:T(8,128)}', space=vmem, size = 0x8000, scoped, tag = 'scratch operand']
  #allocation4 [shape = 'f32[64,32]{1,0:T(8,128)}', space=vmem, size = 0x8000, scoped, tag = 'scratch operand']
  %s0 = inlined_call_operand.vmem [shape: f32[2,64,32], index: 0, kind: input, shape index: {}]
  %s1 = inlined_call_operand.vmem [shape: bf16[2,64,32], index: 1, kind: input, shape index: {}]
  %s2 = inlined_call_operand.vmem [shape: bf16[2,64,32], index: 2, kind: input, shape index: {}]
  %s3 = inlined_call_operand.vmem [shape: bf16[2,64,32], index: 3, kind: input, shape index: {}]
  %s4 = inlined_call_operand.vmem [shape: bf16[32,32], index: 4, kind: input, shape index: {}]
  %s5 = inlined_call_operand.vmem [shape: f32[1,32], index: 5, kind: input, shape index: {}]
  %s6 = inlined_call_operand.vmem [shape: f32[2,64,32], index: 6, kind: output, shape index: {}]
  %s7 = sld [smem:[#allocation0]]
  $region65: #{transform_forward.12} parent=0
    _
  %s9 = ssub.s32 1, %s7
  %s10 = scalar_select 0, %s9, %s7
  loop: start=0, step=1, limit=4
  $region2: #{transform_forward.12} parent=0 // loop_pre_header
    _
  $region3: #{transform_forward.12} parent=0 // loop_header
    %s12 = sphi 0, %s16
    %p13 = scmp.ge.s32.totalorder %s12, 4
    %s19 = sphi 0, %s38
    %s20 = sphi 0, %s34
    %s21 = sphi 0, %s30
    %s22 = sphi 0, %s19
    %s23 = sphi 0, %s20
    %s24 = sphi 0, %s21
    %s25 = sphi 0, %s22
    %s26 = sphi 0, %s23
    %s27 = sphi 0, %s24
    %s43 = sphi 0, %s45
    %s46 = sphi 0, %s43
    %s47 = sphi 0, %s46
    %s63 = sphi 0, %s47
    %s71 = sphi 0, %s73
    %s74 = sphi 0, %s71
    %s75 = sphi 0, %s74
    %s91 = sphi 0, %s75
    %s99 = sphi 0, %s101
    %s102 = sphi 0, %s99
    %s103 = sphi 0, %s102
    %s119 = sphi 0, %s103
    %s127 = sphi 0, %s129
    %s130 = sphi 0, %s127
    %s131 = sphi 0, %s130
    %s147 = sphi 0, %s131
    %s151 = sphi 0, %s151
    %s153 = sphi 0, %s151
    %s154 = sphi 0, %s153
    %s168 = sphi 0, %s154
    %s172 = sphi 0, %s172
    %s174 = sphi 0, %s172
    %s175 = sphi 0, %s174
    %s189 = sphi 0, %s175
    %s197 = sphi 0, %s199
    %s200 = sphi 0, %s197
    %s201 = sphi 0, %s200
    %s217 = sphi 0, %s201
  $region4: #{transform_forward.12} parent=0 // loop_header_branch
    %15 = sbr.rel (%p13) target = $region8
  $region5: #{transform_forward.12} parent=0 // loop_body
    %s17 = ssub.s32 %s12, 1
    %s18 = ssub.s32 %s12, 2
    %s28 = sadd.s32 1, %s21
    %p29 = scmp.ge.s32.totalorder %s28, 1
    %s30 = scalar_select %p29, 0, %s28
    %s31 = sadd.s32 1, %s20
    %s32 = scalar_select %p29, %s31, %s20
    %p33 = scmp.ge.s32.totalorder %s32, 1
    %s34 = scalar_select %p33, 0, %s32
    %s35 = sadd.s32 1, %s19
    %s36 = scalar_select %p33, %s35, %s19
    %p37 = scmp.ge.s32.totalorder %s36, 2
    %s38 = scalar_select %p37, 0, %s36
    %s39 = ssub.s32 %s19, %s38
    %s40 = ssub.s32 %s20, %s34
    %s41 = sor.u32 %s39, %s40
    %p42 = scmp.eq.s32.totalorder %s41, 0
    %s44 = sadd.s32 %s43, 1
    %s45 = scalar_select %p42, %s43, %s44
    %p48 = pneg %p42
    %p49 = scmp.eq.s32.totalorder %s12, 1
    %p50 = por %p48, %p49
    %p51 = scmp.ne.s32.totalorder %s43, %s46
    %p52 = scmp.eq.s32.totalorder %s12, 0
    %p53 = por %p51, %p52
    %p54 = scmp.ne.s32.totalorder %s43, %s46
    %p55 = scmp.eq.s32.totalorder %s17, 1
    %p56 = por %p54, %p55
    %p57 = scmp.ne.s32.totalorder %s46, %s47
    %p58 = scmp.eq.s32.totalorder %s17, 0
    %p59 = por %p57, %p58
    %p60 = scmp.ne.s32.totalorder %s46, %s47
    %p61 = scmp.eq.s32.totalorder %s18, 1
    %p62 = por %p60, %p61
    %p64 = scmp.ne.s32.totalorder %s47, %s63
    %p65 = scmp.eq.s32.totalorder %s18, 0
    %p66 = por %p64, %p65
    %s67 = ssub.s32 %s19, %s38
    %s68 = ssub.s32 %s20, %s34
    %s69 = sor.u32 %s67, %s68
    %p70 = scmp.eq.s32.totalorder %s69, 0
    %s72 = sadd.s32 %s71, 1
    %s73 = scalar_select %p70, %s71, %s72
    %p76 = pneg %p70
    %p77 = scmp.eq.s32.totalorder %s12, 1
    %p78 = por %p76, %p77
    %p79 = scmp.ne.s32.totalorder %s71, %s74
    %p80 = scmp.eq.s32.totalorder %s12, 0
    %p81 = por %p79, %p80
    %p82 = scmp.ne.s32.totalorder %s71, %s74
    %p83 = scmp.eq.s32.totalorder %s17, 1
    %p84 = por %p82, %p83
    %p85 = scmp.ne.s32.totalorder %s74, %s75
    %p86 = scmp.eq.s32.totalorder %s17, 0
    %p87 = por %p85, %p86
    %p88 = scmp.ne.s32.totalorder %s74, %s75
    %p89 = scmp.eq.s32.totalorder %s18, 1
    %p90 = por %p88, %p89
    %p92 = scmp.ne.s32.totalorder %s75, %s91
    %p93 = scmp.eq.s32.totalorder %s18, 0
    %p94 = por %p92, %p93
    %s95 = ssub.s32 %s19, %s38
    %s96 = ssub.s32 %s21, %s30
    %s97 = sor.u32 %s95, %s96
    %p98 = scmp.eq.s32.totalorder %s97, 0
    %s100 = sadd.s32 %s99, 1
    %s101 = scalar_select %p98, %s99, %s100
    %p104 = pneg %p98
    %p105 = scmp.eq.s32.totalorder %s12, 1
    %p106 = por %p104, %p105
    %p107 = scmp.ne.s32.totalorder %s99, %s102
    %p108 = scmp.eq.s32.totalorder %s12, 0
    %p109 = por %p107, %p108
    %p110 = scmp.ne.s32.totalorder %s99, %s102
    %p111 = scmp.eq.s32.totalorder %s17, 1
    %p112 = por %p110, %p111
    %p113 = scmp.ne.s32.totalorder %s102, %s103
    %p114 = scmp.eq.s32.totalorder %s17, 0
    %p115 = por %p113, %p114
    %p116 = scmp.ne.s32.totalorder %s102, %s103
    %p117 = scmp.eq.s32.totalorder %s18, 1
    %p118 = por %p116, %p117
    %p120 = scmp.ne.s32.totalorder %s103, %s119
    %p121 = scmp.eq.s32.totalorder %s18, 0
    %p122 = por %p120, %p121
    %s123 = ssub.s32 %s19, %s38
    %s124 = ssub.s32 %s21, %s30
    %s125 = sor.u32 %s123, %s124
    %p126 = scmp.eq.s32.totalorder %s125, 0
    %s128 = sadd.s32 %s127, 1
    %s129 = scalar_select %p126, %s127, %s128
    %p132 = pneg %p126
    %p133 = scmp.eq.s32.totalorder %s12, 1
    %p134 = por %p132, %p133
    %p135 = scmp.ne.s32.totalorder %s127, %s130
    %p136 = scmp.eq.s32.totalorder %s12, 0
    %p137 = por %p135, %p136
    %p138 = scmp.ne.s32.totalorder %s127, %s130
    %p139 = scmp.eq.s32.totalorder %s17, 1
    %p140 = por %p138, %p139
    %p141 = scmp.ne.s32.totalorder %s130, %s131
    %p142 = scmp.eq.s32.totalorder %s17, 0
    %p143 = por %p141, %p142
    %p144 = scmp.ne.s32.totalorder %s130, %s131
    %p145 = scmp.eq.s32.totalorder %s18, 1
    %p146 = por %p144, %p145
    %p148 = scmp.ne.s32.totalorder %s131, %s147
    %p149 = scmp.eq.s32.totalorder %s18, 0
    %p150 = por %p148, %p149
    %s152 = sadd.s32 %s151, 1
    %p155 = scmp.eq.s32.totalorder %s12, 1
    %p156 = scmp.ne.s32.totalorder %s151, %s153
    %p157 = scmp.eq.s32.totalorder %s12, 0
    %p158 = por %p156, %p157
    %p159 = scmp.ne.s32.totalorder %s151, %s153
    %p160 = scmp.eq.s32.totalorder %s17, 1
    %p161 = por %p159, %p160
    %p162 = scmp.ne.s32.totalorder %s153, %s154
    %p163 = scmp.eq.s32.totalorder %s17, 0
    %p164 = por %p162, %p163
    %p165 = scmp.ne.s32.totalorder %s153, %s154
    %p166 = scmp.eq.s32.totalorder %s18, 1
    %p167 = por %p165, %p166
    %p169 = scmp.ne.s32.totalorder %s154, %s168
    %p170 = scmp.eq.s32.totalorder %s18, 0
    %p171 = por %p169, %p170
    %s173 = sadd.s32 %s172, 1
    %p176 = scmp.eq.s32.totalorder %s12, 1
    %p177 = scmp.ne.s32.totalorder %s172, %s174
    %p178 = scmp.eq.s32.totalorder %s12, 0
    %p179 = por %p177, %p178
    %p180 = scmp.ne.s32.totalorder %s172, %s174
    %p181 = scmp.eq.s32.totalorder %s17, 1
    %p182 = por %p180, %p181
    %p183 = scmp.ne.s32.totalorder %s174, %s175
    %p184 = scmp.eq.s32.totalorder %s17, 0
    %p185 = por %p183, %p184
    %p186 = scmp.ne.s32.totalorder %s174, %s175
    %p187 = scmp.eq.s32.totalorder %s18, 1
    %p188 = por %p186, %p187
    %p190 = scmp.ne.s32.totalorder %s175, %s189
    %p191 = scmp.eq.s32.totalorder %s18, 0
    %p192 = por %p190, %p191
    %s193 = ssub.s32 %s19, %s38
    %s194 = ssub.s32 %s20, %s34
    %s195 = sor.u32 %s193, %s194
    %p196 = scmp.eq.s32.totalorder %s195, 0
    %s198 = sadd.s32 %s197, 1
    %s199 = scalar_select %p196, %s197, %s198
    %p202 = pneg %p196
    %p203 = scmp.eq.s32.totalorder %s12, 1
    %p204 = por %p202, %p203
    %p205 = scmp.ne.s32.totalorder %s197, %s200
    %p206 = scmp.eq.s32.totalorder %s12, 0
    %p207 = por %p205, %p206
    %p208 = scmp.ne.s32.totalorder %s197, %s200
    %p209 = scmp.eq.s32.totalorder %s17, 1
    %p210 = por %p208, %p209
    %p211 = scmp.ne.s32.totalorder %s200, %s201
    %p212 = scmp.eq.s32.totalorder %s17, 0
    %p213 = por %p211, %p212
    %p214 = scmp.ne.s32.totalorder %s200, %s201
    %p215 = scmp.eq.s32.totalorder %s18, 1
    %p216 = por %p214, %p215
    %p218 = scmp.ne.s32.totalorder %s201, %s217
    %p219 = scmp.eq.s32.totalorder %s18, 0
    %p220 = por %p218, %p219
    %p221 = scmp.le.s32.totalorder 1, %s12
    %p222 = scmp.lt.s32.totalorder %s12, 3
    %p223 = pnand %p221, %p222
    %p224 = pneg %p223
    // Predicated region
    $region9: #{transform_forward.12} parent=5 // pred_check
      _
    $region10: #{transform_forward.12} parent=5 // pred_check_branch
      %226 = sbr.rel (%p223) target = $region12
    $region11: #{transform_forward.12} parent=5 // pred_region
      %s227 = ssub.s32 %s12, 1
      // Predicated region
      $region13: #{transform_forward.12} parent=11 // pred_check
        %p228 = pneg %p164
      $region14: #{transform_forward.12} parent=11 // pred_check_branch
        %230 = sbr.rel (%p228) target = $region16
      $region15: #{transform_forward.12} parent=11 // pred_region
        _
      $region16: #{transform_forward.12} parent=11 // pred_fallthru
        _
      // Predicated region
      $region17: #{transform_forward.12} parent=11 // pred_check
        %p231 = pneg %p185
      $region18: #{transform_forward.12} parent=11 // pred_check_branch
        %233 = sbr.rel (%p231) target = $region20
      $region19: #{transform_forward.12} parent=11 // pred_region
        _
      $region20: #{transform_forward.12} parent=11 // pred_fallthru
        _
    $region12: #{transform_forward.12} parent=5 // pred_fallthru
      _
    %p234 = scmp.lt.s32.totalorder %s12, 2
    // Predicated region
    $region21: #{transform_forward.12} parent=5 // pred_check
      %p235 = pneg %p234
    $region22: #{transform_forward.12} parent=5 // pred_check_branch
      %237 = sbr.rel (%p235) target = $region24
    $region23: #{transform_forward.12} parent=5 // pred_region
      // Predicated region
      $region25: #{transform_forward.12} parent=23 // pred_check
        %p238 = pneg %p53
      $region26: #{transform_forward.12} parent=23 // pred_check_branch
        %240 = sbr.rel (%p238) target = $region28
      $region27: #{transform_forward.12} parent=23 // pred_region
        %s241 = smul.u32 8, %s20
        %p242 = scmp.lt.s32.totalorder %s19, 1
        %s243 = scalar_select %p242, %s19, 1
        %p244 = scmp.lt.s32.totalorder %s241, 7
        %s245 = scalar_select %p244, %s241, 7
        %s246 = smul.addr %s243, 8
        %s247 = sadd.s32 %s245, %s246
        %s248 = smul.addr %s247, 8
        %s249 = scalar_lea.vmem %s0, %s248
        %s250 = smul.u32 8, %s20
      $region28: #{transform_forward.12} parent=23 // pred_fallthru
        _
      // Predicated region
      $region29: #{transform_forward.12} parent=23 // pred_check
        %p251 = pneg %p81
      $region30: #{transform_forward.12} parent=23 // pred_check_branch
        %253 = sbr.rel (%p251) target = $region32
      $region31: #{transform_forward.12} parent=23 // pred_region
        %s254 = smul.u32 8, %s20
        %p255 = scmp.lt.s32.totalorder %s19, 1
        %s256 = scalar_select %p255, %s19, 1
        %p257 = scmp.lt.s32.totalorder %s254, 7
        %s258 = scalar_select %p257, %s254, 7
        %s259 = smul.addr %s256, 8
        %s260 = sadd.s32 %s258, %s259
        %s261 = smul.addr %s260, 4
        %s262 = scalar_lea.vmem %s1, %s261
        %s263 = smul.u32 8, %s20
      $region32: #{transform_forward.12} parent=23 // pred_fallthru
        _
      // Predicated region
      $region33: #{transform_forward.12} parent=23 // pred_check
        %p264 = pneg %p109
      $region34: #{transform_forward.12} parent=23 // pred_check_branch
        %266 = sbr.rel (%p264) target = $region36
      $region35: #{transform_forward.12} parent=23 // pred_region
        %s267 = smul.u32 8, %s21
        %p268 = scmp.lt.s32.totalorder %s19, 1
        %s269 = scalar_select %p268, %s19, 1
        %p270 = scmp.lt.s32.totalorder %s267, 7
        %s271 = scalar_select %p270, %s267, 7
        %s272 = smul.addr %s269, 8
        %s273 = sadd.s32 %s271, %s272
        %s274 = smul.addr %s273, 4
        %s275 = scalar_lea.vmem %s2, %s274
        %s276 = smul.u32 8, %s21
      $region36: #{transform_forward.12} parent=23 // pred_fallthru
        _
      // Predicated region
      $region37: #{transform_forward.12} parent=23 // pred_check
        %p277 = pneg %p137
      $region38: #{transform_forward.12} parent=23 // pred_check_branch
        %279 = sbr.rel (%p277) target = $region40
      $region39: #{transform_forward.12} parent=23 // pred_region
        %s280 = smul.u32 8, %s21
        %p281 = scmp.lt.s32.totalorder %s19, 1
        %s282 = scalar_select %p281, %s19, 1
        %p283 = scmp.lt.s32.totalorder %s280, 7
        %s284 = scalar_select %p283, %s280, 7
        %s285 = smul.addr %s282, 8
        %s286 = sadd.s32 %s284, %s285
        %s287 = smul.addr %s286, 4
        %s288 = scalar_lea.vmem %s3, %s287
        %s289 = smul.u32 8, %s21
      $region40: #{transform_forward.12} parent=23 // pred_fallthru
        _
    $region24: #{transform_forward.12} parent=5 // pred_fallthru
      _
    %p290 = scmp.le.s32.totalorder 1, %s12
    %p291 = scmp.lt.s32.totalorder %s12, 3
    %p292 = pnand %p290, %p291
    %p293 = pneg %p292
    // Predicated region
    $region41: #{transform_forward.12} parent=5 // pred_check
      _
    $region42: #{transform_forward.12} parent=5 // pred_check_branch
      %295 = sbr.rel (%p292) target = $region44
    $region43: #{transform_forward.12} parent=5 // pred_region
      %s296 = ssub.s32 %s12, 1
      %s297 = smul.u32 8, %s23
      %p298 = scmp.lt.s32.totalorder %s22, 1
      %s299 = scalar_select %p298, %s22, 1
      %p300 = scmp.lt.s32.totalorder %s297, 7
      %s301 = scalar_select %p300, %s297, 7
      %s302 = smul.addr %s299, 8
      %s303 = sadd.s32 %s301, %s302
      %s304 = smul.addr %s303, 8
      %s305 = scalar_lea.vmem %s0, %s304
      %p306 = pneg %p59
      %p307 = pneg %p56
      %s308 = smul.u32 8, %s23
      %p309 = scmp.lt.s32.totalorder %s22, 1
      %s310 = scalar_select %p309, %s22, 1
      %p311 = scmp.lt.s32.totalorder %s308, 7
      %s312 = scalar_select %p311, %s308, 7
      %s313 = smul.addr %s310, 8
      %s314 = sadd.s32 %s312, %s313
      %s315 = smul.addr %s314, 4
      %s316 = scalar_lea.vmem %s1, %s315
      %p317 = pneg %p87
      %p318 = pneg %p84
      %s319 = smul.u32 8, %s24
      %p320 = scmp.lt.s32.totalorder %s22, 1
      %s321 = scalar_select %p320, %s22, 1
      %p322 = scmp.lt.s32.totalorder %s319, 7
      %s323 = scalar_select %p322, %s319, 7
      %s324 = smul.addr %s321, 8
      %s325 = sadd.s32 %s323, %s324
      %s326 = smul.addr %s325, 4
      %s327 = scalar_lea.vmem %s2, %s326
      %p328 = pneg %p115
      %p329 = pneg %p112
      %s330 = smul.u32 8, %s24
      %p331 = scmp.lt.s32.totalorder %s22, 1
      %s332 = scalar_select %p331, %s22, 1
      %p333 = scmp.lt.s32.totalorder %s330, 7
      %s334 = scalar_select %p333, %s330, 7
      %s335 = smul.addr %s332, 8
      %s336 = sadd.s32 %s334, %s335
      %s337 = smul.addr %s336, 4
      %s338 = scalar_lea.vmem %s3, %s337
      %p339 = pneg %p143
      %p340 = pneg %p140
      %p341 = pneg %p164
      %p342 = pneg %p161
      %p343 = pneg %p185
      %p344 = pneg %p182
      %p345 = pneg %p213
      %p346 = pneg %p210
      %s347 = smul.u32 8, %s23
      %p348 = scmp.lt.s32.totalorder %s22, 1
      %s349 = scalar_select %p348, %s22, 1
      %p350 = scmp.lt.s32.totalorder %s347, 7
      %s351 = scalar_select %p350, %s347, 7
      %s352 = smul.addr %s349, 8
      %s353 = sadd.s32 %s351, %s352
      %s354 = smul.addr %s353, 8
      %s355 = scalar_lea.vmem %s6, %s354
      %s356 = smul.u32 8, %s23
      %p357 = scmp.lt.s32.totalorder %s22, 1
      %s358 = scalar_select %p357, %s22, 1
      %p359 = scmp.lt.s32.totalorder %s356, 7
      %s360 = scalar_select %p359, %s356, 7
      %s361 = smul.addr %s358, 8
      %s362 = sadd.s32 %s360, %s361
      %s363 = smul.addr %s362, 8
      %s364 = scalar_lea.vmem %s0, %s363
      %s365 = smul.u32 8, %s23
      %s366 = smul.u32 8, %s23
      %p367 = scmp.lt.s32.totalorder %s22, 1
      %s368 = scalar_select %p367, %s22, 1
      %p369 = scmp.lt.s32.totalorder %s366, 7
      %s370 = scalar_select %p369, %s366, 7
      %s371 = smul.addr %s368, 8
      %s372 = sadd.s32 %s370, %s371
      %s373 = smul.addr %s372, 4
      %s374 = scalar_lea.vmem %s1, %s373
      %s375 = smul.u32 8, %s23
      %s376 = smul.u32 8, %s24
      %p377 = scmp.lt.s32.totalorder %s22, 1
      %s378 = scalar_select %p377, %s22, 1
      %p379 = scmp.lt.s32.totalorder %s376, 7
      %s380 = scalar_select %p379, %s376, 7
      %s381 = smul.addr %s378, 8
      %s382 = sadd.s32 %s380, %s381
      %s383 = smul.addr %s382, 4
      %s384 = scalar_lea.vmem %s2, %s383
      %s385 = smul.u32 8, %s24
      %s386 = smul.u32 8, %s24
      %p387 = scmp.lt.s32.totalorder %s22, 1
      %s388 = scalar_select %p387, %s22, 1
      %p389 = scmp.lt.s32.totalorder %s386, 7
      %s390 = scalar_select %p389, %s386, 7
      %s391 = smul.addr %s388, 8
      %s392 = sadd.s32 %s390, %s391
      %s393 = smul.addr %s392, 4
      %s394 = scalar_lea.vmem %s3, %s393
      %s395 = smul.u32 8, %s24
      %s396 = smul.u32 8, %s23
      %p397 = scmp.lt.s32.totalorder %s22, 1
      %s398 = scalar_select %p397, %s22, 1
      %p399 = scmp.lt.s32.totalorder %s396, 7
      %s400 = scalar_select %p399, %s396, 7
      %s401 = smul.addr %s398, 8
      %s402 = sadd.s32 %s400, %s401
      %s403 = smul.addr %s402, 8
      %s404 = scalar_lea.vmem %s6, %s403
      %s405 = smul.u32 8, %s23
      %p407 = scmp.eq.s32.totalorder %s24, 0
      // Predicated region
      $region45: #{transform_forward.12} parent=43 // pred_check
        %p408 = pneg %p407
      $region46: #{transform_forward.12} parent=43 // pred_check_branch
        %410 = sbr.rel (%p408) target = $region48
      $region47: #{transform_forward.12} parent=43 // pred_region
        %vm411 = vcmask 7168
        %412 = vst.msk [vmem:[#allocation2] sm:$0xff] %vm411, -inf
        %413 = vst.msk [vmem:[#allocation2 + $0x8] sm:$0xff] %vm411, -inf
        %414 = vst.msk [vmem:[#allocation2 + $0x10] sm:$0xff] %vm411, -inf
        %415 = vst.msk [vmem:[#allocation2 + $0x18] sm:$0xff] %vm411, -inf
        %416 = vst.msk [vmem:[#allocation2 + $0x20] sm:$0xff] %vm411, -inf
        %417 = vst.msk [vmem:[#allocation2 + $0x28] sm:$0xff] %vm411, -inf
        %418 = vst.msk [vmem:[#allocation2 + $0x30] sm:$0xff] %vm411, -inf
        %419 = vst.msk [vmem:[#allocation2 + $0x38] sm:$0xff] %vm411, -inf
        %420 = vst.msk [vmem:[#allocation3] sm:$0xff] %vm411, 0.0
        %421 = vst.msk [vmem:[#allocation3 + $0x8] sm:$0xff] %vm411, 0.0
        %422 = vst.msk [vmem:[#allocation3 + $0x10] sm:$0xff] %vm411, 0.0
        %423 = vst.msk [vmem:[#allocation3 + $0x18] sm:$0xff] %vm411, 0.0
        %424 = vst.msk [vmem:[#allocation3 + $0x20] sm:$0xff] %vm411, 0.0
        %425 = vst.msk [vmem:[#allocation3 + $0x28] sm:$0xff] %vm411, 0.0
        %426 = vst.msk [vmem:[#allocation3 + $0x30] sm:$0xff] %vm411, 0.0
        %427 = vst.msk [vmem:[#allocation3 + $0x38] sm:$0xff] %vm411, 0.0
        %vm428 = vcmask 261120
        %429 = vst.msk [vmem:[#allocation4] sm:$0xff] %vm428, 0.0
        %430 = vst.msk [vmem:[#allocation4 + $0x8] sm:$0xff] %vm428, 0.0
        %431 = vst.msk [vmem:[#allocation4 + $0x10] sm:$0xff] %vm428, 0.0
        %432 = vst.msk [vmem:[#allocation4 + $0x18] sm:$0xff] %vm428, 0.0
        %433 = vst.msk [vmem:[#allocation4 + $0x20] sm:$0xff] %vm428, 0.0
        %434 = vst.msk [vmem:[#allocation4 + $0x28] sm:$0xff] %vm428, 0.0
        %435 = vst.msk [vmem:[#allocation4 + $0x30] sm:$0xff] %vm428, 0.0
        %436 = vst.msk [vmem:[#allocation4 + $0x38] sm:$0xff] %vm428, 0.0
      $region48: #{transform_forward.12} parent=43 // pred_fallthru
        _
      %v437 = vld [vmem:[%s374] sm:$0xf]
      %v438 = vld [vmem:[%s374 + $0x4] sm:$0xf]
      %v439 = vld [vmem:[%s374 + $0x8] sm:$0xf]
      %v440 = vld [vmem:[%s374 + $0xc] sm:$0xf]
      %v441 = vld [vmem:[%s374 + $0x10] sm:$0xf]
      %v442 = vld [vmem:[%s374 + $0x14] sm:$0xf]
      %v443 = vld [vmem:[%s374 + $0x18] sm:$0xf]
      %v444 = vld [vmem:[%s374 + $0x1c] sm:$0xf]
      %v445 = vld [vmem:[%s384] sm:$0xf]
      %v446 = vld [vmem:[%s384 + $0x4] sm:$0xf]
      %v447 = vld [vmem:[%s384 + $0x8] sm:$0xf]
      %v448 = vld [vmem:[%s384 + $0xc] sm:$0xf]
      %v449 = vld [vmem:[%s384 + $0x10] sm:$0xf]
      %v450 = vld [vmem:[%s384 + $0x14] sm:$0xf]
      %v451 = vld [vmem:[%s384 + $0x18] sm:$0xf]
      %v452 = vld [vmem:[%s384 + $0x1c] sm:$0xf]
      %v461 = vunpack.c.l.b16 %v437
      %v462 = vunpack.c.l.b16 %v438
      %v463 = vunpack.c.l.b16 %v439
      %v464 = vunpack.c.l.b16 %v440
      %v465 = vunpack.c.l.b16 %v441
      %v466 = vunpack.c.l.b16 %v442
      %v467 = vunpack.c.l.b16 %v443
      %v468 = vunpack.c.l.b16 %v444
      %v469 = vpack.c.b16 %v462, %v461
      %v470 = vpack.c.b16 %v464, %v463
      %v471 = vpack.c.b16 %v466, %v465
      %v472 = vpack.c.b16 %v468, %v467
      %v481 = vunpack.c.l.b16 %v445
      %v482 = vunpack.c.l.b16 %v446
      %v483 = vunpack.c.l.b16 %v447
      %v484 = vunpack.c.l.b16 %v448
      %v485 = vunpack.c.l.b16 %v449
      %v486 = vunpack.c.l.b16 %v450
      %v487 = vunpack.c.l.b16 %v451
      %v488 = vunpack.c.l.b16 %v452
      %v489 = vpack.c.b16 %v482, %v481
      %v490 = vpack.c.b16 %v484, %v483
      %v491 = vpack.c.b16 %v486, %v485
      %v492 = vpack.c.b16 %v488, %v487
      %vm493 = vcmask 261120
      %v495 = vsel %vm493, %v469, 0
      %v498 = vsel %vm493, %v470, 0
      %v501 = vsel %vm493, %v471, 0
      %v504 = vsel %vm493, %v472, 0
      %v507 = vsel %vm493, %v489, 0
      %v510 = vsel %vm493, %v490, 0
      %v513 = vsel %vm493, %v491, 0
      %v516 = vsel %vm493, %v492, 0
      %518 = vmatprep.subr.bf16.mxu0 0
      %519 = vmatpush1.bf16.xpose.msra.mxu0 %v507
      %520 = vmatprep.subr.bf16.mxu0 0
      %521 = vmatpush1.bf16.xpose.msra.mxu0 %v510
      %522 = vmatprep.subr.bf16.mxu0 0
      %523 = vmatpush1.bf16.xpose.msra.mxu0 %v513
      %524 = vmatprep.subr.bf16.mxu0 0
      %525 = vmatpush1.bf16.xpose.msra.mxu0 %v516
      %526 = vmatprep.subr.bf16.mxu0 0
      %527 = vmatpush1.bf16.xpose.msra.mxu0 0
      %528 = vmatprep.subr.bf16.mxu0 0
      %529 = vmatpush1.bf16.xpose.msra.mxu0 0
      %530 = vmatprep.subr.bf16.mxu0 0
      %531 = vmatpush1.bf16.xpose.msra.mxu0 0
      %532 = vmatprep.subr.bf16.mxu0 0
      %533 = vmatpush1.bf16.xpose.msra.mxu0 0
      %534 = vmatprep.subr.bf16.mxu0 0
      %535 = vmatpush1.bf16.xpose.msra.mxu0 0
      %536 = vmatprep.subr.bf16.mxu0 0
      %537 = vmatpush1.bf16.xpose.msra.mxu0 0
      %538 = vmatprep.subr.bf16.mxu0 0
      %539 = vmatpush1.bf16.xpose.msra.mxu0 0
      %540 = vmatprep.subr.bf16.mxu0 0
      %541 = vmatpush1.bf16.xpose.msra.mxu0 0
      %542 = vmatprep.subr.bf16.mxu0 0
      %543 = vmatpush1.bf16.xpose.msra.mxu0 0
      %544 = vmatprep.subr.bf16.mxu0 0
      %545 = vmatpush1.bf16.xpose.msra.mxu0 0
      %546 = vmatprep.subr.bf16.mxu0 0
      %547 = vmatpush1.bf16.xpose.msra.mxu0 0
      %548 = vmatprep.subr.bf16.mxu0 0
      %549 = vmatpush1.bf16.xpose.msra.mxu0 0
      %550 = vmatprep.mubr.bf16.mxu0 0
      %551 = vmatmul.mubr.bf16.gmra.mrb[0].mxu0 %v495
      %v552 = vpop.f32.mrb[0].mxu0
      %v553 = vadd.f32 0.0, %v552
      %v554 = vpop.f32.mrb[0].mxu0
      %v555 = vpop.f32.mrb[0].mxu0
      %v556 = vadd.f32 0.0, %v555
      %v557 = vpop.f32.mrb[0].mxu0
      %558 = vmatprep.mubr.bf16.mxu0 0
      %559 = vmatmul.mubr.bf16.gmra.mrb[0].mxu0 %v498
      %v560 = vpop.f32.mrb[0].mxu0
      %v561 = vadd.f32 0.0, %v560
      %v562 = vpop.f32.mrb[0].mxu0
      %v563 = vpop.f32.mrb[0].mxu0
      %v564 = vadd.f32 0.0, %v563
      %v565 = vpop.f32.mrb[0].mxu0
      %566 = vmatprep.mubr.bf16.mxu0 0
      %567 = vmatmul.mubr.bf16.gmra.mrb[0].mxu0 %v501
      %v568 = vpop.f32.mrb[0].mxu0
      %v569 = vadd.f32 0.0, %v568
      %v570 = vpop.f32.mrb[0].mxu0
      %v571 = vpop.f32.mrb[0].mxu0
      %v572 = vadd.f32 0.0, %v571
      %v573 = vpop.f32.mrb[0].mxu0
      %574 = vmatprep.mubr.bf16.mxu0 0
      %575 = vmatmul.mubr.bf16.gmra.mrb[0].mxu0 %v504
      %v576 = vpop.f32.mrb[0].mxu0
      %v577 = vadd.f32 0.0, %v576
      %v578 = vpop.f32.mrb[0].mxu0
      %v579 = vpop.f32.mrb[0].mxu0
      %v580 = vadd.f32 0.0, %v579
      %v581 = vpop.f32.mrb[0].mxu0
      %582 = vdwg.mxu0
      %v583 = vld [vmem:[#allocation2] sm:$0xff]
      %v584 = vld [vmem:[#allocation2 + $0x8] sm:$0xff]
      %v585 = vld [vmem:[#allocation2 + $0x10] sm:$0xff]
      %v586 = vld [vmem:[#allocation2 + $0x18] sm:$0xff]
      %v587 = vld [vmem:[#allocation2 + $0x20] sm:$0xff]
      %v588 = vld [vmem:[#allocation2 + $0x28] sm:$0xff]
      %v589 = vld [vmem:[#allocation2 + $0x30] sm:$0xff]
      %v590 = vld [vmem:[#allocation2 + $0x38] sm:$0xff]
      %vm591 = vcmask 523264
      %v592 = vsel %vm591, %v553, -inf
      %593 = vmax.xlane.f32.xlu0 %v592
      %v594 = vpop.xlane.xlu0 %593
      %v595 = vsel %vm591, %v556, -inf
      %596 = vmax.xlane.f32.xlu0 %v595
      %v597 = vpop.xlane.xlu0 %596
      %v598 = vsel %vm591, %v561, -inf
      %599 = vmax.xlane.f32.xlu0 %v598
      %v600 = vpop.xlane.xlu0 %599
      %v601 = vsel %vm591, %v564, -inf
      %602 = vmax.xlane.f32.xlu0 %v601
      %v603 = vpop.xlane.xlu0 %602
      %v604 = vsel %vm591, %v569, -inf
      %605 = vmax.xlane.f32.xlu0 %v604
      %v606 = vpop.xlane.xlu0 %605
      %v607 = vsel %vm591, %v572, -inf
      %608 = vmax.xlane.f32.xlu0 %v607
      %v609 = vpop.xlane.xlu0 %608
      %v610 = vsel %vm591, %v577, -inf
      %611 = vmax.xlane.f32.xlu0 %v610
      %v612 = vpop.xlane.xlu0 %611
      %v613 = vsel %vm591, %v580, -inf
      %614 = vmax.xlane.f32.xlu0 %v613
      %v615 = vpop.xlane.xlu0 %614
      %v616 = vmax.f32 %v583, %v594
      %v617 = vmax.f32 %v584, %v597
      %v618 = vmax.f32 %v585, %v600
      %v619 = vmax.f32 %v586, %v603
      %v620 = vmax.f32 %v587, %v606
      %v621 = vmax.f32 %v588, %v609
      %v622 = vmax.f32 %v589, %v612
      %v623 = vmax.f32 %v590, %v615
      %v624 = vsub.f32 %v583, %v616
      %v625 = vsub.f32 %v584, %v617
      %v626 = vsub.f32 %v585, %v618
      %v627 = vsub.f32 %v586, %v619
      %v628 = vsub.f32 %v587, %v620
      %v629 = vsub.f32 %v588, %v621
      %v630 = vsub.f32 %v589, %v622
      %v631 = vsub.f32 %v590, %v623
      %v632 = vmul.f32 %v624, 1.442695
      %v633 = vpow.pop %v632
      %v634 = vmul.f32 %v625, 1.442695
      %v635 = vpow.pop %v634
      %v636 = vmul.f32 %v626, 1.442695
      %v637 = vpow.pop %v636
      %v638 = vmul.f32 %v627, 1.442695
      %v639 = vpow.pop %v638
      %v640 = vmul.f32 %v628, 1.442695
      %v641 = vpow.pop %v640
      %v642 = vmul.f32 %v629, 1.442695
      %v643 = vpow.pop %v642
      %v644 = vmul.f32 %v630, 1.442695
      %v645 = vpow.pop %v644
      %v646 = vmul.f32 %v631, 1.442695
      %v647 = vpow.pop %v646
      %649 = vset.pattern.permute.xlu0 0
      %650 = vperm.xlu0 %649, %v616
      %v651 = vpop.permute.xlu0 %650
      %654 = vset.pattern.permute.xlu0 0
      %655 = vperm.xlu0 %654, %v617
      %v656 = vpop.permute.xlu0 %655
      %659 = vset.pattern.permute.xlu0 0
      %660 = vperm.xlu0 %659, %v618
      %v661 = vpop.permute.xlu0 %660
      %664 = vset.pattern.permute.xlu0 0
      %665 = vperm.xlu0 %664, %v619
      %v666 = vpop.permute.xlu0 %665
      %669 = vset.pattern.permute.xlu0 0
      %670 = vperm.xlu0 %669, %v620
      %v671 = vpop.permute.xlu0 %670
      %674 = vset.pattern.permute.xlu0 0
      %675 = vperm.xlu0 %674, %v621
      %v676 = vpop.permute.xlu0 %675
      %679 = vset.pattern.permute.xlu0 0
      %680 = vperm.xlu0 %679, %v622
      %v681 = vpop.permute.xlu0 %680
      %684 = vset.pattern.permute.xlu0 0
      %685 = vperm.xlu0 %684, %v623
      %v686 = vpop.permute.xlu0 %685
      %v688 = vsub.f32 %v553, %v651
      %v689 = vsub.f32 %v556, %v656
      %v690 = vsub.f32 %v561, %v661
      %v691 = vsub.f32 %v564, %v666
      %v692 = vsub.f32 %v569, %v671
      %v693 = vsub.f32 %v572, %v676
      %v694 = vsub.f32 %v577, %v681
      %v695 = vsub.f32 %v580, %v686
      %v696 = vmul.f32 %v688, 1.442695
      %v697 = vpow.pop %v696
      %v698 = vmul.f32 %v689, 1.442695
      %v699 = vpow.pop %v698
      %v700 = vmul.f32 %v690, 1.442695
      %v701 = vpow.pop %v700
      %v702 = vmul.f32 %v691, 1.442695
      %v703 = vpow.pop %v702
      %v704 = vmul.f32 %v692, 1.442695
      %v705 = vpow.pop %v704
      %v706 = vmul.f32 %v693, 1.442695
      %v707 = vpow.pop %v706
      %v708 = vmul.f32 %v694, 1.442695
      %v709 = vpow.pop %v708
      %v710 = vmul.f32 %v695, 1.442695
      %v711 = vpow.pop %v710
      %v712 = vld [vmem:[#allocation3] sm:$0xff]
      %v713 = vld [vmem:[#allocation3 + $0x8] sm:$0xff]
      %v714 = vld [vmem:[#allocation3 + $0x10] sm:$0xff]
      %v715 = vld [vmem:[#allocation3 + $0x18] sm:$0xff]
      %v716 = vld [vmem:[#allocation3 + $0x20] sm:$0xff]
      %v717 = vld [vmem:[#allocation3 + $0x28] sm:$0xff]
      %v718 = vld [vmem:[#allocation3 + $0x30] sm:$0xff]
      %v719 = vld [vmem:[#allocation3 + $0x38] sm:$0xff]
      %v720 = vmul.f32 %v633, %v712
      %v721 = vmul.f32 %v635, %v713
      %v722 = vmul.f32 %v637, %v714
      %v723 = vmul.f32 %v639, %v715
      %v724 = vmul.f32 %v641, %v716
      %v725 = vmul.f32 %v643, %v717
      %v726 = vmul.f32 %v645, %v718
      %v727 = vmul.f32 %v647, %v719
      %v728 = vsel %vm591, %v697, 0.0
      %729 = vadd.xlane.f32.xlu0 %v728
      %v730 = vpop.xlane.xlu0 %729
      %v731 = vsel %vm591, %v699, 0.0
      %732 = vadd.xlane.f32.xlu0 %v731
      %v733 = vpop.xlane.xlu0 %732
      %v734 = vsel %vm591, %v701, 0.0
      %735 = vadd.xlane.f32.xlu0 %v734
      %v736 = vpop.xlane.xlu0 %735
      %v737 = vsel %vm591, %v703, 0.0
      %738 = vadd.xlane.f32.xlu0 %v737
      %v739 = vpop.xlane.xlu0 %738
      %v740 = vsel %vm591, %v705, 0.0
      %741 = vadd.xlane.f32.xlu0 %v740
      %v742 = vpop.xlane.xlu0 %741
      %v743 = vsel %vm591, %v707, 0.0
      %744 = vadd.xlane.f32.xlu0 %v743
      %v745 = vpop.xlane.xlu0 %744
      %v746 = vsel %vm591, %v709, 0.0
      %747 = vadd.xlane.f32.xlu0 %v746
      %v748 = vpop.xlane.xlu0 %747
      %v749 = vsel %vm591, %v711, 0.0
      %750 = vadd.xlane.f32.xlu0 %v749
      %v751 = vpop.xlane.xlu0 %750
      %v752 = vadd.f32 %v720, %v730
      %v753 = vadd.f32 %v721, %v733
      %v754 = vadd.f32 %v722, %v736
      %v755 = vadd.f32 %v723, %v739
      %v756 = vadd.f32 %v724, %v742
      %v757 = vadd.f32 %v725, %v745
      %v758 = vadd.f32 %v726, %v748
      %v759 = vadd.f32 %v727, %v751
      %vm760 = vcmask 7168
      %761 = vst.msk [vmem:[#allocation3] sm:$0xff] %vm760, %v752
      %762 = vst.msk [vmem:[#allocation3 + $0x8] sm:$0xff] %vm760, %v753
      %763 = vst.msk [vmem:[#allocation3 + $0x10] sm:$0xff] %vm760, %v754
      %764 = vst.msk [vmem:[#allocation3 + $0x18] sm:$0xff] %vm760, %v755
      %765 = vst.msk [vmem:[#allocation3 + $0x20] sm:$0xff] %vm760, %v756
      %766 = vst.msk [vmem:[#allocation3 + $0x28] sm:$0xff] %vm760, %v757
      %767 = vst.msk [vmem:[#allocation3 + $0x30] sm:$0xff] %vm760, %v758
      %768 = vst.msk [vmem:[#allocation3 + $0x38] sm:$0xff] %vm760, %v759
      %v769 = vld [vmem:[#allocation4] sm:$0xff]
      %v770 = vld [vmem:[#allocation4 + $0x8] sm:$0xff]
      %v771 = vld [vmem:[#allocation4 + $0x10] sm:$0xff]
      %v772 = vld [vmem:[#allocation4 + $0x18] sm:$0xff]
      %v773 = vld [vmem:[#allocation4 + $0x20] sm:$0xff]
      %v774 = vld [vmem:[#allocation4 + $0x28] sm:$0xff]
      %v775 = vld [vmem:[#allocation4 + $0x30] sm:$0xff]
      %v776 = vld [vmem:[#allocation4 + $0x38] sm:$0xff]
      %778 = vset.pattern.permute.xlu0 0
      %779 = vperm.xlu0 %778, %v633
      %v780 = vpop.permute.xlu0 %779
      %783 = vset.pattern.permute.xlu0 0
      %784 = vperm.xlu0 %783, %v635
      %v785 = vpop.permute.xlu0 %784
      %788 = vset.pattern.permute.xlu0 0
      %789 = vperm.xlu0 %788, %v637
      %v790 = vpop.permute.xlu0 %789
      %793 = vset.pattern.permute.xlu0 0
      %794 = vperm.xlu0 %793, %v639
      %v795 = vpop.permute.xlu0 %794
      %798 = vset.pattern.permute.xlu0 0
      %799 = vperm.xlu0 %798, %v641
      %v800 = vpop.permute.xlu0 %799
      %803 = vset.pattern.permute.xlu0 0
      %804 = vperm.xlu0 %803, %v643
      %v805 = vpop.permute.xlu0 %804
      %808 = vset.pattern.permute.xlu0 0
      %809 = vperm.xlu0 %808, %v645
      %v810 = vpop.permute.xlu0 %809
      %813 = vset.pattern.permute.xlu0 0
      %814 = vperm.xlu0 %813, %v647
      %v815 = vpop.permute.xlu0 %814
      %v817 = vmul.f32 %v780, %v769
      %v818 = vmul.f32 %v785, %v770
      %v819 = vmul.f32 %v790, %v771
      %v820 = vmul.f32 %v795, %v772
      %v821 = vmul.f32 %v800, %v773
      %v822 = vmul.f32 %v805, %v774
      %v823 = vmul.f32 %v810, %v775
      %v824 = vmul.f32 %v815, %v776
      %v825 = vpack.c.bf16 %v699, %v697
      %v826 = vpack.c.bf16 %v703, %v701
      %v827 = vpack.c.bf16 %v707, %v705
      %v828 = vpack.c.bf16 %v711, %v709
      %v829 = vld [vmem:[%s394] sm:$0xf]
      %v830 = vld [vmem:[%s394 + $0x4] sm:$0xf]
      %v831 = vld [vmem:[%s394 + $0x8] sm:$0xf]
      %v832 = vld [vmem:[%s394 + $0xc] sm:$0xf]
      %v833 = vld [vmem:[%s394 + $0x10] sm:$0xf]
      %v834 = vld [vmem:[%s394 + $0x14] sm:$0xf]
      %v835 = vld [vmem:[%s394 + $0x18] sm:$0xf]
      %v836 = vld [vmem:[%s394 + $0x1c] sm:$0xf]
      %v845 = vunpack.c.l.b16 %v829
      %v846 = vunpack.c.l.b16 %v830
      %v847 = vunpack.c.l.b16 %v831
      %v848 = vunpack.c.l.b16 %v832
      %v849 = vunpack.c.l.b16 %v833
      %v850 = vunpack.c.l.b16 %v834
      %v851 = vunpack.c.l.b16 %v835
      %v852 = vunpack.c.l.b16 %v836
      %v853 = vpack.c.b16 %v846, %v845
      %v854 = vpack.c.b16 %v848, %v847
      %v855 = vpack.c.b16 %v850, %v849
      %v856 = vpack.c.b16 %v852, %v851
      %v862 = vsel %vm591, %v825, 0
      %v865 = vsel %vm591, %v826, 0
      %v868 = vsel %vm591, %v827, 0
      %v871 = vsel %vm591, %v828, 0
      %873 = vmatprep.subr.bf16.mxu0 0
      %874 = vmatpush1.bf16.msra.mxu0 %v853
      %875 = vmatprep.subr.bf16.mxu0 0
      %876 = vmatpush1.bf16.msra.mxu0 %v854
      %877 = vmatprep.subr.bf16.mxu0 0
      %878 = vmatpush1.bf16.msra.mxu0 %v855
      %879 = vmatprep.subr.bf16.mxu0 0
      %880 = vmatpush1.bf16.msra.mxu0 %v856
      %881 = vmatprep.subr.bf16.mxu0 0
      %882 = vmatpush1.bf16.msra.mxu0 0
      %883 = vmatprep.subr.bf16.mxu0 0
      %884 = vmatpush1.bf16.msra.mxu0 0
      %885 = vmatprep.subr.bf16.mxu0 0
      %886 = vmatpush1.bf16.msra.mxu0 0
      %887 = vmatprep.subr.bf16.mxu0 0
      %888 = vmatpush1.bf16.msra.mxu0 0
      %889 = vmatprep.subr.bf16.mxu0 0
      %890 = vmatpush1.bf16.msra.mxu0 0
      %891 = vmatprep.subr.bf16.mxu0 0
      %892 = vmatpush1.bf16.msra.mxu0 0
      %893 = vmatprep.subr.bf16.mxu0 0
      %894 = vmatpush1.bf16.msra.mxu0 0
      %895 = vmatprep.subr.bf16.mxu0 0
      %896 = vmatpush1.bf16.msra.mxu0 0
      %897 = vmatprep.subr.bf16.mxu0 0
      %898 = vmatpush1.bf16.msra.mxu0 0
      %899 = vmatprep.subr.bf16.mxu0 0
      %900 = vmatpush1.bf16.msra.mxu0 0
      %901 = vmatprep.subr.bf16.mxu0 0
      %902 = vmatpush1.bf16.msra.mxu0 0
      %903 = vmatprep.subr.bf16.mxu0 0
      %904 = vmatpush1.bf16.msra.mxu0 0
      %905 = vmatprep.mubr.bf16.mxu0 0
      %906 = vmatmul.mubr.bf16.gmra.mrb[0].mxu0 %v862
      %v907 = vpop.f32.mrb[0].mxu0
      %v908 = vadd.f32 0.0, %v907
      %v909 = vpop.f32.mrb[0].mxu0
      %v910 = vpop.f32.mrb[0].mxu0
      %v911 = vadd.f32 0.0, %v910
      %v912 = vpop.f32.mrb[0].mxu0
      %913 = vmatprep.mubr.bf16.mxu0 0
      %914 = vmatmul.mubr.bf16.gmra.mrb[0].mxu0 %v865
      %v915 = vpop.f32.mrb[0].mxu0
      %v916 = vadd.f32 0.0, %v915
      %v917 = vpop.f32.mrb[0].mxu0
      %v918 = vpop.f32.mrb[0].mxu0
      %v919 = vadd.f32 0.0, %v918
      %v920 = vpop.f32.mrb[0].mxu0
      %921 = vmatprep.mubr.bf16.mxu0 0
      %922 = vmatmul.mubr.bf16.gmra.mrb[0].mxu0 %v868
      %v923 = vpop.f32.mrb[0].mxu0
      %v924 = vadd.f32 0.0, %v923
      %v925 = vpop.f32.mrb[0].mxu0
      %v926 = vpop.f32.mrb[0].mxu0
      %v927 = vadd.f32 0.0, %v926
      %v928 = vpop.f32.mrb[0].mxu0
      %929 = vmatprep.mubr.bf16.mxu0 0
      %930 = vmatmul.mubr.bf16.gmra.mrb[0].mxu0 %v871
      %v931 = vpop.f32.mrb[0].mxu0
      %v932 = vadd.f32 0.0, %v931
      %v933 = vpop.f32.mrb[0].mxu0
      %v934 = vpop.f32.mrb[0].mxu0
      %v935 = vadd.f32 0.0, %v934
      %v936 = vpop.f32.mrb[0].mxu0
      %937 = vdwg.mxu0
      %v938 = vadd.f32 %v817, %v908
      %v939 = vadd.f32 %v818, %v911
      %v940 = vadd.f32 %v819, %v916
      %v941 = vadd.f32 %v820, %v919
      %v942 = vadd.f32 %v821, %v924
      %v943 = vadd.f32 %v822, %v927
      %v944 = vadd.f32 %v823, %v932
      %v945 = vadd.f32 %v824, %v935
      %946 = vst.msk [vmem:[#allocation4] sm:$0xff] %vm493, %v938
      %947 = vst.msk [vmem:[#allocation4 + $0x8] sm:$0xff] %vm493, %v939
      %948 = vst.msk [vmem:[#allocation4 + $0x10] sm:$0xff] %vm493, %v940
      %949 = vst.msk [vmem:[#allocation4 + $0x18] sm:$0xff] %vm493, %v941
      %950 = vst.msk [vmem:[#allocation4 + $0x20] sm:$0xff] %vm493, %v942
      %951 = vst.msk [vmem:[#allocation4 + $0x28] sm:$0xff] %vm493, %v943
      %952 = vst.msk [vmem:[#allocation4 + $0x30] sm:$0xff] %vm493, %v944
      %953 = vst.msk [vmem:[#allocation4 + $0x38] sm:$0xff] %vm493, %v945
      %954 = vst.msk [vmem:[#allocation2] sm:$0xff] %vm760, %v616
      %955 = vst.msk [vmem:[#allocation2 + $0x8] sm:$0xff] %vm760, %v617
      %956 = vst.msk [vmem:[#allocation2 + $0x10] sm:$0xff] %vm760, %v618
      %957 = vst.msk [vmem:[#allocation2 + $0x18] sm:$0xff] %vm760, %v619
      %958 = vst.msk [vmem:[#allocation2 + $0x20] sm:$0xff] %vm760, %v620
      %959 = vst.msk [vmem:[#allocation2 + $0x28] sm:$0xff] %vm760, %v621
      %960 = vst.msk [vmem:[#allocation2 + $0x30] sm:$0xff] %vm760, %v622
      %961 = vst.msk [vmem:[#allocation2 + $0x38] sm:$0xff] %vm760, %v623
      // Predicated region
      $region49: #{transform_forward.12} parent=43 // pred_check
        %p962 = pneg %p407
      $region50: #{transform_forward.12} parent=43 // pred_check_branch
        %964 = sbr.rel (%p962) target = $region52
      $region51: #{transform_forward.12} parent=43 // pred_region
        %v965 = vld [vmem:[#allocation4] sm:$0xff]
        %v966 = vld [vmem:[#allocation4 + $0x8] sm:$0xff]
        %v967 = vld [vmem:[#allocation4 + $0x10] sm:$0xff]
        %v968 = vld [vmem:[#allocation4 + $0x18] sm:$0xff]
        %v969 = vld [vmem:[#allocation4 + $0x20] sm:$0xff]
        %v970 = vld [vmem:[#allocation4 + $0x28] sm:$0xff]
        %v971 = vld [vmem:[#allocation4 + $0x30] sm:$0xff]
        %v972 = vld [vmem:[#allocation4 + $0x38] sm:$0xff]
        %v973 = vld [vmem:[#allocation3] sm:$0xff]
        %v974 = vld [vmem:[#allocation3 + $0x8] sm:$0xff]
        %v975 = vld [vmem:[#allocation3 + $0x10] sm:$0xff]
        %v976 = vld [vmem:[#allocation3 + $0x18] sm:$0xff]
        %v977 = vld [vmem:[#allocation3 + $0x20] sm:$0xff]
        %v978 = vld [vmem:[#allocation3 + $0x28] sm:$0xff]
        %v979 = vld [vmem:[#allocation3 + $0x30] sm:$0xff]
        %v980 = vld [vmem:[#allocation3 + $0x38] sm:$0xff]
        %v981 = vrcp.pop %v973
        %v982 = vrcp.pop %v974
        %v983 = vrcp.pop %v975
        %v984 = vrcp.pop %v976
        %v985 = vrcp.pop %v977
        %v986 = vrcp.pop %v978
        %v987 = vrcp.pop %v979
        %v988 = vrcp.pop %v980
        %990 = vset.pattern.permute.xlu0 0
        %991 = vperm.xlu0 %990, %v981
        %v992 = vpop.permute.xlu0 %991
        %995 = vset.pattern.permute.xlu0 0
        %996 = vperm.xlu0 %995, %v982
        %v997 = vpop.permute.xlu0 %996
        %1000 = vset.pattern.permute.xlu0 0
        %1001 = vperm.xlu0 %1000, %v983
        %v1002 = vpop.permute.xlu0 %1001
        %1005 = vset.pattern.permute.xlu0 0
        %1006 = vperm.xlu0 %1005, %v984
        %v1007 = vpop.permute.xlu0 %1006
        %1010 = vset.pattern.permute.xlu0 0
        %1011 = vperm.xlu0 %1010, %v985
        %v1012 = vpop.permute.xlu0 %1011
        %1015 = vset.pattern.permute.xlu0 0
        %1016 = vperm.xlu0 %1015, %v986
        %v1017 = vpop.permute.xlu0 %1016
        %1020 = vset.pattern.permute.xlu0 0
        %1021 = vperm.xlu0 %1020, %v987
        %v1022 = vpop.permute.xlu0 %1021
        %1025 = vset.pattern.permute.xlu0 0
        %1026 = vperm.xlu0 %1025, %v988
        %v1027 = vpop.permute.xlu0 %1026
        %v1029 = vmul.f32 %v965, %v992
        %v1030 = vmul.f32 %v966, %v997
        %v1031 = vmul.f32 %v967, %v1002
        %v1032 = vmul.f32 %v968, %v1007
        %v1033 = vmul.f32 %v969, %v1012
        %v1034 = vmul.f32 %v970, %v1017
        %v1035 = vmul.f32 %v971, %v1022
        %v1036 = vmul.f32 %v972, %v1027
        %v1037 = vpack.c.bf16 %v1030, %v1029
        %v1038 = vpack.c.bf16 %v1032, %v1031
        %v1039 = vpack.c.bf16 %v1034, %v1033
        %v1040 = vpack.c.bf16 %v1036, %v1035
        %v1041 = vld [vmem:[%s4] sm:$0xf]
        %v1042 = vld [vmem:[%s4 + $0x4] sm:$0xf]
        %v1043 = vld [vmem:[%s4 + $0x8] sm:$0xf]
        %v1044 = vld [vmem:[%s4 + $0xc] sm:$0xf]
        %v1045 = vld [vmem:[%s5] sm:$0x1]
        %v1047 = vlaneseq
        %v1048 = vshrl.u32 %v1047, 7
        %v1049 = vsub.s32 0, %v1048
        %v1050 = vrot.slane %v1045, %v1049
        %v1056 = vunpack.c.l.b16 %v1041
        %v1057 = vunpack.c.l.b16 %v1042
        %v1058 = vunpack.c.l.b16 %v1043
        %v1059 = vunpack.c.l.b16 %v1044
        %v1060 = vpack.c.b16 %v1057, %v1056
        %v1061 = vpack.c.b16 %v1059, %v1058
        %v1065 = vsel %vm493, %v1037, 0
        %v1068 = vsel %vm493, %v1038, 0
        %v1071 = vsel %vm493, %v1039, 0
        %v1074 = vsel %vm493, %v1040, 0
        %1076 = vmatprep.subr.bf16.mxu0 0
        %1077 = vmatpush1.bf16.msra.mxu0 %v1060
        %1078 = vmatprep.subr.bf16.mxu0 0
        %1079 = vmatpush1.bf16.msra.mxu0 %v1061
        %1080 = vmatprep.subr.bf16.mxu0 0
        %1081 = vmatpush1.bf16.msra.mxu0 0
        %1082 = vmatprep.subr.bf16.mxu0 0
        %1083 = vmatpush1.bf16.msra.mxu0 0
        %1084 = vmatprep.subr.bf16.mxu0 0
        %1085 = vmatpush1.bf16.msra.mxu0 0
        %1086 = vmatprep.subr.bf16.mxu0 0
        %1087 = vmatpush1.bf16.msra.mxu0 0
        %1088 = vmatprep.subr.bf16.mxu0 0
        %1089 = vmatpush1.bf16.msra.mxu0 0
        %1090 = vmatprep.subr.bf16.mxu0 0
        %1091 = vmatpush1.bf16.msra.mxu0 0
        %1092 = vmatprep.subr.bf16.mxu0 0
        %1093 = vmatpush1.bf16.msra.mxu0 0
        %1094 = vmatprep.subr.bf16.mxu0 0
        %1095 = vmatpush1.bf16.msra.mxu0 0
        %1096 = vmatprep.subr.bf16.mxu0 0
        %1097 = vmatpush1.bf16.msra.mxu0 0
        %1098 = vmatprep.subr.bf16.mxu0 0
        %1099 = vmatpush1.bf16.msra.mxu0 0
        %1100 = vmatprep.subr.bf16.mxu0 0
        %1101 = vmatpush1.bf16.msra.mxu0 0
        %1102 = vmatprep.subr.bf16.mxu0 0
        %1103 = vmatpush1.bf16.msra.mxu0 0
        %1104 = vmatprep.subr.bf16.mxu0 0
        %1105 = vmatpush1.bf16.msra.mxu0 0
        %1106 = vmatprep.subr.bf16.mxu0 0
        %1107 = vmatpush1.bf16.msra.mxu0 0
        %1108 = vmatprep.mubr.bf16.mxu0 0
        %1109 = vmatmul.mubr.bf16.gmra.mrb[0].mxu0 %v1065
        %v1110 = vpop.f32.mrb[0].mxu0
        %v1111 = vadd.f32 %v1050, %v1110
        %v1112 = vpop.f32.mrb[0].mxu0
        %v1113 = vpop.f32.mrb[0].mxu0
        %v1114 = vadd.f32 %v1050, %v1113
        %v1115 = vpop.f32.mrb[0].mxu0
        %1116 = vmatprep.mubr.bf16.mxu0 0
        %1117 = vmatmul.mubr.bf16.gmra.mrb[0].mxu0 %v1068
        %v1118 = vpop.f32.mrb[0].mxu0
        %v1119 = vadd.f32 %v1050, %v1118
        %v1120 = vpop.f32.mrb[0].mxu0
        %v1121 = vpop.f32.mrb[0].mxu0
        %v1122 = vadd.f32 %v1050, %v1121
        %v1123 = vpop.f32.mrb[0].mxu0
        %1124 = vmatprep.mubr.bf16.mxu0 0
        %1125 = vmatmul.mubr.bf16.gmra.mrb[0].mxu0 %v1071
        %v1126 = vpop.f32.mrb[0].mxu0
        %v1127 = vadd.f32 %v1050, %v1126
        %v1128 = vpop.f32.mrb[0].mxu0
        %v1129 = vpop.f32.mrb[0].mxu0
        %v1130 = vadd.f32 %v1050, %v1129
        %v1131 = vpop.f32.mrb[0].mxu0
        %1132 = vmatprep.mubr.bf16.mxu0 0
        %1133 = vmatmul.mubr.bf16.gmra.mrb[0].mxu0 %v1074
        %v1134 = vpop.f32.mrb[0].mxu0
        %v1135 = vadd.f32 %v1050, %v1134
        %v1136 = vpop.f32.mrb[0].mxu0
        %v1137 = vpop.f32.mrb[0].mxu0
        %v1138 = vadd.f32 %v1050, %v1137
        %v1139 = vpop.f32.mrb[0].mxu0
        %1140 = vdwg.mxu0
        %v1141 = vld [vmem:[%s364] sm:$0xff]
        %v1142 = vld [vmem:[%s364 + $0x8] sm:$0xff]
        %v1143 = vld [vmem:[%s364 + $0x10] sm:$0xff]
        %v1144 = vld [vmem:[%s364 + $0x18] sm:$0xff]
        %v1145 = vld [vmem:[%s364 + $0x20] sm:$0xff]
        %v1146 = vld [vmem:[%s364 + $0x28] sm:$0xff]
        %v1147 = vld [vmem:[%s364 + $0x30] sm:$0xff]
        %v1148 = vld [vmem:[%s364 + $0x38] sm:$0xff]
        %v1149 = vadd.f32 %v1111, %v1141
        %v1150 = vadd.f32 %v1114, %v1142
        %v1151 = vadd.f32 %v1119, %v1143
        %v1152 = vadd.f32 %v1122, %v1144
        %v1153 = vadd.f32 %v1127, %v1145
        %v1154 = vadd.f32 %v1130, %v1146
        %v1155 = vadd.f32 %v1135, %v1147
        %v1156 = vadd.f32 %v1138, %v1148
        %1157 = vst.msk [vmem:[%s404] sm:$0xff] %vm493, %v1149
        %1158 = vst.msk [vmem:[%s404 + $0x8] sm:$0xff] %vm493, %v1150
        %1159 = vst.msk [vmem:[%s404 + $0x10] sm:$0xff] %vm493, %v1151
        %1160 = vst.msk [vmem:[%s404 + $0x18] sm:$0xff] %vm493, %v1152
        %1161 = vst.msk [vmem:[%s404 + $0x20] sm:$0xff] %vm493, %v1153
        %1162 = vst.msk [vmem:[%s404 + $0x28] sm:$0xff] %vm493, %v1154
        %1163 = vst.msk [vmem:[%s404 + $0x30] sm:$0xff] %vm493, %v1155
        %1164 = vst.msk [vmem:[%s404 + $0x38] sm:$0xff] %vm493, %v1156
      $region52: #{transform_forward.12} parent=43 // pred_fallthru
        _
      %s1165 = smul.u32 8, %s23
      %p1166 = scmp.lt.s32.totalorder %s22, 1
      %s1167 = scalar_select %p1166, %s22, 1
      %p1168 = scmp.lt.s32.totalorder %s1165, 7
      %s1169 = scalar_select %p1168, %s1165, 7
      %s1170 = smul.addr %s1167, 8
      %s1171 = sadd.s32 %s1169, %s1170
      %s1172 = smul.addr %s1171, 8
      %s1173 = scalar_lea.vmem %s6, %s1172
      // Predicated region
      $region53: #{transform_forward.12} parent=43 // pred_check
        %p1174 = pneg %p210
      $region54: #{transform_forward.12} parent=43 // pred_check_branch
        %1176 = sbr.rel (%p1174) target = $region56
      $region55: #{transform_forward.12} parent=43 // pred_region
        %s1177 = smul.u32 8, %s23
      $region56: #{transform_forward.12} parent=43 // pred_fallthru
        _
    $region44: #{transform_forward.12} parent=5 // pred_fallthru
      _
    %p1178 = scmp.le.s32.totalorder 2, %s12
    // Predicated region
    $region57: #{transform_forward.12} parent=5 // pred_check
      %p1179 = pneg %p1178
    $region58: #{transform_forward.12} parent=5 // pred_check_branch
      %1181 = sbr.rel (%p1179) target = $region60
    $region59: #{transform_forward.12} parent=5 // pred_region
      %s1182 = ssub.s32 %s12, 2
      // Predicated region
      $region61: #{transform_forward.12} parent=59 // pred_check
        %p1183 = pneg %p216
      $region62: #{transform_forward.12} parent=59 // pred_check_branch
        %1185 = sbr.rel (%p1183) target = $region64
      $region63: #{transform_forward.12} parent=59 // pred_region
        %s1186 = smul.u32 8, %s26
        %p1187 = scmp.lt.s32.totalorder %s25, 1
        %s1188 = scalar_select %p1187, %s25, 1
        %p1189 = scmp.lt.s32.totalorder %s1186, 7
        %s1190 = scalar_select %p1189, %s1186, 7
        %s1191 = smul.addr %s1188, 8
        %s1192 = sadd.s32 %s1190, %s1191
        %s1193 = smul.addr %s1192, 8
        %s1194 = scalar_lea.vmem %s6, %s1193
      $region64: #{transform_forward.12} parent=59 // pred_fallthru
        _
    $region60: #{transform_forward.12} parent=5 // pred_fallthru
      _
  $region6: #{transform_forward.12} parent=0 // loop_footer
    %s16 = sadd.s32 1, %s12
  $region7: #{transform_forward.12} parent=0 // loop_footer_branch
    %11 = sbr.rel target = $region3
  $region8: #{transform_forward.12} parent=0 // loop_exit
    _

// kernel: transform_forward.13
$region0: #{transform_forward.13}
  #allocation0 [shape = 'u32[]', space=smem, size = 0x4, offset = 0x4, fixed_abs, tag = 'smem constant byte address 0x4 - core index']
  #allocation1 [shape = 'u32[144,128]{1,0:T(1,128)}', space=vmem, size = 0x12000, scoped, tag = 'internal scratch']
  %s0 = inlined_call_operand.vmem [shape: bf16[2,288,96], index: 0, kind: input, shape index: {}]
  %s1 = inlined_call_operand.vmem [shape: bf16[3,96,32], index: 1, kind: input, shape index: {}]
  %s2 = inlined_call_operand.vmem [shape: f32[1,32], index: 2, kind: input, shape index: {}]
  %s3 = inlined_call_operand.hbm [shape: f32[2,256,32], index: 3, kind: output, shape index: {}]
  %s4 = sld [smem:[#allocation0]]
  $region45: #{transform_forward.13} parent=0
    _
  %s6 = ssub.s32 1, %s4
  %s7 = scalar_select 0, %s6, %s4
  $region1: #{transform_forward.13} parent=0
    #allocation2 [shape = 'u8[131072]{0}', space=vmem, size = 0x20000, scoped, tag = 'output window, operand 0']
    #allocation3 [shape = 's32[2]{0}', space=sflag, size = 0x8, scoped, tag = 'scoped memory for transform_forward.13']
    %8 = vsyncpa [#allocation3], 0
    %s9 = scalar_lea.sflag [#allocation3], 1
    %10 = vsyncpa %s9, 0
    loop: start=0, step=1, limit=6
    $region2: #{transform_forward.13} parent=1 // loop_pre_header
      _
    $region3: #{transform_forward.13} parent=1 // loop_header
      %s12 = sphi 0, %s16
      %p13 = scmp.ge.s32.totalorder %s12, 6
      %s19 = sphi 0, %s31
      %s20 = sphi 0, %s27
      %s21 = sphi 0, %s19
      %s22 = sphi 0, %s20
      %s23 = sphi 0, %s21
      %s24 = sphi 0, %s22
      %s34 = sphi 0, %s36
      %s37 = sphi 0, %s34
      %s38 = sphi 0, %s37
      %s54 = sphi 0, %s38
      %s58 = sphi 0, %s58
      %s60 = sphi 0, %s58
      %s61 = sphi 0, %s60
      %s75 = sphi 0, %s61
      %s79 = sphi 0, %s79
      %s81 = sphi 0, %s79
      %s82 = sphi 0, %s81
      %s96 = sphi 0, %s82
      %s104 = sphi 0, %s106
      %s107 = sphi 0, %s104
      %s108 = sphi 0, %s107
      %s124 = sphi 0, %s108
    $region4: #{transform_forward.13} parent=1 // loop_header_branch
      %15 = sbr.rel (%p13) target = $region8
    $region5: #{transform_forward.13} parent=1 // loop_body
      %s17 = ssub.s32 %s12, 1
      %s18 = ssub.s32 %s12, 2
      %s25 = sadd.s32 1, %s20
      %p26 = scmp.ge.s32.totalorder %s25, 2
      %s27 = scalar_select %p26, 0, %s25
      %s28 = sadd.s32 1, %s19
      %s29 = scalar_select %p26, %s28, %s19
      %p30 = scmp.ge.s32.totalorder %s29, 2
      %s31 = scalar_select %p30, 0, %s29
      %s32 = ssub.s32 %s19, %s31
      %p33 = scmp.eq.s32.totalorder %s32, 0
      %s35 = sadd.s32 %s34, 1
      %s36 = scalar_select %p33, %s34, %s35
      %p39 = pneg %p33
      %p40 = scmp.eq.s32.totalorder %s12, 3
      %p41 = por %p39, %p40
      %p42 = scmp.ne.s32.totalorder %s34, %s37
      %p43 = scmp.eq.s32.totalorder %s12, 0
      %p44 = por %p42, %p43
      %p45 = scmp.ne.s32.totalorder %s34, %s37
      %p46 = scmp.eq.s32.totalorder %s17, 3
      %p47 = por %p45, %p46
      %p48 = scmp.ne.s32.totalorder %s37, %s38
      %p49 = scmp.eq.s32.totalorder %s17, 0
      %p50 = por %p48, %p49
      %p51 = scmp.ne.s32.totalorder %s37, %s38
      %p52 = scmp.eq.s32.totalorder %s18, 3
      %p53 = por %p51, %p52
      %p55 = scmp.ne.s32.totalorder %s38, %s54
      %p56 = scmp.eq.s32.totalorder %s18, 0
      %p57 = por %p55, %p56
      %s59 = sadd.s32 %s58, 1
      %p62 = scmp.eq.s32.totalorder %s12, 3
      %p63 = scmp.ne.s32.totalorder %s58, %s60
      %p64 = scmp.eq.s32.totalorder %s12, 0
      %p65 = por %p63, %p64
      %p66 = scmp.ne.s32.totalorder %s58, %s60
      %p67 = scmp.eq.s32.totalorder %s17, 3
      %p68 = por %p66, %p67
      %p69 = scmp.ne.s32.totalorder %s60, %s61
      %p70 = scmp.eq.s32.totalorder %s17, 0
      %p71 = por %p69, %p70
      %p72 = scmp.ne.s32.totalorder %s60, %s61
      %p73 = scmp.eq.s32.totalorder %s18, 3
      %p74 = por %p72, %p73
      %p76 = scmp.ne.s32.totalorder %s61, %s75
      %p77 = scmp.eq.s32.totalorder %s18, 0
      %p78 = por %p76, %p77
      %s80 = sadd.s32 %s79, 1
      %p83 = scmp.eq.s32.totalorder %s12, 3
      %p84 = scmp.ne.s32.totalorder %s79, %s81
      %p85 = scmp.eq.s32.totalorder %s12, 0
      %p86 = por %p84, %p85
      %p87 = scmp.ne.s32.totalorder %s79, %s81
      %p88 = scmp.eq.s32.totalorder %s17, 3
      %p89 = por %p87, %p88
      %p90 = scmp.ne.s32.totalorder %s81, %s82
      %p91 = scmp.eq.s32.totalorder %s17, 0
      %p92 = por %p90, %p91
      %p93 = scmp.ne.s32.totalorder %s81, %s82
      %p94 = scmp.eq.s32.totalorder %s18, 3
      %p95 = por %p93, %p94
      %p97 = scmp.ne.s32.totalorder %s82, %s96
      %p98 = scmp.eq.s32.totalorder %s18, 0
      %p99 = por %p97, %p98
      %s100 = ssub.s32 %s19, %s31
      %s101 = ssub.s32 %s20, %s27
      %s102 = sor.u32 %s100, %s101
      %p103 = scmp.eq.s32.totalorder %s102, 0
      %s105 = sadd.s32 %s104, 1
      %s106 = scalar_select %p103, %s104, %s105
      %p109 = pneg %p103
      %p110 = scmp.eq.s32.totalorder %s12, 3
      %p111 = por %p109, %p110
      %p112 = scmp.ne.s32.totalorder %s104, %s107
      %p113 = scmp.eq.s32.totalorder %s12, 0
      %p114 = por %p112, %p113
      %p115 = scmp.ne.s32.totalorder %s104, %s107
      %p116 = scmp.eq.s32.totalorder %s17, 3
      %p117 = por %p115, %p116
      %p118 = scmp.ne.s32.totalorder %s107, %s108
      %p119 = scmp.eq.s32.totalorder %s17, 0
      %p120 = por %p118, %p119
      %p121 = scmp.ne.s32.totalorder %s107, %s108
      %p122 = scmp.eq.s32.totalorder %s18, 3
      %p123 = por %p121, %p122
      %p125 = scmp.ne.s32.totalorder %s108, %s124
      %p126 = scmp.eq.s32.totalorder %s18, 0
      %p127 = por %p125, %p126
      %p128 = scmp.le.s32.totalorder 1, %s12
      %p129 = scmp.lt.s32.totalorder %s12, 5
      %p130 = pnand %p128, %p129
      %p131 = pneg %p130
      // Predicated region
      $region9: #{transform_forward.13} parent=5 // pred_check
        _
      $region10: #{transform_forward.13} parent=5 // pred_check_branch
        %133 = sbr.rel (%p130) target = $region12
      $region11: #{transform_forward.13} parent=5 // pred_region
        %s134 = ssub.s32 %s12, 1
        // Predicated region
        $region13: #{transform_forward.13} parent=11 // pred_check
          %p135 = pneg %p71
        $region14: #{transform_forward.13} parent=11 // pred_check_branch
          %137 = sbr.rel (%p135) target = $region16
        $region15: #{transform_forward.13} parent=11 // pred_region
          _
        $region16: #{transform_forward.13} parent=11 // pred_fallthru
          _
        // Predicated region
        $region17: #{transform_forward.13} parent=11 // pred_check
          %p138 = pneg %p92
        $region18: #{transform_forward.13} parent=11 // pred_check_branch
          %140 = sbr.rel (%p138) target = $region20
        $region19: #{transform_forward.13} parent=11 // pred_region
          _
        $region20: #{transform_forward.13} parent=11 // pred_fallthru
          _
      $region12: #{transform_forward.13} parent=5 // pred_fallthru
        _
      %p141 = scmp.lt.s32.totalorder %s12, 4
      // Predicated region
      $region21: #{transform_forward.13} parent=5 // pred_check
        %p142 = pneg %p141
      $region22: #{transform_forward.13} parent=5 // pred_check_branch
        %144 = sbr.rel (%p142) target = $region24
      $region23: #{transform_forward.13} parent=5 // pred_region
        // Predicated region
        $region25: #{transform_forward.13} parent=23 // pred_check
          %p145 = pneg %p44
        $region26: #{transform_forward.13} parent=23 // pred_check_branch
          %147 = sbr.rel (%p145) target = $region28
        $region27: #{transform_forward.13} parent=23 // pred_region
          %p148 = scmp.lt.s32.totalorder %s19, 1
          %s149 = scalar_select %p148, %s19, 1
          %s150 = smul.addr %s149, 36
          %s151 = smul.addr %s150, 4
          %s152 = scalar_lea.vmem %s0, %s151
        $region28: #{transform_forward.13} parent=23 // pred_fallthru
          _
      $region24: #{transform_forward.13} parent=5 // pred_fallthru
        _
      %p153 = scmp.le.s32.totalorder 1, %s12
      %p154 = scmp.lt.s32.totalorder %s12, 5
      %p155 = pnand %p153, %p154
      %p156 = pneg %p155
      // Predicated region
      $region29: #{transform_forward.13} parent=5 // pred_check
        _
      $region30: #{transform_forward.13} parent=5 // pred_check_branch
        %158 = sbr.rel (%p155) target = $region32
      $region31: #{transform_forward.13} parent=5 // pred_region
        %s159 = ssub.s32 %s12, 1
        %p160 = scmp.lt.s32.totalorder %s21, 1
        %s161 = scalar_select %p160, %s21, 1
        %s162 = smul.addr %s161, 36
        %s163 = smul.addr %s162, 4
        %s164 = scalar_lea.vmem %s0, %s163
        %p165 = pneg %p50
        %p166 = pneg %p47
        %p167 = pneg %p71
        %p168 = pneg %p68
        %p169 = pneg %p92
        %p170 = pneg %p89
        %p171 = pneg %p120
        %p172 = pneg %p117
        %s173 = sand.u32 %s107, 1
        %s174 = scalar_lea.sflag [#allocation3], %s173
        %s175 = sand.u32 %s107, 1
        %s176 = smul.addr %s175, 128
        %s177 = scalar_lea.vmem [#allocation2], %s176
        %p178 = scmp.lt.s32.totalorder %s21, 1
        %s179 = scalar_select %p178, %s21, 1
        %s180 = smul.addr %s179, 36
        %s181 = smul.addr %s180, 4
        %s182 = scalar_lea.vmem %s0, %s181
        %s183 = smul.u32 16, %s22
        %s185 = smul.u32 %s22, 128
        %s186 = sshra.s32 %s185, 3
        %s187 = sand.u32 %s185, 7
        %s188 = smul.addr %s186, 4
        %s189 = scalar_lea.vmem %s182, %s188
        %v190 = vld [vmem:[%s189] sm:$0xf]
        %v191 = vld [vmem:[%s189 + $0x4] sm:$0xf]
        %v192 = vld [vmem:[%s189 + $0x8] sm:$0xf]
        %v193 = vld [vmem:[%s189 + $0xc] sm:$0xf]
        %v194 = vld [vmem:[%s189 + $0x10] sm:$0xf]
        %v195 = vld [vmem:[%s189 + $0x14] sm:$0xf]
        %v196 = vld [vmem:[%s189 + $0x18] sm:$0xf]
        %v197 = vld [vmem:[%s189 + $0x1c] sm:$0xf]
        %v198 = vld [vmem:[%s189 + $0x20] sm:$0xf]
        %v199 = vld [vmem:[%s189 + $0x24] sm:$0xf]
        %v200 = vld [vmem:[%s189 + $0x28] sm:$0xf]
        %v201 = vld [vmem:[%s189 + $0x2c] sm:$0xf]
        %v202 = vld [vmem:[%s189 + $0x30] sm:$0xf]
        %v203 = vld [vmem:[%s189 + $0x34] sm:$0xf]
        %v204 = vld [vmem:[%s189 + $0x38] sm:$0xf]
        %v205 = vld [vmem:[%s189 + $0x3c] sm:$0xf]
        %v206 = vld [vmem:[%s1] sm:$0xf]
        %v207 = vld [vmem:[%s1 + $0x4] sm:$0xf]
        %v208 = vld [vmem:[%s1 + $0x8] sm:$0xf]
        %v209 = vld [vmem:[%s1 + $0xc] sm:$0xf]
        %v210 = vld [vmem:[%s1 + $0x10] sm:$0xf]
        %v211 = vld [vmem:[%s1 + $0x14] sm:$0xf]
        %v212 = vld [vmem:[%s1 + $0x18] sm:$0xf]
        %v213 = vld [vmem:[%s1 + $0x1c] sm:$0xf]
        %v214 = vld [vmem:[%s1 + $0x20] sm:$0xf]
        %v215 = vld [vmem:[%s1 + $0x24] sm:$0xf]
        %v216 = vld [vmem:[%s1 + $0x28] sm:$0xf]
        %v217 = vld [vmem:[%s1 + $0x2c] sm:$0xf]
        %s218 = sadd.s32 %s185, 16
        %s219 = sshra.s32 %s218, 3
        %s220 = sand.u32 %s218, 7
        %s221 = smul.addr %s219, 4
        %s222 = scalar_lea.vmem %s182, %s221
        %v223 = vld [vmem:[%s222] sm:$0xf]
        %v224 = vld [vmem:[%s222 + $0x4] sm:$0xf]
        %v225 = vld [vmem:[%s222 + $0x8] sm:$0xf]
        %v226 = vld [vmem:[%s222 + $0xc] sm:$0xf]
        %v227 = vld [vmem:[%s222 + $0x10] sm:$0xf]
        %v228 = vld [vmem:[%s222 + $0x14] sm:$0xf]
        %v229 = vld [vmem:[%s222 + $0x18] sm:$0xf]
        %v230 = vld [vmem:[%s222 + $0x1c] sm:$0xf]
        %v231 = vld [vmem:[%s222 + $0x20] sm:$0xf]
        %v232 = vld [vmem:[%s222 + $0x24] sm:$0xf]
        %v233 = vld [vmem:[%s222 + $0x28] sm:$0xf]
        %v234 = vld [vmem:[%s222 + $0x2c] sm:$0xf]
        %v235 = vld [vmem:[%s222 + $0x30] sm:$0xf]
        %v236 = vld [vmem:[%s222 + $0x34] sm:$0xf]
        %v237 = vld [vmem:[%s222 + $0x38] sm:$0xf]
        %v238 = vld [vmem:[%s222 + $0x3c] sm:$0xf]
        %s239 = scalar_lea.vmem %s1, 48
        %v240 = vld [vmem:[%s239] sm:$0xf]
        %v241 = vld [vmem:[%s239 + $0x4] sm:$0xf]
        %v242 = vld [vmem:[%s239 + $0x8] sm:$0xf]
        %v243 = vld [vmem:[%s239 + $0xc] sm:$0xf]
        %v244 = vld [vmem:[%s239 + $0x10] sm:$0xf]
        %v245 = vld [vmem:[%s239 + $0x14] sm:$0xf]
        %v246 = vld [vmem:[%s239 + $0x18] sm:$0xf]
        %v247 = vld [vmem:[%s239 + $0x1c] sm:$0xf]
        %v248 = vld [vmem:[%s239 + $0x20] sm:$0xf]
        %v249 = vld [vmem:[%s239 + $0x24] sm:$0xf]
        %v250 = vld [vmem:[%s239 + $0x28] sm:$0xf]
        %v251 = vld [vmem:[%s239 + $0x2c] sm:$0xf]
        %v268 = vunpack.c.l.b16 %v223
        %v269 = vunpack.c.l.b16 %v224
        %v270 = vunpack.c.l.b16 %v225
        %v271 = vunpack.c.l.b16 %v226
        %v272 = vunpack.c.l.b16 %v227
        %v273 = vunpack.c.l.b16 %v228
        %v274 = vunpack.c.l.b16 %v229
        %v275 = vunpack.c.l.b16 %v230
        %v276 = vunpack.c.l.b16 %v231
        %v277 = vunpack.c.l.b16 %v232
        %v278 = vunpack.c.l.b16 %v233
        %v279 = vunpack.c.l.b16 %v234
        %v280 = vunpack.c.l.b16 %v235
        %v281 = vunpack.c.l.b16 %v236
        %v282 = vunpack.c.l.b16 %v237
        %v283 = vunpack.c.l.b16 %v238
        %v284 = vpack.c.b16 %v269, %v268
        %v285 = vpack.c.b16 %v271, %v270
        %v286 = vpack.c.b16 %v273, %v272
        %v287 = vpack.c.b16 %v275, %v274
        %v288 = vpack.c.b16 %v277, %v276
        %v289 = vpack.c.b16 %v279, %v278
        %v290 = vpack.c.b16 %v281, %v280
        %v291 = vpack.c.b16 %v283, %v282
        %v304 = vunpack.c.l.b16 %v240
        %v305 = vunpack.c.l.b16 %v241
        %v306 = vunpack.c.l.b16 %v242
        %v307 = vunpack.c.l.b16 %v243
        %v308 = vunpack.c.l.b16 %v244
        %v309 = vunpack.c.l.b16 %v245
        %v310 = vunpack.c.l.b16 %v246
        %v311 = vunpack.c.l.b16 %v247
        %v312 = vunpack.c.l.b16 %v248
        %v313 = vunpack.c.l.b16 %v249
        %v314 = vunpack.c.l.b16 %v250
        %v315 = vunpack.c.l.b16 %v251
        %v316 = vpack.c.b16 %v305, %v304
        %v317 = vpack.c.b16 %v307, %v306
        %v318 = vpack.c.b16 %v309, %v308
        %v319 = vpack.c.b16 %v311, %v310
        %v320 = vpack.c.b16 %v313, %v312
        %v321 = vpack.c.b16 %v315, %v314
        %vm328 = vcmask 785408
        %v330 = vsel %vm328, %v284, 0
        %v333 = vsel %vm328, %v285, 0
        %v336 = vsel %vm328, %v286, 0
        %v339 = vsel %vm328, %v287, 0
        %v342 = vsel %vm328, %v288, 0
        %v345 = vsel %vm328, %v289, 0
        %v348 = vsel %vm328, %v290, 0
        %v351 = vsel %vm328, %v291, 0
        %353 = vmatprep.subr.bf16.mxu0 0
        %354 = vmatpush1.bf16.msra.mxu0 %v316
        %355 = vmatprep.subr.bf16.mxu0 0
        %356 = vmatpush1.bf16.msra.mxu0 %v317
        %357 = vmatprep.subr.bf16.mxu0 0
        %358 = vmatpush1.bf16.msra.mxu0 %v318
        %359 = vmatprep.subr.bf16.mxu0 0
        %360 = vmatpush1.bf16.msra.mxu0 %v319
        %361 = vmatprep.subr.bf16.mxu0 0
        %362 = vmatpush1.bf16.msra.mxu0 %v320
        %363 = vmatprep.subr.bf16.mxu0 0
        %364 = vmatpush1.bf16.msra.mxu0 %v321
        %365 = vmatprep.subr.bf16.mxu0 0
        %366 = vmatpush1.bf16.msra.mxu0 0
        %367 = vmatprep.subr.bf16.mxu0 0
        %368 = vmatpush1.bf16.msra.mxu0 0
        %369 = vmatprep.subr.bf16.mxu0 0
        %370 = vmatpush1.bf16.msra.mxu0 0
        %371 = vmatprep.subr.bf16.mxu0 0
        %372 = vmatpush1.bf16.msra.mxu0 0
        %373 = vmatprep.subr.bf16.mxu0 0
        %374 = vmatpush1.bf16.msra.mxu0 0
        %375 = vmatprep.subr.bf16.mxu0 0
        %376 = vmatpush1.bf16.msra.mxu0 0
        %377 = vmatprep.subr.bf16.mxu0 0
        %378 = vmatpush1.bf16.msra.mxu0 0
        %379 = vmatprep.subr.bf16.mxu0 0
        %380 = vmatpush1.bf16.msra.mxu0 0
        %381 = vmatprep.subr.bf16.mxu0 0
        %382 = vmatpush1.bf16.msra.mxu0 0
        %383 = vmatprep.subr.bf16.mxu0 0
        %384 = vmatpush1.bf16.msra.mxu0 0
        %385 = vmatprep.mubr.bf16.mxu0 0
        %386 = vmatmul.mubr.bf16.gmra.mrb[0].mxu0 %v330
        %v387 = vpop.f32.mrb[0].mxu0
        %v388 = vadd.f32 0.0, %v387
        %v389 = vpop.f32.mrb[0].mxu0
        %v390 = vpop.f32.mrb[0].mxu0
        %v391 = vadd.f32 0.0, %v390
        %v392 = vpop.f32.mrb[0].mxu0
        %393 = vmatprep.mubr.bf16.mxu0 0
        %394 = vmatmul.mubr.bf16.gmra.mrb[0].mxu0 %v333
        %v395 = vpop.f32.mrb[0].mxu0
        %v396 = vadd.f32 0.0, %v395
        %v397 = vpop.f32.mrb[0].mxu0
        %v398 = vpop.f32.mrb[0].mxu0
        %v399 = vadd.f32 0.0, %v398
        %v400 = vpop.f32.mrb[0].mxu0
        %401 = vmatprep.mubr.bf16.mxu0 0
        %402 = vmatmul.mubr.bf16.gmra.mrb[0].mxu0 %v336
        %v403 = vpop.f32.mrb[0].mxu0
        %v404 = vadd.f32 0.0, %v403
        %v405 = vpop.f32.mrb[0].mxu0
        %v406 = vpop.f32.mrb[0].mxu0
        %v407 = vadd.f32 0.0, %v406
        %v408 = vpop.f32.mrb[0].mxu0
        %409 = vmatprep.mubr.bf16.mxu0 0
        %410 = vmatmul.mubr.bf16.gmra.mrb[0].mxu0 %v339
        %v411 = vpop.f32.mrb[0].mxu0
        %v412 = vadd.f32 0.0, %v411
        %v413 = vpop.f32.mrb[0].mxu0
        %v414 = vpop.f32.mrb[0].mxu0
        %v415 = vadd.f32 0.0, %v414
        %v416 = vpop.f32.mrb[0].mxu0
        %417 = vmatprep.mubr.bf16.mxu0 0
        %418 = vmatmul.mubr.bf16.gmra.mrb[0].mxu0 %v342
        %v419 = vpop.f32.mrb[0].mxu0
        %v420 = vadd.f32 0.0, %v419
        %v421 = vpop.f32.mrb[0].mxu0
        %v422 = vpop.f32.mrb[0].mxu0
        %v423 = vadd.f32 0.0, %v422
        %v424 = vpop.f32.mrb[0].mxu0
        %425 = vmatprep.mubr.bf16.mxu0 0
        %426 = vmatmul.mubr.bf16.gmra.mrb[0].mxu0 %v345
        %v427 = vpop.f32.mrb[0].mxu0
        %v428 = vadd.f32 0.0, %v427
        %v429 = vpop.f32.mrb[0].mxu0
        %v430 = vpop.f32.mrb[0].mxu0
        %v431 = vadd.f32 0.0, %v430
        %v432 = vpop.f32.mrb[0].mxu0
        %433 = vmatprep.mubr.bf16.mxu0 0
        %434 = vmatmul.mubr.bf16.gmra.mrb[0].mxu0 %v348
        %v435 = vpop.f32.mrb[0].mxu0
        %v436 = vadd.f32 0.0, %v435
        %v437 = vpop.f32.mrb[0].mxu0
        %v438 = vpop.f32.mrb[0].mxu0
        %v439 = vadd.f32 0.0, %v438
        %v440 = vpop.f32.mrb[0].mxu0
        %441 = vmatprep.mubr.bf16.mxu0 0
        %442 = vmatmul.mubr.bf16.gmra.mrb[0].mxu0 %v351
        %v443 = vpop.f32.mrb[0].mxu0
        %v444 = vadd.f32 0.0, %v443
        %v445 = vpop.f32.mrb[0].mxu0
        %v446 = vpop.f32.mrb[0].mxu0
        %v447 = vadd.f32 0.0, %v446
        %v448 = vpop.f32.mrb[0].mxu0
        %449 = vdwg.mxu0
        %v466 = vunpack.c.l.b16 %v190
        %v467 = vunpack.c.l.b16 %v191
        %v468 = vunpack.c.l.b16 %v192
        %v469 = vunpack.c.l.b16 %v193
        %v470 = vunpack.c.l.b16 %v194
        %v471 = vunpack.c.l.b16 %v195
        %v472 = vunpack.c.l.b16 %v196
        %v473 = vunpack.c.l.b16 %v197
        %v474 = vunpack.c.l.b16 %v198
        %v475 = vunpack.c.l.b16 %v199
        %v476 = vunpack.c.l.b16 %v200
        %v477 = vunpack.c.l.b16 %v201
        %v478 = vunpack.c.l.b16 %v202
        %v479 = vunpack.c.l.b16 %v203
        %v480 = vunpack.c.l.b16 %v204
        %v481 = vunpack.c.l.b16 %v205
        %v482 = vpack.c.b16 %v467, %v466
        %v483 = vpack.c.b16 %v469, %v468
        %v484 = vpack.c.b16 %v471, %v470
        %v485 = vpack.c.b16 %v473, %v472
        %v486 = vpack.c.b16 %v475, %v474
        %v487 = vpack.c.b16 %v477, %v476
        %v488 = vpack.c.b16 %v479, %v478
        %v489 = vpack.c.b16 %v481, %v480
        %v502 = vunpack.c.l.b16 %v206
        %v503 = vunpack.c.l.b16 %v207
        %v504 = vunpack.c.l.b16 %v208
        %v505 = vunpack.c.l.b16 %v209
        %v506 = vunpack.c.l.b16 %v210
        %v507 = vunpack.c.l.b16 %v211
        %v508 = vunpack.c.l.b16 %v212
        %v509 = vunpack.c.l.b16 %v213
        %v510 = vunpack.c.l.b16 %v214
        %v511 = vunpack.c.l.b16 %v215
        %v512 = vunpack.c.l.b16 %v216
        %v513 = vunpack.c.l.b16 %v217
        %v514 = vpack.c.b16 %v503, %v502
        %v515 = vpack.c.b16 %v505, %v504
        %v516 = vpack.c.b16 %v507, %v506
        %v517 = vpack.c.b16 %v509, %v508
        %v518 = vpack.c.b16 %v511, %v510
        %v519 = vpack.c.b16 %v513, %v512
        %v527 = vsel %vm328, %v482, 0
        %v530 = vsel %vm328, %v483, 0
        %v533 = vsel %vm328, %v484, 0
        %v536 = vsel %vm328, %v485, 0
        %v539 = vsel %vm328, %v486, 0
        %v542 = vsel %vm328, %v487, 0
        %v545 = vsel %vm328, %v488, 0
        %v548 = vsel %vm328, %v489, 0
        %550 = vmatprep.subr.bf16.mxu0 0
        %551 = vmatpush1.bf16.msra.mxu0 %v514
        %552 = vmatprep.subr.bf16.mxu0 0
        %553 = vmatpush1.bf16.msra.mxu0 %v515
        %554 = vmatprep.subr.bf16.mxu0 0
        %555 = vmatpush1.bf16.msra.mxu0 %v516
        %556 = vmatprep.subr.bf16.mxu0 0
        %557 = vmatpush1.bf16.msra.mxu0 %v517
        %558 = vmatprep.subr.bf16.mxu0 0
        %559 = vmatpush1.bf16.msra.mxu0 %v518
        %560 = vmatprep.subr.bf16.mxu0 0
        %561 = vmatpush1.bf16.msra.mxu0 %v519
        %562 = vmatprep.subr.bf16.mxu0 0
        %563 = vmatpush1.bf16.msra.mxu0 0
        %564 = vmatprep.subr.bf16.mxu0 0
        %565 = vmatpush1.bf16.msra.mxu0 0
        %566 = vmatprep.subr.bf16.mxu0 0
        %567 = vmatpush1.bf16.msra.mxu0 0
        %568 = vmatprep.subr.bf16.mxu0 0
        %569 = vmatpush1.bf16.msra.mxu0 0
        %570 = vmatprep.subr.bf16.mxu0 0
        %571 = vmatpush1.bf16.msra.mxu0 0
        %572 = vmatprep.subr.bf16.mxu0 0
        %573 = vmatpush1.bf16.msra.mxu0 0
        %574 = vmatprep.subr.bf16.mxu0 0
        %575 = vmatpush1.bf16.msra.mxu0 0
        %576 = vmatprep.subr.bf16.mxu0 0
        %577 = vmatpush1.bf16.msra.mxu0 0
        %578 = vmatprep.subr.bf16.mxu0 0
        %579 = vmatpush1.bf16.msra.mxu0 0
        %580 = vmatprep.subr.bf16.mxu0 0
        %581 = vmatpush1.bf16.msra.mxu0 0
        %582 = vmatprep.mubr.bf16.mxu0 0
        %583 = vmatmul.mubr.bf16.gmra.mrb[0].mxu0 %v527
        %v584 = vpop.f32.mrb[0].mxu0
        %v585 = vadd.f32 %v388, %v584
        %v586 = vpop.f32.mrb[0].mxu0
        %v587 = vpop.f32.mrb[0].mxu0
        %v588 = vadd.f32 %v391, %v587
        %v589 = vpop.f32.mrb[0].mxu0
        %590 = vmatprep.mubr.bf16.mxu0 0
        %591 = vmatmul.mubr.bf16.gmra.mrb[0].mxu0 %v530
        %v592 = vpop.f32.mrb[0].mxu0
        %v593 = vadd.f32 %v396, %v592
        %v594 = vpop.f32.mrb[0].mxu0
        %v595 = vpop.f32.mrb[0].mxu0
        %v596 = vadd.f32 %v399, %v595
        %v597 = vpop.f32.mrb[0].mxu0
        %598 = vmatprep.mubr.bf16.mxu0 0
        %599 = vmatmul.mubr.bf16.gmra.mrb[0].mxu0 %v533
        %v600 = vpop.f32.mrb[0].mxu0
        %v601 = vadd.f32 %v404, %v600
        %v602 = vpop.f32.mrb[0].mxu0
        %v603 = vpop.f32.mrb[0].mxu0
        %v604 = vadd.f32 %v407, %v603
        %v605 = vpop.f32.mrb[0].mxu0
        %606 = vmatprep.mubr.bf16.mxu0 0
        %607 = vmatmul.mubr.bf16.gmra.mrb[0].mxu0 %v536
        %v608 = vpop.f32.mrb[0].mxu0
        %v609 = vadd.f32 %v412, %v608
        %v610 = vpop.f32.mrb[0].mxu0
        %v611 = vpop.f32.mrb[0].mxu0
        %v612 = vadd.f32 %v415, %v611
        %v613 = vpop.f32.mrb[0].mxu0
        %614 = vmatprep.mubr.bf16.mxu0 0
        %615 = vmatmul.mubr.bf16.gmra.mrb[0].mxu0 %v539
        %v616 = vpop.f32.mrb[0].mxu0
        %v617 = vadd.f32 %v420, %v616
        %v618 = vpop.f32.mrb[0].mxu0
        %v619 = vpop.f32.mrb[0].mxu0
        %v620 = vadd.f32 %v423, %v619
        %v621 = vpop.f32.mrb[0].mxu0
        %622 = vmatprep.mubr.bf16.mxu0 0
        %623 = vmatmul.mubr.bf16.gmra.mrb[0].mxu0 %v542
        %v624 = vpop.f32.mrb[0].mxu0
        %v625 = vadd.f32 %v428, %v624
        %v626 = vpop.f32.mrb[0].mxu0
        %v627 = vpop.f32.mrb[0].mxu0
        %v628 = vadd.f32 %v431, %v627
        %v629 = vpop.f32.mrb[0].mxu0
        %630 = vmatprep.mubr.bf16.mxu0 0
        %631 = vmatmul.mubr.bf16.gmra.mrb[0].mxu0 %v545
        %v632 = vpop.f32.mrb[0].mxu0
        %v633 = vadd.f32 %v436, %v632
        %v634 = vpop.f32.mrb[0].mxu0
        %v635 = vpop.f32.mrb[0].mxu0
        %v636 = vadd.f32 %v439, %v635
        %v637 = vpop.f32.mrb[0].mxu0
        %638 = vmatprep.mubr.bf16.mxu0 0
        %639 = vmatmul.mubr.bf16.gmra.mrb[0].mxu0 %v548
        %v640 = vpop.f32.mrb[0].mxu0
        %v641 = vadd.f32 %v444, %v640
        %v642 = vpop.f32.mrb[0].mxu0
        %v643 = vpop.f32.mrb[0].mxu0
        %v644 = vadd.f32 %v447, %v643
        %v645 = vpop.f32.mrb[0].mxu0
        %646 = vdwg.mxu0
        %s647 = sadd.s32 %s185, 32
        %s648 = sshra.s32 %s647, 3
        %s649 = sand.u32 %s647, 7
        %s650 = smul.addr %s648, 4
        %s651 = scalar_lea.vmem %s182, %s650
        %v652 = vld [vmem:[%s651] sm:$0xf]
        %v653 = vld [vmem:[%s651 + $0x4] sm:$0xf]
        %v654 = vld [vmem:[%s651 + $0x8] sm:$0xf]
        %v655 = vld [vmem:[%s651 + $0xc] sm:$0xf]
        %v656 = vld [vmem:[%s651 + $0x10] sm:$0xf]
        %v657 = vld [vmem:[%s651 + $0x14] sm:$0xf]
        %v658 = vld [vmem:[%s651 + $0x18] sm:$0xf]
        %v659 = vld [vmem:[%s651 + $0x1c] sm:$0xf]
        %v660 = vld [vmem:[%s651 + $0x20] sm:$0xf]
        %v661 = vld [vmem:[%s651 + $0x24] sm:$0xf]
        %v662 = vld [vmem:[%s651 + $0x28] sm:$0xf]
        %v663 = vld [vmem:[%s651 + $0x2c] sm:$0xf]
        %v664 = vld [vmem:[%s651 + $0x30] sm:$0xf]
        %v665 = vld [vmem:[%s651 + $0x34] sm:$0xf]
        %v666 = vld [vmem:[%s651 + $0x38] sm:$0xf]
        %v667 = vld [vmem:[%s651 + $0x3c] sm:$0xf]
        %s668 = scalar_lea.vmem %s1, 96
        %v669 = vld [vmem:[%s668] sm:$0xf]
        %v670 = vld [vmem:[%s668 + $0x4] sm:$0xf]
        %v671 = vld [vmem:[%s668 + $0x8] sm:$0xf]
        %v672 = vld [vmem:[%s668 + $0xc] sm:$0xf]
        %v673 = vld [vmem:[%s668 + $0x10] sm:$0xf]
        %v674 = vld [vmem:[%s668 + $0x14] sm:$0xf]
        %v675 = vld [vmem:[%s668 + $0x18] sm:$0xf]
        %v676 = vld [vmem:[%s668 + $0x1c] sm:$0xf]
        %v677 = vld [vmem:[%s668 + $0x20] sm:$0xf]
        %v678 = vld [vmem:[%s668 + $0x24] sm:$0xf]
        %v679 = vld [vmem:[%s668 + $0x28] sm:$0xf]
        %v680 = vld [vmem:[%s668 + $0x2c] sm:$0xf]
        %v697 = vunpack.c.l.b16 %v652
        %v698 = vunpack.c.l.b16 %v653
        %v699 = vunpack.c.l.b16 %v654
        %v700 = vunpack.c.l.b16 %v655
        %v701 = vunpack.c.l.b16 %v656
        %v702 = vunpack.c.l.b16 %v657
        %v703 = vunpack.c.l.b16 %v658
        %v704 = vunpack.c.l.b16 %v659
        %v705 = vunpack.c.l.b16 %v660
        %v706 = vunpack.c.l.b16 %v661
        %v707 = vunpack.c.l.b16 %v662
        %v708 = vunpack.c.l.b16 %v663
        %v709 = vunpack.c.l.b16 %v664
        %v710 = vunpack.c.l.b16 %v665
        %v711 = vunpack.c.l.b16 %v666
        %v712 = vunpack.c.l.b16 %v667
        %v713 = vpack.c.b16 %v698, %v697
        %v714 = vpack.c.b16 %v700, %v699
        %v715 = vpack.c.b16 %v702, %v701
        %v716 = vpack.c.b16 %v704, %v703
        %v717 = vpack.c.b16 %v706, %v705
        %v718 = vpack.c.b16 %v708, %v707
        %v719 = vpack.c.b16 %v710, %v709
        %v720 = vpack.c.b16 %v712, %v711
        %v733 = vunpack.c.l.b16 %v669
        %v734 = vunpack.c.l.b16 %v670
        %v735 = vunpack.c.l.b16 %v671
        %v736 = vunpack.c.l.b16 %v672
        %v737 = vunpack.c.l.b16 %v673
        %v738 = vunpack.c.l.b16 %v674
        %v739 = vunpack.c.l.b16 %v675
        %v740 = vunpack.c.l.b16 %v676
        %v741 = vunpack.c.l.b16 %v677
        %v742 = vunpack.c.l.b16 %v678
        %v743 = vunpack.c.l.b16 %v679
        %v744 = vunpack.c.l.b16 %v680
        %v745 = vpack.c.b16 %v734, %v733
        %v746 = vpack.c.b16 %v736, %v735
        %v747 = vpack.c.b16 %v738, %v737
        %v748 = vpack.c.b16 %v740, %v739
        %v749 = vpack.c.b16 %v742, %v741
        %v750 = vpack.c.b16 %v744, %v743
        %v758 = vsel %vm328, %v713, 0
        %v761 = vsel %vm328, %v714, 0
        %v764 = vsel %vm328, %v715, 0
        %v767 = vsel %vm328, %v716, 0
        %v770 = vsel %vm328, %v717, 0
        %v773 = vsel %vm328, %v718, 0
        %v776 = vsel %vm328, %v719, 0
        %v779 = vsel %vm328, %v720, 0
        %781 = vmatprep.subr.bf16.mxu0 0
        %782 = vmatpush1.bf16.msra.mxu0 %v745
        %783 = vmatprep.subr.bf16.mxu0 0
        %784 = vmatpush1.bf16.msra.mxu0 %v746
        %785 = vmatprep.subr.bf16.mxu0 0
        %786 = vmatpush1.bf16.msra.mxu0 %v747
        %787 = vmatprep.subr.bf16.mxu0 0
        %788 = vmatpush1.bf16.msra.mxu0 %v748
        %789 = vmatprep.subr.bf16.mxu0 0
        %790 = vmatpush1.bf16.msra.mxu0 %v749
        %791 = vmatprep.subr.bf16.mxu0 0
        %792 = vmatpush1.bf16.msra.mxu0 %v750
        %793 = vmatprep.subr.bf16.mxu0 0
        %794 = vmatpush1.bf16.msra.mxu0 0
        %795 = vmatprep.subr.bf16.mxu0 0
        %796 = vmatpush1.bf16.msra.mxu0 0
        %797 = vmatprep.subr.bf16.mxu0 0
        %798 = vmatpush1.bf16.msra.mxu0 0
        %799 = vmatprep.subr.bf16.mxu0 0
        %800 = vmatpush1.bf16.msra.mxu0 0
        %801 = vmatprep.subr.bf16.mxu0 0
        %802 = vmatpush1.bf16.msra.mxu0 0
        %803 = vmatprep.subr.bf16.mxu0 0
        %804 = vmatpush1.bf16.msra.mxu0 0
        %805 = vmatprep.subr.bf16.mxu0 0
        %806 = vmatpush1.bf16.msra.mxu0 0
        %807 = vmatprep.subr.bf16.mxu0 0
        %808 = vmatpush1.bf16.msra.mxu0 0
        %809 = vmatprep.subr.bf16.mxu0 0
        %810 = vmatpush1.bf16.msra.mxu0 0
        %811 = vmatprep.subr.bf16.mxu0 0
        %812 = vmatpush1.bf16.msra.mxu0 0
        %813 = vmatprep.mubr.bf16.mxu0 0
        %814 = vmatmul.mubr.bf16.gmra.mrb[0].mxu0 %v758
        %v815 = vpop.f32.mrb[0].mxu0
        %v816 = vadd.f32 0.0, %v815
        %v817 = vpop.f32.mrb[0].mxu0
        %v818 = vpop.f32.mrb[0].mxu0
        %v819 = vadd.f32 0.0, %v818
        %v820 = vpop.f32.mrb[0].mxu0
        %821 = vmatprep.mubr.bf16.mxu0 0
        %822 = vmatmul.mubr.bf16.gmra.mrb[0].mxu0 %v761
        %v823 = vpop.f32.mrb[0].mxu0
        %v824 = vadd.f32 0.0, %v823
        %v825 = vpop.f32.mrb[0].mxu0
        %v826 = vpop.f32.mrb[0].mxu0
        %v827 = vadd.f32 0.0, %v826
        %v828 = vpop.f32.mrb[0].mxu0
        %829 = vmatprep.mubr.bf16.mxu0 0
        %830 = vmatmul.mubr.bf16.gmra.mrb[0].mxu0 %v764
        %v831 = vpop.f32.mrb[0].mxu0
        %v832 = vadd.f32 0.0, %v831
        %v833 = vpop.f32.mrb[0].mxu0
        %v834 = vpop.f32.mrb[0].mxu0
        %v835 = vadd.f32 0.0, %v834
        %v836 = vpop.f32.mrb[0].mxu0
        %837 = vmatprep.mubr.bf16.mxu0 0
        %838 = vmatmul.mubr.bf16.gmra.mrb[0].mxu0 %v767
        %v839 = vpop.f32.mrb[0].mxu0
        %v840 = vadd.f32 0.0, %v839
        %v841 = vpop.f32.mrb[0].mxu0
        %v842 = vpop.f32.mrb[0].mxu0
        %v843 = vadd.f32 0.0, %v842
        %v844 = vpop.f32.mrb[0].mxu0
        %845 = vmatprep.mubr.bf16.mxu0 0
        %846 = vmatmul.mubr.bf16.gmra.mrb[0].mxu0 %v770
        %v847 = vpop.f32.mrb[0].mxu0
        %v848 = vadd.f32 0.0, %v847
        %v849 = vpop.f32.mrb[0].mxu0
        %v850 = vpop.f32.mrb[0].mxu0
        %v851 = vadd.f32 0.0, %v850
        %v852 = vpop.f32.mrb[0].mxu0
        %853 = vmatprep.mubr.bf16.mxu0 0
        %854 = vmatmul.mubr.bf16.gmra.mrb[0].mxu0 %v773
        %v855 = vpop.f32.mrb[0].mxu0
        %v856 = vadd.f32 0.0, %v855
        %v857 = vpop.f32.mrb[0].mxu0
        %v858 = vpop.f32.mrb[0].mxu0
        %v859 = vadd.f32 0.0, %v858
        %v860 = vpop.f32.mrb[0].mxu0
        %861 = vmatprep.mubr.bf16.mxu0 0
        %862 = vmatmul.mubr.bf16.gmra.mrb[0].mxu0 %v776
        %v863 = vpop.f32.mrb[0].mxu0
        %v864 = vadd.f32 0.0, %v863
        %v865 = vpop.f32.mrb[0].mxu0
        %v866 = vpop.f32.mrb[0].mxu0
        %v867 = vadd.f32 0.0, %v866
        %v868 = vpop.f32.mrb[0].mxu0
        %869 = vmatprep.mubr.bf16.mxu0 0
        %870 = vmatmul.mubr.bf16.gmra.mrb[0].mxu0 %v779
        %v871 = vpop.f32.mrb[0].mxu0
        %v872 = vadd.f32 0.0, %v871
        %v873 = vpop.f32.mrb[0].mxu0
        %v874 = vpop.f32.mrb[0].mxu0
        %v875 = vadd.f32 0.0, %v874
        %v876 = vpop.f32.mrb[0].mxu0
        %877 = vdwg.mxu0
        %v878 = vadd.f32 %v585, %v816
        %v879 = vadd.f32 %v588, %v819
        %v880 = vadd.f32 %v593, %v824
        %v881 = vadd.f32 %v596, %v827
        %v882 = vadd.f32 %v601, %v832
        %v883 = vadd.f32 %v604, %v835
        %v884 = vadd.f32 %v609, %v840
        %v885 = vadd.f32 %v612, %v843
        %v886 = vadd.f32 %v617, %v848
        %v887 = vadd.f32 %v620, %v851
        %v888 = vadd.f32 %v625, %v856
        %v889 = vadd.f32 %v628, %v859
        %v890 = vadd.f32 %v633, %v864
        %v891 = vadd.f32 %v636, %v867
        %v892 = vadd.f32 %v641, %v872
        %v893 = vadd.f32 %v644, %v875
        %v894 = vld [vmem:[%s2] sm:$0x1]
        %v896 = vlaneseq
        %v897 = vshrl.u32 %v896, 7
        %v898 = vsub.s32 0, %v897
        %v899 = vrot.slane %v894, %v898
        %v901 = vadd.f32 %v878, %v899
        %v902 = vadd.f32 %v879, %v899
        %v903 = vadd.f32 %v880, %v899
        %v904 = vadd.f32 %v881, %v899
        %v905 = vadd.f32 %v882, %v899
        %v906 = vadd.f32 %v883, %v899
        %v907 = vadd.f32 %v884, %v899
        %v908 = vadd.f32 %v885, %v899
        %v909 = vadd.f32 %v886, %v899
        %v910 = vadd.f32 %v887, %v899
        %v911 = vadd.f32 %v888, %v899
        %v912 = vadd.f32 %v889, %v899
        %v913 = vadd.f32 %v890, %v899
        %v914 = vadd.f32 %v891, %v899
        %v915 = vadd.f32 %v892, %v899
        %v916 = vadd.f32 %v893, %v899
        %vm917 = vcmask 261120
        %918 = vst.msk [vmem:[%s177] sm:$0xff] %vm917, %v901
        %919 = vst.msk [vmem:[%s177 + $0x8] sm:$0xff] %vm917, %v902
        %920 = vst.msk [vmem:[%s177 + $0x10] sm:$0xff] %vm917, %v903
        %921 = vst.msk [vmem:[%s177 + $0x18] sm:$0xff] %vm917, %v904
        %922 = vst.msk [vmem:[%s177 + $0x20] sm:$0xff] %vm917, %v905
        %923 = vst.msk [vmem:[%s177 + $0x28] sm:$0xff] %vm917, %v906
        %924 = vst.msk [vmem:[%s177 + $0x30] sm:$0xff] %vm917, %v907
        %925 = vst.msk [vmem:[%s177 + $0x38] sm:$0xff] %vm917, %v908
        %926 = vst.msk [vmem:[%s177 + $0x40] sm:$0xff] %vm917, %v909
        %927 = vst.msk [vmem:[%s177 + $0x48] sm:$0xff] %vm917, %v910
        %928 = vst.msk [vmem:[%s177 + $0x50] sm:$0xff] %vm917, %v911
        %929 = vst.msk [vmem:[%s177 + $0x58] sm:$0xff] %vm917, %v912
        %930 = vst.msk [vmem:[%s177 + $0x60] sm:$0xff] %vm917, %v913
        %931 = vst.msk [vmem:[%s177 + $0x68] sm:$0xff] %vm917, %v914
        %932 = vst.msk [vmem:[%s177 + $0x70] sm:$0xff] %vm917, %v915
        %933 = vst.msk [vmem:[%s177 + $0x78] sm:$0xff] %vm917, %v916
        %s934 = sand.u32 %s107, 1
        %s935 = scalar_lea.sflag [#allocation3], %s934
        %s936 = sand.u32 %s107, 1
        %s937 = smul.addr %s936, 128
        %s938 = scalar_lea.vmem [#allocation2], %s937
        // Predicated region
        $region33: #{transform_forward.13} parent=31 // pred_check
          %p939 = pneg %p117
        $region34: #{transform_forward.13} parent=31 // pred_check_branch
          %941 = sbr.rel (%p939) target = $region36
        $region35: #{transform_forward.13} parent=31 // pred_region
          %s942 = smul.u32 16, %s22
          %s944 = ssub.s32 2048, 2048
          %945 = vsyncadd %s935, %s944
          %s946 = smul.addr %s21, 32
          %s947 = sadd.s32 %s942, %s946
          %s948 = smul.addr %s947, 128
          %s949 = scalar_lea.hbm %s3, %s948
          %s950 = sshll.u32 %s938, 4
          %s951 = int_to_ptr.vmem [resolvable:$true] %s950
          %956 = dma.vmem_to_hbm [thread:$0]  %s951, 2048, %s949, %s935, 128, 128, 8
        $region36: #{transform_forward.13} parent=31 // pred_fallthru
          _
      $region32: #{transform_forward.13} parent=5 // pred_fallthru
        _
      %p957 = scmp.le.s32.totalorder 2, %s12
      // Predicated region
      $region37: #{transform_forward.13} parent=5 // pred_check
        %p958 = pneg %p957
      $region38: #{transform_forward.13} parent=5 // pred_check_branch
        %960 = sbr.rel (%p958) target = $region40
      $region39: #{transform_forward.13} parent=5 // pred_region
        %s961 = ssub.s32 %s12, 2
        // Predicated region
        $region41: #{transform_forward.13} parent=39 // pred_check
          %p962 = pneg %p123
        $region42: #{transform_forward.13} parent=39 // pred_check_branch
          %964 = sbr.rel (%p962) target = $region44
        $region43: #{transform_forward.13} parent=39 // pred_region
          %s965 = sand.u32 %s108, 1
          %s966 = scalar_lea.sflag [#allocation3], %s965
          %s967 = sand.u32 %s108, 1
          %s968 = smul.addr %s967, 128
          %s969 = scalar_lea.vmem [#allocation2], %s968
          %970 = dma.done %s966, 2048
        $region44: #{transform_forward.13} parent=39 // pred_fallthru
          _
      $region40: #{transform_forward.13} parent=5 // pred_fallthru
        _
    $region6: #{transform_forward.13} parent=1 // loop_footer
      %s16 = sadd.s32 1, %s12
    $region7: #{transform_forward.13} parent=1 // loop_footer_branch
      %11 = sbr.rel target = $region3
    $region8: #{transform_forward.13} parent=1 // loop_exit
      _
    %971 = vsyncpa [#allocation3], 1
    %s972 = scalar_lea.sflag [#allocation3], 1
    %973 = vsyncpa %s972, 1

</llo_original>
